<compile_context>
chip_gen: v5e
topology: v5e:2x2
jax: 0.10.0
libtpu: 0.0.40
codegen_flags: <defaults>
</compile_context>

<pallas_src>
import functools

import jax
import jax.numpy as jnp
from jax.experimental import pallas as pl
from jax.experimental.pallas import tpu as pltpu

_EPS = 1e-5
_ALPHA = 0.2


def _vmem_limit_bytes():
    # ~75% of physical VMEM (v5e/v6e: 128 MiB, v7x: 64 MiB); conservative fallback.
    try:
        cap = int(pltpu.get_tpu_info().vmem_capacity_bytes)
        return max(32 << 20, min(cap * 3 // 4, 100 << 20))
    except Exception:
        return 48 << 20


_VMEM_LIMIT = _vmem_limit_bytes()


def _pick_tile(dim, targets):
    for t in targets:
        if t <= dim and dim % t == 0:
            return t
    return dim


def _pick_parallel_tile(dim, targets=(512, 256, 128)):
    # Prefer a tile yielding >=2 blocks so the "parallel" axis can be split
    # across TensorCores on v7x; fall back to a single full-dim block.
    for t in targets:
        if 2 * t <= dim and dim % t == 0:
            return t
    for t in targets:
        if t <= dim and dim % t == 0:
            return t
    return dim


# ----------------------------------------------------------------------------
# Kernel 1: tiled  Y = LeakyReLU(BN?(X @ W + b))   (used for conv1 / conv2)
# ----------------------------------------------------------------------------
def _mm_bias_act_kernel(x_ref, w_ref, b_ref, o_ref, acc_ref, *, bn, lrelu):
    k = pl.program_id(2)

    @pl.when(k == 0)
    def _():
        acc_ref[...] = jnp.zeros_like(acc_ref)

    acc_ref[...] += jnp.dot(x_ref[...], w_ref[...],
                            preferred_element_type=jnp.float32)

    @pl.when(k == pl.num_programs(2) - 1)
    def _():
        y = acc_ref[...] + b_ref[...]
        if bn:
            # BatchNorm (training mode, gamma=1, beta=0): stats over the row
            # axis. Correct because the whole row axis lives in one block.
            mean = jnp.mean(y, axis=0, keepdims=True)
            var = jnp.mean((y - mean) * (y - mean), axis=0, keepdims=True)
            y = (y - mean) * jax.lax.rsqrt(var + _EPS)
        if lrelu:
            y = jnp.where(y >= 0, y, _ALPHA * y)
        o_ref[...] = y.astype(o_ref.dtype)


def matmul_bias_act(x, w, b, *, bn=False, lrelu=False, out_dtype=jnp.bfloat16):
    """x:(M,K) bf16, w:(K,N) bf16, b:(N,) f32 -> (M,N) out_dtype."""
    M, K = x.shape
    N = w.shape[1]
    tn = _pick_tile(N, (256, 128))
    # Let the reduction axis collapse to one step whenever the block fits VMEM.
    tk = _pick_tile(K, (2048, 1024, 512, 256, 128))
    if bn:
        # BN needs every row in one block (training-mode batch statistics).
        tm = M
    else:
        tm = _pick_parallel_tile(M)

    assert M % tm == 0 and N % tn == 0 and K % tk == 0, (M, N, K, tm, tn, tk)
    if bn:
        assert tm == M, "BatchNorm path requires all rows in a single block"

    kernel = functools.partial(_mm_bias_act_kernel, bn=bn, lrelu=lrelu)
    return pl.pallas_call(
        kernel,
        out_shape=jax.ShapeDtypeStruct((M, N), out_dtype),
        grid_spec=pltpu.PrefetchScalarGridSpec(
            num_scalar_prefetch=0,
            grid=(M // tm, N // tn, K // tk),
            in_specs=[
                pl.BlockSpec((tm, tk), lambda i, j, k: (i, k)),
                pl.BlockSpec((tk, tn), lambda i, j, k: (k, j)),
                pl.BlockSpec((1, tn), lambda i, j, k: (0, j)),
            ],
            out_specs=pl.BlockSpec((tm, tn), lambda i, j, k: (i, j)),
            scratch_shapes=[pltpu.VMEM((tm, tn), jnp.float32)],
        ),
        compiler_params=pltpu.CompilerParams(
            dimension_semantics=("parallel", "parallel", "arbitrary"),
            vmem_limit_bytes=_VMEM_LIMIT,
        ),
    )(x, w, b.reshape(1, N).astype(jnp.float32))


# ----------------------------------------------------------------------------
# Kernel 2: fused  fc1 -> BatchNorm1d -> LeakyReLU -> fc2 (per-tile partials)
#   grid = (N1 tiles [parallel], K1 tiles [arbitrary]); each N1 tile j computes
#   its fc1 columns, normalizes them (stats over the full batch, which is
#   entirely in-block), applies LeakyReLU and emits its fc2 *partial*
#   contribution.  Partials are summed (+ fc2 bias) in XLA — a (nj, M, N2)
#   reduce of a few dozen elements — which keeps the j axis parallel-safe.
# ----------------------------------------------------------------------------
def _fc_fused_kernel(x_ref, w1_ref, b1_ref, w2_ref, o_ref, acc_ref):
    k = pl.program_id(1)
    nk = pl.num_programs(1)

    @pl.when(k == 0)
    def _():
        acc_ref[...] = jnp.zeros_like(acc_ref)

    acc_ref[...] += jnp.dot(x_ref[...], w1_ref[...],
                            preferred_element_type=jnp.float32)

    @pl.when(k == nk - 1)
    def _():
        y = acc_ref[...] + b1_ref[...]
        # BatchNorm1d (training mode): per-feature stats over the batch rows
        # (all rows are in this block); independent across feature tiles.
        mean = jnp.mean(y, axis=0, keepdims=True)
        var = jnp.mean((y - mean) * (y - mean), axis=0, keepdims=True)
        y = (y - mean) * jax.lax.rsqrt(var + _EPS)
        y = jnp.where(y >= 0, y, _ALPHA * y)              # LeakyReLU(0.2)
        # fc2 partial for this feature tile (bf16 operands, f32 accumulation).
        o_ref[...] = jnp.dot(y.astype(jnp.bfloat16), w2_ref[...],
                             preferred_element_type=jnp.float32
                             ).astype(o_ref.dtype)


def fc_fused(xf, w1, b1, w2):
    """xf:(M,K1) bf16, w1:(K1,N1) bf16, w2:(N1,N2) bf16 -> (nj,M,N2) f32 partials."""
    M, K1 = xf.shape
    N1 = w1.shape[1]
    N2 = w2.shape[1]
    tn = _pick_tile(N1, (512, 256, 128))
    tk = _pick_tile(K1, (2048, 1024, 512, 256, 128))
    assert N1 % tn == 0 and K1 % tk == 0, (N1, K1, tn, tk)
    nj = N1 // tn

    return pl.pallas_call(
        _fc_fused_kernel,
        out_shape=jax.ShapeDtypeStruct((nj, M, N2), jnp.float32),
        grid_spec=pltpu.PrefetchScalarGridSpec(
            num_scalar_prefetch=0,
            grid=(nj, K1 // tk),
            in_specs=[
                pl.BlockSpec((M, tk), lambda j, k: (0, k)),
                pl.BlockSpec((tk, tn), lambda j, k: (k, j)),
                pl.BlockSpec((1, tn), lambda j, k: (0, j)),
                pl.BlockSpec((tn, N2), lambda j, k: (j, 0)),
            ],
            out_specs=pl.BlockSpec((None, M, N2), lambda j, k: (j, 0, 0)),
            scratch_shapes=[pltpu.VMEM((M, tn), jnp.float32)],
        ),
        compiler_params=pltpu.CompilerParams(
            dimension_semantics=("parallel", "arbitrary"),
            vmem_limit_bytes=_VMEM_LIMIT,
        ),
    )(xf, w1, b1.reshape(1, N1).astype(jnp.float32), w2)


# ----------------------------------------------------------------------------
# Glue: NHWC im2col (strided slices + one concatenate; no stack/6-D transpose)
# TODO(synk): fold this into the conv kernels to avoid the HBM patch replication.
# ----------------------------------------------------------------------------
def im2col_nhwc(x, k=4, stride=2, pad=1):
    N, H, W, C = x.shape
    xp = jnp.pad(x, ((0, 0), (pad, pad), (pad, pad), (0, 0)))
    OH = (H + 2 * pad - k) // stride + 1
    OW = (W + 2 * pad - k) // stride + 1
    cols = [xp[:, kh:kh + stride * OH:stride, kw:kw + stride * OW:stride, :]
            for kh in range(k) for kw in range(k)]
    p = jnp.concatenate(cols, axis=-1)        # (N, OH, OW, k*k*C), features (kh, kw, c)
    return p.reshape(N * OH * OW, k * k * C), OH, OW


# ----------------------------------------------------------------------------
# One-time parameter prep: layout permutes, lane-dense padding, bf16 casts.
# ----------------------------------------------------------------------------
def prepare_params(params, input_size):
    s4 = input_size // 4
    # OIHW -> (KH*KW*C_in, C_out) to match NHWC im2col feature order (kh, kw, c).
    c1 = params["conv1_w"].transpose(2, 3, 1, 0).reshape(-1, 64)
    # Lane-dense conv1 output: pad to 128 output channels (zero columns).
    c1 = jnp.pad(c1, ((0, 0), (0, 64))).astype(jnp.bfloat16)
    c1_b = jnp.pad(params["conv1_b"], (0, 64)).astype(jnp.float32)
    # conv2: (KH, KW, C_in=64, C_out) with C_in zero-padded to 128 to match y1.
    c2 = params["conv2_w"].transpose(2, 3, 1, 0)                 # (4,4,64,128)
    c2 = jnp.pad(c2, ((0, 0), (0, 0), (0, 64), (0, 0)))          # (4,4,128,128)
    c2 = c2.reshape(-1, 128).astype(jnp.bfloat16)
    # fc1_w rows were laid out for a (C,H,W) flatten; permute once to (H,W,C).
    f1 = (params["fc1_w"].reshape(128, s4, s4, -1)
          .transpose(1, 2, 0, 3).reshape(s4 * s4 * 128, -1).astype(jnp.bfloat16))
    return {
        "conv1_w": c1, "conv1_b": c1_b,
        "conv2_w": c2, "conv2_b": params["conv2_b"].astype(jnp.float32),
        "fc1_w": f1, "fc1_b": params["fc1_b"].astype(jnp.float32),
        "fc2_w": params["fc2_w"].astype(jnp.bfloat16),
        "fc2_b": params["fc2_b"].astype(jnp.float32),
    }


# ----------------------------------------------------------------------------
# Full forward pass (input is NCHW like PyTorch; internals are NHWC/bf16)
# ----------------------------------------------------------------------------
def discriminator_forward(x_nchw, prep):
    N = x_nchw.shape[0]
    x = x_nchw.transpose(0, 2, 3, 1).astype(jnp.bfloat16)   # NCHW -> NHWC once

    # conv1 + LeakyReLU (output lane-dense: 128 channels, upper 64 are zeros)
    p1, oh1, ow1 = im2col_nhwc(x)
    y1 = matmul_bias_act(p1, prep["conv1_w"], prep["conv1_b"], lrelu=True)
    y1 = y1.reshape(N, oh1, ow1, 128)                        # NHWC, no transpose

    # conv2 + BatchNorm2d + LeakyReLU (stats over all N*OH*OW rows, in one block)
    p2, oh2, ow2 = im2col_nhwc(y1)
    y2 = matmul_bias_act(p2, prep["conv2_w"], prep["conv2_b"], bn=True, lrelu=True)

    # flatten in (h, w, c) order; fc1_w rows were permuted to match.
    flat = y2.reshape(N, oh2 * ow2 * 128)

    # fc1 + BatchNorm1d + LeakyReLU + fc2 partials (one fused kernel); the tiny
    # partial-sum + fc2 bias add happens in XLA.
    partials = fc_fused(flat, prep["fc1_w"], prep["fc1_b"], prep["fc2_w"])
    return partials.sum(axis=0) + prep["fc2_b"][None, :]


# ----------------------------------------------------------------------------
# Pure-JAX f32 reference (PyTorch semantics) for correctness checking
# ----------------------------------------------------------------------------
def reference_forward(x, params):
    dn = ("NCHW", "OIHW", "NCHW")

    def lrelu(v):
        return jnp.where(v >= 0, v, _ALPHA * v)

    y = jax.lax.conv_general_dilated(x, params["conv1_w"], (2, 2), [(1, 1), (1, 1)],
                                     dimension_numbers=dn)
    y = lrelu(y + params["conv1_b"][None, :, None, None])
    y = jax.lax.conv_general_dilated(y, params["conv2_w"], (2, 2), [(1, 1), (1, 1)],
                                     dimension_numbers=dn)
    y = y + params["conv2_b"][None, :, None, None]
    m = y.mean(axis=(0, 2, 3), keepdims=True)
    v = ((y - m) ** 2).mean(axis=(0, 2, 3), keepdims=True)
    y = lrelu((y - m) * jax.lax.rsqrt(v + _EPS))
    y = y.reshape(y.shape[0], -1)
    y = y @ params["fc1_w"] + params["fc1_b"]
    m = y.mean(axis=0, keepdims=True)
    v = ((y - m) ** 2).mean(axis=0, keepdims=True)
    y = lrelu((y - m) * jax.lax.rsqrt(v + _EPS))
    return y @ params["fc2_w"] + params["fc2_b"]


# ----------------------------------------------------------------------------
# Deterministic parameter init (N(0, 0.02) weights, zero biases — mirrors
# initialize_weights; BatchNorm affine params are default gamma=1, beta=0).
# ----------------------------------------------------------------------------
def make_params(key, input_dim, output_dim, input_size):
    s4 = input_size // 4
    ks = jax.random.split(key, 4)
    return {
        "conv1_w": 0.02 * jax.random.normal(ks[0], (64, input_dim, 4, 4), jnp.float32),
        "conv1_b": jnp.zeros((64,), jnp.float32),
        "conv2_w": 0.02 * jax.random.normal(ks[1], (128, 64, 4, 4), jnp.float32),
        "conv2_b": jnp.zeros((128,), jnp.float32),
        "fc1_w": 0.02 * jax.random.normal(ks[2], (128 * s4 * s4, 1024), jnp.float32),
        "fc1_b": jnp.zeros((1024,), jnp.float32),
        "fc2_w": 0.02 * jax.random.normal(ks[3], (1024, output_dim), jnp.float32),
        "fc2_b": jnp.zeros((output_dim,), jnp.float32),
    }


if __name__ == "__main__":
    input_dim, output_dim, input_size, batch = 1, 1, 16, 8

    key = jax.random.PRNGKey(0)
    kp, kx = jax.random.split(key)
    params = make_params(kp, input_dim, output_dim, input_size)
    x = jax.random.normal(kx, (batch, input_dim, input_size, input_size), jnp.float32)

    prep = prepare_params(params, input_size)      # one-time weight layout / bf16 prep
    fwd = jax.jit(discriminator_forward)
    out = jax.block_until_ready(fwd(x, prep))

    ref = jax.block_until_ready(reference_forward(x, params))
    assert out.shape == (batch, output_dim), out.shape
    # bf16 MXU operands with f32 accumulation => relaxed tolerance vs f32 reference.
    assert jnp.allclose(out, ref, rtol=5e-2, atol=5e-2), (
        float(jnp.max(jnp.abs(out - ref))), out, ref)

    print("KERNEL_OK")
</pallas_src>

<mosaic_0001>
module attributes {stable_mosaic.version = 11 : i64} {
  func.func @_mm_bias_act_kernel(%arg0: i32, %arg1: i32, %arg2: i32, %arg3: memref<256x16xbf16, #tpu.memory_space<vmem>>, %arg4: memref<16x128xbf16, #tpu.memory_space<vmem>>, %arg5: memref<1x128xf32, #tpu.memory_space<vmem>>, %arg6: memref<256x128xbf16, #tpu.memory_space<vmem>>, %arg7: memref<256x128xf32, #tpu.memory_space<vmem>>) attributes {dimension_semantics = [#tpu.dimension_semantics<parallel>, #tpu.dimension_semantics<parallel>, #tpu.dimension_semantics<arbitrary>], iteration_bounds = array<i64: 2, 1, 1>, scalar_prefetch = 0 : i64, scratch_operands = 1 : i64, tpu.core_type = #tpu.core_type<tc>, window_params = [{transform_indices = @transform_0, window_bounds = array<i64: 256, 16>}, {transform_indices = @transform_1, window_bounds = array<i64: 16, 128>}, {transform_indices = @transform_2, window_bounds = array<i64: 1, 128>}, {transform_indices = @transform_3, window_bounds = array<i64: 256, 128>}]} {
    %c0_i32 = arith.constant 0 : i32
    %0 = arith.cmpi eq, %arg2, %c0_i32 : i32
    %1 = arith.extui %0 : i1 to i32
    %c0_i32_0 = arith.constant 0 : i32
    %2 = arith.cmpi ne, %1, %c0_i32_0 : i32
    scf.if %2 {
      %cst_10 = arith.constant 0.000000e+00 : f32
      %12 = vector.broadcast %cst_10 : f32 to vector<256x128xf32>
      %c0_11 = arith.constant 0 : index
      %c0_12 = arith.constant 0 : index
      %13 = vector.load %arg7[%c0_11, %c0_12] : memref<256x128xf32, #tpu.memory_space<vmem>>, vector<256x128xf32>
      tpu.vector_store %arg7[%c0_11, %c0_12], %12 {strides = array<i32>} : memref<256x128xf32, #tpu.memory_space<vmem>>, vector<256x128xf32>,
    } else {
    }
    %c0 = arith.constant 0 : index
    %c0_1 = arith.constant 0 : index
    %3 = vector.load %arg7[%c0, %c0_1] : memref<256x128xf32, #tpu.memory_space<vmem>>, vector<256x128xf32>
    %c0_2 = arith.constant 0 : index
    %c0_3 = arith.constant 0 : index
    %4 = vector.load %arg3[%c0_2, %c0_3] : memref<256x16xbf16, #tpu.memory_space<vmem>>, vector<256x16xbf16>
    %c0_4 = arith.constant 0 : index
    %c0_5 = arith.constant 0 : index
    %5 = vector.load %arg4[%c0_4, %c0_5] : memref<16x128xbf16, #tpu.memory_space<vmem>>, vector<16x128xbf16>
    %cst = arith.constant dense<0.000000e+00> : vector<256x128xf32>
    %6 = tpu.matmul %4, %5, %cst {dimension_numbers = #tpu.dot_dimension_numbers<[1], [0], [0], [1], [0, 0, 1, 1], [], []>} : vector<256x16xbf16>, vector<16x128xbf16>, vector<256x128xf32> -> vector<256x128xf32>
    %7 = arith.addf %3, %6 : vector<256x128xf32>
    %c0_6 = arith.constant 0 : index
    %c0_7 = arith.constant 0 : index
    %8 = vector.load %arg7[%c0_6, %c0_7] : memref<256x128xf32, #tpu.memory_space<vmem>>, vector<256x128xf32>
    tpu.vector_store %arg7[%c0_6, %c0_7], %7 {strides = array<i32>} : memref<256x128xf32, #tpu.memory_space<vmem>>, vector<256x128xf32>,
    %c0_i32_8 = arith.constant 0 : i32
    %9 = arith.cmpi eq, %arg2, %c0_i32_8 : i32
    %10 = arith.extui %9 : i1 to i32
    %c0_i32_9 = arith.constant 0 : i32
    %11 = arith.cmpi ne, %10, %c0_i32_9 : i32
    scf.if %11 {
      %c0_10 = arith.constant 0 : index
      %c0_11 = arith.constant 0 : index
      %12 = vector.load %arg7[%c0_10, %c0_11] : memref<256x128xf32, #tpu.memory_space<vmem>>, vector<256x128xf32>
      %c0_12 = arith.constant 0 : index
      %c0_13 = arith.constant 0 : index
      %13 = vector.load %arg5[%c0_12, %c0_13] : memref<1x128xf32, #tpu.memory_space<vmem>>, vector<1x128xf32>
      %14 = vector.broadcast %13 : vector<1x128xf32> to vector<256x128xf32>
      %15 = arith.addf %12, %14 : vector<256x128xf32>
      %cst_14 = arith.constant 0.000000e+00 : f32
      %16 = vector.broadcast %cst_14 : f32 to vector<256x128xf32>
      %17 = arith.cmpf oge, %15, %16 : vector<256x128xf32>
      %cst_15 = arith.constant 2.000000e-01 : f32
      %18 = vector.broadcast %cst_15 : f32 to vector<256x128xf32>
      %19 = arith.mulf %18, %15 : vector<256x128xf32>
      %20 = arith.select %17, %15, %19 : vector<256x128xi1>, vector<256x128xf32>
      %21 = arith.truncf %20 : vector<256x128xf32> to vector<256x128xbf16>
      %c0_16 = arith.constant 0 : index
      %c0_17 = arith.constant 0 : index
      %22 = vector.load %arg6[%c0_16, %c0_17] : memref<256x128xbf16, #tpu.memory_space<vmem>>, vector<256x128xbf16>
      tpu.vector_store %arg6[%c0_16, %c0_17], %21 {strides = array<i32>} : memref<256x128xbf16, #tpu.memory_space<vmem>>, vector<256x128xbf16>,
    } else {
    }
    return
  }
  func.func @transform_0(%arg0: i32, %arg1: i32, %arg2: i32) -> (i32, i32) {
    %c0_i32 = arith.constant 0 : i32
    return %arg0, %arg2 : i32, i32
  }
  func.func @transform_1(%arg0: i32, %arg1: i32, %arg2: i32) -> (i32, i32) {
    %c0_i32 = arith.constant 0 : i32
    return %arg2, %arg1 : i32, i32
  }
  func.func @transform_2(%arg0: i32, %arg1: i32, %arg2: i32) -> (i32, i32) {
    %c0_i32 = arith.constant 0 : i32
    %c0_i32_0 = arith.constant 0 : i32
    return %c0_i32, %arg1 : i32, i32
  }
  func.func @transform_3(%arg0: i32, %arg1: i32, %arg2: i32) -> (i32, i32) {
    %c0_i32 = arith.constant 0 : i32
    return %arg0, %arg1 : i32, i32
  }
}

module attributes {stable_mosaic.version = 11 : i64} {
  func.func @_mm_bias_act_kernel(%arg0: i32, %arg1: i32, %arg2: i32, %arg3: memref<128x2048xbf16, #tpu.memory_space<vmem>>, %arg4: memref<2048x128xbf16, #tpu.memory_space<vmem>>, %arg5: memref<1x128xf32, #tpu.memory_space<vmem>>, %arg6: memref<128x128xbf16, #tpu.memory_space<vmem>>, %arg7: memref<128x128xf32, #tpu.memory_space<vmem>>) attributes {dimension_semantics = [#tpu.dimension_semantics<parallel>, #tpu.dimension_semantics<parallel>, #tpu.dimension_semantics<arbitrary>], iteration_bounds = array<i64: 1, 1, 1>, scalar_prefetch = 0 : i64, scratch_operands = 1 : i64, tpu.core_type = #tpu.core_type<tc>, window_params = [{transform_indices = @transform_0, window_bounds = array<i64: 128, 2048>}, {transform_indices = @transform_1, window_bounds = array<i64: 2048, 128>}, {transform_indices = @transform_2, window_bounds = array<i64: 1, 128>}, {transform_indices = @transform_3, window_bounds = array<i64: 128, 128>}]} {
    %c0_i32 = arith.constant 0 : i32
    %0 = arith.cmpi eq, %arg2, %c0_i32 : i32
    %1 = arith.extui %0 : i1 to i32
    %c0_i32_0 = arith.constant 0 : i32
    %2 = arith.cmpi ne, %1, %c0_i32_0 : i32
    scf.if %2 {
      %cst_10 = arith.constant 0.000000e+00 : f32
      %12 = vector.broadcast %cst_10 : f32 to vector<128x128xf32>
      %c0_11 = arith.constant 0 : index
      %c0_12 = arith.constant 0 : index
      %13 = vector.load %arg7[%c0_11, %c0_12] : memref<128x128xf32, #tpu.memory_space<vmem>>, vector<128x128xf32>
      tpu.vector_store %arg7[%c0_11, %c0_12], %12 {strides = array<i32>} : memref<128x128xf32, #tpu.memory_space<vmem>>, vector<128x128xf32>,
    } else {
    }
    %c0 = arith.constant 0 : index
    %c0_1 = arith.constant 0 : index
    %3 = vector.load %arg7[%c0, %c0_1] : memref<128x128xf32, #tpu.memory_space<vmem>>, vector<128x128xf32>
    %c0_2 = arith.constant 0 : index
    %c0_3 = arith.constant 0 : index
    %4 = vector.load %arg3[%c0_2, %c0_3] : memref<128x2048xbf16, #tpu.memory_space<vmem>>, vector<128x2048xbf16>
    %c0_4 = arith.constant 0 : index
    %c0_5 = arith.constant 0 : index
    %5 = vector.load %arg4[%c0_4, %c0_5] : memref<2048x128xbf16, #tpu.memory_space<vmem>>, vector<2048x128xbf16>
    %cst = arith.constant dense<0.000000e+00> : vector<128x128xf32>
    %6 = tpu.matmul %4, %5, %cst {dimension_numbers = #tpu.dot_dimension_numbers<[1], [0], [0], [1], [0, 0, 1, 1], [], []>} : vector<128x2048xbf16>, vector<2048x128xbf16>, vector<128x128xf32> -> vector<128x128xf32>
    %7 = arith.addf %3, %6 : vector<128x128xf32>
    %c0_6 = arith.constant 0 : index
    %c0_7 = arith.constant 0 : index
    %8 = vector.load %arg7[%c0_6, %c0_7] : memref<128x128xf32, #tpu.memory_space<vmem>>, vector<128x128xf32>
    tpu.vector_store %arg7[%c0_6, %c0_7], %7 {strides = array<i32>} : memref<128x128xf32, #tpu.memory_space<vmem>>, vector<128x128xf32>,
    %c0_i32_8 = arith.constant 0 : i32
    %9 = arith.cmpi eq, %arg2, %c0_i32_8 : i32
    %10 = arith.extui %9 : i1 to i32
    %c0_i32_9 = arith.constant 0 : i32
    %11 = arith.cmpi ne, %10, %c0_i32_9 : i32
    scf.if %11 {
      %c0_10 = arith.constant 0 : index
      %c0_11 = arith.constant 0 : index
      %12 = vector.load %arg7[%c0_10, %c0_11] : memref<128x128xf32, #tpu.memory_space<vmem>>, vector<128x128xf32>
      %c0_12 = arith.constant 0 : index
      %c0_13 = arith.constant 0 : index
      %13 = vector.load %arg5[%c0_12, %c0_13] : memref<1x128xf32, #tpu.memory_space<vmem>>, vector<1x128xf32>
      %14 = vector.broadcast %13 : vector<1x128xf32> to vector<128x128xf32>
      %15 = arith.addf %12, %14 : vector<128x128xf32>
      %cst_14 = arith.constant dense<0.000000e+00> : vector<128xf32>
      %16 = vector.multi_reduction <add>, %15, %cst_14 [0] : vector<128x128xf32> to vector<128xf32>
      %17 = vector.shape_cast %16 : vector<128xf32> to vector<1x128xf32>
      %cst_15 = arith.constant 1.280000e+02 : f32
      %18 = vector.broadcast %cst_15 : f32 to vector<1x128xf32>
      %19 = arith.divf %17, %18 : vector<1x128xf32>
      %20 = vector.broadcast %19 : vector<1x128xf32> to vector<128x128xf32>
      %21 = arith.subf %15, %20 : vector<128x128xf32>
      %22 = vector.broadcast %19 : vector<1x128xf32> to vector<128x128xf32>
      %23 = arith.subf %15, %22 : vector<128x128xf32>
      %24 = arith.mulf %21, %23 : vector<128x128xf32>
      %cst_16 = arith.constant dense<0.000000e+00> : vector<128xf32>
      %25 = vector.multi_reduction <add>, %24, %cst_16 [0] : vector<128x128xf32> to vector<128xf32>
      %26 = vector.shape_cast %25 : vector<128xf32> to vector<1x128xf32>
      %cst_17 = arith.constant 1.280000e+02 : f32
      %27 = vector.broadcast %cst_17 : f32 to vector<1x128xf32>
      %28 = arith.divf %26, %27 : vector<1x128xf32>
      %29 = vector.broadcast %19 : vector<1x128xf32> to vector<128x128xf32>
      %30 = arith.subf %15, %29 : vector<128x128xf32>
      %cst_18 = arith.constant 9.99999974E-6 : f32
      %31 = vector.broadcast %cst_18 : f32 to vector<1x128xf32>
      %32 = arith.addf %28, %31 : vector<1x128xf32>
      %33 = math.rsqrt %32 : vector<1x128xf32>
      %34 = vector.broadcast %33 : vector<1x128xf32> to vector<128x128xf32>
      %35 = arith.mulf %30, %34 : vector<128x128xf32>
      %cst_19 = arith.constant 0.000000e+00 : f32
      %36 = vector.broadcast %cst_19 : f32 to vector<128x128xf32>
      %37 = arith.cmpf oge, %35, %36 : vector<128x128xf32>
      %cst_20 = arith.constant 2.000000e-01 : f32
      %38 = vector.broadcast %cst_20 : f32 to vector<128x128xf32>
      %39 = arith.mulf %38, %35 : vector<128x128xf32>
      %40 = arith.select %37, %35, %39 : vector<128x128xi1>, vector<128x128xf32>
      %41 = arith.truncf %40 : vector<128x128xf32> to vector<128x128xbf16>
      %c0_21 = arith.constant 0 : index
      %c0_22 = arith.constant 0 : index
      %42 = vector.load %arg6[%c0_21, %c0_22] : memref<128x128xbf16, #tpu.memory_space<vmem>>, vector<128x128xbf16>
      tpu.vector_store %arg6[%c0_21, %c0_22], %41 {strides = array<i32>} : memref<128x128xbf16, #tpu.memory_space<vmem>>, vector<128x128xbf16>,
    } else {
    }
    return
  }
  func.func @transform_0(%arg0: i32, %arg1: i32, %arg2: i32) -> (i32, i32) {
    %c0_i32 = arith.constant 0 : i32
    return %arg0, %arg2 : i32, i32
  }
  func.func @transform_1(%arg0: i32, %arg1: i32, %arg2: i32) -> (i32, i32) {
    %c0_i32 = arith.constant 0 : i32
    return %arg2, %arg1 : i32, i32
  }
  func.func @transform_2(%arg0: i32, %arg1: i32, %arg2: i32) -> (i32, i32) {
    %c0_i32 = arith.constant 0 : i32
    %c0_i32_0 = arith.constant 0 : i32
    return %c0_i32, %arg1 : i32, i32
  }
  func.func @transform_3(%arg0: i32, %arg1: i32, %arg2: i32) -> (i32, i32) {
    %c0_i32 = arith.constant 0 : i32
    return %arg0, %arg1 : i32, i32
  }
}

module attributes {stable_mosaic.version = 11 : i64} {
  func.func @_fc_fused_kernel(%arg0: i32, %arg1: i32, %arg2: memref<8x2048xbf16, #tpu.memory_space<vmem>>, %arg3: memref<2048x512xbf16, #tpu.memory_space<vmem>>, %arg4: memref<1x512xf32, #tpu.memory_space<vmem>>, %arg5: memref<512x1xbf16, #tpu.memory_space<vmem>>, %arg6: memref<1x8x1xf32, #tpu.memory_space<vmem>>, %arg7: memref<8x512xf32, #tpu.memory_space<vmem>>) attributes {dimension_semantics = [#tpu.dimension_semantics<parallel>, #tpu.dimension_semantics<arbitrary>], iteration_bounds = array<i64: 2, 1>, scalar_prefetch = 0 : i64, scratch_operands = 1 : i64, tpu.core_type = #tpu.core_type<tc>, window_params = [{transform_indices = @transform_0, window_bounds = array<i64: 8, 2048>}, {transform_indices = @transform_1, window_bounds = array<i64: 2048, 512>}, {transform_indices = @transform_2, window_bounds = array<i64: 1, 512>}, {transform_indices = @transform_3, window_bounds = array<i64: 512, 1>}, {transform_indices = @transform_4, window_bounds = array<i64: 1, 8, 1>}]} {
    %c0_i32 = arith.constant 0 : i32
    %0 = arith.cmpi eq, %arg1, %c0_i32 : i32
    %1 = arith.extui %0 : i1 to i32
    %c0_i32_0 = arith.constant 0 : i32
    %2 = arith.cmpi ne, %1, %c0_i32_0 : i32
    scf.if %2 {
      %cst_10 = arith.constant 0.000000e+00 : f32
      %12 = vector.broadcast %cst_10 : f32 to vector<8x512xf32>
      %c0_11 = arith.constant 0 : index
      %c0_12 = arith.constant 0 : index
      %13 = vector.load %arg7[%c0_11, %c0_12] : memref<8x512xf32, #tpu.memory_space<vmem>>, vector<8x512xf32>
      tpu.vector_store %arg7[%c0_11, %c0_12], %12 {strides = array<i32>} : memref<8x512xf32, #tpu.memory_space<vmem>>, vector<8x512xf32>,
    } else {
    }
    %c0 = arith.constant 0 : index
    %c0_1 = arith.constant 0 : index
    %3 = vector.load %arg7[%c0, %c0_1] : memref<8x512xf32, #tpu.memory_space<vmem>>, vector<8x512xf32>
    %c0_2 = arith.constant 0 : index
    %c0_3 = arith.constant 0 : index
    %4 = vector.load %arg2[%c0_2, %c0_3] : memref<8x2048xbf16, #tpu.memory_space<vmem>>, vector<8x2048xbf16>
    %c0_4 = arith.constant 0 : index
    %c0_5 = arith.constant 0 : index
    %5 = vector.load %arg3[%c0_4, %c0_5] : memref<2048x512xbf16, #tpu.memory_space<vmem>>, vector<2048x512xbf16>
    %cst = arith.constant dense<0.000000e+00> : vector<8x512xf32>
    %6 = tpu.matmul %4, %5, %cst {dimension_numbers = #tpu.dot_dimension_numbers<[1], [0], [0], [1], [0, 0, 1, 1], [], []>} : vector<8x2048xbf16>, vector<2048x512xbf16>, vector<8x512xf32> -> vector<8x512xf32>
    %7 = arith.addf %3, %6 : vector<8x512xf32>
    %c0_6 = arith.constant 0 : index
    %c0_7 = arith.constant 0 : index
    %8 = vector.load %arg7[%c0_6, %c0_7] : memref<8x512xf32, #tpu.memory_space<vmem>>, vector<8x512xf32>
    tpu.vector_store %arg7[%c0_6, %c0_7], %7 {strides = array<i32>} : memref<8x512xf32, #tpu.memory_space<vmem>>, vector<8x512xf32>,
    %c0_i32_8 = arith.constant 0 : i32
    %9 = arith.cmpi eq, %arg1, %c0_i32_8 : i32
    %10 = arith.extui %9 : i1 to i32
    %c0_i32_9 = arith.constant 0 : i32
    %11 = arith.cmpi ne, %10, %c0_i32_9 : i32
    scf.if %11 {
      %c0_10 = arith.constant 0 : index
      %c0_11 = arith.constant 0 : index
      %12 = vector.load %arg7[%c0_10, %c0_11] : memref<8x512xf32, #tpu.memory_space<vmem>>, vector<8x512xf32>
      %c0_12 = arith.constant 0 : index
      %c0_13 = arith.constant 0 : index
      %13 = vector.load %arg4[%c0_12, %c0_13] : memref<1x512xf32, #tpu.memory_space<vmem>>, vector<1x512xf32>
      %14 = vector.broadcast %13 : vector<1x512xf32> to vector<8x512xf32>
      %15 = arith.addf %12, %14 : vector<8x512xf32>
      %cst_14 = arith.constant dense<0.000000e+00> : vector<512xf32>
      %16 = vector.multi_reduction <add>, %15, %cst_14 [0] : vector<8x512xf32> to vector<512xf32>
      %17 = vector.shape_cast %16 : vector<512xf32> to vector<1x512xf32>
      %cst_15 = arith.constant 8.000000e+00 : f32
      %18 = vector.broadcast %cst_15 : f32 to vector<1x512xf32>
      %19 = arith.divf %17, %18 : vector<1x512xf32>
      %20 = vector.broadcast %19 : vector<1x512xf32> to vector<8x512xf32>
      %21 = arith.subf %15, %20 : vector<8x512xf32>
      %22 = vector.broadcast %19 : vector<1x512xf32> to vector<8x512xf32>
      %23 = arith.subf %15, %22 : vector<8x512xf32>
      %24 = arith.mulf %21, %23 : vector<8x512xf32>
      %cst_16 = arith.constant dense<0.000000e+00> : vector<512xf32>
      %25 = vector.multi_reduction <add>, %24, %cst_16 [0] : vector<8x512xf32> to vector<512xf32>
      %26 = vector.shape_cast %25 : vector<512xf32> to vector<1x512xf32>
      %cst_17 = arith.constant 8.000000e+00 : f32
      %27 = vector.broadcast %cst_17 : f32 to vector<1x512xf32>
      %28 = arith.divf %26, %27 : vector<1x512xf32>
      %29 = vector.broadcast %19 : vector<1x512xf32> to vector<8x512xf32>
      %30 = arith.subf %15, %29 : vector<8x512xf32>
      %cst_18 = arith.constant 9.99999974E-6 : f32
      %31 = vector.broadcast %cst_18 : f32 to vector<1x512xf32>
      %32 = arith.addf %28, %31 : vector<1x512xf32>
      %33 = math.rsqrt %32 : vector<1x512xf32>
      %34 = vector.broadcast %33 : vector<1x512xf32> to vector<8x512xf32>
      %35 = arith.mulf %30, %34 : vector<8x512xf32>
      %cst_19 = arith.constant 0.000000e+00 : f32
      %36 = vector.broadcast %cst_19 : f32 to vector<8x512xf32>
      %37 = arith.cmpf oge, %35, %36 : vector<8x512xf32>
      %cst_20 = arith.constant 2.000000e-01 : f32
      %38 = vector.broadcast %cst_20 : f32 to vector<8x512xf32>
      %39 = arith.mulf %38, %35 : vector<8x512xf32>
      %40 = arith.select %37, %35, %39 : vector<8x512xi1>, vector<8x512xf32>
      %41 = arith.truncf %40 : vector<8x512xf32> to vector<8x512xbf16>
      %c0_21 = arith.constant 0 : index
      %c0_22 = arith.constant 0 : index
      %42 = vector.load %arg5[%c0_21, %c0_22] : memref<512x1xbf16, #tpu.memory_space<vmem>>, vector<512x1xbf16>
      %cst_23 = arith.constant dense<0.000000e+00> : vector<8x1xf32>
      %43 = tpu.matmul %41, %42, %cst_23 {dimension_numbers = #tpu.dot_dimension_numbers<[1], [0], [0], [1], [0, 0, 1, 1], [], []>} : vector<8x512xbf16>, vector<512x1xbf16>, vector<8x1xf32> -> vector<8x1xf32>
      %c0_24 = arith.constant 0 : index
      %c0_25 = arith.constant 0 : index
      %c0_26 = arith.constant 0 : index
      %44 = vector.load %arg6[%c0_24, %c0_25, %c0_26] : memref<1x8x1xf32, #tpu.memory_space<vmem>>, vector<1x8x1xf32>
      %45 = vector.shape_cast %44 : vector<1x8x1xf32> to vector<8x1xf32>
      %46 = vector.shape_cast %43 : vector<8x1xf32> to vector<1x8x1xf32>
      tpu.vector_store %arg6[%c0_24, %c0_25, %c0_26], %46 {strides = array<i32>} : memref<1x8x1xf32, #tpu.memory_space<vmem>>, vector<1x8x1xf32>,
    } else {
    }
    return
  }
  func.func @transform_0(%arg0: i32, %arg1: i32) -> (i32, i32) {
    %c0_i32 = arith.constant 0 : i32
    %c0_i32_0 = arith.constant 0 : i32
    return %c0_i32, %arg1 : i32, i32
  }
  func.func @transform_1(%arg0: i32, %arg1: i32) -> (i32, i32) {
    %c0_i32 = arith.constant 0 : i32
    return %arg1, %arg0 : i32, i32
  }
  func.func @transform_2(%arg0: i32, %arg1: i32) -> (i32, i32) {
    %c0_i32 = arith.constant 0 : i32
    %c0_i32_0 = arith.constant 0 : i32
    return %c0_i32, %arg0 : i32, i32
  }
  func.func @transform_3(%arg0: i32, %arg1: i32) -> (i32, i32) {
    %c0_i32 = arith.constant 0 : i32
    %c0_i32_0 = arith.constant 0 : i32
    return %arg0, %c0_i32 : i32, i32
  }
  func.func @transform_4(%arg0: i32, %arg1: i32) -> (i32, i32, i32) {
    %c0_i32 = arith.constant 0 : i32
    %c0_i32_0 = arith.constant 0 : i32
    %c0_i32_1 = arith.constant 0 : i32
    return %arg0, %c0_i32, %c0_i32_0 : i32, i32, i32
  }
}

</mosaic_0001>

<llo_original>
// kernel: discriminator_forward.3
$region0: #{discriminator_forward.3}
  #allocation0 [shape = 'u32[]', space=smem, size = 0x4, offset = 0x4, fixed_abs, tag = 'smem constant byte address 0x4 - core index']
  #allocation1 [shape = 'u32[72,128]{1,0:T(1,128)}', space=vmem, size = 0x9000, scoped, tag = 'internal scratch']
  #allocation2 [shape = 'f32[256,128]{1,0:T(8,128)}', space=vmem, size = 0x20000, scoped, tag = 'scratch operand']
  %s0 = inlined_call_operand.vmem [shape: bf16[512,16], index: 0, kind: input, shape index: {}]
  %s1 = inlined_call_operand.hbm [shape: bf16[16,128], index: 1, kind: input, shape index: {}]
  %s2 = inlined_call_operand.hbm [shape: f32[1,128], index: 2, kind: input, shape index: {}]
  %s3 = inlined_call_operand.vmem [shape: bf16[512,128], index: 3, kind: output, shape index: {}]
  %s4 = sld [smem:[#allocation0]]
  $region61: #{discriminator_forward.3} parent=0
    _
  %s6 = ssub.s32 1, %s4
  %s7 = scalar_select 0, %s6, %s4
  $region1: #{discriminator_forward.3} parent=0
    #allocation3 [shape = 'u8[4096]{0}', space=vmem, size = 0x1000, scoped, tag = 'input window, operand 1, single buffered']
    #allocation4 [shape = 's32[2]{0}', space=sflag, size = 0x8, scoped, tag = 'scoped memory for discriminator_forward.3']
    #allocation5 [shape = 'u8[512]{0}', space=vmem, size = 0x400, scoped, tag = 'input window, operand 2, single buffered']
    #allocation6 [shape = 's32[1]{0}', space=sflag, size = 0x4, scoped, tag = 'scoped memory for discriminator_forward.3']
    %8 = vsyncpa [#allocation4], 0
    %9 = vsyncpa [#allocation6], 0
    loop: start=0, step=1, limit=4
    $region2: #{discriminator_forward.3} parent=1 // loop_pre_header
      _
    $region3: #{discriminator_forward.3} parent=1 // loop_header
      %s11 = sphi 0, %s15
      %p12 = scmp.ge.s32.totalorder %s11, 4
      %s18 = sphi 0, %s37
      %s19 = sphi 0, %s33
      %s20 = sphi 0, %s29
      %s21 = sphi 0, %s18
      %s22 = sphi 0, %s19
      %s23 = sphi 0, %s20
      %s24 = sphi 0, %s21
      %s25 = sphi 0, %s22
      %s26 = sphi 0, %s23
      %s42 = sphi 0, %s44
      %s45 = sphi 0, %s42
      %s46 = sphi 0, %s45
      %s62 = sphi 0, %s46
      %s70 = sphi 0, %s72
      %s73 = sphi 0, %s70
      %s74 = sphi 0, %s73
      %s90 = sphi 0, %s74
      %s96 = sphi 0, %s98
      %s99 = sphi 0, %s96
      %s100 = sphi 0, %s99
      %s116 = sphi 0, %s100
      %s124 = sphi 0, %s126
      %s127 = sphi 0, %s124
      %s128 = sphi 0, %s127
      %s144 = sphi 0, %s128
    $region4: #{discriminator_forward.3} parent=1 // loop_header_branch
      %14 = sbr.rel (%p12) target = $region8
    $region5: #{discriminator_forward.3} parent=1 // loop_body
      %s16 = ssub.s32 %s11, 1
      %s17 = ssub.s32 %s11, 2
      %s27 = sadd.s32 1, %s20
      %p28 = scmp.ge.s32.totalorder %s27, 1
      %s29 = scalar_select %p28, 0, %s27
      %s30 = sadd.s32 1, %s19
      %s31 = scalar_select %p28, %s30, %s19
      %p32 = scmp.ge.s32.totalorder %s31, 1
      %s33 = scalar_select %p32, 0, %s31
      %s34 = sadd.s32 1, %s18
      %s35 = scalar_select %p32, %s34, %s18
      %p36 = scmp.ge.s32.totalorder %s35, 2
      %s37 = scalar_select %p36, 0, %s35
      %s38 = ssub.s32 %s18, %s37
      %s39 = ssub.s32 %s20, %s29
      %s40 = sor.u32 %s38, %s39
      %p41 = scmp.eq.s32.totalorder %s40, 0
      %s43 = sadd.s32 %s42, 1
      %s44 = scalar_select %p41, %s42, %s43
      %p47 = pneg %p41
      %p48 = scmp.eq.s32.totalorder %s11, 1
      %p49 = por %p47, %p48
      %p50 = scmp.ne.s32.totalorder %s42, %s45
      %p51 = scmp.eq.s32.totalorder %s11, 0
      %p52 = por %p50, %p51
      %p53 = scmp.ne.s32.totalorder %s42, %s45
      %p54 = scmp.eq.s32.totalorder %s16, 1
      %p55 = por %p53, %p54
      %p56 = scmp.ne.s32.totalorder %s45, %s46
      %p57 = scmp.eq.s32.totalorder %s16, 0
      %p58 = por %p56, %p57
      %p59 = scmp.ne.s32.totalorder %s45, %s46
      %p60 = scmp.eq.s32.totalorder %s17, 1
      %p61 = por %p59, %p60
      %p63 = scmp.ne.s32.totalorder %s46, %s62
      %p64 = scmp.eq.s32.totalorder %s17, 0
      %p65 = por %p63, %p64
      %s66 = ssub.s32 %s20, %s29
      %s67 = ssub.s32 %s19, %s33
      %s68 = sor.u32 %s66, %s67
      %p69 = scmp.eq.s32.totalorder %s68, 0
      %s71 = sadd.s32 %s70, 1
      %s72 = scalar_select %p69, %s70, %s71
      %p75 = pneg %p69
      %p76 = scmp.eq.s32.totalorder %s11, 1
      %p77 = por %p75, %p76
      %p78 = scmp.ne.s32.totalorder %s70, %s73
      %p79 = scmp.eq.s32.totalorder %s11, 0
      %p80 = por %p78, %p79
      %p81 = scmp.ne.s32.totalorder %s70, %s73
      %p82 = scmp.eq.s32.totalorder %s16, 1
      %p83 = por %p81, %p82
      %p84 = scmp.ne.s32.totalorder %s73, %s74
      %p85 = scmp.eq.s32.totalorder %s16, 0
      %p86 = por %p84, %p85
      %p87 = scmp.ne.s32.totalorder %s73, %s74
      %p88 = scmp.eq.s32.totalorder %s17, 1
      %p89 = por %p87, %p88
      %p91 = scmp.ne.s32.totalorder %s74, %s90
      %p92 = scmp.eq.s32.totalorder %s17, 0
      %p93 = por %p91, %p92
      %s94 = ssub.s32 %s19, %s33
      %p95 = scmp.eq.s32.totalorder %s94, 0
      %s97 = sadd.s32 %s96, 1
      %s98 = scalar_select %p95, %s96, %s97
      %p101 = pneg %p95
      %p102 = scmp.eq.s32.totalorder %s11, 1
      %p103 = por %p101, %p102
      %p104 = scmp.ne.s32.totalorder %s96, %s99
      %p105 = scmp.eq.s32.totalorder %s11, 0
      %p106 = por %p104, %p105
      %p107 = scmp.ne.s32.totalorder %s96, %s99
      %p108 = scmp.eq.s32.totalorder %s16, 1
      %p109 = por %p107, %p108
      %p110 = scmp.ne.s32.totalorder %s99, %s100
      %p111 = scmp.eq.s32.totalorder %s16, 0
      %p112 = por %p110, %p111
      %p113 = scmp.ne.s32.totalorder %s99, %s100
      %p114 = scmp.eq.s32.totalorder %s17, 1
      %p115 = por %p113, %p114
      %p117 = scmp.ne.s32.totalorder %s100, %s116
      %p118 = scmp.eq.s32.totalorder %s17, 0
      %p119 = por %p117, %p118
      %s120 = ssub.s32 %s18, %s37
      %s121 = ssub.s32 %s19, %s33
      %s122 = sor.u32 %s120, %s121
      %p123 = scmp.eq.s32.totalorder %s122, 0
      %s125 = sadd.s32 %s124, 1
      %s126 = scalar_select %p123, %s124, %s125
      %p129 = pneg %p123
      %p130 = scmp.eq.s32.totalorder %s11, 1
      %p131 = por %p129, %p130
      %p132 = scmp.ne.s32.totalorder %s124, %s127
      %p133 = scmp.eq.s32.totalorder %s11, 0
      %p134 = por %p132, %p133
      %p135 = scmp.ne.s32.totalorder %s124, %s127
      %p136 = scmp.eq.s32.totalorder %s16, 1
      %p137 = por %p135, %p136
      %p138 = scmp.ne.s32.totalorder %s127, %s128
      %p139 = scmp.eq.s32.totalorder %s16, 0
      %p140 = por %p138, %p139
      %p141 = scmp.ne.s32.totalorder %s127, %s128
      %p142 = scmp.eq.s32.totalorder %s17, 1
      %p143 = por %p141, %p142
      %p145 = scmp.ne.s32.totalorder %s128, %s144
      %p146 = scmp.eq.s32.totalorder %s17, 0
      %p147 = por %p145, %p146
      %p148 = scmp.le.s32.totalorder 1, %s11
      %p149 = scmp.lt.s32.totalorder %s11, 3
      %p150 = pnand %p148, %p149
      %p151 = pneg %p150
      // Predicated region
      $region9: #{discriminator_forward.3} parent=5 // pred_check
        _
      $region10: #{discriminator_forward.3} parent=5 // pred_check_branch
        %153 = sbr.rel (%p150) target = $region12
      $region11: #{discriminator_forward.3} parent=5 // pred_region
        %s154 = ssub.s32 %s11, 1
        // Predicated region
        $region13: #{discriminator_forward.3} parent=11 // pred_check
          %p155 = pneg %p86
        $region14: #{discriminator_forward.3} parent=11 // pred_check_branch
          %157 = sbr.rel (%p155) target = $region16
        $region15: #{discriminator_forward.3} parent=11 // pred_region
          %s158 = smul.u32 2, %s23
          %160 = vsyncadd [#allocation4], 0
          %s161 = sadd.s32 %s22, %s158
          %s162 = smul.addr %s161, 4
          %s163 = scalar_lea.hbm %s1, %s162
          %s164 = sshll.u32 %s163, 4
          %s165 = int_to_ptr.hbm [resolvable:$true] %s164
          %s166 = sshll.u32 [#allocation3], 4
          %s167 = int_to_ptr.vmem [resolvable:$true] %s166
          %172 = dma.hbm_to_vmem [thread:$0]  %s165, 128, %s167, [#allocation4], 64, 64, 4
        $region16: #{discriminator_forward.3} parent=11 // pred_fallthru
          _
        // Predicated region
        $region17: #{discriminator_forward.3} parent=11 // pred_check
          %p173 = pneg %p112
        $region18: #{discriminator_forward.3} parent=11 // pred_check_branch
          %175 = sbr.rel (%p173) target = $region20
        $region19: #{discriminator_forward.3} parent=11 // pred_region
          %177 = vsyncadd [#allocation6], 0
          %s178 = scalar_lea.hbm %s2, %s22
          %s180 = sshll.u32 %s178, 4
          %s181 = int_to_ptr.hbm [resolvable:$true] %s180
          %s182 = sshll.u32 [#allocation5], 4
          %s183 = int_to_ptr.vmem [resolvable:$true] %s182
          %185 = dma.hbm_to_vmem [thread:$0]  %s181, 16, %s183, [#allocation6]
        $region20: #{discriminator_forward.3} parent=11 // pred_fallthru
          _
      $region12: #{discriminator_forward.3} parent=5 // pred_fallthru
        _
      %p186 = scmp.lt.s32.totalorder %s11, 2
      // Predicated region
      $region21: #{discriminator_forward.3} parent=5 // pred_check
        %p187 = pneg %p186
      $region22: #{discriminator_forward.3} parent=5 // pred_check_branch
        %189 = sbr.rel (%p187) target = $region24
      $region23: #{discriminator_forward.3} parent=5 // pred_region
        // Predicated region
        $region25: #{discriminator_forward.3} parent=23 // pred_check
          %p190 = pneg %p52
        $region26: #{discriminator_forward.3} parent=23 // pred_check_branch
          %192 = sbr.rel (%p190) target = $region28
        $region27: #{discriminator_forward.3} parent=23 // pred_region
          %s193 = smul.u32 32, %s18
          %p194 = scmp.lt.s32.totalorder %s193, 63
          %s195 = scalar_select %p194, %s193, 63
          %p196 = scmp.lt.s32.totalorder %s20, 0
          %s197 = scalar_select %p196, %s20, 0
          %s198 = sadd.s32 %s197, %s195
          %s199 = smul.addr %s198, 4
          %s200 = scalar_lea.vmem %s0, %s199
          %s201 = smul.u32 32, %s18
        $region28: #{discriminator_forward.3} parent=23 // pred_fallthru
          _
      $region24: #{discriminator_forward.3} parent=5 // pred_fallthru
        _
      %p202 = scmp.le.s32.totalorder 1, %s11
      %p203 = scmp.lt.s32.totalorder %s11, 3
      %p204 = pnand %p202, %p203
      %p205 = pneg %p204
      // Predicated region
      $region29: #{discriminator_forward.3} parent=5 // pred_check
        _
      $region30: #{discriminator_forward.3} parent=5 // pred_check_branch
        %207 = sbr.rel (%p204) target = $region32
      $region31: #{discriminator_forward.3} parent=5 // pred_region
        %s208 = ssub.s32 %s11, 1
        // Predicated region
        $region33: #{discriminator_forward.3} parent=31 // pred_check
          %p209 = pneg %p86
        $region34: #{discriminator_forward.3} parent=31 // pred_check_branch
          %211 = sbr.rel (%p209) target = $region36
        $region35: #{discriminator_forward.3} parent=31 // pred_region
          %213 = dma.done [#allocation4], 128
        $region36: #{discriminator_forward.3} parent=31 // pred_fallthru
          _
        // Predicated region
        $region37: #{discriminator_forward.3} parent=31 // pred_check
          %p214 = pneg %p112
        $region38: #{discriminator_forward.3} parent=31 // pred_check_branch
          %216 = sbr.rel (%p214) target = $region40
        $region39: #{discriminator_forward.3} parent=31 // pred_region
          %218 = dma.done [#allocation6], 16
        $region40: #{discriminator_forward.3} parent=31 // pred_fallthru
          _
        %s219 = smul.u32 32, %s21
        %p220 = scmp.lt.s32.totalorder %s219, 63
        %s221 = scalar_select %p220, %s219, 63
        %p222 = scmp.lt.s32.totalorder %s23, 0
        %s223 = scalar_select %p222, %s23, 0
        %s224 = sadd.s32 %s223, %s221
        %s225 = smul.addr %s224, 4
        %s226 = scalar_lea.vmem %s0, %s225
        %p227 = pneg %p58
        %p228 = pneg %p55
        %p229 = pneg %p86
        %p230 = pneg %p83
        %p231 = pneg %p112
        %p232 = pneg %p109
        %p233 = pneg %p140
        %p234 = pneg %p137
        %s235 = smul.u32 32, %s21
        %p236 = scmp.lt.s32.totalorder %s235, 63
        %s237 = scalar_select %p236, %s235, 63
        %p238 = scmp.lt.s32.totalorder %s22, 0
        %s239 = scalar_select %p238, %s22, 0
        %s240 = sadd.s32 %s239, %s237
        %s241 = smul.addr %s240, 4
        %s242 = scalar_lea.vmem %s3, %s241
        %s243 = smul.u32 32, %s21
        %p244 = scmp.lt.s32.totalorder %s243, 63
        %s245 = scalar_select %p244, %s243, 63
        %p246 = scmp.lt.s32.totalorder %s23, 0
        %s247 = scalar_select %p246, %s23, 0
        %s248 = sadd.s32 %s247, %s245
        %s249 = smul.addr %s248, 4
        %s250 = scalar_lea.vmem %s0, %s249
        %s251 = smul.u32 32, %s21
        %s252 = smul.u32 2, %s23
        %s253 = smul.u32 32, %s21
        %p254 = scmp.lt.s32.totalorder %s253, 63
        %s255 = scalar_select %p254, %s253, 63
        %p256 = scmp.lt.s32.totalorder %s22, 0
        %s257 = scalar_select %p256, %s22, 0
        %s258 = sadd.s32 %s257, %s255
        %s259 = smul.addr %s258, 4
        %s260 = scalar_lea.vmem %s3, %s259
        %s261 = smul.u32 32, %s21
        %p263 = scmp.eq.s32.totalorder %s23, 0
        // Predicated region
        $region41: #{discriminator_forward.3} parent=31 // pred_check
          %p264 = pneg %p263
        $region42: #{discriminator_forward.3} parent=31 // pred_check_branch
          %266 = sbr.rel (%p264) target = $region44
        $region43: #{discriminator_forward.3} parent=31 // pred_region
          %267 = vst [vmem:[#allocation2] sm:$0xff] 0.0
          %268 = vst [vmem:[#allocation2 + $0x8] sm:$0xff] 0.0
          %269 = vst [vmem:[#allocation2 + $0x10] sm:$0xff] 0.0
          %270 = vst [vmem:[#allocation2 + $0x18] sm:$0xff] 0.0
          %271 = vst [vmem:[#allocation2 + $0x20] sm:$0xff] 0.0
          %272 = vst [vmem:[#allocation2 + $0x28] sm:$0xff] 0.0
          %273 = vst [vmem:[#allocation2 + $0x30] sm:$0xff] 0.0
          %274 = vst [vmem:[#allocation2 + $0x38] sm:$0xff] 0.0
          %275 = vst [vmem:[#allocation2 + $0x40] sm:$0xff] 0.0
          %276 = vst [vmem:[#allocation2 + $0x48] sm:$0xff] 0.0
          %277 = vst [vmem:[#allocation2 + $0x50] sm:$0xff] 0.0
          %278 = vst [vmem:[#allocation2 + $0x58] sm:$0xff] 0.0
          %279 = vst [vmem:[#allocation2 + $0x60] sm:$0xff] 0.0
          %280 = vst [vmem:[#allocation2 + $0x68] sm:$0xff] 0.0
          %281 = vst [vmem:[#allocation2 + $0x70] sm:$0xff] 0.0
          %282 = vst [vmem:[#allocation2 + $0x78] sm:$0xff] 0.0
          %283 = vst [vmem:[#allocation2 + $0x80] sm:$0xff] 0.0
          %284 = vst [vmem:[#allocation2 + $0x88] sm:$0xff] 0.0
          %285 = vst [vmem:[#allocation2 + $0x90] sm:$0xff] 0.0
          %286 = vst [vmem:[#allocation2 + $0x98] sm:$0xff] 0.0
          %287 = vst [vmem:[#allocation2 + $0xa0] sm:$0xff] 0.0
          %288 = vst [vmem:[#allocation2 + $0xa8] sm:$0xff] 0.0
          %289 = vst [vmem:[#allocation2 + $0xb0] sm:$0xff] 0.0
          %290 = vst [vmem:[#allocation2 + $0xb8] sm:$0xff] 0.0
          %291 = vst [vmem:[#allocation2 + $0xc0] sm:$0xff] 0.0
          %292 = vst [vmem:[#allocation2 + $0xc8] sm:$0xff] 0.0
          %293 = vst [vmem:[#allocation2 + $0xd0] sm:$0xff] 0.0
          %294 = vst [vmem:[#allocation2 + $0xd8] sm:$0xff] 0.0
          %295 = vst [vmem:[#allocation2 + $0xe0] sm:$0xff] 0.0
          %296 = vst [vmem:[#allocation2 + $0xe8] sm:$0xff] 0.0
          %297 = vst [vmem:[#allocation2 + $0xf0] sm:$0xff] 0.0
          %298 = vst [vmem:[#allocation2 + $0xf8] sm:$0xff] 0.0
        $region44: #{discriminator_forward.3} parent=31 // pred_fallthru
          _
        %v299 = vld [vmem:[#allocation2] sm:$0xff]
        %v300 = vld [vmem:[#allocation2 + $0x8] sm:$0xff]
        %v301 = vld [vmem:[#allocation2 + $0x10] sm:$0xff]
        %v302 = vld [vmem:[#allocation2 + $0x18] sm:$0xff]
        %v303 = vld [vmem:[#allocation2 + $0x20] sm:$0xff]
        %v304 = vld [vmem:[#allocation2 + $0x28] sm:$0xff]
        %v305 = vld [vmem:[#allocation2 + $0x30] sm:$0xff]
        %v306 = vld [vmem:[#allocation2 + $0x38] sm:$0xff]
        %v307 = vld [vmem:[#allocation2 + $0x40] sm:$0xff]
        %v308 = vld [vmem:[#allocation2 + $0x48] sm:$0xff]
        %v309 = vld [vmem:[#allocation2 + $0x50] sm:$0xff]
        %v310 = vld [vmem:[#allocation2 + $0x58] sm:$0xff]
        %v311 = vld [vmem:[#allocation2 + $0x60] sm:$0xff]
        %v312 = vld [vmem:[#allocation2 + $0x68] sm:$0xff]
        %v313 = vld [vmem:[#allocation2 + $0x70] sm:$0xff]
        %v314 = vld [vmem:[#allocation2 + $0x78] sm:$0xff]
        %v315 = vld [vmem:[#allocation2 + $0x80] sm:$0xff]
        %v316 = vld [vmem:[#allocation2 + $0x88] sm:$0xff]
        %v317 = vld [vmem:[#allocation2 + $0x90] sm:$0xff]
        %v318 = vld [vmem:[#allocation2 + $0x98] sm:$0xff]
        %v319 = vld [vmem:[#allocation2 + $0xa0] sm:$0xff]
        %v320 = vld [vmem:[#allocation2 + $0xa8] sm:$0xff]
        %v321 = vld [vmem:[#allocation2 + $0xb0] sm:$0xff]
        %v322 = vld [vmem:[#allocation2 + $0xb8] sm:$0xff]
        %v323 = vld [vmem:[#allocation2 + $0xc0] sm:$0xff]
        %v324 = vld [vmem:[#allocation2 + $0xc8] sm:$0xff]
        %v325 = vld [vmem:[#allocation2 + $0xd0] sm:$0xff]
        %v326 = vld [vmem:[#allocation2 + $0xd8] sm:$0xff]
        %v327 = vld [vmem:[#allocation2 + $0xe0] sm:$0xff]
        %v328 = vld [vmem:[#allocation2 + $0xe8] sm:$0xff]
        %v329 = vld [vmem:[#allocation2 + $0xf0] sm:$0xff]
        %v330 = vld [vmem:[#allocation2 + $0xf8] sm:$0xff]
        %v331 = vld [vmem:[%s250] sm:$0xf]
        %v332 = vld [vmem:[%s250 + $0x4] sm:$0xf]
        %v333 = vld [vmem:[%s250 + $0x8] sm:$0xf]
        %v334 = vld [vmem:[%s250 + $0xc] sm:$0xf]
        %v335 = vld [vmem:[%s250 + $0x10] sm:$0xf]
        %v336 = vld [vmem:[%s250 + $0x14] sm:$0xf]
        %v337 = vld [vmem:[%s250 + $0x18] sm:$0xf]
        %v338 = vld [vmem:[%s250 + $0x1c] sm:$0xf]
        %v339 = vld [vmem:[%s250 + $0x20] sm:$0xf]
        %v340 = vld [vmem:[%s250 + $0x24] sm:$0xf]
        %v341 = vld [vmem:[%s250 + $0x28] sm:$0xf]
        %v342 = vld [vmem:[%s250 + $0x2c] sm:$0xf]
        %v343 = vld [vmem:[%s250 + $0x30] sm:$0xf]
        %v344 = vld [vmem:[%s250 + $0x34] sm:$0xf]
        %v345 = vld [vmem:[%s250 + $0x38] sm:$0xf]
        %v346 = vld [vmem:[%s250 + $0x3c] sm:$0xf]
        %v347 = vld [vmem:[%s250 + $0x40] sm:$0xf]
        %v348 = vld [vmem:[%s250 + $0x44] sm:$0xf]
        %v349 = vld [vmem:[%s250 + $0x48] sm:$0xf]
        %v350 = vld [vmem:[%s250 + $0x4c] sm:$0xf]
        %v351 = vld [vmem:[%s250 + $0x50] sm:$0xf]
        %v352 = vld [vmem:[%s250 + $0x54] sm:$0xf]
        %v353 = vld [vmem:[%s250 + $0x58] sm:$0xf]
        %v354 = vld [vmem:[%s250 + $0x5c] sm:$0xf]
        %v355 = vld [vmem:[%s250 + $0x60] sm:$0xf]
        %v356 = vld [vmem:[%s250 + $0x64] sm:$0xf]
        %v357 = vld [vmem:[%s250 + $0x68] sm:$0xf]
        %v358 = vld [vmem:[%s250 + $0x6c] sm:$0xf]
        %v359 = vld [vmem:[%s250 + $0x70] sm:$0xf]
        %v360 = vld [vmem:[%s250 + $0x74] sm:$0xf]
        %v361 = vld [vmem:[%s250 + $0x78] sm:$0xf]
        %v362 = vld [vmem:[%s250 + $0x7c] sm:$0xf]
        %v363 = vld [vmem:[#allocation3] sm:$0xf]
        %v364 = vld [vmem:[#allocation3 + $0x4] sm:$0xf]
        %v397 = vunpack.c.l.b16 %v331
        %v398 = vunpack.c.l.b16 %v332
        %v399 = vunpack.c.l.b16 %v333
        %v400 = vunpack.c.l.b16 %v334
        %v401 = vunpack.c.l.b16 %v335
        %v402 = vunpack.c.l.b16 %v336
        %v403 = vunpack.c.l.b16 %v337
        %v404 = vunpack.c.l.b16 %v338
        %v405 = vunpack.c.l.b16 %v339
        %v406 = vunpack.c.l.b16 %v340
        %v407 = vunpack.c.l.b16 %v341
        %v408 = vunpack.c.l.b16 %v342
        %v409 = vunpack.c.l.b16 %v343
        %v410 = vunpack.c.l.b16 %v344
        %v411 = vunpack.c.l.b16 %v345
        %v412 = vunpack.c.l.b16 %v346
        %v413 = vunpack.c.l.b16 %v347
        %v414 = vunpack.c.l.b16 %v348
        %v415 = vunpack.c.l.b16 %v349
        %v416 = vunpack.c.l.b16 %v350
        %v417 = vunpack.c.l.b16 %v351
        %v418 = vunpack.c.l.b16 %v352
        %v419 = vunpack.c.l.b16 %v353
        %v420 = vunpack.c.l.b16 %v354
        %v421 = vunpack.c.l.b16 %v355
        %v422 = vunpack.c.l.b16 %v356
        %v423 = vunpack.c.l.b16 %v357
        %v424 = vunpack.c.l.b16 %v358
        %v425 = vunpack.c.l.b16 %v359
        %v426 = vunpack.c.l.b16 %v360
        %v427 = vunpack.c.l.b16 %v361
        %v428 = vunpack.c.l.b16 %v362
        %v429 = vpack.c.b16 %v398, %v397
        %v430 = vpack.c.b16 %v400, %v399
        %v431 = vpack.c.b16 %v402, %v401
        %v432 = vpack.c.b16 %v404, %v403
        %v433 = vpack.c.b16 %v406, %v405
        %v434 = vpack.c.b16 %v408, %v407
        %v435 = vpack.c.b16 %v410, %v409
        %v436 = vpack.c.b16 %v412, %v411
        %v437 = vpack.c.b16 %v414, %v413
        %v438 = vpack.c.b16 %v416, %v415
        %v439 = vpack.c.b16 %v418, %v417
        %v440 = vpack.c.b16 %v420, %v419
        %v441 = vpack.c.b16 %v422, %v421
        %v442 = vpack.c.b16 %v424, %v423
        %v443 = vpack.c.b16 %v426, %v425
        %v444 = vpack.c.b16 %v428, %v427
        %v447 = vunpack.c.l.b16 %v363
        %v448 = vunpack.c.l.b16 %v364
        %v449 = vpack.c.b16 %v448, %v447
        %vm451 = vcmask 130048
        %v453 = vsel %vm451, %v429, 0
        %v456 = vsel %vm451, %v430, 0
        %v459 = vsel %vm451, %v431, 0
        %v462 = vsel %vm451, %v432, 0
        %v465 = vsel %vm451, %v433, 0
        %v468 = vsel %vm451, %v434, 0
        %v471 = vsel %vm451, %v435, 0
        %v474 = vsel %vm451, %v436, 0
        %v477 = vsel %vm451, %v437, 0
        %v480 = vsel %vm451, %v438, 0
        %v483 = vsel %vm451, %v439, 0
        %v486 = vsel %vm451, %v440, 0
        %v489 = vsel %vm451, %v441, 0
        %v492 = vsel %vm451, %v442, 0
        %v495 = vsel %vm451, %v443, 0
        %v498 = vsel %vm451, %v444, 0
        %500 = vmatpush.bf16.msra.mxu0 0
        %501 = vmatpush.bf16.msra.mxu0 0
        %502 = vmatpush.bf16.msra.mxu0 0
        %503 = vmatpush.bf16.msra.mxu0 0
        %504 = vmatpush.bf16.msra.mxu0 0
        %505 = vmatpush.bf16.msra.mxu0 0
        %506 = vmatpush.bf16.msra.mxu0 0
        %507 = vmatpush.bf16.msra.mxu0 %v449
        %508 = vmatmul.bf16.gmra.mxu0 %v453
        %v509 = vpop.f32.mrf.mxu0
        %v510 = vadd.f32 0.0, %v509
        %v511 = vpop.f32.mrf.mxu0
        %v512 = vadd.f32 0.0, %v511
        %513 = vmatmul.bf16.gmra.mxu0 %v456
        %v514 = vpop.f32.mrf.mxu0
        %v515 = vadd.f32 0.0, %v514
        %v516 = vpop.f32.mrf.mxu0
        %v517 = vadd.f32 0.0, %v516
        %518 = vmatmul.bf16.gmra.mxu0 %v459
        %v519 = vpop.f32.mrf.mxu0
        %v520 = vadd.f32 0.0, %v519
        %v521 = vpop.f32.mrf.mxu0
        %v522 = vadd.f32 0.0, %v521
        %523 = vmatmul.bf16.gmra.mxu0 %v462
        %v524 = vpop.f32.mrf.mxu0
        %v525 = vadd.f32 0.0, %v524
        %v526 = vpop.f32.mrf.mxu0
        %v527 = vadd.f32 0.0, %v526
        %528 = vmatmul.bf16.gmra.mxu0 %v465
        %v529 = vpop.f32.mrf.mxu0
        %v530 = vadd.f32 0.0, %v529
        %v531 = vpop.f32.mrf.mxu0
        %v532 = vadd.f32 0.0, %v531
        %533 = vmatmul.bf16.gmra.mxu0 %v468
        %v534 = vpop.f32.mrf.mxu0
        %v535 = vadd.f32 0.0, %v534
        %v536 = vpop.f32.mrf.mxu0
        %v537 = vadd.f32 0.0, %v536
        %538 = vmatmul.bf16.gmra.mxu0 %v471
        %v539 = vpop.f32.mrf.mxu0
        %v540 = vadd.f32 0.0, %v539
        %v541 = vpop.f32.mrf.mxu0
        %v542 = vadd.f32 0.0, %v541
        %543 = vmatmul.bf16.gmra.mxu0 %v474
        %v544 = vpop.f32.mrf.mxu0
        %v545 = vadd.f32 0.0, %v544
        %v546 = vpop.f32.mrf.mxu0
        %v547 = vadd.f32 0.0, %v546
        %548 = vmatmul.bf16.gmra.mxu0 %v477
        %v549 = vpop.f32.mrf.mxu0
        %v550 = vadd.f32 0.0, %v549
        %v551 = vpop.f32.mrf.mxu0
        %v552 = vadd.f32 0.0, %v551
        %553 = vmatmul.bf16.gmra.mxu0 %v480
        %v554 = vpop.f32.mrf.mxu0
        %v555 = vadd.f32 0.0, %v554
        %v556 = vpop.f32.mrf.mxu0
        %v557 = vadd.f32 0.0, %v556
        %558 = vmatmul.bf16.gmra.mxu0 %v483
        %v559 = vpop.f32.mrf.mxu0
        %v560 = vadd.f32 0.0, %v559
        %v561 = vpop.f32.mrf.mxu0
        %v562 = vadd.f32 0.0, %v561
        %563 = vmatmul.bf16.gmra.mxu0 %v486
        %v564 = vpop.f32.mrf.mxu0
        %v565 = vadd.f32 0.0, %v564
        %v566 = vpop.f32.mrf.mxu0
        %v567 = vadd.f32 0.0, %v566
        %568 = vmatmul.bf16.gmra.mxu0 %v489
        %v569 = vpop.f32.mrf.mxu0
        %v570 = vadd.f32 0.0, %v569
        %v571 = vpop.f32.mrf.mxu0
        %v572 = vadd.f32 0.0, %v571
        %573 = vmatmul.bf16.gmra.mxu0 %v492
        %v574 = vpop.f32.mrf.mxu0
        %v575 = vadd.f32 0.0, %v574
        %v576 = vpop.f32.mrf.mxu0
        %v577 = vadd.f32 0.0, %v576
        %578 = vmatmul.bf16.gmra.mxu0 %v495
        %v579 = vpop.f32.mrf.mxu0
        %v580 = vadd.f32 0.0, %v579
        %v581 = vpop.f32.mrf.mxu0
        %v582 = vadd.f32 0.0, %v581
        %583 = vmatmul.bf16.gmra.mxu0 %v498
        %v584 = vpop.f32.mrf.mxu0
        %v585 = vadd.f32 0.0, %v584
        %v586 = vpop.f32.mrf.mxu0
        %v587 = vadd.f32 0.0, %v586
        %588 = vdwg.mxu0
        %v589 = vadd.f32 %v299, %v510
        %v590 = vadd.f32 %v300, %v512
        %v591 = vadd.f32 %v301, %v515
        %v592 = vadd.f32 %v302, %v517
        %v593 = vadd.f32 %v303, %v520
        %v594 = vadd.f32 %v304, %v522
        %v595 = vadd.f32 %v305, %v525
        %v596 = vadd.f32 %v306, %v527
        %v597 = vadd.f32 %v307, %v530
        %v598 = vadd.f32 %v308, %v532
        %v599 = vadd.f32 %v309, %v535
        %v600 = vadd.f32 %v310, %v537
        %v601 = vadd.f32 %v311, %v540
        %v602 = vadd.f32 %v312, %v542
        %v603 = vadd.f32 %v313, %v545
        %v604 = vadd.f32 %v314, %v547
        %v605 = vadd.f32 %v315, %v550
        %v606 = vadd.f32 %v316, %v552
        %v607 = vadd.f32 %v317, %v555
        %v608 = vadd.f32 %v318, %v557
        %v609 = vadd.f32 %v319, %v560
        %v610 = vadd.f32 %v320, %v562
        %v611 = vadd.f32 %v321, %v565
        %v612 = vadd.f32 %v322, %v567
        %v613 = vadd.f32 %v323, %v570
        %v614 = vadd.f32 %v324, %v572
        %v615 = vadd.f32 %v325, %v575
        %v616 = vadd.f32 %v326, %v577
        %v617 = vadd.f32 %v327, %v580
        %v618 = vadd.f32 %v328, %v582
        %v619 = vadd.f32 %v329, %v585
        %v620 = vadd.f32 %v330, %v587
        %621 = vst [vmem:[#allocation2] sm:$0xff] %v589
        %622 = vst [vmem:[#allocation2 + $0x8] sm:$0xff] %v590
        %623 = vst [vmem:[#allocation2 + $0x10] sm:$0xff] %v591
        %624 = vst [vmem:[#allocation2 + $0x18] sm:$0xff] %v592
        %625 = vst [vmem:[#allocation2 + $0x20] sm:$0xff] %v593
        %626 = vst [vmem:[#allocation2 + $0x28] sm:$0xff] %v594
        %627 = vst [vmem:[#allocation2 + $0x30] sm:$0xff] %v595
        %628 = vst [vmem:[#allocation2 + $0x38] sm:$0xff] %v596
        %629 = vst [vmem:[#allocation2 + $0x40] sm:$0xff] %v597
        %630 = vst [vmem:[#allocation2 + $0x48] sm:$0xff] %v598
        %631 = vst [vmem:[#allocation2 + $0x50] sm:$0xff] %v599
        %632 = vst [vmem:[#allocation2 + $0x58] sm:$0xff] %v600
        %633 = vst [vmem:[#allocation2 + $0x60] sm:$0xff] %v601
        %634 = vst [vmem:[#allocation2 + $0x68] sm:$0xff] %v602
        %635 = vst [vmem:[#allocation2 + $0x70] sm:$0xff] %v603
        %636 = vst [vmem:[#allocation2 + $0x78] sm:$0xff] %v604
        %637 = vst [vmem:[#allocation2 + $0x80] sm:$0xff] %v605
        %638 = vst [vmem:[#allocation2 + $0x88] sm:$0xff] %v606
        %639 = vst [vmem:[#allocation2 + $0x90] sm:$0xff] %v607
        %640 = vst [vmem:[#allocation2 + $0x98] sm:$0xff] %v608
        %641 = vst [vmem:[#allocation2 + $0xa0] sm:$0xff] %v609
        %642 = vst [vmem:[#allocation2 + $0xa8] sm:$0xff] %v610
        %643 = vst [vmem:[#allocation2 + $0xb0] sm:$0xff] %v611
        %644 = vst [vmem:[#allocation2 + $0xb8] sm:$0xff] %v612
        %645 = vst [vmem:[#allocation2 + $0xc0] sm:$0xff] %v613
        %646 = vst [vmem:[#allocation2 + $0xc8] sm:$0xff] %v614
        %647 = vst [vmem:[#allocation2 + $0xd0] sm:$0xff] %v615
        %648 = vst [vmem:[#allocation2 + $0xd8] sm:$0xff] %v616
        %649 = vst [vmem:[#allocation2 + $0xe0] sm:$0xff] %v617
        %650 = vst [vmem:[#allocation2 + $0xe8] sm:$0xff] %v618
        %651 = vst [vmem:[#allocation2 + $0xf0] sm:$0xff] %v619
        %652 = vst [vmem:[#allocation2 + $0xf8] sm:$0xff] %v620
        // Predicated region
        $region45: #{discriminator_forward.3} parent=31 // pred_check
          %p653 = pneg %p263
        $region46: #{discriminator_forward.3} parent=31 // pred_check_branch
          %655 = sbr.rel (%p653) target = $region48
        $region47: #{discriminator_forward.3} parent=31 // pred_region
          %v656 = vld [vmem:[#allocation2] sm:$0xff]
          %v657 = vld [vmem:[#allocation2 + $0x8] sm:$0xff]
          %v658 = vld [vmem:[#allocation2 + $0x10] sm:$0xff]
          %v659 = vld [vmem:[#allocation2 + $0x18] sm:$0xff]
          %v660 = vld [vmem:[#allocation2 + $0x20] sm:$0xff]
          %v661 = vld [vmem:[#allocation2 + $0x28] sm:$0xff]
          %v662 = vld [vmem:[#allocation2 + $0x30] sm:$0xff]
          %v663 = vld [vmem:[#allocation2 + $0x38] sm:$0xff]
          %v664 = vld [vmem:[#allocation2 + $0x40] sm:$0xff]
          %v665 = vld [vmem:[#allocation2 + $0x48] sm:$0xff]
          %v666 = vld [vmem:[#allocation2 + $0x50] sm:$0xff]
          %v667 = vld [vmem:[#allocation2 + $0x58] sm:$0xff]
          %v668 = vld [vmem:[#allocation2 + $0x60] sm:$0xff]
          %v669 = vld [vmem:[#allocation2 + $0x68] sm:$0xff]
          %v670 = vld [vmem:[#allocation2 + $0x70] sm:$0xff]
          %v671 = vld [vmem:[#allocation2 + $0x78] sm:$0xff]
          %v672 = vld [vmem:[#allocation2 + $0x80] sm:$0xff]
          %v673 = vld [vmem:[#allocation2 + $0x88] sm:$0xff]
          %v674 = vld [vmem:[#allocation2 + $0x90] sm:$0xff]
          %v675 = vld [vmem:[#allocation2 + $0x98] sm:$0xff]
          %v676 = vld [vmem:[#allocation2 + $0xa0] sm:$0xff]
          %v677 = vld [vmem:[#allocation2 + $0xa8] sm:$0xff]
          %v678 = vld [vmem:[#allocation2 + $0xb0] sm:$0xff]
          %v679 = vld [vmem:[#allocation2 + $0xb8] sm:$0xff]
          %v680 = vld [vmem:[#allocation2 + $0xc0] sm:$0xff]
          %v681 = vld [vmem:[#allocation2 + $0xc8] sm:$0xff]
          %v682 = vld [vmem:[#allocation2 + $0xd0] sm:$0xff]
          %v683 = vld [vmem:[#allocation2 + $0xd8] sm:$0xff]
          %v684 = vld [vmem:[#allocation2 + $0xe0] sm:$0xff]
          %v685 = vld [vmem:[#allocation2 + $0xe8] sm:$0xff]
          %v686 = vld [vmem:[#allocation2 + $0xf0] sm:$0xff]
          %v687 = vld [vmem:[#allocation2 + $0xf8] sm:$0xff]
          %v688 = vld [vmem:[#allocation5] sm:$0x1]
          %v690 = vperm.slane %v688, 0
          %v692 = vadd.f32 %v656, %v690
          %v693 = vadd.f32 %v657, %v690
          %v694 = vadd.f32 %v658, %v690
          %v695 = vadd.f32 %v659, %v690
          %v696 = vadd.f32 %v660, %v690
          %v697 = vadd.f32 %v661, %v690
          %v698 = vadd.f32 %v662, %v690
          %v699 = vadd.f32 %v663, %v690
          %v700 = vadd.f32 %v664, %v690
          %v701 = vadd.f32 %v665, %v690
          %v702 = vadd.f32 %v666, %v690
          %v703 = vadd.f32 %v667, %v690
          %v704 = vadd.f32 %v668, %v690
          %v705 = vadd.f32 %v669, %v690
          %v706 = vadd.f32 %v670, %v690
          %v707 = vadd.f32 %v671, %v690
          %v708 = vadd.f32 %v672, %v690
          %v709 = vadd.f32 %v673, %v690
          %v710 = vadd.f32 %v674, %v690
          %v711 = vadd.f32 %v675, %v690
          %v712 = vadd.f32 %v676, %v690
          %v713 = vadd.f32 %v677, %v690
          %v714 = vadd.f32 %v678, %v690
          %v715 = vadd.f32 %v679, %v690
          %v716 = vadd.f32 %v680, %v690
          %v717 = vadd.f32 %v681, %v690
          %v718 = vadd.f32 %v682, %v690
          %v719 = vadd.f32 %v683, %v690
          %v720 = vadd.f32 %v684, %v690
          %v721 = vadd.f32 %v685, %v690
          %v722 = vadd.f32 %v686, %v690
          %v723 = vadd.f32 %v687, %v690
          %vm724 = vcmp.ge.f32.partialorder %v692, 0.0
          %vm725 = vcmp.ge.f32.partialorder %v693, 0.0
          %vm726 = vcmp.ge.f32.partialorder %v694, 0.0
          %vm727 = vcmp.ge.f32.partialorder %v695, 0.0
          %vm728 = vcmp.ge.f32.partialorder %v696, 0.0
          %vm729 = vcmp.ge.f32.partialorder %v697, 0.0
          %vm730 = vcmp.ge.f32.partialorder %v698, 0.0
          %vm731 = vcmp.ge.f32.partialorder %v699, 0.0
          %vm732 = vcmp.ge.f32.partialorder %v700, 0.0
          %vm733 = vcmp.ge.f32.partialorder %v701, 0.0
          %vm734 = vcmp.ge.f32.partialorder %v702, 0.0
          %vm735 = vcmp.ge.f32.partialorder %v703, 0.0
          %vm736 = vcmp.ge.f32.partialorder %v704, 0.0
          %vm737 = vcmp.ge.f32.partialorder %v705, 0.0
          %vm738 = vcmp.ge.f32.partialorder %v706, 0.0
          %vm739 = vcmp.ge.f32.partialorder %v707, 0.0
          %vm740 = vcmp.ge.f32.partialorder %v708, 0.0
          %vm741 = vcmp.ge.f32.partialorder %v709, 0.0
          %vm742 = vcmp.ge.f32.partialorder %v710, 0.0
          %vm743 = vcmp.ge.f32.partialorder %v711, 0.0
          %vm744 = vcmp.ge.f32.partialorder %v712, 0.0
          %vm745 = vcmp.ge.f32.partialorder %v713, 0.0
          %vm746 = vcmp.ge.f32.partialorder %v714, 0.0
          %vm747 = vcmp.ge.f32.partialorder %v715, 0.0
          %vm748 = vcmp.ge.f32.partialorder %v716, 0.0
          %vm749 = vcmp.ge.f32.partialorder %v717, 0.0
          %vm750 = vcmp.ge.f32.partialorder %v718, 0.0
          %vm751 = vcmp.ge.f32.partialorder %v719, 0.0
          %vm752 = vcmp.ge.f32.partialorder %v720, 0.0
          %vm753 = vcmp.ge.f32.partialorder %v721, 0.0
          %vm754 = vcmp.ge.f32.partialorder %v722, 0.0
          %vm755 = vcmp.ge.f32.partialorder %v723, 0.0
          %v756 = vmul.f32 %v692, 0.2
          %v757 = vmul.f32 %v693, 0.2
          %v758 = vmul.f32 %v694, 0.2
          %v759 = vmul.f32 %v695, 0.2
          %v760 = vmul.f32 %v696, 0.2
          %v761 = vmul.f32 %v697, 0.2
          %v762 = vmul.f32 %v698, 0.2
          %v763 = vmul.f32 %v699, 0.2
          %v764 = vmul.f32 %v700, 0.2
          %v765 = vmul.f32 %v701, 0.2
          %v766 = vmul.f32 %v702, 0.2
          %v767 = vmul.f32 %v703, 0.2
          %v768 = vmul.f32 %v704, 0.2
          %v769 = vmul.f32 %v705, 0.2
          %v770 = vmul.f32 %v706, 0.2
          %v771 = vmul.f32 %v707, 0.2
          %v772 = vmul.f32 %v708, 0.2
          %v773 = vmul.f32 %v709, 0.2
          %v774 = vmul.f32 %v710, 0.2
          %v775 = vmul.f32 %v711, 0.2
          %v776 = vmul.f32 %v712, 0.2
          %v777 = vmul.f32 %v713, 0.2
          %v778 = vmul.f32 %v714, 0.2
          %v779 = vmul.f32 %v715, 0.2
          %v780 = vmul.f32 %v716, 0.2
          %v781 = vmul.f32 %v717, 0.2
          %v782 = vmul.f32 %v718, 0.2
          %v783 = vmul.f32 %v719, 0.2
          %v784 = vmul.f32 %v720, 0.2
          %v785 = vmul.f32 %v721, 0.2
          %v786 = vmul.f32 %v722, 0.2
          %v787 = vmul.f32 %v723, 0.2
          %v788 = vsel %vm724, %v692, %v756
          %v789 = vsel %vm725, %v693, %v757
          %v790 = vsel %vm726, %v694, %v758
          %v791 = vsel %vm727, %v695, %v759
          %v792 = vsel %vm728, %v696, %v760
          %v793 = vsel %vm729, %v697, %v761
          %v794 = vsel %vm730, %v698, %v762
          %v795 = vsel %vm731, %v699, %v763
          %v796 = vsel %vm732, %v700, %v764
          %v797 = vsel %vm733, %v701, %v765
          %v798 = vsel %vm734, %v702, %v766
          %v799 = vsel %vm735, %v703, %v767
          %v800 = vsel %vm736, %v704, %v768
          %v801 = vsel %vm737, %v705, %v769
          %v802 = vsel %vm738, %v706, %v770
          %v803 = vsel %vm739, %v707, %v771
          %v804 = vsel %vm740, %v708, %v772
          %v805 = vsel %vm741, %v709, %v773
          %v806 = vsel %vm742, %v710, %v774
          %v807 = vsel %vm743, %v711, %v775
          %v808 = vsel %vm744, %v712, %v776
          %v809 = vsel %vm745, %v713, %v777
          %v810 = vsel %vm746, %v714, %v778
          %v811 = vsel %vm747, %v715, %v779
          %v812 = vsel %vm748, %v716, %v780
          %v813 = vsel %vm749, %v717, %v781
          %v814 = vsel %vm750, %v718, %v782
          %v815 = vsel %vm751, %v719, %v783
          %v816 = vsel %vm752, %v720, %v784
          %v817 = vsel %vm753, %v721, %v785
          %v818 = vsel %vm754, %v722, %v786
          %v819 = vsel %vm755, %v723, %v787
          %v820 = vpack.c.bf16 %v788, %v788
          %v821 = vpack.c.bf16 %v789, %v789
          %v822 = vpack.c.bf16 %v790, %v790
          %v823 = vpack.c.bf16 %v791, %v791
          %v824 = vpack.c.bf16 %v792, %v792
          %v825 = vpack.c.bf16 %v793, %v793
          %v826 = vpack.c.bf16 %v794, %v794
          %v827 = vpack.c.bf16 %v795, %v795
          %v828 = vpack.c.bf16 %v796, %v796
          %v829 = vpack.c.bf16 %v797, %v797
          %v830 = vpack.c.bf16 %v798, %v798
          %v831 = vpack.c.bf16 %v799, %v799
          %v832 = vpack.c.bf16 %v800, %v800
          %v833 = vpack.c.bf16 %v801, %v801
          %v834 = vpack.c.bf16 %v802, %v802
          %v835 = vpack.c.bf16 %v803, %v803
          %v836 = vpack.c.bf16 %v804, %v804
          %v837 = vpack.c.bf16 %v805, %v805
          %v838 = vpack.c.bf16 %v806, %v806
          %v839 = vpack.c.bf16 %v807, %v807
          %v840 = vpack.c.bf16 %v808, %v808
          %v841 = vpack.c.bf16 %v809, %v809
          %v842 = vpack.c.bf16 %v810, %v810
          %v843 = vpack.c.bf16 %v811, %v811
          %v844 = vpack.c.bf16 %v812, %v812
          %v845 = vpack.c.bf16 %v813, %v813
          %v846 = vpack.c.bf16 %v814, %v814
          %v847 = vpack.c.bf16 %v815, %v815
          %v848 = vpack.c.bf16 %v816, %v816
          %v849 = vpack.c.bf16 %v817, %v817
          %v850 = vpack.c.bf16 %v818, %v818
          %v851 = vpack.c.bf16 %v819, %v819
          %852 = vst [vmem:[%s260] sm:$0xf] %v820
          %853 = vst [vmem:[%s260 + $0x4] sm:$0xf] %v821
          %854 = vst [vmem:[%s260 + $0x8] sm:$0xf] %v822
          %855 = vst [vmem:[%s260 + $0xc] sm:$0xf] %v823
          %856 = vst [vmem:[%s260 + $0x10] sm:$0xf] %v824
          %857 = vst [vmem:[%s260 + $0x14] sm:$0xf] %v825
          %858 = vst [vmem:[%s260 + $0x18] sm:$0xf] %v826
          %859 = vst [vmem:[%s260 + $0x1c] sm:$0xf] %v827
          %860 = vst [vmem:[%s260 + $0x20] sm:$0xf] %v828
          %861 = vst [vmem:[%s260 + $0x24] sm:$0xf] %v829
          %862 = vst [vmem:[%s260 + $0x28] sm:$0xf] %v830
          %863 = vst [vmem:[%s260 + $0x2c] sm:$0xf] %v831
          %864 = vst [vmem:[%s260 + $0x30] sm:$0xf] %v832
          %865 = vst [vmem:[%s260 + $0x34] sm:$0xf] %v833
          %866 = vst [vmem:[%s260 + $0x38] sm:$0xf] %v834
          %867 = vst [vmem:[%s260 + $0x3c] sm:$0xf] %v835
          %868 = vst [vmem:[%s260 + $0x40] sm:$0xf] %v836
          %869 = vst [vmem:[%s260 + $0x44] sm:$0xf] %v837
          %870 = vst [vmem:[%s260 + $0x48] sm:$0xf] %v838
          %871 = vst [vmem:[%s260 + $0x4c] sm:$0xf] %v839
          %872 = vst [vmem:[%s260 + $0x50] sm:$0xf] %v840
          %873 = vst [vmem:[%s260 + $0x54] sm:$0xf] %v841
          %874 = vst [vmem:[%s260 + $0x58] sm:$0xf] %v842
          %875 = vst [vmem:[%s260 + $0x5c] sm:$0xf] %v843
          %876 = vst [vmem:[%s260 + $0x60] sm:$0xf] %v844
          %877 = vst [vmem:[%s260 + $0x64] sm:$0xf] %v845
          %878 = vst [vmem:[%s260 + $0x68] sm:$0xf] %v846
          %879 = vst [vmem:[%s260 + $0x6c] sm:$0xf] %v847
          %880 = vst [vmem:[%s260 + $0x70] sm:$0xf] %v848
          %881 = vst [vmem:[%s260 + $0x74] sm:$0xf] %v849
          %882 = vst [vmem:[%s260 + $0x78] sm:$0xf] %v850
          %883 = vst [vmem:[%s260 + $0x7c] sm:$0xf] %v851
        $region48: #{discriminator_forward.3} parent=31 // pred_fallthru
          _
        %s884 = smul.u32 32, %s21
        %p885 = scmp.lt.s32.totalorder %s884, 63
        %s886 = scalar_select %p885, %s884, 63
        %p887 = scmp.lt.s32.totalorder %s22, 0
        %s888 = scalar_select %p887, %s22, 0
        %s889 = sadd.s32 %s888, %s886
        %s890 = smul.addr %s889, 4
        %s891 = scalar_lea.vmem %s3, %s890
        // Predicated region
        $region49: #{discriminator_forward.3} parent=31 // pred_check
          %p892 = pneg %p137
        $region50: #{discriminator_forward.3} parent=31 // pred_check_branch
          %894 = sbr.rel (%p892) target = $region52
        $region51: #{discriminator_forward.3} parent=31 // pred_region
          %s895 = smul.u32 32, %s21
        $region52: #{discriminator_forward.3} parent=31 // pred_fallthru
          _
      $region32: #{discriminator_forward.3} parent=5 // pred_fallthru
        _
      %p896 = scmp.le.s32.totalorder 2, %s11
      // Predicated region
      $region53: #{discriminator_forward.3} parent=5 // pred_check
        %p897 = pneg %p896
      $region54: #{discriminator_forward.3} parent=5 // pred_check_branch
        %899 = sbr.rel (%p897) target = $region56
      $region55: #{discriminator_forward.3} parent=5 // pred_region
        %s900 = ssub.s32 %s11, 2
        // Predicated region
        $region57: #{discriminator_forward.3} parent=55 // pred_check
          %p901 = pneg %p143
        $region58: #{discriminator_forward.3} parent=55 // pred_check_branch
          %903 = sbr.rel (%p901) target = $region60
        $region59: #{discriminator_forward.3} parent=55 // pred_region
          %s904 = smul.u32 32, %s24
          %p905 = scmp.lt.s32.totalorder %s904, 63
          %s906 = scalar_select %p905, %s904, 63
          %p907 = scmp.lt.s32.totalorder %s25, 0
          %s908 = scalar_select %p907, %s25, 0
          %s909 = sadd.s32 %s908, %s906
          %s910 = smul.addr %s909, 4
          %s911 = scalar_lea.vmem %s3, %s910
        $region60: #{discriminator_forward.3} parent=55 // pred_fallthru
          _
      $region56: #{discriminator_forward.3} parent=5 // pred_fallthru
        _
    $region6: #{discriminator_forward.3} parent=1 // loop_footer
      %s15 = sadd.s32 1, %s11
    $region7: #{discriminator_forward.3} parent=1 // loop_footer_branch
      %10 = sbr.rel target = $region3
    $region8: #{discriminator_forward.3} parent=1 // loop_exit
      _
    %912 = vsyncpa [#allocation4], 1
    %s913 = scalar_lea.sflag [#allocation4], 1
    %914 = vsyncpa %s913, 1
    %915 = vsyncpa [#allocation6], 1

// kernel: discriminator_forward.4
$region0: #{discriminator_forward.4}
  #allocation0 [shape = 'u32[]', space=smem, size = 0x4, offset = 0x4, fixed_abs, tag = 'smem constant byte address 0x4 - core index']
  #allocation1 [shape = 'u32[72,128]{1,0:T(1,128)}', space=vmem, size = 0x9000, scoped, tag = 'internal scratch']
  #allocation2 [shape = 'f32[128,128]{1,0:T(8,128)}', space=vmem, size = 0x10000, scoped, tag = 'scratch operand']
  %s0 = inlined_call_operand.vmem [shape: bf16[128,2048], index: 0, kind: input, shape index: {}]
  %s1 = inlined_call_operand.vmem [shape: bf16[2048,128], index: 1, kind: input, shape index: {}]
  %s2 = inlined_call_operand.vmem [shape: f32[1,128], index: 2, kind: input, shape index: {}]
  %s3 = inlined_call_operand.vmem [shape: bf16[128,128], index: 3, kind: output, shape index: {}]
  %s4 = sld [smem:[#allocation0]]
  $region30: #{discriminator_forward.4} parent=0
    _
  %s6 = ssub.s32 1, %s4
  %s7 = scalar_select 0, %s6, %s4
  // Predicated region
  $region2: #{discriminator_forward.4} parent=0 // pred_check
    _
  $region3: #{discriminator_forward.4} parent=0 // pred_check_branch
    %9 = sbr.rel (0) target = $region5
  $region4: #{discriminator_forward.4} parent=0 // pred_region
    _
  $region5: #{discriminator_forward.4} parent=0 // pred_fallthru
    _
  // Predicated region
  $region6: #{discriminator_forward.4} parent=0 // pred_check
    _
  $region7: #{discriminator_forward.4} parent=0 // pred_check_branch
    %11 = sbr.rel (0) target = $region9
  $region8: #{discriminator_forward.4} parent=0 // pred_region
    _
  $region9: #{discriminator_forward.4} parent=0 // pred_fallthru
    _
  // Predicated region
  $region10: #{discriminator_forward.4} parent=0 // pred_check
    _
  $region11: #{discriminator_forward.4} parent=0 // pred_check_branch
    %13 = sbr.rel (0) target = $region13
  $region12: #{discriminator_forward.4} parent=0 // pred_region
    _
  $region13: #{discriminator_forward.4} parent=0 // pred_fallthru
    _
  %p14 = scmp.eq.s32.totalorder 0, 0
  // Predicated region
  $region14: #{discriminator_forward.4} parent=0 // pred_check
    %p15 = pneg %p14
  $region15: #{discriminator_forward.4} parent=0 // pred_check_branch
    %17 = sbr.rel (%p15) target = $region17
  $region16: #{discriminator_forward.4} parent=0 // pred_region
    %18 = vst [vmem:[#allocation2] sm:$0xff] 0.0
    %19 = vst [vmem:[#allocation2 + $0x8] sm:$0xff] 0.0
    %20 = vst [vmem:[#allocation2 + $0x10] sm:$0xff] 0.0
    %21 = vst [vmem:[#allocation2 + $0x18] sm:$0xff] 0.0
    %22 = vst [vmem:[#allocation2 + $0x20] sm:$0xff] 0.0
    %23 = vst [vmem:[#allocation2 + $0x28] sm:$0xff] 0.0
    %24 = vst [vmem:[#allocation2 + $0x30] sm:$0xff] 0.0
    %25 = vst [vmem:[#allocation2 + $0x38] sm:$0xff] 0.0
    %26 = vst [vmem:[#allocation2 + $0x40] sm:$0xff] 0.0
    %27 = vst [vmem:[#allocation2 + $0x48] sm:$0xff] 0.0
    %28 = vst [vmem:[#allocation2 + $0x50] sm:$0xff] 0.0
    %29 = vst [vmem:[#allocation2 + $0x58] sm:$0xff] 0.0
    %30 = vst [vmem:[#allocation2 + $0x60] sm:$0xff] 0.0
    %31 = vst [vmem:[#allocation2 + $0x68] sm:$0xff] 0.0
    %32 = vst [vmem:[#allocation2 + $0x70] sm:$0xff] 0.0
    %33 = vst [vmem:[#allocation2 + $0x78] sm:$0xff] 0.0
  $region17: #{discriminator_forward.4} parent=0 // pred_fallthru
    _
  %v34 = vld [vmem:[#allocation2] sm:$0xff]
  %v35 = vld [vmem:[#allocation2 + $0x8] sm:$0xff]
  %v36 = vld [vmem:[#allocation2 + $0x10] sm:$0xff]
  %v37 = vld [vmem:[#allocation2 + $0x18] sm:$0xff]
  %v38 = vld [vmem:[#allocation2 + $0x20] sm:$0xff]
  %v39 = vld [vmem:[#allocation2 + $0x28] sm:$0xff]
  %v40 = vld [vmem:[#allocation2 + $0x30] sm:$0xff]
  %v41 = vld [vmem:[#allocation2 + $0x38] sm:$0xff]
  %v42 = vld [vmem:[#allocation2 + $0x40] sm:$0xff]
  %v43 = vld [vmem:[#allocation2 + $0x48] sm:$0xff]
  %v44 = vld [vmem:[#allocation2 + $0x50] sm:$0xff]
  %v45 = vld [vmem:[#allocation2 + $0x58] sm:$0xff]
  %v46 = vld [vmem:[#allocation2 + $0x60] sm:$0xff]
  %v47 = vld [vmem:[#allocation2 + $0x68] sm:$0xff]
  %v48 = vld [vmem:[#allocation2 + $0x70] sm:$0xff]
  %v49 = vld [vmem:[#allocation2 + $0x78] sm:$0xff]
  %v50 = vld [vmem:[%s0] sm:$0xff]
  %v51 = vld [vmem:[%s0 + $0x8] sm:$0xff]
  %v52 = vld [vmem:[%s0 + $0x10] sm:$0xff]
  %v53 = vld [vmem:[%s0 + $0x18] sm:$0xff]
  %v54 = vld [vmem:[%s0 + $0x20] sm:$0xff]
  %v55 = vld [vmem:[%s0 + $0x28] sm:$0xff]
  %v56 = vld [vmem:[%s0 + $0x30] sm:$0xff]
  %v57 = vld [vmem:[%s0 + $0x38] sm:$0xff]
  %v58 = vld [vmem:[%s0 + $0x40] sm:$0xff]
  %v59 = vld [vmem:[%s0 + $0x48] sm:$0xff]
  %v60 = vld [vmem:[%s0 + $0x50] sm:$0xff]
  %v61 = vld [vmem:[%s0 + $0x58] sm:$0xff]
  %v62 = vld [vmem:[%s0 + $0x60] sm:$0xff]
  %v63 = vld [vmem:[%s0 + $0x68] sm:$0xff]
  %v64 = vld [vmem:[%s0 + $0x70] sm:$0xff]
  %v65 = vld [vmem:[%s0 + $0x78] sm:$0xff]
  %v66 = vld [vmem:[%s0 + $0x80] sm:$0xff]
  %v67 = vld [vmem:[%s0 + $0x88] sm:$0xff]
  %v68 = vld [vmem:[%s0 + $0x90] sm:$0xff]
  %v69 = vld [vmem:[%s0 + $0x98] sm:$0xff]
  %v70 = vld [vmem:[%s0 + $0xa0] sm:$0xff]
  %v71 = vld [vmem:[%s0 + $0xa8] sm:$0xff]
  %v72 = vld [vmem:[%s0 + $0xb0] sm:$0xff]
  %v73 = vld [vmem:[%s0 + $0xb8] sm:$0xff]
  %v74 = vld [vmem:[%s0 + $0xc0] sm:$0xff]
  %v75 = vld [vmem:[%s0 + $0xc8] sm:$0xff]
  %v76 = vld [vmem:[%s0 + $0xd0] sm:$0xff]
  %v77 = vld [vmem:[%s0 + $0xd8] sm:$0xff]
  %v78 = vld [vmem:[%s0 + $0xe0] sm:$0xff]
  %v79 = vld [vmem:[%s0 + $0xe8] sm:$0xff]
  %v80 = vld [vmem:[%s0 + $0xf0] sm:$0xff]
  %v81 = vld [vmem:[%s0 + $0xf8] sm:$0xff]
  %v82 = vld [vmem:[%s0 + $0x100] sm:$0xff]
  %v83 = vld [vmem:[%s0 + $0x108] sm:$0xff]
  %v84 = vld [vmem:[%s0 + $0x110] sm:$0xff]
  %v85 = vld [vmem:[%s0 + $0x118] sm:$0xff]
  %v86 = vld [vmem:[%s0 + $0x120] sm:$0xff]
  %v87 = vld [vmem:[%s0 + $0x128] sm:$0xff]
  %v88 = vld [vmem:[%s0 + $0x130] sm:$0xff]
  %v89 = vld [vmem:[%s0 + $0x138] sm:$0xff]
  %v90 = vld [vmem:[%s0 + $0x140] sm:$0xff]
  %v91 = vld [vmem:[%s0 + $0x148] sm:$0xff]
  %v92 = vld [vmem:[%s0 + $0x150] sm:$0xff]
  %v93 = vld [vmem:[%s0 + $0x158] sm:$0xff]
  %v94 = vld [vmem:[%s0 + $0x160] sm:$0xff]
  %v95 = vld [vmem:[%s0 + $0x168] sm:$0xff]
  %v96 = vld [vmem:[%s0 + $0x170] sm:$0xff]
  %v97 = vld [vmem:[%s0 + $0x178] sm:$0xff]
  %v98 = vld [vmem:[%s0 + $0x180] sm:$0xff]
  %v99 = vld [vmem:[%s0 + $0x188] sm:$0xff]
  %v100 = vld [vmem:[%s0 + $0x190] sm:$0xff]
  %v101 = vld [vmem:[%s0 + $0x198] sm:$0xff]
  %v102 = vld [vmem:[%s0 + $0x1a0] sm:$0xff]
  %v103 = vld [vmem:[%s0 + $0x1a8] sm:$0xff]
  %v104 = vld [vmem:[%s0 + $0x1b0] sm:$0xff]
  %v105 = vld [vmem:[%s0 + $0x1b8] sm:$0xff]
  %v106 = vld [vmem:[%s0 + $0x1c0] sm:$0xff]
  %v107 = vld [vmem:[%s0 + $0x1c8] sm:$0xff]
  %v108 = vld [vmem:[%s0 + $0x1d0] sm:$0xff]
  %v109 = vld [vmem:[%s0 + $0x1d8] sm:$0xff]
  %v110 = vld [vmem:[%s0 + $0x1e0] sm:$0xff]
  %v111 = vld [vmem:[%s0 + $0x1e8] sm:$0xff]
  %v112 = vld [vmem:[%s0 + $0x1f0] sm:$0xff]
  %v113 = vld [vmem:[%s0 + $0x1f8] sm:$0xff]
  %v114 = vld [vmem:[%s0 + $0x200] sm:$0xff]
  %v115 = vld [vmem:[%s0 + $0x208] sm:$0xff]
  %v116 = vld [vmem:[%s0 + $0x210] sm:$0xff]
  %v117 = vld [vmem:[%s0 + $0x218] sm:$0xff]
  %v118 = vld [vmem:[%s0 + $0x220] sm:$0xff]
  %v119 = vld [vmem:[%s0 + $0x228] sm:$0xff]
  %v120 = vld [vmem:[%s0 + $0x230] sm:$0xff]
  %v121 = vld [vmem:[%s0 + $0x238] sm:$0xff]
  %v122 = vld [vmem:[%s0 + $0x240] sm:$0xff]
  %v123 = vld [vmem:[%s0 + $0x248] sm:$0xff]
  %v124 = vld [vmem:[%s0 + $0x250] sm:$0xff]
  %v125 = vld [vmem:[%s0 + $0x258] sm:$0xff]
  %v126 = vld [vmem:[%s0 + $0x260] sm:$0xff]
  %v127 = vld [vmem:[%s0 + $0x268] sm:$0xff]
  %v128 = vld [vmem:[%s0 + $0x270] sm:$0xff]
  %v129 = vld [vmem:[%s0 + $0x278] sm:$0xff]
  %v130 = vld [vmem:[%s0 + $0x280] sm:$0xff]
  %v131 = vld [vmem:[%s0 + $0x288] sm:$0xff]
  %v132 = vld [vmem:[%s0 + $0x290] sm:$0xff]
  %v133 = vld [vmem:[%s0 + $0x298] sm:$0xff]
  %v134 = vld [vmem:[%s0 + $0x2a0] sm:$0xff]
  %v135 = vld [vmem:[%s0 + $0x2a8] sm:$0xff]
  %v136 = vld [vmem:[%s0 + $0x2b0] sm:$0xff]
  %v137 = vld [vmem:[%s0 + $0x2b8] sm:$0xff]
  %v138 = vld [vmem:[%s0 + $0x2c0] sm:$0xff]
  %v139 = vld [vmem:[%s0 + $0x2c8] sm:$0xff]
  %v140 = vld [vmem:[%s0 + $0x2d0] sm:$0xff]
  %v141 = vld [vmem:[%s0 + $0x2d8] sm:$0xff]
  %v142 = vld [vmem:[%s0 + $0x2e0] sm:$0xff]
  %v143 = vld [vmem:[%s0 + $0x2e8] sm:$0xff]
  %v144 = vld [vmem:[%s0 + $0x2f0] sm:$0xff]
  %v145 = vld [vmem:[%s0 + $0x2f8] sm:$0xff]
  %v146 = vld [vmem:[%s0 + $0x300] sm:$0xff]
  %v147 = vld [vmem:[%s0 + $0x308] sm:$0xff]
  %v148 = vld [vmem:[%s0 + $0x310] sm:$0xff]
  %v149 = vld [vmem:[%s0 + $0x318] sm:$0xff]
  %v150 = vld [vmem:[%s0 + $0x320] sm:$0xff]
  %v151 = vld [vmem:[%s0 + $0x328] sm:$0xff]
  %v152 = vld [vmem:[%s0 + $0x330] sm:$0xff]
  %v153 = vld [vmem:[%s0 + $0x338] sm:$0xff]
  %v154 = vld [vmem:[%s0 + $0x340] sm:$0xff]
  %v155 = vld [vmem:[%s0 + $0x348] sm:$0xff]
  %v156 = vld [vmem:[%s0 + $0x350] sm:$0xff]
  %v157 = vld [vmem:[%s0 + $0x358] sm:$0xff]
  %v158 = vld [vmem:[%s0 + $0x360] sm:$0xff]
  %v159 = vld [vmem:[%s0 + $0x368] sm:$0xff]
  %v160 = vld [vmem:[%s0 + $0x370] sm:$0xff]
  %v161 = vld [vmem:[%s0 + $0x378] sm:$0xff]
  %v162 = vld [vmem:[%s0 + $0x380] sm:$0xff]
  %v163 = vld [vmem:[%s0 + $0x388] sm:$0xff]
  %v164 = vld [vmem:[%s0 + $0x390] sm:$0xff]
  %v165 = vld [vmem:[%s0 + $0x398] sm:$0xff]
  %v166 = vld [vmem:[%s0 + $0x3a0] sm:$0xff]
  %v167 = vld [vmem:[%s0 + $0x3a8] sm:$0xff]
  %v168 = vld [vmem:[%s0 + $0x3b0] sm:$0xff]
  %v169 = vld [vmem:[%s0 + $0x3b8] sm:$0xff]
  %v170 = vld [vmem:[%s0 + $0x3c0] sm:$0xff]
  %v171 = vld [vmem:[%s0 + $0x3c8] sm:$0xff]
  %v172 = vld [vmem:[%s0 + $0x3d0] sm:$0xff]
  %v173 = vld [vmem:[%s0 + $0x3d8] sm:$0xff]
  %v174 = vld [vmem:[%s0 + $0x3e0] sm:$0xff]
  %v175 = vld [vmem:[%s0 + $0x3e8] sm:$0xff]
  %v176 = vld [vmem:[%s0 + $0x3f0] sm:$0xff]
  %v177 = vld [vmem:[%s0 + $0x3f8] sm:$0xff]
  %v178 = vld [vmem:[%s1] sm:$0xf]
  %v179 = vld [vmem:[%s1 + $0x4] sm:$0xf]
  %v180 = vld [vmem:[%s1 + $0x8] sm:$0xf]
  %v181 = vld [vmem:[%s1 + $0xc] sm:$0xf]
  %v182 = vld [vmem:[%s1 + $0x10] sm:$0xf]
  %v183 = vld [vmem:[%s1 + $0x14] sm:$0xf]
  %v184 = vld [vmem:[%s1 + $0x18] sm:$0xf]
  %v185 = vld [vmem:[%s1 + $0x1c] sm:$0xf]
  %v186 = vld [vmem:[%s1 + $0x20] sm:$0xf]
  %v187 = vld [vmem:[%s1 + $0x24] sm:$0xf]
  %v188 = vld [vmem:[%s1 + $0x28] sm:$0xf]
  %v189 = vld [vmem:[%s1 + $0x2c] sm:$0xf]
  %v190 = vld [vmem:[%s1 + $0x30] sm:$0xf]
  %v191 = vld [vmem:[%s1 + $0x34] sm:$0xf]
  %v192 = vld [vmem:[%s1 + $0x38] sm:$0xf]
  %v193 = vld [vmem:[%s1 + $0x3c] sm:$0xf]
  %v194 = vld [vmem:[%s1 + $0x40] sm:$0xf]
  %v195 = vld [vmem:[%s1 + $0x44] sm:$0xf]
  %v196 = vld [vmem:[%s1 + $0x48] sm:$0xf]
  %v197 = vld [vmem:[%s1 + $0x4c] sm:$0xf]
  %v198 = vld [vmem:[%s1 + $0x50] sm:$0xf]
  %v199 = vld [vmem:[%s1 + $0x54] sm:$0xf]
  %v200 = vld [vmem:[%s1 + $0x58] sm:$0xf]
  %v201 = vld [vmem:[%s1 + $0x5c] sm:$0xf]
  %v202 = vld [vmem:[%s1 + $0x60] sm:$0xf]
  %v203 = vld [vmem:[%s1 + $0x64] sm:$0xf]
  %v204 = vld [vmem:[%s1 + $0x68] sm:$0xf]
  %v205 = vld [vmem:[%s1 + $0x6c] sm:$0xf]
  %v206 = vld [vmem:[%s1 + $0x70] sm:$0xf]
  %v207 = vld [vmem:[%s1 + $0x74] sm:$0xf]
  %v208 = vld [vmem:[%s1 + $0x78] sm:$0xf]
  %v209 = vld [vmem:[%s1 + $0x7c] sm:$0xf]
  %v210 = vld [vmem:[%s1 + $0x80] sm:$0xf]
  %v211 = vld [vmem:[%s1 + $0x84] sm:$0xf]
  %v212 = vld [vmem:[%s1 + $0x88] sm:$0xf]
  %v213 = vld [vmem:[%s1 + $0x8c] sm:$0xf]
  %v214 = vld [vmem:[%s1 + $0x90] sm:$0xf]
  %v215 = vld [vmem:[%s1 + $0x94] sm:$0xf]
  %v216 = vld [vmem:[%s1 + $0x98] sm:$0xf]
  %v217 = vld [vmem:[%s1 + $0x9c] sm:$0xf]
  %v218 = vld [vmem:[%s1 + $0xa0] sm:$0xf]
  %v219 = vld [vmem:[%s1 + $0xa4] sm:$0xf]
  %v220 = vld [vmem:[%s1 + $0xa8] sm:$0xf]
  %v221 = vld [vmem:[%s1 + $0xac] sm:$0xf]
  %v222 = vld [vmem:[%s1 + $0xb0] sm:$0xf]
  %v223 = vld [vmem:[%s1 + $0xb4] sm:$0xf]
  %v224 = vld [vmem:[%s1 + $0xb8] sm:$0xf]
  %v225 = vld [vmem:[%s1 + $0xbc] sm:$0xf]
  %v226 = vld [vmem:[%s1 + $0xc0] sm:$0xf]
  %v227 = vld [vmem:[%s1 + $0xc4] sm:$0xf]
  %v228 = vld [vmem:[%s1 + $0xc8] sm:$0xf]
  %v229 = vld [vmem:[%s1 + $0xcc] sm:$0xf]
  %v230 = vld [vmem:[%s1 + $0xd0] sm:$0xf]
  %v231 = vld [vmem:[%s1 + $0xd4] sm:$0xf]
  %v232 = vld [vmem:[%s1 + $0xd8] sm:$0xf]
  %v233 = vld [vmem:[%s1 + $0xdc] sm:$0xf]
  %v234 = vld [vmem:[%s1 + $0xe0] sm:$0xf]
  %v235 = vld [vmem:[%s1 + $0xe4] sm:$0xf]
  %v236 = vld [vmem:[%s1 + $0xe8] sm:$0xf]
  %v237 = vld [vmem:[%s1 + $0xec] sm:$0xf]
  %v238 = vld [vmem:[%s1 + $0xf0] sm:$0xf]
  %v239 = vld [vmem:[%s1 + $0xf4] sm:$0xf]
  %v240 = vld [vmem:[%s1 + $0xf8] sm:$0xf]
  %v241 = vld [vmem:[%s1 + $0xfc] sm:$0xf]
  %v242 = vld [vmem:[%s1 + $0x100] sm:$0xf]
  %v243 = vld [vmem:[%s1 + $0x104] sm:$0xf]
  %v244 = vld [vmem:[%s1 + $0x108] sm:$0xf]
  %v245 = vld [vmem:[%s1 + $0x10c] sm:$0xf]
  %v246 = vld [vmem:[%s1 + $0x110] sm:$0xf]
  %v247 = vld [vmem:[%s1 + $0x114] sm:$0xf]
  %v248 = vld [vmem:[%s1 + $0x118] sm:$0xf]
  %v249 = vld [vmem:[%s1 + $0x11c] sm:$0xf]
  %v250 = vld [vmem:[%s1 + $0x120] sm:$0xf]
  %v251 = vld [vmem:[%s1 + $0x124] sm:$0xf]
  %v252 = vld [vmem:[%s1 + $0x128] sm:$0xf]
  %v253 = vld [vmem:[%s1 + $0x12c] sm:$0xf]
  %v254 = vld [vmem:[%s1 + $0x130] sm:$0xf]
  %v255 = vld [vmem:[%s1 + $0x134] sm:$0xf]
  %v256 = vld [vmem:[%s1 + $0x138] sm:$0xf]
  %v257 = vld [vmem:[%s1 + $0x13c] sm:$0xf]
  %v258 = vld [vmem:[%s1 + $0x140] sm:$0xf]
  %v259 = vld [vmem:[%s1 + $0x144] sm:$0xf]
  %v260 = vld [vmem:[%s1 + $0x148] sm:$0xf]
  %v261 = vld [vmem:[%s1 + $0x14c] sm:$0xf]
  %v262 = vld [vmem:[%s1 + $0x150] sm:$0xf]
  %v263 = vld [vmem:[%s1 + $0x154] sm:$0xf]
  %v264 = vld [vmem:[%s1 + $0x158] sm:$0xf]
  %v265 = vld [vmem:[%s1 + $0x15c] sm:$0xf]
  %v266 = vld [vmem:[%s1 + $0x160] sm:$0xf]
  %v267 = vld [vmem:[%s1 + $0x164] sm:$0xf]
  %v268 = vld [vmem:[%s1 + $0x168] sm:$0xf]
  %v269 = vld [vmem:[%s1 + $0x16c] sm:$0xf]
  %v270 = vld [vmem:[%s1 + $0x170] sm:$0xf]
  %v271 = vld [vmem:[%s1 + $0x174] sm:$0xf]
  %v272 = vld [vmem:[%s1 + $0x178] sm:$0xf]
  %v273 = vld [vmem:[%s1 + $0x17c] sm:$0xf]
  %v274 = vld [vmem:[%s1 + $0x180] sm:$0xf]
  %v275 = vld [vmem:[%s1 + $0x184] sm:$0xf]
  %v276 = vld [vmem:[%s1 + $0x188] sm:$0xf]
  %v277 = vld [vmem:[%s1 + $0x18c] sm:$0xf]
  %v278 = vld [vmem:[%s1 + $0x190] sm:$0xf]
  %v279 = vld [vmem:[%s1 + $0x194] sm:$0xf]
  %v280 = vld [vmem:[%s1 + $0x198] sm:$0xf]
  %v281 = vld [vmem:[%s1 + $0x19c] sm:$0xf]
  %v282 = vld [vmem:[%s1 + $0x1a0] sm:$0xf]
  %v283 = vld [vmem:[%s1 + $0x1a4] sm:$0xf]
  %v284 = vld [vmem:[%s1 + $0x1a8] sm:$0xf]
  %v285 = vld [vmem:[%s1 + $0x1ac] sm:$0xf]
  %v286 = vld [vmem:[%s1 + $0x1b0] sm:$0xf]
  %v287 = vld [vmem:[%s1 + $0x1b4] sm:$0xf]
  %v288 = vld [vmem:[%s1 + $0x1b8] sm:$0xf]
  %v289 = vld [vmem:[%s1 + $0x1bc] sm:$0xf]
  %v290 = vld [vmem:[%s1 + $0x1c0] sm:$0xf]
  %v291 = vld [vmem:[%s1 + $0x1c4] sm:$0xf]
  %v292 = vld [vmem:[%s1 + $0x1c8] sm:$0xf]
  %v293 = vld [vmem:[%s1 + $0x1cc] sm:$0xf]
  %v294 = vld [vmem:[%s1 + $0x1d0] sm:$0xf]
  %v295 = vld [vmem:[%s1 + $0x1d4] sm:$0xf]
  %v296 = vld [vmem:[%s1 + $0x1d8] sm:$0xf]
  %v297 = vld [vmem:[%s1 + $0x1dc] sm:$0xf]
  %v298 = vld [vmem:[%s1 + $0x1e0] sm:$0xf]
  %v299 = vld [vmem:[%s1 + $0x1e4] sm:$0xf]
  %v300 = vld [vmem:[%s1 + $0x1e8] sm:$0xf]
  %v301 = vld [vmem:[%s1 + $0x1ec] sm:$0xf]
  %v302 = vld [vmem:[%s1 + $0x1f0] sm:$0xf]
  %v303 = vld [vmem:[%s1 + $0x1f4] sm:$0xf]
  %v304 = vld [vmem:[%s1 + $0x1f8] sm:$0xf]
  %v305 = vld [vmem:[%s1 + $0x1fc] sm:$0xf]
  %v306 = vld [vmem:[%s1 + $0x200] sm:$0xf]
  %v307 = vld [vmem:[%s1 + $0x204] sm:$0xf]
  %v308 = vld [vmem:[%s1 + $0x208] sm:$0xf]
  %v309 = vld [vmem:[%s1 + $0x20c] sm:$0xf]
  %v310 = vld [vmem:[%s1 + $0x210] sm:$0xf]
  %v311 = vld [vmem:[%s1 + $0x214] sm:$0xf]
  %v312 = vld [vmem:[%s1 + $0x218] sm:$0xf]
  %v313 = vld [vmem:[%s1 + $0x21c] sm:$0xf]
  %v314 = vld [vmem:[%s1 + $0x220] sm:$0xf]
  %v315 = vld [vmem:[%s1 + $0x224] sm:$0xf]
  %v316 = vld [vmem:[%s1 + $0x228] sm:$0xf]
  %v317 = vld [vmem:[%s1 + $0x22c] sm:$0xf]
  %v318 = vld [vmem:[%s1 + $0x230] sm:$0xf]
  %v319 = vld [vmem:[%s1 + $0x234] sm:$0xf]
  %v320 = vld [vmem:[%s1 + $0x238] sm:$0xf]
  %v321 = vld [vmem:[%s1 + $0x23c] sm:$0xf]
  %v322 = vld [vmem:[%s1 + $0x240] sm:$0xf]
  %v323 = vld [vmem:[%s1 + $0x244] sm:$0xf]
  %v324 = vld [vmem:[%s1 + $0x248] sm:$0xf]
  %v325 = vld [vmem:[%s1 + $0x24c] sm:$0xf]
  %v326 = vld [vmem:[%s1 + $0x250] sm:$0xf]
  %v327 = vld [vmem:[%s1 + $0x254] sm:$0xf]
  %v328 = vld [vmem:[%s1 + $0x258] sm:$0xf]
  %v329 = vld [vmem:[%s1 + $0x25c] sm:$0xf]
  %v330 = vld [vmem:[%s1 + $0x260] sm:$0xf]
  %v331 = vld [vmem:[%s1 + $0x264] sm:$0xf]
  %v332 = vld [vmem:[%s1 + $0x268] sm:$0xf]
  %v333 = vld [vmem:[%s1 + $0x26c] sm:$0xf]
  %v334 = vld [vmem:[%s1 + $0x270] sm:$0xf]
  %v335 = vld [vmem:[%s1 + $0x274] sm:$0xf]
  %v336 = vld [vmem:[%s1 + $0x278] sm:$0xf]
  %v337 = vld [vmem:[%s1 + $0x27c] sm:$0xf]
  %v338 = vld [vmem:[%s1 + $0x280] sm:$0xf]
  %v339 = vld [vmem:[%s1 + $0x284] sm:$0xf]
  %v340 = vld [vmem:[%s1 + $0x288] sm:$0xf]
  %v341 = vld [vmem:[%s1 + $0x28c] sm:$0xf]
  %v342 = vld [vmem:[%s1 + $0x290] sm:$0xf]
  %v343 = vld [vmem:[%s1 + $0x294] sm:$0xf]
  %v344 = vld [vmem:[%s1 + $0x298] sm:$0xf]
  %v345 = vld [vmem:[%s1 + $0x29c] sm:$0xf]
  %v346 = vld [vmem:[%s1 + $0x2a0] sm:$0xf]
  %v347 = vld [vmem:[%s1 + $0x2a4] sm:$0xf]
  %v348 = vld [vmem:[%s1 + $0x2a8] sm:$0xf]
  %v349 = vld [vmem:[%s1 + $0x2ac] sm:$0xf]
  %v350 = vld [vmem:[%s1 + $0x2b0] sm:$0xf]
  %v351 = vld [vmem:[%s1 + $0x2b4] sm:$0xf]
  %v352 = vld [vmem:[%s1 + $0x2b8] sm:$0xf]
  %v353 = vld [vmem:[%s1 + $0x2bc] sm:$0xf]
  %v354 = vld [vmem:[%s1 + $0x2c0] sm:$0xf]
  %v355 = vld [vmem:[%s1 + $0x2c4] sm:$0xf]
  %v356 = vld [vmem:[%s1 + $0x2c8] sm:$0xf]
  %v357 = vld [vmem:[%s1 + $0x2cc] sm:$0xf]
  %v358 = vld [vmem:[%s1 + $0x2d0] sm:$0xf]
  %v359 = vld [vmem:[%s1 + $0x2d4] sm:$0xf]
  %v360 = vld [vmem:[%s1 + $0x2d8] sm:$0xf]
  %v361 = vld [vmem:[%s1 + $0x2dc] sm:$0xf]
  %v362 = vld [vmem:[%s1 + $0x2e0] sm:$0xf]
  %v363 = vld [vmem:[%s1 + $0x2e4] sm:$0xf]
  %v364 = vld [vmem:[%s1 + $0x2e8] sm:$0xf]
  %v365 = vld [vmem:[%s1 + $0x2ec] sm:$0xf]
  %v366 = vld [vmem:[%s1 + $0x2f0] sm:$0xf]
  %v367 = vld [vmem:[%s1 + $0x2f4] sm:$0xf]
  %v368 = vld [vmem:[%s1 + $0x2f8] sm:$0xf]
  %v369 = vld [vmem:[%s1 + $0x2fc] sm:$0xf]
  %v370 = vld [vmem:[%s1 + $0x300] sm:$0xf]
  %v371 = vld [vmem:[%s1 + $0x304] sm:$0xf]
  %v372 = vld [vmem:[%s1 + $0x308] sm:$0xf]
  %v373 = vld [vmem:[%s1 + $0x30c] sm:$0xf]
  %v374 = vld [vmem:[%s1 + $0x310] sm:$0xf]
  %v375 = vld [vmem:[%s1 + $0x314] sm:$0xf]
  %v376 = vld [vmem:[%s1 + $0x318] sm:$0xf]
  %v377 = vld [vmem:[%s1 + $0x31c] sm:$0xf]
  %v378 = vld [vmem:[%s1 + $0x320] sm:$0xf]
  %v379 = vld [vmem:[%s1 + $0x324] sm:$0xf]
  %v380 = vld [vmem:[%s1 + $0x328] sm:$0xf]
  %v381 = vld [vmem:[%s1 + $0x32c] sm:$0xf]
  %v382 = vld [vmem:[%s1 + $0x330] sm:$0xf]
  %v383 = vld [vmem:[%s1 + $0x334] sm:$0xf]
  %v384 = vld [vmem:[%s1 + $0x338] sm:$0xf]
  %v385 = vld [vmem:[%s1 + $0x33c] sm:$0xf]
  %v386 = vld [vmem:[%s1 + $0x340] sm:$0xf]
  %v387 = vld [vmem:[%s1 + $0x344] sm:$0xf]
  %v388 = vld [vmem:[%s1 + $0x348] sm:$0xf]
  %v389 = vld [vmem:[%s1 + $0x34c] sm:$0xf]
  %v390 = vld [vmem:[%s1 + $0x350] sm:$0xf]
  %v391 = vld [vmem:[%s1 + $0x354] sm:$0xf]
  %v392 = vld [vmem:[%s1 + $0x358] sm:$0xf]
  %v393 = vld [vmem:[%s1 + $0x35c] sm:$0xf]
  %v394 = vld [vmem:[%s1 + $0x360] sm:$0xf]
  %v395 = vld [vmem:[%s1 + $0x364] sm:$0xf]
  %v396 = vld [vmem:[%s1 + $0x368] sm:$0xf]
  %v397 = vld [vmem:[%s1 + $0x36c] sm:$0xf]
  %v398 = vld [vmem:[%s1 + $0x370] sm:$0xf]
  %v399 = vld [vmem:[%s1 + $0x374] sm:$0xf]
  %v400 = vld [vmem:[%s1 + $0x378] sm:$0xf]
  %v401 = vld [vmem:[%s1 + $0x37c] sm:$0xf]
  %v402 = vld [vmem:[%s1 + $0x380] sm:$0xf]
  %v403 = vld [vmem:[%s1 + $0x384] sm:$0xf]
  %v404 = vld [vmem:[%s1 + $0x388] sm:$0xf]
  %v405 = vld [vmem:[%s1 + $0x38c] sm:$0xf]
  %v406 = vld [vmem:[%s1 + $0x390] sm:$0xf]
  %v407 = vld [vmem:[%s1 + $0x394] sm:$0xf]
  %v408 = vld [vmem:[%s1 + $0x398] sm:$0xf]
  %v409 = vld [vmem:[%s1 + $0x39c] sm:$0xf]
  %v410 = vld [vmem:[%s1 + $0x3a0] sm:$0xf]
  %v411 = vld [vmem:[%s1 + $0x3a4] sm:$0xf]
  %v412 = vld [vmem:[%s1 + $0x3a8] sm:$0xf]
  %v413 = vld [vmem:[%s1 + $0x3ac] sm:$0xf]
  %v414 = vld [vmem:[%s1 + $0x3b0] sm:$0xf]
  %v415 = vld [vmem:[%s1 + $0x3b4] sm:$0xf]
  %v416 = vld [vmem:[%s1 + $0x3b8] sm:$0xf]
  %v417 = vld [vmem:[%s1 + $0x3bc] sm:$0xf]
  %v418 = vld [vmem:[%s1 + $0x3c0] sm:$0xf]
  %v419 = vld [vmem:[%s1 + $0x3c4] sm:$0xf]
  %v420 = vld [vmem:[%s1 + $0x3c8] sm:$0xf]
  %v421 = vld [vmem:[%s1 + $0x3cc] sm:$0xf]
  %v422 = vld [vmem:[%s1 + $0x3d0] sm:$0xf]
  %v423 = vld [vmem:[%s1 + $0x3d4] sm:$0xf]
  %v424 = vld [vmem:[%s1 + $0x3d8] sm:$0xf]
  %v425 = vld [vmem:[%s1 + $0x3dc] sm:$0xf]
  %v426 = vld [vmem:[%s1 + $0x3e0] sm:$0xf]
  %v427 = vld [vmem:[%s1 + $0x3e4] sm:$0xf]
  %v428 = vld [vmem:[%s1 + $0x3e8] sm:$0xf]
  %v429 = vld [vmem:[%s1 + $0x3ec] sm:$0xf]
  %v430 = vld [vmem:[%s1 + $0x3f0] sm:$0xf]
  %v431 = vld [vmem:[%s1 + $0x3f4] sm:$0xf]
  %v432 = vld [vmem:[%s1 + $0x3f8] sm:$0xf]
  %v433 = vld [vmem:[%s1 + $0x3fc] sm:$0xf]
  %v562 = vunpack.c.l.b16 %v50
  %v563 = vunpack.c.h.b16 %v50
  %v564 = vunpack.c.l.b16 %v51
  %v565 = vunpack.c.h.b16 %v51
  %v566 = vunpack.c.l.b16 %v52
  %v567 = vunpack.c.h.b16 %v52
  %v568 = vunpack.c.l.b16 %v53
  %v569 = vunpack.c.h.b16 %v53
  %v570 = vunpack.c.l.b16 %v54
  %v571 = vunpack.c.h.b16 %v54
  %v572 = vunpack.c.l.b16 %v55
  %v573 = vunpack.c.h.b16 %v55
  %v574 = vunpack.c.l.b16 %v56
  %v575 = vunpack.c.h.b16 %v56
  %v576 = vunpack.c.l.b16 %v57
  %v577 = vunpack.c.h.b16 %v57
  %v578 = vunpack.c.l.b16 %v58
  %v579 = vunpack.c.h.b16 %v58
  %v580 = vunpack.c.l.b16 %v59
  %v581 = vunpack.c.h.b16 %v59
  %v582 = vunpack.c.l.b16 %v60
  %v583 = vunpack.c.h.b16 %v60
  %v584 = vunpack.c.l.b16 %v61
  %v585 = vunpack.c.h.b16 %v61
  %v586 = vunpack.c.l.b16 %v62
  %v587 = vunpack.c.h.b16 %v62
  %v588 = vunpack.c.l.b16 %v63
  %v589 = vunpack.c.h.b16 %v63
  %v590 = vunpack.c.l.b16 %v64
  %v591 = vunpack.c.h.b16 %v64
  %v592 = vunpack.c.l.b16 %v65
  %v593 = vunpack.c.h.b16 %v65
  %v594 = vunpack.c.l.b16 %v66
  %v595 = vunpack.c.h.b16 %v66
  %v596 = vunpack.c.l.b16 %v67
  %v597 = vunpack.c.h.b16 %v67
  %v598 = vunpack.c.l.b16 %v68
  %v599 = vunpack.c.h.b16 %v68
  %v600 = vunpack.c.l.b16 %v69
  %v601 = vunpack.c.h.b16 %v69
  %v602 = vunpack.c.l.b16 %v70
  %v603 = vunpack.c.h.b16 %v70
  %v604 = vunpack.c.l.b16 %v71
  %v605 = vunpack.c.h.b16 %v71
  %v606 = vunpack.c.l.b16 %v72
  %v607 = vunpack.c.h.b16 %v72
  %v608 = vunpack.c.l.b16 %v73
  %v609 = vunpack.c.h.b16 %v73
  %v610 = vunpack.c.l.b16 %v74
  %v611 = vunpack.c.h.b16 %v74
  %v612 = vunpack.c.l.b16 %v75
  %v613 = vunpack.c.h.b16 %v75
  %v614 = vunpack.c.l.b16 %v76
  %v615 = vunpack.c.h.b16 %v76
  %v616 = vunpack.c.l.b16 %v77
  %v617 = vunpack.c.h.b16 %v77
  %v618 = vunpack.c.l.b16 %v78
  %v619 = vunpack.c.h.b16 %v78
  %v620 = vunpack.c.l.b16 %v79
  %v621 = vunpack.c.h.b16 %v79
  %v622 = vunpack.c.l.b16 %v80
  %v623 = vunpack.c.h.b16 %v80
  %v624 = vunpack.c.l.b16 %v81
  %v625 = vunpack.c.h.b16 %v81
  %v626 = vunpack.c.l.b16 %v82
  %v627 = vunpack.c.h.b16 %v82
  %v628 = vunpack.c.l.b16 %v83
  %v629 = vunpack.c.h.b16 %v83
  %v630 = vunpack.c.l.b16 %v84
  %v631 = vunpack.c.h.b16 %v84
  %v632 = vunpack.c.l.b16 %v85
  %v633 = vunpack.c.h.b16 %v85
  %v634 = vunpack.c.l.b16 %v86
  %v635 = vunpack.c.h.b16 %v86
  %v636 = vunpack.c.l.b16 %v87
  %v637 = vunpack.c.h.b16 %v87
  %v638 = vunpack.c.l.b16 %v88
  %v639 = vunpack.c.h.b16 %v88
  %v640 = vunpack.c.l.b16 %v89
  %v641 = vunpack.c.h.b16 %v89
  %v642 = vunpack.c.l.b16 %v90
  %v643 = vunpack.c.h.b16 %v90
  %v644 = vunpack.c.l.b16 %v91
  %v645 = vunpack.c.h.b16 %v91
  %v646 = vunpack.c.l.b16 %v92
  %v647 = vunpack.c.h.b16 %v92
  %v648 = vunpack.c.l.b16 %v93
  %v649 = vunpack.c.h.b16 %v93
  %v650 = vunpack.c.l.b16 %v94
  %v651 = vunpack.c.h.b16 %v94
  %v652 = vunpack.c.l.b16 %v95
  %v653 = vunpack.c.h.b16 %v95
  %v654 = vunpack.c.l.b16 %v96
  %v655 = vunpack.c.h.b16 %v96
  %v656 = vunpack.c.l.b16 %v97
  %v657 = vunpack.c.h.b16 %v97
  %v658 = vunpack.c.l.b16 %v98
  %v659 = vunpack.c.h.b16 %v98
  %v660 = vunpack.c.l.b16 %v99
  %v661 = vunpack.c.h.b16 %v99
  %v662 = vunpack.c.l.b16 %v100
  %v663 = vunpack.c.h.b16 %v100
  %v664 = vunpack.c.l.b16 %v101
  %v665 = vunpack.c.h.b16 %v101
  %v666 = vunpack.c.l.b16 %v102
  %v667 = vunpack.c.h.b16 %v102
  %v668 = vunpack.c.l.b16 %v103
  %v669 = vunpack.c.h.b16 %v103
  %v670 = vunpack.c.l.b16 %v104
  %v671 = vunpack.c.h.b16 %v104
  %v672 = vunpack.c.l.b16 %v105
  %v673 = vunpack.c.h.b16 %v105
  %v674 = vunpack.c.l.b16 %v106
  %v675 = vunpack.c.h.b16 %v106
  %v676 = vunpack.c.l.b16 %v107
  %v677 = vunpack.c.h.b16 %v107
  %v678 = vunpack.c.l.b16 %v108
  %v679 = vunpack.c.h.b16 %v108
  %v680 = vunpack.c.l.b16 %v109
  %v681 = vunpack.c.h.b16 %v109
  %v682 = vunpack.c.l.b16 %v110
  %v683 = vunpack.c.h.b16 %v110
  %v684 = vunpack.c.l.b16 %v111
  %v685 = vunpack.c.h.b16 %v111
  %v686 = vunpack.c.l.b16 %v112
  %v687 = vunpack.c.h.b16 %v112
  %v688 = vunpack.c.l.b16 %v113
  %v689 = vunpack.c.h.b16 %v113
  %v690 = vunpack.c.l.b16 %v114
  %v691 = vunpack.c.h.b16 %v114
  %v692 = vunpack.c.l.b16 %v115
  %v693 = vunpack.c.h.b16 %v115
  %v694 = vunpack.c.l.b16 %v116
  %v695 = vunpack.c.h.b16 %v116
  %v696 = vunpack.c.l.b16 %v117
  %v697 = vunpack.c.h.b16 %v117
  %v698 = vunpack.c.l.b16 %v118
  %v699 = vunpack.c.h.b16 %v118
  %v700 = vunpack.c.l.b16 %v119
  %v701 = vunpack.c.h.b16 %v119
  %v702 = vunpack.c.l.b16 %v120
  %v703 = vunpack.c.h.b16 %v120
  %v704 = vunpack.c.l.b16 %v121
  %v705 = vunpack.c.h.b16 %v121
  %v706 = vunpack.c.l.b16 %v122
  %v707 = vunpack.c.h.b16 %v122
  %v708 = vunpack.c.l.b16 %v123
  %v709 = vunpack.c.h.b16 %v123
  %v710 = vunpack.c.l.b16 %v124
  %v711 = vunpack.c.h.b16 %v124
  %v712 = vunpack.c.l.b16 %v125
  %v713 = vunpack.c.h.b16 %v125
  %v714 = vunpack.c.l.b16 %v126
  %v715 = vunpack.c.h.b16 %v126
  %v716 = vunpack.c.l.b16 %v127
  %v717 = vunpack.c.h.b16 %v127
  %v718 = vunpack.c.l.b16 %v128
  %v719 = vunpack.c.h.b16 %v128
  %v720 = vunpack.c.l.b16 %v129
  %v721 = vunpack.c.h.b16 %v129
  %v722 = vunpack.c.l.b16 %v130
  %v723 = vunpack.c.h.b16 %v130
  %v724 = vunpack.c.l.b16 %v131
  %v725 = vunpack.c.h.b16 %v131
  %v726 = vunpack.c.l.b16 %v132
  %v727 = vunpack.c.h.b16 %v132
  %v728 = vunpack.c.l.b16 %v133
  %v729 = vunpack.c.h.b16 %v133
  %v730 = vunpack.c.l.b16 %v134
  %v731 = vunpack.c.h.b16 %v134
  %v732 = vunpack.c.l.b16 %v135
  %v733 = vunpack.c.h.b16 %v135
  %v734 = vunpack.c.l.b16 %v136
  %v735 = vunpack.c.h.b16 %v136
  %v736 = vunpack.c.l.b16 %v137
  %v737 = vunpack.c.h.b16 %v137
  %v738 = vunpack.c.l.b16 %v138
  %v739 = vunpack.c.h.b16 %v138
  %v740 = vunpack.c.l.b16 %v139
  %v741 = vunpack.c.h.b16 %v139
  %v742 = vunpack.c.l.b16 %v140
  %v743 = vunpack.c.h.b16 %v140
  %v744 = vunpack.c.l.b16 %v141
  %v745 = vunpack.c.h.b16 %v141
  %v746 = vunpack.c.l.b16 %v142
  %v747 = vunpack.c.h.b16 %v142
  %v748 = vunpack.c.l.b16 %v143
  %v749 = vunpack.c.h.b16 %v143
  %v750 = vunpack.c.l.b16 %v144
  %v751 = vunpack.c.h.b16 %v144
  %v752 = vunpack.c.l.b16 %v145
  %v753 = vunpack.c.h.b16 %v145
  %v754 = vunpack.c.l.b16 %v146
  %v755 = vunpack.c.h.b16 %v146
  %v756 = vunpack.c.l.b16 %v147
  %v757 = vunpack.c.h.b16 %v147
  %v758 = vunpack.c.l.b16 %v148
  %v759 = vunpack.c.h.b16 %v148
  %v760 = vunpack.c.l.b16 %v149
  %v761 = vunpack.c.h.b16 %v149
  %v762 = vunpack.c.l.b16 %v150
  %v763 = vunpack.c.h.b16 %v150
  %v764 = vunpack.c.l.b16 %v151
  %v765 = vunpack.c.h.b16 %v151
  %v766 = vunpack.c.l.b16 %v152
  %v767 = vunpack.c.h.b16 %v152
  %v768 = vunpack.c.l.b16 %v153
  %v769 = vunpack.c.h.b16 %v153
  %v770 = vunpack.c.l.b16 %v154
  %v771 = vunpack.c.h.b16 %v154
  %v772 = vunpack.c.l.b16 %v155
  %v773 = vunpack.c.h.b16 %v155
  %v774 = vunpack.c.l.b16 %v156
  %v775 = vunpack.c.h.b16 %v156
  %v776 = vunpack.c.l.b16 %v157
  %v777 = vunpack.c.h.b16 %v157
  %v778 = vunpack.c.l.b16 %v158
  %v779 = vunpack.c.h.b16 %v158
  %v780 = vunpack.c.l.b16 %v159
  %v781 = vunpack.c.h.b16 %v159
  %v782 = vunpack.c.l.b16 %v160
  %v783 = vunpack.c.h.b16 %v160
  %v784 = vunpack.c.l.b16 %v161
  %v785 = vunpack.c.h.b16 %v161
  %v786 = vunpack.c.l.b16 %v162
  %v787 = vunpack.c.h.b16 %v162
  %v788 = vunpack.c.l.b16 %v163
  %v789 = vunpack.c.h.b16 %v163
  %v790 = vunpack.c.l.b16 %v164
  %v791 = vunpack.c.h.b16 %v164
  %v792 = vunpack.c.l.b16 %v165
  %v793 = vunpack.c.h.b16 %v165
  %v794 = vunpack.c.l.b16 %v166
  %v795 = vunpack.c.h.b16 %v166
  %v796 = vunpack.c.l.b16 %v167
  %v797 = vunpack.c.h.b16 %v167
  %v798 = vunpack.c.l.b16 %v168
  %v799 = vunpack.c.h.b16 %v168
  %v800 = vunpack.c.l.b16 %v169
  %v801 = vunpack.c.h.b16 %v169
  %v802 = vunpack.c.l.b16 %v170
  %v803 = vunpack.c.h.b16 %v170
  %v804 = vunpack.c.l.b16 %v171
  %v805 = vunpack.c.h.b16 %v171
  %v806 = vunpack.c.l.b16 %v172
  %v807 = vunpack.c.h.b16 %v172
  %v808 = vunpack.c.l.b16 %v173
  %v809 = vunpack.c.h.b16 %v173
  %v810 = vunpack.c.l.b16 %v174
  %v811 = vunpack.c.h.b16 %v174
  %v812 = vunpack.c.l.b16 %v175
  %v813 = vunpack.c.h.b16 %v175
  %v814 = vunpack.c.l.b16 %v176
  %v815 = vunpack.c.h.b16 %v176
  %v816 = vunpack.c.l.b16 %v177
  %v817 = vunpack.c.h.b16 %v177
  %v818 = vpack.c.b16 %v578, %v562
  %v819 = vpack.c.b16 %v579, %v563
  %v820 = vpack.c.b16 %v580, %v564
  %v821 = vpack.c.b16 %v581, %v565
  %v822 = vpack.c.b16 %v582, %v566
  %v823 = vpack.c.b16 %v583, %v567
  %v824 = vpack.c.b16 %v584, %v568
  %v825 = vpack.c.b16 %v585, %v569
  %v826 = vpack.c.b16 %v586, %v570
  %v827 = vpack.c.b16 %v587, %v571
  %v828 = vpack.c.b16 %v588, %v572
  %v829 = vpack.c.b16 %v589, %v573
  %v830 = vpack.c.b16 %v590, %v574
  %v831 = vpack.c.b16 %v591, %v575
  %v832 = vpack.c.b16 %v592, %v576
  %v833 = vpack.c.b16 %v593, %v577
  %v834 = vpack.c.b16 %v610, %v594
  %v835 = vpack.c.b16 %v611, %v595
  %v836 = vpack.c.b16 %v612, %v596
  %v837 = vpack.c.b16 %v613, %v597
  %v838 = vpack.c.b16 %v614, %v598
  %v839 = vpack.c.b16 %v615, %v599
  %v840 = vpack.c.b16 %v616, %v600
  %v841 = vpack.c.b16 %v617, %v601
  %v842 = vpack.c.b16 %v618, %v602
  %v843 = vpack.c.b16 %v619, %v603
  %v844 = vpack.c.b16 %v620, %v604
  %v845 = vpack.c.b16 %v621, %v605
  %v846 = vpack.c.b16 %v622, %v606
  %v847 = vpack.c.b16 %v623, %v607
  %v848 = vpack.c.b16 %v624, %v608
  %v849 = vpack.c.b16 %v625, %v609
  %v850 = vpack.c.b16 %v642, %v626
  %v851 = vpack.c.b16 %v643, %v627
  %v852 = vpack.c.b16 %v644, %v628
  %v853 = vpack.c.b16 %v645, %v629
  %v854 = vpack.c.b16 %v646, %v630
  %v855 = vpack.c.b16 %v647, %v631
  %v856 = vpack.c.b16 %v648, %v632
  %v857 = vpack.c.b16 %v649, %v633
  %v858 = vpack.c.b16 %v650, %v634
  %v859 = vpack.c.b16 %v651, %v635
  %v860 = vpack.c.b16 %v652, %v636
  %v861 = vpack.c.b16 %v653, %v637
  %v862 = vpack.c.b16 %v654, %v638
  %v863 = vpack.c.b16 %v655, %v639
  %v864 = vpack.c.b16 %v656, %v640
  %v865 = vpack.c.b16 %v657, %v641
  %v866 = vpack.c.b16 %v674, %v658
  %v867 = vpack.c.b16 %v675, %v659
  %v868 = vpack.c.b16 %v676, %v660
  %v869 = vpack.c.b16 %v677, %v661
  %v870 = vpack.c.b16 %v678, %v662
  %v871 = vpack.c.b16 %v679, %v663
  %v872 = vpack.c.b16 %v680, %v664
  %v873 = vpack.c.b16 %v681, %v665
  %v874 = vpack.c.b16 %v682, %v666
  %v875 = vpack.c.b16 %v683, %v667
  %v876 = vpack.c.b16 %v684, %v668
  %v877 = vpack.c.b16 %v685, %v669
  %v878 = vpack.c.b16 %v686, %v670
  %v879 = vpack.c.b16 %v687, %v671
  %v880 = vpack.c.b16 %v688, %v672
  %v881 = vpack.c.b16 %v689, %v673
  %v882 = vpack.c.b16 %v706, %v690
  %v883 = vpack.c.b16 %v707, %v691
  %v884 = vpack.c.b16 %v708, %v692
  %v885 = vpack.c.b16 %v709, %v693
  %v886 = vpack.c.b16 %v710, %v694
  %v887 = vpack.c.b16 %v711, %v695
  %v888 = vpack.c.b16 %v712, %v696
  %v889 = vpack.c.b16 %v713, %v697
  %v890 = vpack.c.b16 %v714, %v698
  %v891 = vpack.c.b16 %v715, %v699
  %v892 = vpack.c.b16 %v716, %v700
  %v893 = vpack.c.b16 %v717, %v701
  %v894 = vpack.c.b16 %v718, %v702
  %v895 = vpack.c.b16 %v719, %v703
  %v896 = vpack.c.b16 %v720, %v704
  %v897 = vpack.c.b16 %v721, %v705
  %v898 = vpack.c.b16 %v738, %v722
  %v899 = vpack.c.b16 %v739, %v723
  %v900 = vpack.c.b16 %v740, %v724
  %v901 = vpack.c.b16 %v741, %v725
  %v902 = vpack.c.b16 %v742, %v726
  %v903 = vpack.c.b16 %v743, %v727
  %v904 = vpack.c.b16 %v744, %v728
  %v905 = vpack.c.b16 %v745, %v729
  %v906 = vpack.c.b16 %v746, %v730
  %v907 = vpack.c.b16 %v747, %v731
  %v908 = vpack.c.b16 %v748, %v732
  %v909 = vpack.c.b16 %v749, %v733
  %v910 = vpack.c.b16 %v750, %v734
  %v911 = vpack.c.b16 %v751, %v735
  %v912 = vpack.c.b16 %v752, %v736
  %v913 = vpack.c.b16 %v753, %v737
  %v914 = vpack.c.b16 %v770, %v754
  %v915 = vpack.c.b16 %v771, %v755
  %v916 = vpack.c.b16 %v772, %v756
  %v917 = vpack.c.b16 %v773, %v757
  %v918 = vpack.c.b16 %v774, %v758
  %v919 = vpack.c.b16 %v775, %v759
  %v920 = vpack.c.b16 %v776, %v760
  %v921 = vpack.c.b16 %v777, %v761
  %v922 = vpack.c.b16 %v778, %v762
  %v923 = vpack.c.b16 %v779, %v763
  %v924 = vpack.c.b16 %v780, %v764
  %v925 = vpack.c.b16 %v781, %v765
  %v926 = vpack.c.b16 %v782, %v766
  %v927 = vpack.c.b16 %v783, %v767
  %v928 = vpack.c.b16 %v784, %v768
  %v929 = vpack.c.b16 %v785, %v769
  %v930 = vpack.c.b16 %v802, %v786
  %v931 = vpack.c.b16 %v803, %v787
  %v932 = vpack.c.b16 %v804, %v788
  %v933 = vpack.c.b16 %v805, %v789
  %v934 = vpack.c.b16 %v806, %v790
  %v935 = vpack.c.b16 %v807, %v791
  %v936 = vpack.c.b16 %v808, %v792
  %v937 = vpack.c.b16 %v809, %v793
  %v938 = vpack.c.b16 %v810, %v794
  %v939 = vpack.c.b16 %v811, %v795
  %v940 = vpack.c.b16 %v812, %v796
  %v941 = vpack.c.b16 %v813, %v797
  %v942 = vpack.c.b16 %v814, %v798
  %v943 = vpack.c.b16 %v815, %v799
  %v944 = vpack.c.b16 %v816, %v800
  %v945 = vpack.c.b16 %v817, %v801
  %v1330 = vunpack.c.l.b16 %v178
  %v1331 = vunpack.c.l.b16 %v179
  %v1332 = vunpack.c.l.b16 %v180
  %v1333 = vunpack.c.l.b16 %v181
  %v1334 = vunpack.c.l.b16 %v182
  %v1335 = vunpack.c.l.b16 %v183
  %v1336 = vunpack.c.l.b16 %v184
  %v1337 = vunpack.c.l.b16 %v185
  %v1338 = vunpack.c.l.b16 %v186
  %v1339 = vunpack.c.l.b16 %v187
  %v1340 = vunpack.c.l.b16 %v188
  %v1341 = vunpack.c.l.b16 %v189
  %v1342 = vunpack.c.l.b16 %v190
  %v1343 = vunpack.c.l.b16 %v191
  %v1344 = vunpack.c.l.b16 %v192
  %v1345 = vunpack.c.l.b16 %v193
  %v1346 = vunpack.c.l.b16 %v194
  %v1347 = vunpack.c.l.b16 %v195
  %v1348 = vunpack.c.l.b16 %v196
  %v1349 = vunpack.c.l.b16 %v197
  %v1350 = vunpack.c.l.b16 %v198
  %v1351 = vunpack.c.l.b16 %v199
  %v1352 = vunpack.c.l.b16 %v200
  %v1353 = vunpack.c.l.b16 %v201
  %v1354 = vunpack.c.l.b16 %v202
  %v1355 = vunpack.c.l.b16 %v203
  %v1356 = vunpack.c.l.b16 %v204
  %v1357 = vunpack.c.l.b16 %v205
  %v1358 = vunpack.c.l.b16 %v206
  %v1359 = vunpack.c.l.b16 %v207
  %v1360 = vunpack.c.l.b16 %v208
  %v1361 = vunpack.c.l.b16 %v209
  %v1362 = vunpack.c.l.b16 %v210
  %v1363 = vunpack.c.l.b16 %v211
  %v1364 = vunpack.c.l.b16 %v212
  %v1365 = vunpack.c.l.b16 %v213
  %v1366 = vunpack.c.l.b16 %v214
  %v1367 = vunpack.c.l.b16 %v215
  %v1368 = vunpack.c.l.b16 %v216
  %v1369 = vunpack.c.l.b16 %v217
  %v1370 = vunpack.c.l.b16 %v218
  %v1371 = vunpack.c.l.b16 %v219
  %v1372 = vunpack.c.l.b16 %v220
  %v1373 = vunpack.c.l.b16 %v221
  %v1374 = vunpack.c.l.b16 %v222
  %v1375 = vunpack.c.l.b16 %v223
  %v1376 = vunpack.c.l.b16 %v224
  %v1377 = vunpack.c.l.b16 %v225
  %v1378 = vunpack.c.l.b16 %v226
  %v1379 = vunpack.c.l.b16 %v227
  %v1380 = vunpack.c.l.b16 %v228
  %v1381 = vunpack.c.l.b16 %v229
  %v1382 = vunpack.c.l.b16 %v230
  %v1383 = vunpack.c.l.b16 %v231
  %v1384 = vunpack.c.l.b16 %v232
  %v1385 = vunpack.c.l.b16 %v233
  %v1386 = vunpack.c.l.b16 %v234
  %v1387 = vunpack.c.l.b16 %v235
  %v1388 = vunpack.c.l.b16 %v236
  %v1389 = vunpack.c.l.b16 %v237
  %v1390 = vunpack.c.l.b16 %v238
  %v1391 = vunpack.c.l.b16 %v239
  %v1392 = vunpack.c.l.b16 %v240
  %v1393 = vunpack.c.l.b16 %v241
  %v1394 = vunpack.c.l.b16 %v242
  %v1395 = vunpack.c.l.b16 %v243
  %v1396 = vunpack.c.l.b16 %v244
  %v1397 = vunpack.c.l.b16 %v245
  %v1398 = vunpack.c.l.b16 %v246
  %v1399 = vunpack.c.l.b16 %v247
  %v1400 = vunpack.c.l.b16 %v248
  %v1401 = vunpack.c.l.b16 %v249
  %v1402 = vunpack.c.l.b16 %v250
  %v1403 = vunpack.c.l.b16 %v251
  %v1404 = vunpack.c.l.b16 %v252
  %v1405 = vunpack.c.l.b16 %v253
  %v1406 = vunpack.c.l.b16 %v254
  %v1407 = vunpack.c.l.b16 %v255
  %v1408 = vunpack.c.l.b16 %v256
  %v1409 = vunpack.c.l.b16 %v257
  %v1410 = vunpack.c.l.b16 %v258
  %v1411 = vunpack.c.l.b16 %v259
  %v1412 = vunpack.c.l.b16 %v260
  %v1413 = vunpack.c.l.b16 %v261
  %v1414 = vunpack.c.l.b16 %v262
  %v1415 = vunpack.c.l.b16 %v263
  %v1416 = vunpack.c.l.b16 %v264
  %v1417 = vunpack.c.l.b16 %v265
  %v1418 = vunpack.c.l.b16 %v266
  %v1419 = vunpack.c.l.b16 %v267
  %v1420 = vunpack.c.l.b16 %v268
  %v1421 = vunpack.c.l.b16 %v269
  %v1422 = vunpack.c.l.b16 %v270
  %v1423 = vunpack.c.l.b16 %v271
  %v1424 = vunpack.c.l.b16 %v272
  %v1425 = vunpack.c.l.b16 %v273
  %v1426 = vunpack.c.l.b16 %v274
  %v1427 = vunpack.c.l.b16 %v275
  %v1428 = vunpack.c.l.b16 %v276
  %v1429 = vunpack.c.l.b16 %v277
  %v1430 = vunpack.c.l.b16 %v278
  %v1431 = vunpack.c.l.b16 %v279
  %v1432 = vunpack.c.l.b16 %v280
  %v1433 = vunpack.c.l.b16 %v281
  %v1434 = vunpack.c.l.b16 %v282
  %v1435 = vunpack.c.l.b16 %v283
  %v1436 = vunpack.c.l.b16 %v284
  %v1437 = vunpack.c.l.b16 %v285
  %v1438 = vunpack.c.l.b16 %v286
  %v1439 = vunpack.c.l.b16 %v287
  %v1440 = vunpack.c.l.b16 %v288
  %v1441 = vunpack.c.l.b16 %v289
  %v1442 = vunpack.c.l.b16 %v290
  %v1443 = vunpack.c.l.b16 %v291
  %v1444 = vunpack.c.l.b16 %v292
  %v1445 = vunpack.c.l.b16 %v293
  %v1446 = vunpack.c.l.b16 %v294
  %v1447 = vunpack.c.l.b16 %v295
  %v1448 = vunpack.c.l.b16 %v296
  %v1449 = vunpack.c.l.b16 %v297
  %v1450 = vunpack.c.l.b16 %v298
  %v1451 = vunpack.c.l.b16 %v299
  %v1452 = vunpack.c.l.b16 %v300
  %v1453 = vunpack.c.l.b16 %v301
  %v1454 = vunpack.c.l.b16 %v302
  %v1455 = vunpack.c.l.b16 %v303
  %v1456 = vunpack.c.l.b16 %v304
  %v1457 = vunpack.c.l.b16 %v305
  %v1458 = vunpack.c.l.b16 %v306
  %v1459 = vunpack.c.l.b16 %v307
  %v1460 = vunpack.c.l.b16 %v308
  %v1461 = vunpack.c.l.b16 %v309
  %v1462 = vunpack.c.l.b16 %v310
  %v1463 = vunpack.c.l.b16 %v311
  %v1464 = vunpack.c.l.b16 %v312
  %v1465 = vunpack.c.l.b16 %v313
  %v1466 = vunpack.c.l.b16 %v314
  %v1467 = vunpack.c.l.b16 %v315
  %v1468 = vunpack.c.l.b16 %v316
  %v1469 = vunpack.c.l.b16 %v317
  %v1470 = vunpack.c.l.b16 %v318
  %v1471 = vunpack.c.l.b16 %v319
  %v1472 = vunpack.c.l.b16 %v320
  %v1473 = vunpack.c.l.b16 %v321
  %v1474 = vunpack.c.l.b16 %v322
  %v1475 = vunpack.c.l.b16 %v323
  %v1476 = vunpack.c.l.b16 %v324
  %v1477 = vunpack.c.l.b16 %v325
  %v1478 = vunpack.c.l.b16 %v326
  %v1479 = vunpack.c.l.b16 %v327
  %v1480 = vunpack.c.l.b16 %v328
  %v1481 = vunpack.c.l.b16 %v329
  %v1482 = vunpack.c.l.b16 %v330
  %v1483 = vunpack.c.l.b16 %v331
  %v1484 = vunpack.c.l.b16 %v332
  %v1485 = vunpack.c.l.b16 %v333
  %v1486 = vunpack.c.l.b16 %v334
  %v1487 = vunpack.c.l.b16 %v335
  %v1488 = vunpack.c.l.b16 %v336
  %v1489 = vunpack.c.l.b16 %v337
  %v1490 = vunpack.c.l.b16 %v338
  %v1491 = vunpack.c.l.b16 %v339
  %v1492 = vunpack.c.l.b16 %v340
  %v1493 = vunpack.c.l.b16 %v341
  %v1494 = vunpack.c.l.b16 %v342
  %v1495 = vunpack.c.l.b16 %v343
  %v1496 = vunpack.c.l.b16 %v344
  %v1497 = vunpack.c.l.b16 %v345
  %v1498 = vunpack.c.l.b16 %v346
  %v1499 = vunpack.c.l.b16 %v347
  %v1500 = vunpack.c.l.b16 %v348
  %v1501 = vunpack.c.l.b16 %v349
  %v1502 = vunpack.c.l.b16 %v350
  %v1503 = vunpack.c.l.b16 %v351
  %v1504 = vunpack.c.l.b16 %v352
  %v1505 = vunpack.c.l.b16 %v353
  %v1506 = vunpack.c.l.b16 %v354
  %v1507 = vunpack.c.l.b16 %v355
  %v1508 = vunpack.c.l.b16 %v356
  %v1509 = vunpack.c.l.b16 %v357
  %v1510 = vunpack.c.l.b16 %v358
  %v1511 = vunpack.c.l.b16 %v359
  %v1512 = vunpack.c.l.b16 %v360
  %v1513 = vunpack.c.l.b16 %v361
  %v1514 = vunpack.c.l.b16 %v362
  %v1515 = vunpack.c.l.b16 %v363
  %v1516 = vunpack.c.l.b16 %v364
  %v1517 = vunpack.c.l.b16 %v365
  %v1518 = vunpack.c.l.b16 %v366
  %v1519 = vunpack.c.l.b16 %v367
  %v1520 = vunpack.c.l.b16 %v368
  %v1521 = vunpack.c.l.b16 %v369
  %v1522 = vunpack.c.l.b16 %v370
  %v1523 = vunpack.c.l.b16 %v371
  %v1524 = vunpack.c.l.b16 %v372
  %v1525 = vunpack.c.l.b16 %v373
  %v1526 = vunpack.c.l.b16 %v374
  %v1527 = vunpack.c.l.b16 %v375
  %v1528 = vunpack.c.l.b16 %v376
  %v1529 = vunpack.c.l.b16 %v377
  %v1530 = vunpack.c.l.b16 %v378
  %v1531 = vunpack.c.l.b16 %v379
  %v1532 = vunpack.c.l.b16 %v380
  %v1533 = vunpack.c.l.b16 %v381
  %v1534 = vunpack.c.l.b16 %v382
  %v1535 = vunpack.c.l.b16 %v383
  %v1536 = vunpack.c.l.b16 %v384
  %v1537 = vunpack.c.l.b16 %v385
  %v1538 = vunpack.c.l.b16 %v386
  %v1539 = vunpack.c.l.b16 %v387
  %v1540 = vunpack.c.l.b16 %v388
  %v1541 = vunpack.c.l.b16 %v389
  %v1542 = vunpack.c.l.b16 %v390
  %v1543 = vunpack.c.l.b16 %v391
  %v1544 = vunpack.c.l.b16 %v392
  %v1545 = vunpack.c.l.b16 %v393
  %v1546 = vunpack.c.l.b16 %v394
  %v1547 = vunpack.c.l.b16 %v395
  %v1548 = vunpack.c.l.b16 %v396
  %v1549 = vunpack.c.l.b16 %v397
  %v1550 = vunpack.c.l.b16 %v398
  %v1551 = vunpack.c.l.b16 %v399
  %v1552 = vunpack.c.l.b16 %v400
  %v1553 = vunpack.c.l.b16 %v401
  %v1554 = vunpack.c.l.b16 %v402
  %v1555 = vunpack.c.l.b16 %v403
  %v1556 = vunpack.c.l.b16 %v404
  %v1557 = vunpack.c.l.b16 %v405
  %v1558 = vunpack.c.l.b16 %v406
  %v1559 = vunpack.c.l.b16 %v407
  %v1560 = vunpack.c.l.b16 %v408
  %v1561 = vunpack.c.l.b16 %v409
  %v1562 = vunpack.c.l.b16 %v410
  %v1563 = vunpack.c.l.b16 %v411
  %v1564 = vunpack.c.l.b16 %v412
  %v1565 = vunpack.c.l.b16 %v413
  %v1566 = vunpack.c.l.b16 %v414
  %v1567 = vunpack.c.l.b16 %v415
  %v1568 = vunpack.c.l.b16 %v416
  %v1569 = vunpack.c.l.b16 %v417
  %v1570 = vunpack.c.l.b16 %v418
  %v1571 = vunpack.c.l.b16 %v419
  %v1572 = vunpack.c.l.b16 %v420
  %v1573 = vunpack.c.l.b16 %v421
  %v1574 = vunpack.c.l.b16 %v422
  %v1575 = vunpack.c.l.b16 %v423
  %v1576 = vunpack.c.l.b16 %v424
  %v1577 = vunpack.c.l.b16 %v425
  %v1578 = vunpack.c.l.b16 %v426
  %v1579 = vunpack.c.l.b16 %v427
  %v1580 = vunpack.c.l.b16 %v428
  %v1581 = vunpack.c.l.b16 %v429
  %v1582 = vunpack.c.l.b16 %v430
  %v1583 = vunpack.c.l.b16 %v431
  %v1584 = vunpack.c.l.b16 %v432
  %v1585 = vunpack.c.l.b16 %v433
  %v1586 = vpack.c.b16 %v1331, %v1330
  %v1587 = vpack.c.b16 %v1333, %v1332
  %v1588 = vpack.c.b16 %v1335, %v1334
  %v1589 = vpack.c.b16 %v1337, %v1336
  %v1590 = vpack.c.b16 %v1339, %v1338
  %v1591 = vpack.c.b16 %v1341, %v1340
  %v1592 = vpack.c.b16 %v1343, %v1342
  %v1593 = vpack.c.b16 %v1345, %v1344
  %v1594 = vpack.c.b16 %v1347, %v1346
  %v1595 = vpack.c.b16 %v1349, %v1348
  %v1596 = vpack.c.b16 %v1351, %v1350
  %v1597 = vpack.c.b16 %v1353, %v1352
  %v1598 = vpack.c.b16 %v1355, %v1354
  %v1599 = vpack.c.b16 %v1357, %v1356
  %v1600 = vpack.c.b16 %v1359, %v1358
  %v1601 = vpack.c.b16 %v1361, %v1360
  %v1602 = vpack.c.b16 %v1363, %v1362
  %v1603 = vpack.c.b16 %v1365, %v1364
  %v1604 = vpack.c.b16 %v1367, %v1366
  %v1605 = vpack.c.b16 %v1369, %v1368
  %v1606 = vpack.c.b16 %v1371, %v1370
  %v1607 = vpack.c.b16 %v1373, %v1372
  %v1608 = vpack.c.b16 %v1375, %v1374
  %v1609 = vpack.c.b16 %v1377, %v1376
  %v1610 = vpack.c.b16 %v1379, %v1378
  %v1611 = vpack.c.b16 %v1381, %v1380
  %v1612 = vpack.c.b16 %v1383, %v1382
  %v1613 = vpack.c.b16 %v1385, %v1384
  %v1614 = vpack.c.b16 %v1387, %v1386
  %v1615 = vpack.c.b16 %v1389, %v1388
  %v1616 = vpack.c.b16 %v1391, %v1390
  %v1617 = vpack.c.b16 %v1393, %v1392
  %v1618 = vpack.c.b16 %v1395, %v1394
  %v1619 = vpack.c.b16 %v1397, %v1396
  %v1620 = vpack.c.b16 %v1399, %v1398
  %v1621 = vpack.c.b16 %v1401, %v1400
  %v1622 = vpack.c.b16 %v1403, %v1402
  %v1623 = vpack.c.b16 %v1405, %v1404
  %v1624 = vpack.c.b16 %v1407, %v1406
  %v1625 = vpack.c.b16 %v1409, %v1408
  %v1626 = vpack.c.b16 %v1411, %v1410
  %v1627 = vpack.c.b16 %v1413, %v1412
  %v1628 = vpack.c.b16 %v1415, %v1414
  %v1629 = vpack.c.b16 %v1417, %v1416
  %v1630 = vpack.c.b16 %v1419, %v1418
  %v1631 = vpack.c.b16 %v1421, %v1420
  %v1632 = vpack.c.b16 %v1423, %v1422
  %v1633 = vpack.c.b16 %v1425, %v1424
  %v1634 = vpack.c.b16 %v1427, %v1426
  %v1635 = vpack.c.b16 %v1429, %v1428
  %v1636 = vpack.c.b16 %v1431, %v1430
  %v1637 = vpack.c.b16 %v1433, %v1432
  %v1638 = vpack.c.b16 %v1435, %v1434
  %v1639 = vpack.c.b16 %v1437, %v1436
  %v1640 = vpack.c.b16 %v1439, %v1438
  %v1641 = vpack.c.b16 %v1441, %v1440
  %v1642 = vpack.c.b16 %v1443, %v1442
  %v1643 = vpack.c.b16 %v1445, %v1444
  %v1644 = vpack.c.b16 %v1447, %v1446
  %v1645 = vpack.c.b16 %v1449, %v1448
  %v1646 = vpack.c.b16 %v1451, %v1450
  %v1647 = vpack.c.b16 %v1453, %v1452
  %v1648 = vpack.c.b16 %v1455, %v1454
  %v1649 = vpack.c.b16 %v1457, %v1456
  %v1650 = vpack.c.b16 %v1459, %v1458
  %v1651 = vpack.c.b16 %v1461, %v1460
  %v1652 = vpack.c.b16 %v1463, %v1462
  %v1653 = vpack.c.b16 %v1465, %v1464
  %v1654 = vpack.c.b16 %v1467, %v1466
  %v1655 = vpack.c.b16 %v1469, %v1468
  %v1656 = vpack.c.b16 %v1471, %v1470
  %v1657 = vpack.c.b16 %v1473, %v1472
  %v1658 = vpack.c.b16 %v1475, %v1474
  %v1659 = vpack.c.b16 %v1477, %v1476
  %v1660 = vpack.c.b16 %v1479, %v1478
  %v1661 = vpack.c.b16 %v1481, %v1480
  %v1662 = vpack.c.b16 %v1483, %v1482
  %v1663 = vpack.c.b16 %v1485, %v1484
  %v1664 = vpack.c.b16 %v1487, %v1486
  %v1665 = vpack.c.b16 %v1489, %v1488
  %v1666 = vpack.c.b16 %v1491, %v1490
  %v1667 = vpack.c.b16 %v1493, %v1492
  %v1668 = vpack.c.b16 %v1495, %v1494
  %v1669 = vpack.c.b16 %v1497, %v1496
  %v1670 = vpack.c.b16 %v1499, %v1498
  %v1671 = vpack.c.b16 %v1501, %v1500
  %v1672 = vpack.c.b16 %v1503, %v1502
  %v1673 = vpack.c.b16 %v1505, %v1504
  %v1674 = vpack.c.b16 %v1507, %v1506
  %v1675 = vpack.c.b16 %v1509, %v1508
  %v1676 = vpack.c.b16 %v1511, %v1510
  %v1677 = vpack.c.b16 %v1513, %v1512
  %v1678 = vpack.c.b16 %v1515, %v1514
  %v1679 = vpack.c.b16 %v1517, %v1516
  %v1680 = vpack.c.b16 %v1519, %v1518
  %v1681 = vpack.c.b16 %v1521, %v1520
  %v1682 = vpack.c.b16 %v1523, %v1522
  %v1683 = vpack.c.b16 %v1525, %v1524
  %v1684 = vpack.c.b16 %v1527, %v1526
  %v1685 = vpack.c.b16 %v1529, %v1528
  %v1686 = vpack.c.b16 %v1531, %v1530
  %v1687 = vpack.c.b16 %v1533, %v1532
  %v1688 = vpack.c.b16 %v1535, %v1534
  %v1689 = vpack.c.b16 %v1537, %v1536
  %v1690 = vpack.c.b16 %v1539, %v1538
  %v1691 = vpack.c.b16 %v1541, %v1540
  %v1692 = vpack.c.b16 %v1543, %v1542
  %v1693 = vpack.c.b16 %v1545, %v1544
  %v1694 = vpack.c.b16 %v1547, %v1546
  %v1695 = vpack.c.b16 %v1549, %v1548
  %v1696 = vpack.c.b16 %v1551, %v1550
  %v1697 = vpack.c.b16 %v1553, %v1552
  %v1698 = vpack.c.b16 %v1555, %v1554
  %v1699 = vpack.c.b16 %v1557, %v1556
  %v1700 = vpack.c.b16 %v1559, %v1558
  %v1701 = vpack.c.b16 %v1561, %v1560
  %v1702 = vpack.c.b16 %v1563, %v1562
  %v1703 = vpack.c.b16 %v1565, %v1564
  %v1704 = vpack.c.b16 %v1567, %v1566
  %v1705 = vpack.c.b16 %v1569, %v1568
  %v1706 = vpack.c.b16 %v1571, %v1570
  %v1707 = vpack.c.b16 %v1573, %v1572
  %v1708 = vpack.c.b16 %v1575, %v1574
  %v1709 = vpack.c.b16 %v1577, %v1576
  %v1710 = vpack.c.b16 %v1579, %v1578
  %v1711 = vpack.c.b16 %v1581, %v1580
  %v1712 = vpack.c.b16 %v1583, %v1582
  %v1713 = vpack.c.b16 %v1585, %v1584
  %1842 = vmatpush.bf16.msra.mxu0 %v1593
  %1843 = vmatpush.bf16.msra.mxu0 %v1592
  %1844 = vmatpush.bf16.msra.mxu0 %v1591
  %1845 = vmatpush.bf16.msra.mxu0 %v1590
  %1846 = vmatpush.bf16.msra.mxu0 %v1589
  %1847 = vmatpush.bf16.msra.mxu0 %v1588
  %1848 = vmatpush.bf16.msra.mxu0 %v1587
  %1849 = vmatpush.bf16.msra.mxu0 %v1586
  %1850 = vmatmul.bf16.gmra.mxu0 %v818
  %v1851 = vpop.f32.mrf.mxu0
  %v1852 = vadd.f32 0.0, %v1851
  %v1853 = vpop.f32.mrf.mxu0
  %v1854 = vadd.f32 0.0, %v1853
  %1855 = vmatmul.bf16.gmra.mxu0 %v834
  %v1856 = vpop.f32.mrf.mxu0
  %v1857 = vadd.f32 0.0, %v1856
  %v1858 = vpop.f32.mrf.mxu0
  %v1859 = vadd.f32 0.0, %v1858
  %1860 = vmatmul.bf16.gmra.mxu0 %v850
  %v1861 = vpop.f32.mrf.mxu0
  %v1862 = vadd.f32 0.0, %v1861
  %v1863 = vpop.f32.mrf.mxu0
  %v1864 = vadd.f32 0.0, %v1863
  %1865 = vmatmul.bf16.gmra.mxu0 %v866
  %v1866 = vpop.f32.mrf.mxu0
  %v1867 = vadd.f32 0.0, %v1866
  %v1868 = vpop.f32.mrf.mxu0
  %v1869 = vadd.f32 0.0, %v1868
  %1870 = vmatmul.bf16.gmra.mxu0 %v882
  %v1871 = vpop.f32.mrf.mxu0
  %v1872 = vadd.f32 0.0, %v1871
  %v1873 = vpop.f32.mrf.mxu0
  %v1874 = vadd.f32 0.0, %v1873
  %1875 = vmatmul.bf16.gmra.mxu0 %v898
  %v1876 = vpop.f32.mrf.mxu0
  %v1877 = vadd.f32 0.0, %v1876
  %v1878 = vpop.f32.mrf.mxu0
  %v1879 = vadd.f32 0.0, %v1878
  %1880 = vmatmul.bf16.gmra.mxu0 %v914
  %v1881 = vpop.f32.mrf.mxu0
  %v1882 = vadd.f32 0.0, %v1881
  %v1883 = vpop.f32.mrf.mxu0
  %v1884 = vadd.f32 0.0, %v1883
  %1885 = vmatmul.bf16.gmra.mxu0 %v930
  %v1886 = vpop.f32.mrf.mxu0
  %v1887 = vadd.f32 0.0, %v1886
  %v1888 = vpop.f32.mrf.mxu0
  %v1889 = vadd.f32 0.0, %v1888
  %1890 = vdwg.mxu0
  %1891 = vmatpush.bf16.msra.mxu0 %v1601
  %1892 = vmatpush.bf16.msra.mxu0 %v1600
  %1893 = vmatpush.bf16.msra.mxu0 %v1599
  %1894 = vmatpush.bf16.msra.mxu0 %v1598
  %1895 = vmatpush.bf16.msra.mxu0 %v1597
  %1896 = vmatpush.bf16.msra.mxu0 %v1596
  %1897 = vmatpush.bf16.msra.mxu0 %v1595
  %1898 = vmatpush.bf16.msra.mxu0 %v1594
  %1899 = vmatmul.bf16.gmra.mxu0 %v819
  %v1900 = vpop.f32.mrf.mxu0
  %v1901 = vadd.f32 %v1852, %v1900
  %v1902 = vpop.f32.mrf.mxu0
  %v1903 = vadd.f32 %v1854, %v1902
  %1904 = vmatmul.bf16.gmra.mxu0 %v835
  %v1905 = vpop.f32.mrf.mxu0
  %v1906 = vadd.f32 %v1857, %v1905
  %v1907 = vpop.f32.mrf.mxu0
  %v1908 = vadd.f32 %v1859, %v1907
  %1909 = vmatmul.bf16.gmra.mxu0 %v851
  %v1910 = vpop.f32.mrf.mxu0
  %v1911 = vadd.f32 %v1862, %v1910
  %v1912 = vpop.f32.mrf.mxu0
  %v1913 = vadd.f32 %v1864, %v1912
  %1914 = vmatmul.bf16.gmra.mxu0 %v867
  %v1915 = vpop.f32.mrf.mxu0
  %v1916 = vadd.f32 %v1867, %v1915
  %v1917 = vpop.f32.mrf.mxu0
  %v1918 = vadd.f32 %v1869, %v1917
  %1919 = vmatmul.bf16.gmra.mxu0 %v883
  %v1920 = vpop.f32.mrf.mxu0
  %v1921 = vadd.f32 %v1872, %v1920
  %v1922 = vpop.f32.mrf.mxu0
  %v1923 = vadd.f32 %v1874, %v1922
  %1924 = vmatmul.bf16.gmra.mxu0 %v899
  %v1925 = vpop.f32.mrf.mxu0
  %v1926 = vadd.f32 %v1877, %v1925
  %v1927 = vpop.f32.mrf.mxu0
  %v1928 = vadd.f32 %v1879, %v1927
  %1929 = vmatmul.bf16.gmra.mxu0 %v915
  %v1930 = vpop.f32.mrf.mxu0
  %v1931 = vadd.f32 %v1882, %v1930
  %v1932 = vpop.f32.mrf.mxu0
  %v1933 = vadd.f32 %v1884, %v1932
  %1934 = vmatmul.bf16.gmra.mxu0 %v931
  %v1935 = vpop.f32.mrf.mxu0
  %v1936 = vadd.f32 %v1887, %v1935
  %v1937 = vpop.f32.mrf.mxu0
  %v1938 = vadd.f32 %v1889, %v1937
  %1939 = vdwg.mxu0
  %1940 = vmatpush.bf16.msra.mxu0 %v1609
  %1941 = vmatpush.bf16.msra.mxu0 %v1608
  %1942 = vmatpush.bf16.msra.mxu0 %v1607
  %1943 = vmatpush.bf16.msra.mxu0 %v1606
  %1944 = vmatpush.bf16.msra.mxu0 %v1605
  %1945 = vmatpush.bf16.msra.mxu0 %v1604
  %1946 = vmatpush.bf16.msra.mxu0 %v1603
  %1947 = vmatpush.bf16.msra.mxu0 %v1602
  %1948 = vmatmul.bf16.gmra.mxu0 %v820
  %v1949 = vpop.f32.mrf.mxu0
  %v1950 = vadd.f32 %v1901, %v1949
  %v1951 = vpop.f32.mrf.mxu0
  %v1952 = vadd.f32 %v1903, %v1951
  %1953 = vmatmul.bf16.gmra.mxu0 %v836
  %v1954 = vpop.f32.mrf.mxu0
  %v1955 = vadd.f32 %v1906, %v1954
  %v1956 = vpop.f32.mrf.mxu0
  %v1957 = vadd.f32 %v1908, %v1956
  %1958 = vmatmul.bf16.gmra.mxu0 %v852
  %v1959 = vpop.f32.mrf.mxu0
  %v1960 = vadd.f32 %v1911, %v1959
  %v1961 = vpop.f32.mrf.mxu0
  %v1962 = vadd.f32 %v1913, %v1961
  %1963 = vmatmul.bf16.gmra.mxu0 %v868
  %v1964 = vpop.f32.mrf.mxu0
  %v1965 = vadd.f32 %v1916, %v1964
  %v1966 = vpop.f32.mrf.mxu0
  %v1967 = vadd.f32 %v1918, %v1966
  %1968 = vmatmul.bf16.gmra.mxu0 %v884
  %v1969 = vpop.f32.mrf.mxu0
  %v1970 = vadd.f32 %v1921, %v1969
  %v1971 = vpop.f32.mrf.mxu0
  %v1972 = vadd.f32 %v1923, %v1971
  %1973 = vmatmul.bf16.gmra.mxu0 %v900
  %v1974 = vpop.f32.mrf.mxu0
  %v1975 = vadd.f32 %v1926, %v1974
  %v1976 = vpop.f32.mrf.mxu0
  %v1977 = vadd.f32 %v1928, %v1976
  %1978 = vmatmul.bf16.gmra.mxu0 %v916
  %v1979 = vpop.f32.mrf.mxu0
  %v1980 = vadd.f32 %v1931, %v1979
  %v1981 = vpop.f32.mrf.mxu0
  %v1982 = vadd.f32 %v1933, %v1981
  %1983 = vmatmul.bf16.gmra.mxu0 %v932
  %v1984 = vpop.f32.mrf.mxu0
  %v1985 = vadd.f32 %v1936, %v1984
  %v1986 = vpop.f32.mrf.mxu0
  %v1987 = vadd.f32 %v1938, %v1986
  %1988 = vdwg.mxu0
  %1989 = vmatpush.bf16.msra.mxu0 %v1617
  %1990 = vmatpush.bf16.msra.mxu0 %v1616
  %1991 = vmatpush.bf16.msra.mxu0 %v1615
  %1992 = vmatpush.bf16.msra.mxu0 %v1614
  %1993 = vmatpush.bf16.msra.mxu0 %v1613
  %1994 = vmatpush.bf16.msra.mxu0 %v1612
  %1995 = vmatpush.bf16.msra.mxu0 %v1611
  %1996 = vmatpush.bf16.msra.mxu0 %v1610
  %1997 = vmatmul.bf16.gmra.mxu0 %v821
  %v1998 = vpop.f32.mrf.mxu0
  %v1999 = vadd.f32 %v1950, %v1998
  %v2000 = vpop.f32.mrf.mxu0
  %v2001 = vadd.f32 %v1952, %v2000
  %2002 = vmatmul.bf16.gmra.mxu0 %v837
  %v2003 = vpop.f32.mrf.mxu0
  %v2004 = vadd.f32 %v1955, %v2003
  %v2005 = vpop.f32.mrf.mxu0
  %v2006 = vadd.f32 %v1957, %v2005
  %2007 = vmatmul.bf16.gmra.mxu0 %v853
  %v2008 = vpop.f32.mrf.mxu0
  %v2009 = vadd.f32 %v1960, %v2008
  %v2010 = vpop.f32.mrf.mxu0
  %v2011 = vadd.f32 %v1962, %v2010
  %2012 = vmatmul.bf16.gmra.mxu0 %v869
  %v2013 = vpop.f32.mrf.mxu0
  %v2014 = vadd.f32 %v1965, %v2013
  %v2015 = vpop.f32.mrf.mxu0
  %v2016 = vadd.f32 %v1967, %v2015
  %2017 = vmatmul.bf16.gmra.mxu0 %v885
  %v2018 = vpop.f32.mrf.mxu0
  %v2019 = vadd.f32 %v1970, %v2018
  %v2020 = vpop.f32.mrf.mxu0
  %v2021 = vadd.f32 %v1972, %v2020
  %2022 = vmatmul.bf16.gmra.mxu0 %v901
  %v2023 = vpop.f32.mrf.mxu0
  %v2024 = vadd.f32 %v1975, %v2023
  %v2025 = vpop.f32.mrf.mxu0
  %v2026 = vadd.f32 %v1977, %v2025
  %2027 = vmatmul.bf16.gmra.mxu0 %v917
  %v2028 = vpop.f32.mrf.mxu0
  %v2029 = vadd.f32 %v1980, %v2028
  %v2030 = vpop.f32.mrf.mxu0
  %v2031 = vadd.f32 %v1982, %v2030
  %2032 = vmatmul.bf16.gmra.mxu0 %v933
  %v2033 = vpop.f32.mrf.mxu0
  %v2034 = vadd.f32 %v1985, %v2033
  %v2035 = vpop.f32.mrf.mxu0
  %v2036 = vadd.f32 %v1987, %v2035
  %2037 = vdwg.mxu0
  %2038 = vmatpush.bf16.msra.mxu0 %v1625
  %2039 = vmatpush.bf16.msra.mxu0 %v1624
  %2040 = vmatpush.bf16.msra.mxu0 %v1623
  %2041 = vmatpush.bf16.msra.mxu0 %v1622
  %2042 = vmatpush.bf16.msra.mxu0 %v1621
  %2043 = vmatpush.bf16.msra.mxu0 %v1620
  %2044 = vmatpush.bf16.msra.mxu0 %v1619
  %2045 = vmatpush.bf16.msra.mxu0 %v1618
  %2046 = vmatmul.bf16.gmra.mxu0 %v822
  %v2047 = vpop.f32.mrf.mxu0
  %v2048 = vadd.f32 %v1999, %v2047
  %v2049 = vpop.f32.mrf.mxu0
  %v2050 = vadd.f32 %v2001, %v2049
  %2051 = vmatmul.bf16.gmra.mxu0 %v838
  %v2052 = vpop.f32.mrf.mxu0
  %v2053 = vadd.f32 %v2004, %v2052
  %v2054 = vpop.f32.mrf.mxu0
  %v2055 = vadd.f32 %v2006, %v2054
  %2056 = vmatmul.bf16.gmra.mxu0 %v854
  %v2057 = vpop.f32.mrf.mxu0
  %v2058 = vadd.f32 %v2009, %v2057
  %v2059 = vpop.f32.mrf.mxu0
  %v2060 = vadd.f32 %v2011, %v2059
  %2061 = vmatmul.bf16.gmra.mxu0 %v870
  %v2062 = vpop.f32.mrf.mxu0
  %v2063 = vadd.f32 %v2014, %v2062
  %v2064 = vpop.f32.mrf.mxu0
  %v2065 = vadd.f32 %v2016, %v2064
  %2066 = vmatmul.bf16.gmra.mxu0 %v886
  %v2067 = vpop.f32.mrf.mxu0
  %v2068 = vadd.f32 %v2019, %v2067
  %v2069 = vpop.f32.mrf.mxu0
  %v2070 = vadd.f32 %v2021, %v2069
  %2071 = vmatmul.bf16.gmra.mxu0 %v902
  %v2072 = vpop.f32.mrf.mxu0
  %v2073 = vadd.f32 %v2024, %v2072
  %v2074 = vpop.f32.mrf.mxu0
  %v2075 = vadd.f32 %v2026, %v2074
  %2076 = vmatmul.bf16.gmra.mxu0 %v918
  %v2077 = vpop.f32.mrf.mxu0
  %v2078 = vadd.f32 %v2029, %v2077
  %v2079 = vpop.f32.mrf.mxu0
  %v2080 = vadd.f32 %v2031, %v2079
  %2081 = vmatmul.bf16.gmra.mxu0 %v934
  %v2082 = vpop.f32.mrf.mxu0
  %v2083 = vadd.f32 %v2034, %v2082
  %v2084 = vpop.f32.mrf.mxu0
  %v2085 = vadd.f32 %v2036, %v2084
  %2086 = vdwg.mxu0
  %2087 = vmatpush.bf16.msra.mxu0 %v1633
  %2088 = vmatpush.bf16.msra.mxu0 %v1632
  %2089 = vmatpush.bf16.msra.mxu0 %v1631
  %2090 = vmatpush.bf16.msra.mxu0 %v1630
  %2091 = vmatpush.bf16.msra.mxu0 %v1629
  %2092 = vmatpush.bf16.msra.mxu0 %v1628
  %2093 = vmatpush.bf16.msra.mxu0 %v1627
  %2094 = vmatpush.bf16.msra.mxu0 %v1626
  %2095 = vmatmul.bf16.gmra.mxu0 %v823
  %v2096 = vpop.f32.mrf.mxu0
  %v2097 = vadd.f32 %v2048, %v2096
  %v2098 = vpop.f32.mrf.mxu0
  %v2099 = vadd.f32 %v2050, %v2098
  %2100 = vmatmul.bf16.gmra.mxu0 %v839
  %v2101 = vpop.f32.mrf.mxu0
  %v2102 = vadd.f32 %v2053, %v2101
  %v2103 = vpop.f32.mrf.mxu0
  %v2104 = vadd.f32 %v2055, %v2103
  %2105 = vmatmul.bf16.gmra.mxu0 %v855
  %v2106 = vpop.f32.mrf.mxu0
  %v2107 = vadd.f32 %v2058, %v2106
  %v2108 = vpop.f32.mrf.mxu0
  %v2109 = vadd.f32 %v2060, %v2108
  %2110 = vmatmul.bf16.gmra.mxu0 %v871
  %v2111 = vpop.f32.mrf.mxu0
  %v2112 = vadd.f32 %v2063, %v2111
  %v2113 = vpop.f32.mrf.mxu0
  %v2114 = vadd.f32 %v2065, %v2113
  %2115 = vmatmul.bf16.gmra.mxu0 %v887
  %v2116 = vpop.f32.mrf.mxu0
  %v2117 = vadd.f32 %v2068, %v2116
  %v2118 = vpop.f32.mrf.mxu0
  %v2119 = vadd.f32 %v2070, %v2118
  %2120 = vmatmul.bf16.gmra.mxu0 %v903
  %v2121 = vpop.f32.mrf.mxu0
  %v2122 = vadd.f32 %v2073, %v2121
  %v2123 = vpop.f32.mrf.mxu0
  %v2124 = vadd.f32 %v2075, %v2123
  %2125 = vmatmul.bf16.gmra.mxu0 %v919
  %v2126 = vpop.f32.mrf.mxu0
  %v2127 = vadd.f32 %v2078, %v2126
  %v2128 = vpop.f32.mrf.mxu0
  %v2129 = vadd.f32 %v2080, %v2128
  %2130 = vmatmul.bf16.gmra.mxu0 %v935
  %v2131 = vpop.f32.mrf.mxu0
  %v2132 = vadd.f32 %v2083, %v2131
  %v2133 = vpop.f32.mrf.mxu0
  %v2134 = vadd.f32 %v2085, %v2133
  %2135 = vdwg.mxu0
  %2136 = vmatpush.bf16.msra.mxu0 %v1641
  %2137 = vmatpush.bf16.msra.mxu0 %v1640
  %2138 = vmatpush.bf16.msra.mxu0 %v1639
  %2139 = vmatpush.bf16.msra.mxu0 %v1638
  %2140 = vmatpush.bf16.msra.mxu0 %v1637
  %2141 = vmatpush.bf16.msra.mxu0 %v1636
  %2142 = vmatpush.bf16.msra.mxu0 %v1635
  %2143 = vmatpush.bf16.msra.mxu0 %v1634
  %2144 = vmatmul.bf16.gmra.mxu0 %v824
  %v2145 = vpop.f32.mrf.mxu0
  %v2146 = vadd.f32 %v2097, %v2145
  %v2147 = vpop.f32.mrf.mxu0
  %v2148 = vadd.f32 %v2099, %v2147
  %2149 = vmatmul.bf16.gmra.mxu0 %v840
  %v2150 = vpop.f32.mrf.mxu0
  %v2151 = vadd.f32 %v2102, %v2150
  %v2152 = vpop.f32.mrf.mxu0
  %v2153 = vadd.f32 %v2104, %v2152
  %2154 = vmatmul.bf16.gmra.mxu0 %v856
  %v2155 = vpop.f32.mrf.mxu0
  %v2156 = vadd.f32 %v2107, %v2155
  %v2157 = vpop.f32.mrf.mxu0
  %v2158 = vadd.f32 %v2109, %v2157
  %2159 = vmatmul.bf16.gmra.mxu0 %v872
  %v2160 = vpop.f32.mrf.mxu0
  %v2161 = vadd.f32 %v2112, %v2160
  %v2162 = vpop.f32.mrf.mxu0
  %v2163 = vadd.f32 %v2114, %v2162
  %2164 = vmatmul.bf16.gmra.mxu0 %v888
  %v2165 = vpop.f32.mrf.mxu0
  %v2166 = vadd.f32 %v2117, %v2165
  %v2167 = vpop.f32.mrf.mxu0
  %v2168 = vadd.f32 %v2119, %v2167
  %2169 = vmatmul.bf16.gmra.mxu0 %v904
  %v2170 = vpop.f32.mrf.mxu0
  %v2171 = vadd.f32 %v2122, %v2170
  %v2172 = vpop.f32.mrf.mxu0
  %v2173 = vadd.f32 %v2124, %v2172
  %2174 = vmatmul.bf16.gmra.mxu0 %v920
  %v2175 = vpop.f32.mrf.mxu0
  %v2176 = vadd.f32 %v2127, %v2175
  %v2177 = vpop.f32.mrf.mxu0
  %v2178 = vadd.f32 %v2129, %v2177
  %2179 = vmatmul.bf16.gmra.mxu0 %v936
  %v2180 = vpop.f32.mrf.mxu0
  %v2181 = vadd.f32 %v2132, %v2180
  %v2182 = vpop.f32.mrf.mxu0
  %v2183 = vadd.f32 %v2134, %v2182
  %2184 = vdwg.mxu0
  %2185 = vmatpush.bf16.msra.mxu0 %v1649
  %2186 = vmatpush.bf16.msra.mxu0 %v1648
  %2187 = vmatpush.bf16.msra.mxu0 %v1647
  %2188 = vmatpush.bf16.msra.mxu0 %v1646
  %2189 = vmatpush.bf16.msra.mxu0 %v1645
  %2190 = vmatpush.bf16.msra.mxu0 %v1644
  %2191 = vmatpush.bf16.msra.mxu0 %v1643
  %2192 = vmatpush.bf16.msra.mxu0 %v1642
  %2193 = vmatmul.bf16.gmra.mxu0 %v825
  %v2194 = vpop.f32.mrf.mxu0
  %v2195 = vadd.f32 %v2146, %v2194
  %v2196 = vpop.f32.mrf.mxu0
  %v2197 = vadd.f32 %v2148, %v2196
  %2198 = vmatmul.bf16.gmra.mxu0 %v841
  %v2199 = vpop.f32.mrf.mxu0
  %v2200 = vadd.f32 %v2151, %v2199
  %v2201 = vpop.f32.mrf.mxu0
  %v2202 = vadd.f32 %v2153, %v2201
  %2203 = vmatmul.bf16.gmra.mxu0 %v857
  %v2204 = vpop.f32.mrf.mxu0
  %v2205 = vadd.f32 %v2156, %v2204
  %v2206 = vpop.f32.mrf.mxu0
  %v2207 = vadd.f32 %v2158, %v2206
  %2208 = vmatmul.bf16.gmra.mxu0 %v873
  %v2209 = vpop.f32.mrf.mxu0
  %v2210 = vadd.f32 %v2161, %v2209
  %v2211 = vpop.f32.mrf.mxu0
  %v2212 = vadd.f32 %v2163, %v2211
  %2213 = vmatmul.bf16.gmra.mxu0 %v889
  %v2214 = vpop.f32.mrf.mxu0
  %v2215 = vadd.f32 %v2166, %v2214
  %v2216 = vpop.f32.mrf.mxu0
  %v2217 = vadd.f32 %v2168, %v2216
  %2218 = vmatmul.bf16.gmra.mxu0 %v905
  %v2219 = vpop.f32.mrf.mxu0
  %v2220 = vadd.f32 %v2171, %v2219
  %v2221 = vpop.f32.mrf.mxu0
  %v2222 = vadd.f32 %v2173, %v2221
  %2223 = vmatmul.bf16.gmra.mxu0 %v921
  %v2224 = vpop.f32.mrf.mxu0
  %v2225 = vadd.f32 %v2176, %v2224
  %v2226 = vpop.f32.mrf.mxu0
  %v2227 = vadd.f32 %v2178, %v2226
  %2228 = vmatmul.bf16.gmra.mxu0 %v937
  %v2229 = vpop.f32.mrf.mxu0
  %v2230 = vadd.f32 %v2181, %v2229
  %v2231 = vpop.f32.mrf.mxu0
  %v2232 = vadd.f32 %v2183, %v2231
  %2233 = vdwg.mxu0
  %2234 = vmatpush.bf16.msra.mxu0 %v1657
  %2235 = vmatpush.bf16.msra.mxu0 %v1656
  %2236 = vmatpush.bf16.msra.mxu0 %v1655
  %2237 = vmatpush.bf16.msra.mxu0 %v1654
  %2238 = vmatpush.bf16.msra.mxu0 %v1653
  %2239 = vmatpush.bf16.msra.mxu0 %v1652
  %2240 = vmatpush.bf16.msra.mxu0 %v1651
  %2241 = vmatpush.bf16.msra.mxu0 %v1650
  %2242 = vmatmul.bf16.gmra.mxu0 %v826
  %v2243 = vpop.f32.mrf.mxu0
  %v2244 = vadd.f32 %v2195, %v2243
  %v2245 = vpop.f32.mrf.mxu0
  %v2246 = vadd.f32 %v2197, %v2245
  %2247 = vmatmul.bf16.gmra.mxu0 %v842
  %v2248 = vpop.f32.mrf.mxu0
  %v2249 = vadd.f32 %v2200, %v2248
  %v2250 = vpop.f32.mrf.mxu0
  %v2251 = vadd.f32 %v2202, %v2250
  %2252 = vmatmul.bf16.gmra.mxu0 %v858
  %v2253 = vpop.f32.mrf.mxu0
  %v2254 = vadd.f32 %v2205, %v2253
  %v2255 = vpop.f32.mrf.mxu0
  %v2256 = vadd.f32 %v2207, %v2255
  %2257 = vmatmul.bf16.gmra.mxu0 %v874
  %v2258 = vpop.f32.mrf.mxu0
  %v2259 = vadd.f32 %v2210, %v2258
  %v2260 = vpop.f32.mrf.mxu0
  %v2261 = vadd.f32 %v2212, %v2260
  %2262 = vmatmul.bf16.gmra.mxu0 %v890
  %v2263 = vpop.f32.mrf.mxu0
  %v2264 = vadd.f32 %v2215, %v2263
  %v2265 = vpop.f32.mrf.mxu0
  %v2266 = vadd.f32 %v2217, %v2265
  %2267 = vmatmul.bf16.gmra.mxu0 %v906
  %v2268 = vpop.f32.mrf.mxu0
  %v2269 = vadd.f32 %v2220, %v2268
  %v2270 = vpop.f32.mrf.mxu0
  %v2271 = vadd.f32 %v2222, %v2270
  %2272 = vmatmul.bf16.gmra.mxu0 %v922
  %v2273 = vpop.f32.mrf.mxu0
  %v2274 = vadd.f32 %v2225, %v2273
  %v2275 = vpop.f32.mrf.mxu0
  %v2276 = vadd.f32 %v2227, %v2275
  %2277 = vmatmul.bf16.gmra.mxu0 %v938
  %v2278 = vpop.f32.mrf.mxu0
  %v2279 = vadd.f32 %v2230, %v2278
  %v2280 = vpop.f32.mrf.mxu0
  %v2281 = vadd.f32 %v2232, %v2280
  %2282 = vdwg.mxu0
  %2283 = vmatpush.bf16.msra.mxu0 %v1665
  %2284 = vmatpush.bf16.msra.mxu0 %v1664
  %2285 = vmatpush.bf16.msra.mxu0 %v1663
  %2286 = vmatpush.bf16.msra.mxu0 %v1662
  %2287 = vmatpush.bf16.msra.mxu0 %v1661
  %2288 = vmatpush.bf16.msra.mxu0 %v1660
  %2289 = vmatpush.bf16.msra.mxu0 %v1659
  %2290 = vmatpush.bf16.msra.mxu0 %v1658
  %2291 = vmatmul.bf16.gmra.mxu0 %v827
  %v2292 = vpop.f32.mrf.mxu0
  %v2293 = vadd.f32 %v2244, %v2292
  %v2294 = vpop.f32.mrf.mxu0
  %v2295 = vadd.f32 %v2246, %v2294
  %2296 = vmatmul.bf16.gmra.mxu0 %v843
  %v2297 = vpop.f32.mrf.mxu0
  %v2298 = vadd.f32 %v2249, %v2297
  %v2299 = vpop.f32.mrf.mxu0
  %v2300 = vadd.f32 %v2251, %v2299
  %2301 = vmatmul.bf16.gmra.mxu0 %v859
  %v2302 = vpop.f32.mrf.mxu0
  %v2303 = vadd.f32 %v2254, %v2302
  %v2304 = vpop.f32.mrf.mxu0
  %v2305 = vadd.f32 %v2256, %v2304
  %2306 = vmatmul.bf16.gmra.mxu0 %v875
  %v2307 = vpop.f32.mrf.mxu0
  %v2308 = vadd.f32 %v2259, %v2307
  %v2309 = vpop.f32.mrf.mxu0
  %v2310 = vadd.f32 %v2261, %v2309
  %2311 = vmatmul.bf16.gmra.mxu0 %v891
  %v2312 = vpop.f32.mrf.mxu0
  %v2313 = vadd.f32 %v2264, %v2312
  %v2314 = vpop.f32.mrf.mxu0
  %v2315 = vadd.f32 %v2266, %v2314
  %2316 = vmatmul.bf16.gmra.mxu0 %v907
  %v2317 = vpop.f32.mrf.mxu0
  %v2318 = vadd.f32 %v2269, %v2317
  %v2319 = vpop.f32.mrf.mxu0
  %v2320 = vadd.f32 %v2271, %v2319
  %2321 = vmatmul.bf16.gmra.mxu0 %v923
  %v2322 = vpop.f32.mrf.mxu0
  %v2323 = vadd.f32 %v2274, %v2322
  %v2324 = vpop.f32.mrf.mxu0
  %v2325 = vadd.f32 %v2276, %v2324
  %2326 = vmatmul.bf16.gmra.mxu0 %v939
  %v2327 = vpop.f32.mrf.mxu0
  %v2328 = vadd.f32 %v2279, %v2327
  %v2329 = vpop.f32.mrf.mxu0
  %v2330 = vadd.f32 %v2281, %v2329
  %2331 = vdwg.mxu0
  %2332 = vmatpush.bf16.msra.mxu0 %v1673
  %2333 = vmatpush.bf16.msra.mxu0 %v1672
  %2334 = vmatpush.bf16.msra.mxu0 %v1671
  %2335 = vmatpush.bf16.msra.mxu0 %v1670
  %2336 = vmatpush.bf16.msra.mxu0 %v1669
  %2337 = vmatpush.bf16.msra.mxu0 %v1668
  %2338 = vmatpush.bf16.msra.mxu0 %v1667
  %2339 = vmatpush.bf16.msra.mxu0 %v1666
  %2340 = vmatmul.bf16.gmra.mxu0 %v828
  %v2341 = vpop.f32.mrf.mxu0
  %v2342 = vadd.f32 %v2293, %v2341
  %v2343 = vpop.f32.mrf.mxu0
  %v2344 = vadd.f32 %v2295, %v2343
  %2345 = vmatmul.bf16.gmra.mxu0 %v844
  %v2346 = vpop.f32.mrf.mxu0
  %v2347 = vadd.f32 %v2298, %v2346
  %v2348 = vpop.f32.mrf.mxu0
  %v2349 = vadd.f32 %v2300, %v2348
  %2350 = vmatmul.bf16.gmra.mxu0 %v860
  %v2351 = vpop.f32.mrf.mxu0
  %v2352 = vadd.f32 %v2303, %v2351
  %v2353 = vpop.f32.mrf.mxu0
  %v2354 = vadd.f32 %v2305, %v2353
  %2355 = vmatmul.bf16.gmra.mxu0 %v876
  %v2356 = vpop.f32.mrf.mxu0
  %v2357 = vadd.f32 %v2308, %v2356
  %v2358 = vpop.f32.mrf.mxu0
  %v2359 = vadd.f32 %v2310, %v2358
  %2360 = vmatmul.bf16.gmra.mxu0 %v892
  %v2361 = vpop.f32.mrf.mxu0
  %v2362 = vadd.f32 %v2313, %v2361
  %v2363 = vpop.f32.mrf.mxu0
  %v2364 = vadd.f32 %v2315, %v2363
  %2365 = vmatmul.bf16.gmra.mxu0 %v908
  %v2366 = vpop.f32.mrf.mxu0
  %v2367 = vadd.f32 %v2318, %v2366
  %v2368 = vpop.f32.mrf.mxu0
  %v2369 = vadd.f32 %v2320, %v2368
  %2370 = vmatmul.bf16.gmra.mxu0 %v924
  %v2371 = vpop.f32.mrf.mxu0
  %v2372 = vadd.f32 %v2323, %v2371
  %v2373 = vpop.f32.mrf.mxu0
  %v2374 = vadd.f32 %v2325, %v2373
  %2375 = vmatmul.bf16.gmra.mxu0 %v940
  %v2376 = vpop.f32.mrf.mxu0
  %v2377 = vadd.f32 %v2328, %v2376
  %v2378 = vpop.f32.mrf.mxu0
  %v2379 = vadd.f32 %v2330, %v2378
  %2380 = vdwg.mxu0
  %2381 = vmatpush.bf16.msra.mxu0 %v1681
  %2382 = vmatpush.bf16.msra.mxu0 %v1680
  %2383 = vmatpush.bf16.msra.mxu0 %v1679
  %2384 = vmatpush.bf16.msra.mxu0 %v1678
  %2385 = vmatpush.bf16.msra.mxu0 %v1677
  %2386 = vmatpush.bf16.msra.mxu0 %v1676
  %2387 = vmatpush.bf16.msra.mxu0 %v1675
  %2388 = vmatpush.bf16.msra.mxu0 %v1674
  %2389 = vmatmul.bf16.gmra.mxu0 %v829
  %v2390 = vpop.f32.mrf.mxu0
  %v2391 = vadd.f32 %v2342, %v2390
  %v2392 = vpop.f32.mrf.mxu0
  %v2393 = vadd.f32 %v2344, %v2392
  %2394 = vmatmul.bf16.gmra.mxu0 %v845
  %v2395 = vpop.f32.mrf.mxu0
  %v2396 = vadd.f32 %v2347, %v2395
  %v2397 = vpop.f32.mrf.mxu0
  %v2398 = vadd.f32 %v2349, %v2397
  %2399 = vmatmul.bf16.gmra.mxu0 %v861
  %v2400 = vpop.f32.mrf.mxu0
  %v2401 = vadd.f32 %v2352, %v2400
  %v2402 = vpop.f32.mrf.mxu0
  %v2403 = vadd.f32 %v2354, %v2402
  %2404 = vmatmul.bf16.gmra.mxu0 %v877
  %v2405 = vpop.f32.mrf.mxu0
  %v2406 = vadd.f32 %v2357, %v2405
  %v2407 = vpop.f32.mrf.mxu0
  %v2408 = vadd.f32 %v2359, %v2407
  %2409 = vmatmul.bf16.gmra.mxu0 %v893
  %v2410 = vpop.f32.mrf.mxu0
  %v2411 = vadd.f32 %v2362, %v2410
  %v2412 = vpop.f32.mrf.mxu0
  %v2413 = vadd.f32 %v2364, %v2412
  %2414 = vmatmul.bf16.gmra.mxu0 %v909
  %v2415 = vpop.f32.mrf.mxu0
  %v2416 = vadd.f32 %v2367, %v2415
  %v2417 = vpop.f32.mrf.mxu0
  %v2418 = vadd.f32 %v2369, %v2417
  %2419 = vmatmul.bf16.gmra.mxu0 %v925
  %v2420 = vpop.f32.mrf.mxu0
  %v2421 = vadd.f32 %v2372, %v2420
  %v2422 = vpop.f32.mrf.mxu0
  %v2423 = vadd.f32 %v2374, %v2422
  %2424 = vmatmul.bf16.gmra.mxu0 %v941
  %v2425 = vpop.f32.mrf.mxu0
  %v2426 = vadd.f32 %v2377, %v2425
  %v2427 = vpop.f32.mrf.mxu0
  %v2428 = vadd.f32 %v2379, %v2427
  %2429 = vdwg.mxu0
  %2430 = vmatpush.bf16.msra.mxu0 %v1689
  %2431 = vmatpush.bf16.msra.mxu0 %v1688
  %2432 = vmatpush.bf16.msra.mxu0 %v1687
  %2433 = vmatpush.bf16.msra.mxu0 %v1686
  %2434 = vmatpush.bf16.msra.mxu0 %v1685
  %2435 = vmatpush.bf16.msra.mxu0 %v1684
  %2436 = vmatpush.bf16.msra.mxu0 %v1683
  %2437 = vmatpush.bf16.msra.mxu0 %v1682
  %2438 = vmatmul.bf16.gmra.mxu0 %v830
  %v2439 = vpop.f32.mrf.mxu0
  %v2440 = vadd.f32 %v2391, %v2439
  %v2441 = vpop.f32.mrf.mxu0
  %v2442 = vadd.f32 %v2393, %v2441
  %2443 = vmatmul.bf16.gmra.mxu0 %v846
  %v2444 = vpop.f32.mrf.mxu0
  %v2445 = vadd.f32 %v2396, %v2444
  %v2446 = vpop.f32.mrf.mxu0
  %v2447 = vadd.f32 %v2398, %v2446
  %2448 = vmatmul.bf16.gmra.mxu0 %v862
  %v2449 = vpop.f32.mrf.mxu0
  %v2450 = vadd.f32 %v2401, %v2449
  %v2451 = vpop.f32.mrf.mxu0
  %v2452 = vadd.f32 %v2403, %v2451
  %2453 = vmatmul.bf16.gmra.mxu0 %v878
  %v2454 = vpop.f32.mrf.mxu0
  %v2455 = vadd.f32 %v2406, %v2454
  %v2456 = vpop.f32.mrf.mxu0
  %v2457 = vadd.f32 %v2408, %v2456
  %2458 = vmatmul.bf16.gmra.mxu0 %v894
  %v2459 = vpop.f32.mrf.mxu0
  %v2460 = vadd.f32 %v2411, %v2459
  %v2461 = vpop.f32.mrf.mxu0
  %v2462 = vadd.f32 %v2413, %v2461
  %2463 = vmatmul.bf16.gmra.mxu0 %v910
  %v2464 = vpop.f32.mrf.mxu0
  %v2465 = vadd.f32 %v2416, %v2464
  %v2466 = vpop.f32.mrf.mxu0
  %v2467 = vadd.f32 %v2418, %v2466
  %2468 = vmatmul.bf16.gmra.mxu0 %v926
  %v2469 = vpop.f32.mrf.mxu0
  %v2470 = vadd.f32 %v2421, %v2469
  %v2471 = vpop.f32.mrf.mxu0
  %v2472 = vadd.f32 %v2423, %v2471
  %2473 = vmatmul.bf16.gmra.mxu0 %v942
  %v2474 = vpop.f32.mrf.mxu0
  %v2475 = vadd.f32 %v2426, %v2474
  %v2476 = vpop.f32.mrf.mxu0
  %v2477 = vadd.f32 %v2428, %v2476
  %2478 = vdwg.mxu0
  %2479 = vmatpush.bf16.msra.mxu0 %v1697
  %2480 = vmatpush.bf16.msra.mxu0 %v1696
  %2481 = vmatpush.bf16.msra.mxu0 %v1695
  %2482 = vmatpush.bf16.msra.mxu0 %v1694
  %2483 = vmatpush.bf16.msra.mxu0 %v1693
  %2484 = vmatpush.bf16.msra.mxu0 %v1692
  %2485 = vmatpush.bf16.msra.mxu0 %v1691
  %2486 = vmatpush.bf16.msra.mxu0 %v1690
  %2487 = vmatmul.bf16.gmra.mxu0 %v831
  %v2488 = vpop.f32.mrf.mxu0
  %v2489 = vadd.f32 %v2440, %v2488
  %v2490 = vpop.f32.mrf.mxu0
  %v2491 = vadd.f32 %v2442, %v2490
  %2492 = vmatmul.bf16.gmra.mxu0 %v847
  %v2493 = vpop.f32.mrf.mxu0
  %v2494 = vadd.f32 %v2445, %v2493
  %v2495 = vpop.f32.mrf.mxu0
  %v2496 = vadd.f32 %v2447, %v2495
  %2497 = vmatmul.bf16.gmra.mxu0 %v863
  %v2498 = vpop.f32.mrf.mxu0
  %v2499 = vadd.f32 %v2450, %v2498
  %v2500 = vpop.f32.mrf.mxu0
  %v2501 = vadd.f32 %v2452, %v2500
  %2502 = vmatmul.bf16.gmra.mxu0 %v879
  %v2503 = vpop.f32.mrf.mxu0
  %v2504 = vadd.f32 %v2455, %v2503
  %v2505 = vpop.f32.mrf.mxu0
  %v2506 = vadd.f32 %v2457, %v2505
  %2507 = vmatmul.bf16.gmra.mxu0 %v895
  %v2508 = vpop.f32.mrf.mxu0
  %v2509 = vadd.f32 %v2460, %v2508
  %v2510 = vpop.f32.mrf.mxu0
  %v2511 = vadd.f32 %v2462, %v2510
  %2512 = vmatmul.bf16.gmra.mxu0 %v911
  %v2513 = vpop.f32.mrf.mxu0
  %v2514 = vadd.f32 %v2465, %v2513
  %v2515 = vpop.f32.mrf.mxu0
  %v2516 = vadd.f32 %v2467, %v2515
  %2517 = vmatmul.bf16.gmra.mxu0 %v927
  %v2518 = vpop.f32.mrf.mxu0
  %v2519 = vadd.f32 %v2470, %v2518
  %v2520 = vpop.f32.mrf.mxu0
  %v2521 = vadd.f32 %v2472, %v2520
  %2522 = vmatmul.bf16.gmra.mxu0 %v943
  %v2523 = vpop.f32.mrf.mxu0
  %v2524 = vadd.f32 %v2475, %v2523
  %v2525 = vpop.f32.mrf.mxu0
  %v2526 = vadd.f32 %v2477, %v2525
  %2527 = vdwg.mxu0
  %2528 = vmatpush.bf16.msra.mxu0 %v1705
  %2529 = vmatpush.bf16.msra.mxu0 %v1704
  %2530 = vmatpush.bf16.msra.mxu0 %v1703
  %2531 = vmatpush.bf16.msra.mxu0 %v1702
  %2532 = vmatpush.bf16.msra.mxu0 %v1701
  %2533 = vmatpush.bf16.msra.mxu0 %v1700
  %2534 = vmatpush.bf16.msra.mxu0 %v1699
  %2535 = vmatpush.bf16.msra.mxu0 %v1698
  %2536 = vmatmul.bf16.gmra.mxu0 %v832
  %v2537 = vpop.f32.mrf.mxu0
  %v2538 = vadd.f32 %v2489, %v2537
  %v2539 = vpop.f32.mrf.mxu0
  %v2540 = vadd.f32 %v2491, %v2539
  %2541 = vmatmul.bf16.gmra.mxu0 %v848
  %v2542 = vpop.f32.mrf.mxu0
  %v2543 = vadd.f32 %v2494, %v2542
  %v2544 = vpop.f32.mrf.mxu0
  %v2545 = vadd.f32 %v2496, %v2544
  %2546 = vmatmul.bf16.gmra.mxu0 %v864
  %v2547 = vpop.f32.mrf.mxu0
  %v2548 = vadd.f32 %v2499, %v2547
  %v2549 = vpop.f32.mrf.mxu0
  %v2550 = vadd.f32 %v2501, %v2549
  %2551 = vmatmul.bf16.gmra.mxu0 %v880
  %v2552 = vpop.f32.mrf.mxu0
  %v2553 = vadd.f32 %v2504, %v2552
  %v2554 = vpop.f32.mrf.mxu0
  %v2555 = vadd.f32 %v2506, %v2554
  %2556 = vmatmul.bf16.gmra.mxu0 %v896
  %v2557 = vpop.f32.mrf.mxu0
  %v2558 = vadd.f32 %v2509, %v2557
  %v2559 = vpop.f32.mrf.mxu0
  %v2560 = vadd.f32 %v2511, %v2559
  %2561 = vmatmul.bf16.gmra.mxu0 %v912
  %v2562 = vpop.f32.mrf.mxu0
  %v2563 = vadd.f32 %v2514, %v2562
  %v2564 = vpop.f32.mrf.mxu0
  %v2565 = vadd.f32 %v2516, %v2564
  %2566 = vmatmul.bf16.gmra.mxu0 %v928
  %v2567 = vpop.f32.mrf.mxu0
  %v2568 = vadd.f32 %v2519, %v2567
  %v2569 = vpop.f32.mrf.mxu0
  %v2570 = vadd.f32 %v2521, %v2569
  %2571 = vmatmul.bf16.gmra.mxu0 %v944
  %v2572 = vpop.f32.mrf.mxu0
  %v2573 = vadd.f32 %v2524, %v2572
  %v2574 = vpop.f32.mrf.mxu0
  %v2575 = vadd.f32 %v2526, %v2574
  %2576 = vdwg.mxu0
  %2577 = vmatpush.bf16.msra.mxu0 %v1713
  %2578 = vmatpush.bf16.msra.mxu0 %v1712
  %2579 = vmatpush.bf16.msra.mxu0 %v1711
  %2580 = vmatpush.bf16.msra.mxu0 %v1710
  %2581 = vmatpush.bf16.msra.mxu0 %v1709
  %2582 = vmatpush.bf16.msra.mxu0 %v1708
  %2583 = vmatpush.bf16.msra.mxu0 %v1707
  %2584 = vmatpush.bf16.msra.mxu0 %v1706
  %2585 = vmatmul.bf16.gmra.mxu0 %v833
  %v2586 = vpop.f32.mrf.mxu0
  %v2587 = vadd.f32 %v2538, %v2586
  %v2588 = vpop.f32.mrf.mxu0
  %v2589 = vadd.f32 %v2540, %v2588
  %2590 = vmatmul.bf16.gmra.mxu0 %v849
  %v2591 = vpop.f32.mrf.mxu0
  %v2592 = vadd.f32 %v2543, %v2591
  %v2593 = vpop.f32.mrf.mxu0
  %v2594 = vadd.f32 %v2545, %v2593
  %2595 = vmatmul.bf16.gmra.mxu0 %v865
  %v2596 = vpop.f32.mrf.mxu0
  %v2597 = vadd.f32 %v2548, %v2596
  %v2598 = vpop.f32.mrf.mxu0
  %v2599 = vadd.f32 %v2550, %v2598
  %2600 = vmatmul.bf16.gmra.mxu0 %v881
  %v2601 = vpop.f32.mrf.mxu0
  %v2602 = vadd.f32 %v2553, %v2601
  %v2603 = vpop.f32.mrf.mxu0
  %v2604 = vadd.f32 %v2555, %v2603
  %2605 = vmatmul.bf16.gmra.mxu0 %v897
  %v2606 = vpop.f32.mrf.mxu0
  %v2607 = vadd.f32 %v2558, %v2606
  %v2608 = vpop.f32.mrf.mxu0
  %v2609 = vadd.f32 %v2560, %v2608
  %2610 = vmatmul.bf16.gmra.mxu0 %v913
  %v2611 = vpop.f32.mrf.mxu0
  %v2612 = vadd.f32 %v2563, %v2611
  %v2613 = vpop.f32.mrf.mxu0
  %v2614 = vadd.f32 %v2565, %v2613
  %2615 = vmatmul.bf16.gmra.mxu0 %v929
  %v2616 = vpop.f32.mrf.mxu0
  %v2617 = vadd.f32 %v2568, %v2616
  %v2618 = vpop.f32.mrf.mxu0
  %v2619 = vadd.f32 %v2570, %v2618
  %2620 = vmatmul.bf16.gmra.mxu0 %v945
  %v2621 = vpop.f32.mrf.mxu0
  %v2622 = vadd.f32 %v2573, %v2621
  %v2623 = vpop.f32.mrf.mxu0
  %v2624 = vadd.f32 %v2575, %v2623
  %2625 = vdwg.mxu0
  %v2626 = vadd.f32 %v34, %v2587
  %v2627 = vadd.f32 %v35, %v2589
  %v2628 = vadd.f32 %v36, %v2592
  %v2629 = vadd.f32 %v37, %v2594
  %v2630 = vadd.f32 %v38, %v2597
  %v2631 = vadd.f32 %v39, %v2599
  %v2632 = vadd.f32 %v40, %v2602
  %v2633 = vadd.f32 %v41, %v2604
  %v2634 = vadd.f32 %v42, %v2607
  %v2635 = vadd.f32 %v43, %v2609
  %v2636 = vadd.f32 %v44, %v2612
  %v2637 = vadd.f32 %v45, %v2614
  %v2638 = vadd.f32 %v46, %v2617
  %v2639 = vadd.f32 %v47, %v2619
  %v2640 = vadd.f32 %v48, %v2622
  %v2641 = vadd.f32 %v49, %v2624
  %2642 = vst [vmem:[#allocation2] sm:$0xff] %v2626
  %2643 = vst [vmem:[#allocation2 + $0x8] sm:$0xff] %v2627
  %2644 = vst [vmem:[#allocation2 + $0x10] sm:$0xff] %v2628
  %2645 = vst [vmem:[#allocation2 + $0x18] sm:$0xff] %v2629
  %2646 = vst [vmem:[#allocation2 + $0x20] sm:$0xff] %v2630
  %2647 = vst [vmem:[#allocation2 + $0x28] sm:$0xff] %v2631
  %2648 = vst [vmem:[#allocation2 + $0x30] sm:$0xff] %v2632
  %2649 = vst [vmem:[#allocation2 + $0x38] sm:$0xff] %v2633
  %2650 = vst [vmem:[#allocation2 + $0x40] sm:$0xff] %v2634
  %2651 = vst [vmem:[#allocation2 + $0x48] sm:$0xff] %v2635
  %2652 = vst [vmem:[#allocation2 + $0x50] sm:$0xff] %v2636
  %2653 = vst [vmem:[#allocation2 + $0x58] sm:$0xff] %v2637
  %2654 = vst [vmem:[#allocation2 + $0x60] sm:$0xff] %v2638
  %2655 = vst [vmem:[#allocation2 + $0x68] sm:$0xff] %v2639
  %2656 = vst [vmem:[#allocation2 + $0x70] sm:$0xff] %v2640
  %2657 = vst [vmem:[#allocation2 + $0x78] sm:$0xff] %v2641
  // Predicated region
  $region18: #{discriminator_forward.4} parent=0 // pred_check
    %p2658 = pneg %p14
  $region19: #{discriminator_forward.4} parent=0 // pred_check_branch
    %2660 = sbr.rel (%p2658) target = $region21
  $region20: #{discriminator_forward.4} parent=0 // pred_region
    %v2661 = vld [vmem:[#allocation2] sm:$0xff]
    %v2662 = vld [vmem:[#allocation2 + $0x8] sm:$0xff]
    %v2663 = vld [vmem:[#allocation2 + $0x10] sm:$0xff]
    %v2664 = vld [vmem:[#allocation2 + $0x18] sm:$0xff]
    %v2665 = vld [vmem:[#allocation2 + $0x20] sm:$0xff]
    %v2666 = vld [vmem:[#allocation2 + $0x28] sm:$0xff]
    %v2667 = vld [vmem:[#allocation2 + $0x30] sm:$0xff]
    %v2668 = vld [vmem:[#allocation2 + $0x38] sm:$0xff]
    %v2669 = vld [vmem:[#allocation2 + $0x40] sm:$0xff]
    %v2670 = vld [vmem:[#allocation2 + $0x48] sm:$0xff]
    %v2671 = vld [vmem:[#allocation2 + $0x50] sm:$0xff]
    %v2672 = vld [vmem:[#allocation2 + $0x58] sm:$0xff]
    %v2673 = vld [vmem:[#allocation2 + $0x60] sm:$0xff]
    %v2674 = vld [vmem:[#allocation2 + $0x68] sm:$0xff]
    %v2675 = vld [vmem:[#allocation2 + $0x70] sm:$0xff]
    %v2676 = vld [vmem:[#allocation2 + $0x78] sm:$0xff]
    %v2677 = vld [vmem:[%s2] sm:$0x1]
    %v2679 = vperm.slane %v2677, 0
    %v2681 = vadd.f32 %v2661, %v2679
    %v2682 = vadd.f32 %v2662, %v2679
    %v2683 = vadd.f32 %v2663, %v2679
    %v2684 = vadd.f32 %v2664, %v2679
    %v2685 = vadd.f32 %v2665, %v2679
    %v2686 = vadd.f32 %v2666, %v2679
    %v2687 = vadd.f32 %v2667, %v2679
    %v2688 = vadd.f32 %v2668, %v2679
    %v2689 = vadd.f32 %v2669, %v2679
    %v2690 = vadd.f32 %v2670, %v2679
    %v2691 = vadd.f32 %v2671, %v2679
    %v2692 = vadd.f32 %v2672, %v2679
    %v2693 = vadd.f32 %v2673, %v2679
    %v2694 = vadd.f32 %v2674, %v2679
    %v2695 = vadd.f32 %v2675, %v2679
    %v2696 = vadd.f32 %v2676, %v2679
    %v2697 = vadd.f32 %v2681, %v2682
    %v2698 = vadd.f32 %v2697, %v2683
    %v2699 = vadd.f32 %v2698, %v2684
    %v2700 = vadd.f32 %v2699, %v2685
    %v2701 = vadd.f32 %v2700, %v2686
    %v2702 = vadd.f32 %v2701, %v2687
    %v2703 = vadd.f32 %v2702, %v2688
    %v2704 = vadd.f32 %v2703, %v2689
    %v2705 = vadd.f32 %v2704, %v2690
    %v2706 = vadd.f32 %v2705, %v2691
    %v2707 = vadd.f32 %v2706, %v2692
    %v2708 = vadd.f32 %v2707, %v2693
    %v2709 = vadd.f32 %v2708, %v2694
    %v2710 = vadd.f32 %v2709, %v2695
    %v2711 = vadd.f32 %v2710, %v2696
    %v2712 = vrot.slane %v2711, 4
    %v2713 = vadd.f32 %v2711, %v2712
    %v2714 = vrot.slane %v2713, 2
    %v2715 = vadd.f32 %v2713, %v2714
    %v2716 = vrot.slane %v2715, 1
    %v2717 = vadd.f32 %v2715, %v2716
    %v2718 = vrcp.pop 128.0
    %v2719 = vmul.f32 128.0, %v2718
    %v2720 = vsub.f32 1.0, %v2719
    %v2721 = vmul.f32 %v2718, %v2720
    %v2722 = vadd.f32 %v2718, %v2721
    %vm2723 = vweird.f32 %v2718
    %v2724 = vsel %vm2723, %v2718, %v2722
    %v2725 = vmul.f32 %v2717, %v2724
    %v2726 = vsub.f32 %v2681, %v2725
    %v2727 = vsub.f32 %v2682, %v2725
    %v2728 = vsub.f32 %v2683, %v2725
    %v2729 = vsub.f32 %v2684, %v2725
    %v2730 = vsub.f32 %v2685, %v2725
    %v2731 = vsub.f32 %v2686, %v2725
    %v2732 = vsub.f32 %v2687, %v2725
    %v2733 = vsub.f32 %v2688, %v2725
    %v2734 = vsub.f32 %v2689, %v2725
    %v2735 = vsub.f32 %v2690, %v2725
    %v2736 = vsub.f32 %v2691, %v2725
    %v2737 = vsub.f32 %v2692, %v2725
    %v2738 = vsub.f32 %v2693, %v2725
    %v2739 = vsub.f32 %v2694, %v2725
    %v2740 = vsub.f32 %v2695, %v2725
    %v2741 = vsub.f32 %v2696, %v2725
    %v2742 = vmul.f32 %v2726, %v2726
    %v2743 = vmul.f32 %v2727, %v2727
    %v2744 = vmul.f32 %v2728, %v2728
    %v2745 = vmul.f32 %v2729, %v2729
    %v2746 = vmul.f32 %v2730, %v2730
    %v2747 = vmul.f32 %v2731, %v2731
    %v2748 = vmul.f32 %v2732, %v2732
    %v2749 = vmul.f32 %v2733, %v2733
    %v2750 = vmul.f32 %v2734, %v2734
    %v2751 = vmul.f32 %v2735, %v2735
    %v2752 = vmul.f32 %v2736, %v2736
    %v2753 = vmul.f32 %v2737, %v2737
    %v2754 = vmul.f32 %v2738, %v2738
    %v2755 = vmul.f32 %v2739, %v2739
    %v2756 = vmul.f32 %v2740, %v2740
    %v2757 = vmul.f32 %v2741, %v2741
    %v2758 = vadd.f32 %v2742, %v2743
    %v2759 = vadd.f32 %v2758, %v2744
    %v2760 = vadd.f32 %v2759, %v2745
    %v2761 = vadd.f32 %v2760, %v2746
    %v2762 = vadd.f32 %v2761, %v2747
    %v2763 = vadd.f32 %v2762, %v2748
    %v2764 = vadd.f32 %v2763, %v2749
    %v2765 = vadd.f32 %v2764, %v2750
    %v2766 = vadd.f32 %v2765, %v2751
    %v2767 = vadd.f32 %v2766, %v2752
    %v2768 = vadd.f32 %v2767, %v2753
    %v2769 = vadd.f32 %v2768, %v2754
    %v2770 = vadd.f32 %v2769, %v2755
    %v2771 = vadd.f32 %v2770, %v2756
    %v2772 = vadd.f32 %v2771, %v2757
    %v2773 = vrot.slane %v2772, 4
    %v2774 = vadd.f32 %v2772, %v2773
    %v2775 = vrot.slane %v2774, 2
    %v2776 = vadd.f32 %v2774, %v2775
    %v2777 = vrot.slane %v2776, 1
    %v2778 = vadd.f32 %v2776, %v2777
    %v2779 = vmul.f32 %v2778, %v2724
    %v2780 = vadd.f32 %v2779, 1e-05
    %v2781 = vrsqrt.pop %v2780
    %v2782 = vmul.f32 %v2781, %v2780
    %v2783 = vmul.f32 %v2782, %v2781
    %v2784 = vmul.f32 0.5, %v2783
    %v2785 = vsub.f32 1.5, %v2784
    %v2786 = vmul.f32 %v2781, %v2785
    %vm2787 = vweird.f32 %v2780
    %vm2788 = vweird.f32 %v2781
    %vm2789 = vmor %vm2787, %vm2788
    %v2790 = vsel %vm2789, %v2781, %v2786
    %v2791 = vmul.f32 %v2726, %v2790
    %v2792 = vmul.f32 %v2727, %v2790
    %v2793 = vmul.f32 %v2728, %v2790
    %v2794 = vmul.f32 %v2729, %v2790
    %v2795 = vmul.f32 %v2730, %v2790
    %v2796 = vmul.f32 %v2731, %v2790
    %v2797 = vmul.f32 %v2732, %v2790
    %v2798 = vmul.f32 %v2733, %v2790
    %v2799 = vmul.f32 %v2734, %v2790
    %v2800 = vmul.f32 %v2735, %v2790
    %v2801 = vmul.f32 %v2736, %v2790
    %v2802 = vmul.f32 %v2737, %v2790
    %v2803 = vmul.f32 %v2738, %v2790
    %v2804 = vmul.f32 %v2739, %v2790
    %v2805 = vmul.f32 %v2740, %v2790
    %v2806 = vmul.f32 %v2741, %v2790
    %vm2807 = vcmp.ge.f32.partialorder %v2791, 0.0
    %vm2808 = vcmp.ge.f32.partialorder %v2792, 0.0
    %vm2809 = vcmp.ge.f32.partialorder %v2793, 0.0
    %vm2810 = vcmp.ge.f32.partialorder %v2794, 0.0
    %vm2811 = vcmp.ge.f32.partialorder %v2795, 0.0
    %vm2812 = vcmp.ge.f32.partialorder %v2796, 0.0
    %vm2813 = vcmp.ge.f32.partialorder %v2797, 0.0
    %vm2814 = vcmp.ge.f32.partialorder %v2798, 0.0
    %vm2815 = vcmp.ge.f32.partialorder %v2799, 0.0
    %vm2816 = vcmp.ge.f32.partialorder %v2800, 0.0
    %vm2817 = vcmp.ge.f32.partialorder %v2801, 0.0
    %vm2818 = vcmp.ge.f32.partialorder %v2802, 0.0
    %vm2819 = vcmp.ge.f32.partialorder %v2803, 0.0
    %vm2820 = vcmp.ge.f32.partialorder %v2804, 0.0
    %vm2821 = vcmp.ge.f32.partialorder %v2805, 0.0
    %vm2822 = vcmp.ge.f32.partialorder %v2806, 0.0
    %v2823 = vmul.f32 %v2791, 0.2
    %v2824 = vmul.f32 %v2792, 0.2
    %v2825 = vmul.f32 %v2793, 0.2
    %v2826 = vmul.f32 %v2794, 0.2
    %v2827 = vmul.f32 %v2795, 0.2
    %v2828 = vmul.f32 %v2796, 0.2
    %v2829 = vmul.f32 %v2797, 0.2
    %v2830 = vmul.f32 %v2798, 0.2
    %v2831 = vmul.f32 %v2799, 0.2
    %v2832 = vmul.f32 %v2800, 0.2
    %v2833 = vmul.f32 %v2801, 0.2
    %v2834 = vmul.f32 %v2802, 0.2
    %v2835 = vmul.f32 %v2803, 0.2
    %v2836 = vmul.f32 %v2804, 0.2
    %v2837 = vmul.f32 %v2805, 0.2
    %v2838 = vmul.f32 %v2806, 0.2
    %v2839 = vsel %vm2807, %v2791, %v2823
    %v2840 = vsel %vm2808, %v2792, %v2824
    %v2841 = vsel %vm2809, %v2793, %v2825
    %v2842 = vsel %vm2810, %v2794, %v2826
    %v2843 = vsel %vm2811, %v2795, %v2827
    %v2844 = vsel %vm2812, %v2796, %v2828
    %v2845 = vsel %vm2813, %v2797, %v2829
    %v2846 = vsel %vm2814, %v2798, %v2830
    %v2847 = vsel %vm2815, %v2799, %v2831
    %v2848 = vsel %vm2816, %v2800, %v2832
    %v2849 = vsel %vm2817, %v2801, %v2833
    %v2850 = vsel %vm2818, %v2802, %v2834
    %v2851 = vsel %vm2819, %v2803, %v2835
    %v2852 = vsel %vm2820, %v2804, %v2836
    %v2853 = vsel %vm2821, %v2805, %v2837
    %v2854 = vsel %vm2822, %v2806, %v2838
    %v2855 = vpack.c.bf16 %v2839, %v2839
    %v2856 = vpack.c.bf16 %v2840, %v2840
    %v2857 = vpack.c.bf16 %v2841, %v2841
    %v2858 = vpack.c.bf16 %v2842, %v2842
    %v2859 = vpack.c.bf16 %v2843, %v2843
    %v2860 = vpack.c.bf16 %v2844, %v2844
    %v2861 = vpack.c.bf16 %v2845, %v2845
    %v2862 = vpack.c.bf16 %v2846, %v2846
    %v2863 = vpack.c.bf16 %v2847, %v2847
    %v2864 = vpack.c.bf16 %v2848, %v2848
    %v2865 = vpack.c.bf16 %v2849, %v2849
    %v2866 = vpack.c.bf16 %v2850, %v2850
    %v2867 = vpack.c.bf16 %v2851, %v2851
    %v2868 = vpack.c.bf16 %v2852, %v2852
    %v2869 = vpack.c.bf16 %v2853, %v2853
    %v2870 = vpack.c.bf16 %v2854, %v2854
    %2871 = vst [vmem:[%s3] sm:$0xf] %v2855
    %2872 = vst [vmem:[%s3 + $0x4] sm:$0xf] %v2856
    %2873 = vst [vmem:[%s3 + $0x8] sm:$0xf] %v2857
    %2874 = vst [vmem:[%s3 + $0xc] sm:$0xf] %v2858
    %2875 = vst [vmem:[%s3 + $0x10] sm:$0xf] %v2859
    %2876 = vst [vmem:[%s3 + $0x14] sm:$0xf] %v2860
    %2877 = vst [vmem:[%s3 + $0x18] sm:$0xf] %v2861
    %2878 = vst [vmem:[%s3 + $0x1c] sm:$0xf] %v2862
    %2879 = vst [vmem:[%s3 + $0x20] sm:$0xf] %v2863
    %2880 = vst [vmem:[%s3 + $0x24] sm:$0xf] %v2864
    %2881 = vst [vmem:[%s3 + $0x28] sm:$0xf] %v2865
    %2882 = vst [vmem:[%s3 + $0x2c] sm:$0xf] %v2866
    %2883 = vst [vmem:[%s3 + $0x30] sm:$0xf] %v2867
    %2884 = vst [vmem:[%s3 + $0x34] sm:$0xf] %v2868
    %2885 = vst [vmem:[%s3 + $0x38] sm:$0xf] %v2869
    %2886 = vst [vmem:[%s3 + $0x3c] sm:$0xf] %v2870
  $region21: #{discriminator_forward.4} parent=0 // pred_fallthru
    _
  // Predicated region
  $region22: #{discriminator_forward.4} parent=0 // pred_check
    _
  $region23: #{discriminator_forward.4} parent=0 // pred_check_branch
    %2888 = sbr.rel (0) target = $region25
  $region24: #{discriminator_forward.4} parent=0 // pred_region
    _
  $region25: #{discriminator_forward.4} parent=0 // pred_fallthru
    _
  // Predicated region
  $region26: #{discriminator_forward.4} parent=0 // pred_check
    _
  $region27: #{discriminator_forward.4} parent=0 // pred_check_branch
    %2890 = sbr.rel (0) target = $region29
  $region28: #{discriminator_forward.4} parent=0 // pred_region
    _
  $region29: #{discriminator_forward.4} parent=0 // pred_fallthru
    _

// kernel: discriminator_forward.5
$region0: #{discriminator_forward.5}
  #allocation0 [shape = 'u32[]', space=smem, size = 0x4, offset = 0x4, fixed_abs, tag = 'smem constant byte address 0x4 - core index']
  #allocation1 [shape = 'u32[72,128]{1,0:T(1,128)}', space=vmem, size = 0x9000, scoped, tag = 'internal scratch']
  #allocation2 [shape = 'f32[8,512]{1,0:T(8,128)}', space=vmem, size = 0x4000, scoped, tag = 'scratch operand']
  %s0 = inlined_call_operand.vmem [shape: bf16[8,2048], index: 0, kind: input, shape index: {}]
  %s1 = inlined_call_operand.vmem [shape: bf16[2048,1024], index: 1, kind: input, shape index: {}]
  %s2 = inlined_call_operand.vmem [shape: f32[1,1024], index: 2, kind: input, shape index: {}]
  %s3 = inlined_call_operand.vmem [shape: bf16[1024,1], index: 3, kind: input, shape index: {}]
  %s4 = inlined_call_operand.vmem [shape: f32[2,8,1], index: 4, kind: output, shape index: {}]
  %s5 = sld [smem:[#allocation0]]
  $region94: #{discriminator_forward.5} parent=0
    _
  %s7 = ssub.s32 1, %s5
  %s8 = scalar_select 0, %s7, %s5
  $region1: #{discriminator_forward.5} parent=0
    #allocation3 [shape = 'u8[4194304]{0}', space=vmem, size = 0x400000, scoped, tag = 'input window, operand 1']
    loop: start=0, step=1, limit=4
    $region2: #{discriminator_forward.5} parent=1 // loop_pre_header
      _
    $region3: #{discriminator_forward.5} parent=1 // loop_header
      %s10 = sphi 0, %s14
      %p11 = scmp.ge.s32.totalorder %s10, 4
      %s17 = sphi 0, %s29
      %s18 = sphi 0, %s25
      %s19 = sphi 0, %s17
      %s20 = sphi 0, %s18
      %s21 = sphi 0, %s19
      %s22 = sphi 0, %s20
      %s32 = sphi 0, %s34
      %s35 = sphi 0, %s32
      %s36 = sphi 0, %s35
      %s52 = sphi 0, %s36
      %s60 = sphi 0, %s62
      %s63 = sphi 0, %s60
      %s64 = sphi 0, %s63
      %s80 = sphi 0, %s64
      %s86 = sphi 0, %s88
      %s89 = sphi 0, %s86
      %s90 = sphi 0, %s89
      %s106 = sphi 0, %s90
      %s112 = sphi 0, %s114
      %s115 = sphi 0, %s112
      %s116 = sphi 0, %s115
      %s132 = sphi 0, %s116
      %s138 = sphi 0, %s140
      %s141 = sphi 0, %s138
      %s142 = sphi 0, %s141
      %s158 = sphi 0, %s142
    $region4: #{discriminator_forward.5} parent=1 // loop_header_branch
      %13 = sbr.rel (%p11) target = $region8
    $region5: #{discriminator_forward.5} parent=1 // loop_body
      %s15 = ssub.s32 %s10, 1
      %s16 = ssub.s32 %s10, 2
      %s23 = sadd.s32 1, %s18
      %p24 = scmp.ge.s32.totalorder %s23, 1
      %s25 = scalar_select %p24, 0, %s23
      %s26 = sadd.s32 1, %s17
      %s27 = scalar_select %p24, %s26, %s17
      %p28 = scmp.ge.s32.totalorder %s27, 2
      %s29 = scalar_select %p28, 0, %s27
      %s30 = ssub.s32 %s18, %s25
      %p31 = scmp.eq.s32.totalorder %s30, 0
      %s33 = sadd.s32 %s32, 1
      %s34 = scalar_select %p31, %s32, %s33
      %p37 = pneg %p31
      %p38 = scmp.eq.s32.totalorder %s10, 1
      %p39 = por %p37, %p38
      %p40 = scmp.ne.s32.totalorder %s32, %s35
      %p41 = scmp.eq.s32.totalorder %s10, 0
      %p42 = por %p40, %p41
      %p43 = scmp.ne.s32.totalorder %s32, %s35
      %p44 = scmp.eq.s32.totalorder %s15, 1
      %p45 = por %p43, %p44
      %p46 = scmp.ne.s32.totalorder %s35, %s36
      %p47 = scmp.eq.s32.totalorder %s15, 0
      %p48 = por %p46, %p47
      %p49 = scmp.ne.s32.totalorder %s35, %s36
      %p50 = scmp.eq.s32.totalorder %s16, 1
      %p51 = por %p49, %p50
      %p53 = scmp.ne.s32.totalorder %s36, %s52
      %p54 = scmp.eq.s32.totalorder %s16, 0
      %p55 = por %p53, %p54
      %s56 = ssub.s32 %s18, %s25
      %s57 = ssub.s32 %s17, %s29
      %s58 = sor.u32 %s56, %s57
      %p59 = scmp.eq.s32.totalorder %s58, 0
      %s61 = sadd.s32 %s60, 1
      %s62 = scalar_select %p59, %s60, %s61
      %p65 = pneg %p59
      %p66 = scmp.eq.s32.totalorder %s10, 1
      %p67 = por %p65, %p66
      %p68 = scmp.ne.s32.totalorder %s60, %s63
      %p69 = scmp.eq.s32.totalorder %s10, 0
      %p70 = por %p68, %p69
      %p71 = scmp.ne.s32.totalorder %s60, %s63
      %p72 = scmp.eq.s32.totalorder %s15, 1
      %p73 = por %p71, %p72
      %p74 = scmp.ne.s32.totalorder %s63, %s64
      %p75 = scmp.eq.s32.totalorder %s15, 0
      %p76 = por %p74, %p75
      %p77 = scmp.ne.s32.totalorder %s63, %s64
      %p78 = scmp.eq.s32.totalorder %s16, 1
      %p79 = por %p77, %p78
      %p81 = scmp.ne.s32.totalorder %s64, %s80
      %p82 = scmp.eq.s32.totalorder %s16, 0
      %p83 = por %p81, %p82
      %s84 = ssub.s32 %s17, %s29
      %p85 = scmp.eq.s32.totalorder %s84, 0
      %s87 = sadd.s32 %s86, 1
      %s88 = scalar_select %p85, %s86, %s87
      %p91 = pneg %p85
      %p92 = scmp.eq.s32.totalorder %s10, 1
      %p93 = por %p91, %p92
      %p94 = scmp.ne.s32.totalorder %s86, %s89
      %p95 = scmp.eq.s32.totalorder %s10, 0
      %p96 = por %p94, %p95
      %p97 = scmp.ne.s32.totalorder %s86, %s89
      %p98 = scmp.eq.s32.totalorder %s15, 1
      %p99 = por %p97, %p98
      %p100 = scmp.ne.s32.totalorder %s89, %s90
      %p101 = scmp.eq.s32.totalorder %s15, 0
      %p102 = por %p100, %p101
      %p103 = scmp.ne.s32.totalorder %s89, %s90
      %p104 = scmp.eq.s32.totalorder %s16, 1
      %p105 = por %p103, %p104
      %p107 = scmp.ne.s32.totalorder %s90, %s106
      %p108 = scmp.eq.s32.totalorder %s16, 0
      %p109 = por %p107, %p108
      %s110 = ssub.s32 %s17, %s29
      %p111 = scmp.eq.s32.totalorder %s110, 0
      %s113 = sadd.s32 %s112, 1
      %s114 = scalar_select %p111, %s112, %s113
      %p117 = pneg %p111
      %p118 = scmp.eq.s32.totalorder %s10, 1
      %p119 = por %p117, %p118
      %p120 = scmp.ne.s32.totalorder %s112, %s115
      %p121 = scmp.eq.s32.totalorder %s10, 0
      %p122 = por %p120, %p121
      %p123 = scmp.ne.s32.totalorder %s112, %s115
      %p124 = scmp.eq.s32.totalorder %s15, 1
      %p125 = por %p123, %p124
      %p126 = scmp.ne.s32.totalorder %s115, %s116
      %p127 = scmp.eq.s32.totalorder %s15, 0
      %p128 = por %p126, %p127
      %p129 = scmp.ne.s32.totalorder %s115, %s116
      %p130 = scmp.eq.s32.totalorder %s16, 1
      %p131 = por %p129, %p130
      %p133 = scmp.ne.s32.totalorder %s116, %s132
      %p134 = scmp.eq.s32.totalorder %s16, 0
      %p135 = por %p133, %p134
      %s136 = ssub.s32 %s17, %s29
      %p137 = scmp.eq.s32.totalorder %s136, 0
      %s139 = sadd.s32 %s138, 1
      %s140 = scalar_select %p137, %s138, %s139
      %p143 = pneg %p137
      %p144 = scmp.eq.s32.totalorder %s10, 1
      %p145 = por %p143, %p144
      %p146 = scmp.ne.s32.totalorder %s138, %s141
      %p147 = scmp.eq.s32.totalorder %s10, 0
      %p148 = por %p146, %p147
      %p149 = scmp.ne.s32.totalorder %s138, %s141
      %p150 = scmp.eq.s32.totalorder %s15, 1
      %p151 = por %p149, %p150
      %p152 = scmp.ne.s32.totalorder %s141, %s142
      %p153 = scmp.eq.s32.totalorder %s15, 0
      %p154 = por %p152, %p153
      %p155 = scmp.ne.s32.totalorder %s141, %s142
      %p156 = scmp.eq.s32.totalorder %s16, 1
      %p157 = por %p155, %p156
      %p159 = scmp.ne.s32.totalorder %s142, %s158
      %p160 = scmp.eq.s32.totalorder %s16, 0
      %p161 = por %p159, %p160
      %p162 = scmp.le.s32.totalorder 1, %s10
      %p163 = scmp.lt.s32.totalorder %s10, 3
      %p164 = pnand %p162, %p163
      %p165 = pneg %p164
      // Predicated region
      $region9: #{discriminator_forward.5} parent=5 // pred_check
        _
      $region10: #{discriminator_forward.5} parent=5 // pred_check_branch
        %167 = sbr.rel (%p164) target = $region12
      $region11: #{discriminator_forward.5} parent=5 // pred_region
        %s168 = ssub.s32 %s10, 1
        // Predicated region
        $region13: #{discriminator_forward.5} parent=11 // pred_check
          %p169 = pneg %p48
        $region14: #{discriminator_forward.5} parent=11 // pred_check_branch
          %171 = sbr.rel (%p169) target = $region16
        $region15: #{discriminator_forward.5} parent=11 // pred_region
          %s172 = smul.u32 16, %s20
          %p173 = scmp.lt.s32.totalorder %s172, 15
          %s174 = scalar_select %p173, %s172, 15
          %s175 = smul.addr %s174, 4
          %s176 = scalar_lea.vmem %s0, %s175
          %s177 = smul.u32 16, %s20
        $region16: #{discriminator_forward.5} parent=11 // pred_fallthru
          _
      $region12: #{discriminator_forward.5} parent=5 // pred_fallthru
        _
      %p178 = scmp.lt.s32.totalorder %s10, 2
      // Predicated region
      $region17: #{discriminator_forward.5} parent=5 // pred_check
        %p179 = pneg %p178
      $region18: #{discriminator_forward.5} parent=5 // pred_check_branch
        %181 = sbr.rel (%p179) target = $region20
      $region19: #{discriminator_forward.5} parent=5 // pred_region
        // Predicated region
        $region21: #{discriminator_forward.5} parent=19 // pred_check
          %p182 = pneg %p70
        $region22: #{discriminator_forward.5} parent=19 // pred_check_branch
          %184 = sbr.rel (%p182) target = $region24
        $region23: #{discriminator_forward.5} parent=19 // pred_region
          %s185 = sand.u32 %s60, 1
          %s186 = sand.u32 %s60, 1
          %s187 = smul.addr %s186, 4096
          %s188 = scalar_lea.vmem [#allocation3], %s187
          %s189 = smul.u32 256, %s18
          %s190 = smul.u32 4, %s17
          %s191 = smul.addr %s189, 8
          %s192 = sadd.s32 %s190, %s191
          %s193 = smul.addr %s192, 4
          %s194 = scalar_lea.vmem %s1, %s193
          // Predicated region
          $region25: #{discriminator_forward.5} parent=23 // pred_check
            _
          $region26: #{discriminator_forward.5} parent=23 // pred_check_branch
            %196 = sbr.rel (0) target = $region28
          $region27: #{discriminator_forward.5} parent=23 // pred_region
            // Predicated region
            $region29: #{discriminator_forward.5} parent=27 // pred_check
              _
            $region30: #{discriminator_forward.5} parent=27 // pred_check_branch
              %198 = sbr.rel (0) target = $region32
            $region31: #{discriminator_forward.5} parent=27 // pred_region
              loop: start=0, step=1, limit=2
              $region33: #{discriminator_forward.5} parent=31 // loop_pre_header
                _
              $region34: #{discriminator_forward.5} parent=31 // loop_header
                %s200 = sphi 0, %s204
                %p201 = scmp.ge.s32.totalorder %s200, 2
                %s205 = sphi 0, %s722
                %s206 = sphi %s194, %s725
                %s207 = sphi %s188, %s726
              $region35: #{discriminator_forward.5} parent=31 // loop_header_branch
                %203 = sbr.rel (%p201) target = $region39
              $region36: #{discriminator_forward.5} parent=31 // loop_body
                %v208 = vld [vmem:[%s206] sm:$0xff]
                %209 = vst [vmem:[%s207] sm:$0xff] %v208
                %v210 = vld [vmem:[%s206 + $0x20] sm:$0xff]
                %211 = vst [vmem:[%s207 + $0x10] sm:$0xff] %v210
                %v212 = vld [vmem:[%s206 + $0x40] sm:$0xff]
                %213 = vst [vmem:[%s207 + $0x20] sm:$0xff] %v212
                %v214 = vld [vmem:[%s206 + $0x60] sm:$0xff]
                %215 = vst [vmem:[%s207 + $0x30] sm:$0xff] %v214
                %v216 = vld [vmem:[%s206 + $0x80] sm:$0xff]
                %217 = vst [vmem:[%s207 + $0x40] sm:$0xff] %v216
                %v218 = vld [vmem:[%s206 + $0xa0] sm:$0xff]
                %219 = vst [vmem:[%s207 + $0x50] sm:$0xff] %v218
                %v220 = vld [vmem:[%s206 + $0xc0] sm:$0xff]
                %221 = vst [vmem:[%s207 + $0x60] sm:$0xff] %v220
                %v222 = vld [vmem:[%s206 + $0xe0] sm:$0xff]
                %223 = vst [vmem:[%s207 + $0x70] sm:$0xff] %v222
                %v224 = vld [vmem:[%s206 + $0x100] sm:$0xff]
                %225 = vst [vmem:[%s207 + $0x80] sm:$0xff] %v224
                %v226 = vld [vmem:[%s206 + $0x120] sm:$0xff]
                %227 = vst [vmem:[%s207 + $0x90] sm:$0xff] %v226
                %v228 = vld [vmem:[%s206 + $0x140] sm:$0xff]
                %229 = vst [vmem:[%s207 + $0xa0] sm:$0xff] %v228
                %v230 = vld [vmem:[%s206 + $0x160] sm:$0xff]
                %231 = vst [vmem:[%s207 + $0xb0] sm:$0xff] %v230
                %v232 = vld [vmem:[%s206 + $0x180] sm:$0xff]
                %233 = vst [vmem:[%s207 + $0xc0] sm:$0xff] %v232
                %v234 = vld [vmem:[%s206 + $0x1a0] sm:$0xff]
                %235 = vst [vmem:[%s207 + $0xd0] sm:$0xff] %v234
                %v236 = vld [vmem:[%s206 + $0x1c0] sm:$0xff]
                %237 = vst [vmem:[%s207 + $0xe0] sm:$0xff] %v236
                %v238 = vld [vmem:[%s206 + $0x1e0] sm:$0xff]
                %239 = vst [vmem:[%s207 + $0xf0] sm:$0xff] %v238
                %v240 = vld [vmem:[%s206 + $0x200] sm:$0xff]
                %241 = vst [vmem:[%s207 + $0x100] sm:$0xff] %v240
                %v242 = vld [vmem:[%s206 + $0x220] sm:$0xff]
                %243 = vst [vmem:[%s207 + $0x110] sm:$0xff] %v242
                %v244 = vld [vmem:[%s206 + $0x240] sm:$0xff]
                %245 = vst [vmem:[%s207 + $0x120] sm:$0xff] %v244
                %v246 = vld [vmem:[%s206 + $0x260] sm:$0xff]
                %247 = vst [vmem:[%s207 + $0x130] sm:$0xff] %v246
                %v248 = vld [vmem:[%s206 + $0x280] sm:$0xff]
                %249 = vst [vmem:[%s207 + $0x140] sm:$0xff] %v248
                %v250 = vld [vmem:[%s206 + $0x2a0] sm:$0xff]
                %251 = vst [vmem:[%s207 + $0x150] sm:$0xff] %v250
                %v252 = vld [vmem:[%s206 + $0x2c0] sm:$0xff]
                %253 = vst [vmem:[%s207 + $0x160] sm:$0xff] %v252
                %v254 = vld [vmem:[%s206 + $0x2e0] sm:$0xff]
                %255 = vst [vmem:[%s207 + $0x170] sm:$0xff] %v254
                %v256 = vld [vmem:[%s206 + $0x300] sm:$0xff]
                %257 = vst [vmem:[%s207 + $0x180] sm:$0xff] %v256
                %v258 = vld [vmem:[%s206 + $0x320] sm:$0xff]
                %259 = vst [vmem:[%s207 + $0x190] sm:$0xff] %v258
                %v260 = vld [vmem:[%s206 + $0x340] sm:$0xff]
                %261 = vst [vmem:[%s207 + $0x1a0] sm:$0xff] %v260
                %v262 = vld [vmem:[%s206 + $0x360] sm:$0xff]
                %263 = vst [vmem:[%s207 + $0x1b0] sm:$0xff] %v262
                %v264 = vld [vmem:[%s206 + $0x380] sm:$0xff]
                %265 = vst [vmem:[%s207 + $0x1c0] sm:$0xff] %v264
                %v266 = vld [vmem:[%s206 + $0x3a0] sm:$0xff]
                %267 = vst [vmem:[%s207 + $0x1d0] sm:$0xff] %v266
                %v268 = vld [vmem:[%s206 + $0x3c0] sm:$0xff]
                %269 = vst [vmem:[%s207 + $0x1e0] sm:$0xff] %v268
                %v270 = vld [vmem:[%s206 + $0x3e0] sm:$0xff]
                %271 = vst [vmem:[%s207 + $0x1f0] sm:$0xff] %v270
                %v272 = vld [vmem:[%s206 + $0x400] sm:$0xff]
                %273 = vst [vmem:[%s207 + $0x200] sm:$0xff] %v272
                %v274 = vld [vmem:[%s206 + $0x420] sm:$0xff]
                %275 = vst [vmem:[%s207 + $0x210] sm:$0xff] %v274
                %v276 = vld [vmem:[%s206 + $0x440] sm:$0xff]
                %277 = vst [vmem:[%s207 + $0x220] sm:$0xff] %v276
                %v278 = vld [vmem:[%s206 + $0x460] sm:$0xff]
                %279 = vst [vmem:[%s207 + $0x230] sm:$0xff] %v278
                %v280 = vld [vmem:[%s206 + $0x480] sm:$0xff]
                %281 = vst [vmem:[%s207 + $0x240] sm:$0xff] %v280
                %v282 = vld [vmem:[%s206 + $0x4a0] sm:$0xff]
                %283 = vst [vmem:[%s207 + $0x250] sm:$0xff] %v282
                %v284 = vld [vmem:[%s206 + $0x4c0] sm:$0xff]
                %285 = vst [vmem:[%s207 + $0x260] sm:$0xff] %v284
                %v286 = vld [vmem:[%s206 + $0x4e0] sm:$0xff]
                %287 = vst [vmem:[%s207 + $0x270] sm:$0xff] %v286
                %v288 = vld [vmem:[%s206 + $0x500] sm:$0xff]
                %289 = vst [vmem:[%s207 + $0x280] sm:$0xff] %v288
                %v290 = vld [vmem:[%s206 + $0x520] sm:$0xff]
                %291 = vst [vmem:[%s207 + $0x290] sm:$0xff] %v290
                %v292 = vld [vmem:[%s206 + $0x540] sm:$0xff]
                %293 = vst [vmem:[%s207 + $0x2a0] sm:$0xff] %v292
                %v294 = vld [vmem:[%s206 + $0x560] sm:$0xff]
                %295 = vst [vmem:[%s207 + $0x2b0] sm:$0xff] %v294
                %v296 = vld [vmem:[%s206 + $0x580] sm:$0xff]
                %297 = vst [vmem:[%s207 + $0x2c0] sm:$0xff] %v296
                %v298 = vld [vmem:[%s206 + $0x5a0] sm:$0xff]
                %299 = vst [vmem:[%s207 + $0x2d0] sm:$0xff] %v298
                %v300 = vld [vmem:[%s206 + $0x5c0] sm:$0xff]
                %301 = vst [vmem:[%s207 + $0x2e0] sm:$0xff] %v300
                %v302 = vld [vmem:[%s206 + $0x5e0] sm:$0xff]
                %303 = vst [vmem:[%s207 + $0x2f0] sm:$0xff] %v302
                %v304 = vld [vmem:[%s206 + $0x600] sm:$0xff]
                %305 = vst [vmem:[%s207 + $0x300] sm:$0xff] %v304
                %v306 = vld [vmem:[%s206 + $0x620] sm:$0xff]
                %307 = vst [vmem:[%s207 + $0x310] sm:$0xff] %v306
                %v308 = vld [vmem:[%s206 + $0x640] sm:$0xff]
                %309 = vst [vmem:[%s207 + $0x320] sm:$0xff] %v308
                %v310 = vld [vmem:[%s206 + $0x660] sm:$0xff]
                %311 = vst [vmem:[%s207 + $0x330] sm:$0xff] %v310
                %v312 = vld [vmem:[%s206 + $0x680] sm:$0xff]
                %313 = vst [vmem:[%s207 + $0x340] sm:$0xff] %v312
                %v314 = vld [vmem:[%s206 + $0x6a0] sm:$0xff]
                %315 = vst [vmem:[%s207 + $0x350] sm:$0xff] %v314
                %v316 = vld [vmem:[%s206 + $0x6c0] sm:$0xff]
                %317 = vst [vmem:[%s207 + $0x360] sm:$0xff] %v316
                %v318 = vld [vmem:[%s206 + $0x6e0] sm:$0xff]
                %319 = vst [vmem:[%s207 + $0x370] sm:$0xff] %v318
                %v320 = vld [vmem:[%s206 + $0x700] sm:$0xff]
                %321 = vst [vmem:[%s207 + $0x380] sm:$0xff] %v320
                %v322 = vld [vmem:[%s206 + $0x720] sm:$0xff]
                %323 = vst [vmem:[%s207 + $0x390] sm:$0xff] %v322
                %v324 = vld [vmem:[%s206 + $0x740] sm:$0xff]
                %325 = vst [vmem:[%s207 + $0x3a0] sm:$0xff] %v324
                %v326 = vld [vmem:[%s206 + $0x760] sm:$0xff]
                %327 = vst [vmem:[%s207 + $0x3b0] sm:$0xff] %v326
                %v328 = vld [vmem:[%s206 + $0x780] sm:$0xff]
                %329 = vst [vmem:[%s207 + $0x3c0] sm:$0xff] %v328
                %v330 = vld [vmem:[%s206 + $0x7a0] sm:$0xff]
                %331 = vst [vmem:[%s207 + $0x3d0] sm:$0xff] %v330
                %v332 = vld [vmem:[%s206 + $0x7c0] sm:$0xff]
                %333 = vst [vmem:[%s207 + $0x3e0] sm:$0xff] %v332
                %v334 = vld [vmem:[%s206 + $0x7e0] sm:$0xff]
                %335 = vst [vmem:[%s207 + $0x3f0] sm:$0xff] %v334
                %v336 = vld [vmem:[%s206 + $0x800] sm:$0xff]
                %337 = vst [vmem:[%s207 + $0x400] sm:$0xff] %v336
                %v338 = vld [vmem:[%s206 + $0x820] sm:$0xff]
                %339 = vst [vmem:[%s207 + $0x410] sm:$0xff] %v338
                %v340 = vld [vmem:[%s206 + $0x840] sm:$0xff]
                %341 = vst [vmem:[%s207 + $0x420] sm:$0xff] %v340
                %v342 = vld [vmem:[%s206 + $0x860] sm:$0xff]
                %343 = vst [vmem:[%s207 + $0x430] sm:$0xff] %v342
                %v344 = vld [vmem:[%s206 + $0x880] sm:$0xff]
                %345 = vst [vmem:[%s207 + $0x440] sm:$0xff] %v344
                %v346 = vld [vmem:[%s206 + $0x8a0] sm:$0xff]
                %347 = vst [vmem:[%s207 + $0x450] sm:$0xff] %v346
                %v348 = vld [vmem:[%s206 + $0x8c0] sm:$0xff]
                %349 = vst [vmem:[%s207 + $0x460] sm:$0xff] %v348
                %v350 = vld [vmem:[%s206 + $0x8e0] sm:$0xff]
                %351 = vst [vmem:[%s207 + $0x470] sm:$0xff] %v350
                %v352 = vld [vmem:[%s206 + $0x900] sm:$0xff]
                %353 = vst [vmem:[%s207 + $0x480] sm:$0xff] %v352
                %v354 = vld [vmem:[%s206 + $0x920] sm:$0xff]
                %355 = vst [vmem:[%s207 + $0x490] sm:$0xff] %v354
                %v356 = vld [vmem:[%s206 + $0x940] sm:$0xff]
                %357 = vst [vmem:[%s207 + $0x4a0] sm:$0xff] %v356
                %v358 = vld [vmem:[%s206 + $0x960] sm:$0xff]
                %359 = vst [vmem:[%s207 + $0x4b0] sm:$0xff] %v358
                %v360 = vld [vmem:[%s206 + $0x980] sm:$0xff]
                %361 = vst [vmem:[%s207 + $0x4c0] sm:$0xff] %v360
                %v362 = vld [vmem:[%s206 + $0x9a0] sm:$0xff]
                %363 = vst [vmem:[%s207 + $0x4d0] sm:$0xff] %v362
                %v364 = vld [vmem:[%s206 + $0x9c0] sm:$0xff]
                %365 = vst [vmem:[%s207 + $0x4e0] sm:$0xff] %v364
                %v366 = vld [vmem:[%s206 + $0x9e0] sm:$0xff]
                %367 = vst [vmem:[%s207 + $0x4f0] sm:$0xff] %v366
                %v368 = vld [vmem:[%s206 + $0xa00] sm:$0xff]
                %369 = vst [vmem:[%s207 + $0x500] sm:$0xff] %v368
                %v370 = vld [vmem:[%s206 + $0xa20] sm:$0xff]
                %371 = vst [vmem:[%s207 + $0x510] sm:$0xff] %v370
                %v372 = vld [vmem:[%s206 + $0xa40] sm:$0xff]
                %373 = vst [vmem:[%s207 + $0x520] sm:$0xff] %v372
                %v374 = vld [vmem:[%s206 + $0xa60] sm:$0xff]
                %375 = vst [vmem:[%s207 + $0x530] sm:$0xff] %v374
                %v376 = vld [vmem:[%s206 + $0xa80] sm:$0xff]
                %377 = vst [vmem:[%s207 + $0x540] sm:$0xff] %v376
                %v378 = vld [vmem:[%s206 + $0xaa0] sm:$0xff]
                %379 = vst [vmem:[%s207 + $0x550] sm:$0xff] %v378
                %v380 = vld [vmem:[%s206 + $0xac0] sm:$0xff]
                %381 = vst [vmem:[%s207 + $0x560] sm:$0xff] %v380
                %v382 = vld [vmem:[%s206 + $0xae0] sm:$0xff]
                %383 = vst [vmem:[%s207 + $0x570] sm:$0xff] %v382
                %v384 = vld [vmem:[%s206 + $0xb00] sm:$0xff]
                %385 = vst [vmem:[%s207 + $0x580] sm:$0xff] %v384
                %v386 = vld [vmem:[%s206 + $0xb20] sm:$0xff]
                %387 = vst [vmem:[%s207 + $0x590] sm:$0xff] %v386
                %v388 = vld [vmem:[%s206 + $0xb40] sm:$0xff]
                %389 = vst [vmem:[%s207 + $0x5a0] sm:$0xff] %v388
                %v390 = vld [vmem:[%s206 + $0xb60] sm:$0xff]
                %391 = vst [vmem:[%s207 + $0x5b0] sm:$0xff] %v390
                %v392 = vld [vmem:[%s206 + $0xb80] sm:$0xff]
                %393 = vst [vmem:[%s207 + $0x5c0] sm:$0xff] %v392
                %v394 = vld [vmem:[%s206 + $0xba0] sm:$0xff]
                %395 = vst [vmem:[%s207 + $0x5d0] sm:$0xff] %v394
                %v396 = vld [vmem:[%s206 + $0xbc0] sm:$0xff]
                %397 = vst [vmem:[%s207 + $0x5e0] sm:$0xff] %v396
                %v398 = vld [vmem:[%s206 + $0xbe0] sm:$0xff]
                %399 = vst [vmem:[%s207 + $0x5f0] sm:$0xff] %v398
                %v400 = vld [vmem:[%s206 + $0xc00] sm:$0xff]
                %401 = vst [vmem:[%s207 + $0x600] sm:$0xff] %v400
                %v402 = vld [vmem:[%s206 + $0xc20] sm:$0xff]
                %403 = vst [vmem:[%s207 + $0x610] sm:$0xff] %v402
                %v404 = vld [vmem:[%s206 + $0xc40] sm:$0xff]
                %405 = vst [vmem:[%s207 + $0x620] sm:$0xff] %v404
                %v406 = vld [vmem:[%s206 + $0xc60] sm:$0xff]
                %407 = vst [vmem:[%s207 + $0x630] sm:$0xff] %v406
                %v408 = vld [vmem:[%s206 + $0xc80] sm:$0xff]
                %409 = vst [vmem:[%s207 + $0x640] sm:$0xff] %v408
                %v410 = vld [vmem:[%s206 + $0xca0] sm:$0xff]
                %411 = vst [vmem:[%s207 + $0x650] sm:$0xff] %v410
                %v412 = vld [vmem:[%s206 + $0xcc0] sm:$0xff]
                %413 = vst [vmem:[%s207 + $0x660] sm:$0xff] %v412
                %v414 = vld [vmem:[%s206 + $0xce0] sm:$0xff]
                %415 = vst [vmem:[%s207 + $0x670] sm:$0xff] %v414
                %v416 = vld [vmem:[%s206 + $0xd00] sm:$0xff]
                %417 = vst [vmem:[%s207 + $0x680] sm:$0xff] %v416
                %v418 = vld [vmem:[%s206 + $0xd20] sm:$0xff]
                %419 = vst [vmem:[%s207 + $0x690] sm:$0xff] %v418
                %v420 = vld [vmem:[%s206 + $0xd40] sm:$0xff]
                %421 = vst [vmem:[%s207 + $0x6a0] sm:$0xff] %v420
                %v422 = vld [vmem:[%s206 + $0xd60] sm:$0xff]
                %423 = vst [vmem:[%s207 + $0x6b0] sm:$0xff] %v422
                %v424 = vld [vmem:[%s206 + $0xd80] sm:$0xff]
                %425 = vst [vmem:[%s207 + $0x6c0] sm:$0xff] %v424
                %v426 = vld [vmem:[%s206 + $0xda0] sm:$0xff]
                %427 = vst [vmem:[%s207 + $0x6d0] sm:$0xff] %v426
                %v428 = vld [vmem:[%s206 + $0xdc0] sm:$0xff]
                %429 = vst [vmem:[%s207 + $0x6e0] sm:$0xff] %v428
                %v430 = vld [vmem:[%s206 + $0xde0] sm:$0xff]
                %431 = vst [vmem:[%s207 + $0x6f0] sm:$0xff] %v430
                %v432 = vld [vmem:[%s206 + $0xe00] sm:$0xff]
                %433 = vst [vmem:[%s207 + $0x700] sm:$0xff] %v432
                %v434 = vld [vmem:[%s206 + $0xe20] sm:$0xff]
                %435 = vst [vmem:[%s207 + $0x710] sm:$0xff] %v434
                %v436 = vld [vmem:[%s206 + $0xe40] sm:$0xff]
                %437 = vst [vmem:[%s207 + $0x720] sm:$0xff] %v436
                %v438 = vld [vmem:[%s206 + $0xe60] sm:$0xff]
                %439 = vst [vmem:[%s207 + $0x730] sm:$0xff] %v438
                %v440 = vld [vmem:[%s206 + $0xe80] sm:$0xff]
                %441 = vst [vmem:[%s207 + $0x740] sm:$0xff] %v440
                %v442 = vld [vmem:[%s206 + $0xea0] sm:$0xff]
                %443 = vst [vmem:[%s207 + $0x750] sm:$0xff] %v442
                %v444 = vld [vmem:[%s206 + $0xec0] sm:$0xff]
                %445 = vst [vmem:[%s207 + $0x760] sm:$0xff] %v444
                %v446 = vld [vmem:[%s206 + $0xee0] sm:$0xff]
                %447 = vst [vmem:[%s207 + $0x770] sm:$0xff] %v446
                %v448 = vld [vmem:[%s206 + $0xf00] sm:$0xff]
                %449 = vst [vmem:[%s207 + $0x780] sm:$0xff] %v448
                %v450 = vld [vmem:[%s206 + $0xf20] sm:$0xff]
                %451 = vst [vmem:[%s207 + $0x790] sm:$0xff] %v450
                %v452 = vld [vmem:[%s206 + $0xf40] sm:$0xff]
                %453 = vst [vmem:[%s207 + $0x7a0] sm:$0xff] %v452
                %v454 = vld [vmem:[%s206 + $0xf60] sm:$0xff]
                %455 = vst [vmem:[%s207 + $0x7b0] sm:$0xff] %v454
                %v456 = vld [vmem:[%s206 + $0xf80] sm:$0xff]
                %457 = vst [vmem:[%s207 + $0x7c0] sm:$0xff] %v456
                %v458 = vld [vmem:[%s206 + $0xfa0] sm:$0xff]
                %459 = vst [vmem:[%s207 + $0x7d0] sm:$0xff] %v458
                %v460 = vld [vmem:[%s206 + $0xfc0] sm:$0xff]
                %461 = vst [vmem:[%s207 + $0x7e0] sm:$0xff] %v460
                %v462 = vld [vmem:[%s206 + $0xfe0] sm:$0xff]
                %463 = vst [vmem:[%s207 + $0x7f0] sm:$0xff] %v462
                %v464 = vld [vmem:[%s206 + $0x1000] sm:$0xff]
                %465 = vst [vmem:[%s207 + $0x800] sm:$0xff] %v464
                %v466 = vld [vmem:[%s206 + $0x1020] sm:$0xff]
                %467 = vst [vmem:[%s207 + $0x810] sm:$0xff] %v466
                %v468 = vld [vmem:[%s206 + $0x1040] sm:$0xff]
                %469 = vst [vmem:[%s207 + $0x820] sm:$0xff] %v468
                %v470 = vld [vmem:[%s206 + $0x1060] sm:$0xff]
                %471 = vst [vmem:[%s207 + $0x830] sm:$0xff] %v470
                %v472 = vld [vmem:[%s206 + $0x1080] sm:$0xff]
                %473 = vst [vmem:[%s207 + $0x840] sm:$0xff] %v472
                %v474 = vld [vmem:[%s206 + $0x10a0] sm:$0xff]
                %475 = vst [vmem:[%s207 + $0x850] sm:$0xff] %v474
                %v476 = vld [vmem:[%s206 + $0x10c0] sm:$0xff]
                %477 = vst [vmem:[%s207 + $0x860] sm:$0xff] %v476
                %v478 = vld [vmem:[%s206 + $0x10e0] sm:$0xff]
                %479 = vst [vmem:[%s207 + $0x870] sm:$0xff] %v478
                %v480 = vld [vmem:[%s206 + $0x1100] sm:$0xff]
                %481 = vst [vmem:[%s207 + $0x880] sm:$0xff] %v480
                %v482 = vld [vmem:[%s206 + $0x1120] sm:$0xff]
                %483 = vst [vmem:[%s207 + $0x890] sm:$0xff] %v482
                %v484 = vld [vmem:[%s206 + $0x1140] sm:$0xff]
                %485 = vst [vmem:[%s207 + $0x8a0] sm:$0xff] %v484
                %v486 = vld [vmem:[%s206 + $0x1160] sm:$0xff]
                %487 = vst [vmem:[%s207 + $0x8b0] sm:$0xff] %v486
                %v488 = vld [vmem:[%s206 + $0x1180] sm:$0xff]
                %489 = vst [vmem:[%s207 + $0x8c0] sm:$0xff] %v488
                %v490 = vld [vmem:[%s206 + $0x11a0] sm:$0xff]
                %491 = vst [vmem:[%s207 + $0x8d0] sm:$0xff] %v490
                %v492 = vld [vmem:[%s206 + $0x11c0] sm:$0xff]
                %493 = vst [vmem:[%s207 + $0x8e0] sm:$0xff] %v492
                %v494 = vld [vmem:[%s206 + $0x11e0] sm:$0xff]
                %495 = vst [vmem:[%s207 + $0x8f0] sm:$0xff] %v494
                %v496 = vld [vmem:[%s206 + $0x1200] sm:$0xff]
                %497 = vst [vmem:[%s207 + $0x900] sm:$0xff] %v496
                %v498 = vld [vmem:[%s206 + $0x1220] sm:$0xff]
                %499 = vst [vmem:[%s207 + $0x910] sm:$0xff] %v498
                %v500 = vld [vmem:[%s206 + $0x1240] sm:$0xff]
                %501 = vst [vmem:[%s207 + $0x920] sm:$0xff] %v500
                %v502 = vld [vmem:[%s206 + $0x1260] sm:$0xff]
                %503 = vst [vmem:[%s207 + $0x930] sm:$0xff] %v502
                %v504 = vld [vmem:[%s206 + $0x1280] sm:$0xff]
                %505 = vst [vmem:[%s207 + $0x940] sm:$0xff] %v504
                %v506 = vld [vmem:[%s206 + $0x12a0] sm:$0xff]
                %507 = vst [vmem:[%s207 + $0x950] sm:$0xff] %v506
                %v508 = vld [vmem:[%s206 + $0x12c0] sm:$0xff]
                %509 = vst [vmem:[%s207 + $0x960] sm:$0xff] %v508
                %v510 = vld [vmem:[%s206 + $0x12e0] sm:$0xff]
                %511 = vst [vmem:[%s207 + $0x970] sm:$0xff] %v510
                %v512 = vld [vmem:[%s206 + $0x1300] sm:$0xff]
                %513 = vst [vmem:[%s207 + $0x980] sm:$0xff] %v512
                %v514 = vld [vmem:[%s206 + $0x1320] sm:$0xff]
                %515 = vst [vmem:[%s207 + $0x990] sm:$0xff] %v514
                %v516 = vld [vmem:[%s206 + $0x1340] sm:$0xff]
                %517 = vst [vmem:[%s207 + $0x9a0] sm:$0xff] %v516
                %v518 = vld [vmem:[%s206 + $0x1360] sm:$0xff]
                %519 = vst [vmem:[%s207 + $0x9b0] sm:$0xff] %v518
                %v520 = vld [vmem:[%s206 + $0x1380] sm:$0xff]
                %521 = vst [vmem:[%s207 + $0x9c0] sm:$0xff] %v520
                %v522 = vld [vmem:[%s206 + $0x13a0] sm:$0xff]
                %523 = vst [vmem:[%s207 + $0x9d0] sm:$0xff] %v522
                %v524 = vld [vmem:[%s206 + $0x13c0] sm:$0xff]
                %525 = vst [vmem:[%s207 + $0x9e0] sm:$0xff] %v524
                %v526 = vld [vmem:[%s206 + $0x13e0] sm:$0xff]
                %527 = vst [vmem:[%s207 + $0x9f0] sm:$0xff] %v526
                %v528 = vld [vmem:[%s206 + $0x1400] sm:$0xff]
                %529 = vst [vmem:[%s207 + $0xa00] sm:$0xff] %v528
                %v530 = vld [vmem:[%s206 + $0x1420] sm:$0xff]
                %531 = vst [vmem:[%s207 + $0xa10] sm:$0xff] %v530
                %v532 = vld [vmem:[%s206 + $0x1440] sm:$0xff]
                %533 = vst [vmem:[%s207 + $0xa20] sm:$0xff] %v532
                %v534 = vld [vmem:[%s206 + $0x1460] sm:$0xff]
                %535 = vst [vmem:[%s207 + $0xa30] sm:$0xff] %v534
                %v536 = vld [vmem:[%s206 + $0x1480] sm:$0xff]
                %537 = vst [vmem:[%s207 + $0xa40] sm:$0xff] %v536
                %v538 = vld [vmem:[%s206 + $0x14a0] sm:$0xff]
                %539 = vst [vmem:[%s207 + $0xa50] sm:$0xff] %v538
                %v540 = vld [vmem:[%s206 + $0x14c0] sm:$0xff]
                %541 = vst [vmem:[%s207 + $0xa60] sm:$0xff] %v540
                %v542 = vld [vmem:[%s206 + $0x14e0] sm:$0xff]
                %543 = vst [vmem:[%s207 + $0xa70] sm:$0xff] %v542
                %v544 = vld [vmem:[%s206 + $0x1500] sm:$0xff]
                %545 = vst [vmem:[%s207 + $0xa80] sm:$0xff] %v544
                %v546 = vld [vmem:[%s206 + $0x1520] sm:$0xff]
                %547 = vst [vmem:[%s207 + $0xa90] sm:$0xff] %v546
                %v548 = vld [vmem:[%s206 + $0x1540] sm:$0xff]
                %549 = vst [vmem:[%s207 + $0xaa0] sm:$0xff] %v548
                %v550 = vld [vmem:[%s206 + $0x1560] sm:$0xff]
                %551 = vst [vmem:[%s207 + $0xab0] sm:$0xff] %v550
                %v552 = vld [vmem:[%s206 + $0x1580] sm:$0xff]
                %553 = vst [vmem:[%s207 + $0xac0] sm:$0xff] %v552
                %v554 = vld [vmem:[%s206 + $0x15a0] sm:$0xff]
                %555 = vst [vmem:[%s207 + $0xad0] sm:$0xff] %v554
                %v556 = vld [vmem:[%s206 + $0x15c0] sm:$0xff]
                %557 = vst [vmem:[%s207 + $0xae0] sm:$0xff] %v556
                %v558 = vld [vmem:[%s206 + $0x15e0] sm:$0xff]
                %559 = vst [vmem:[%s207 + $0xaf0] sm:$0xff] %v558
                %v560 = vld [vmem:[%s206 + $0x1600] sm:$0xff]
                %561 = vst [vmem:[%s207 + $0xb00] sm:$0xff] %v560
                %v562 = vld [vmem:[%s206 + $0x1620] sm:$0xff]
                %563 = vst [vmem:[%s207 + $0xb10] sm:$0xff] %v562
                %v564 = vld [vmem:[%s206 + $0x1640] sm:$0xff]
                %565 = vst [vmem:[%s207 + $0xb20] sm:$0xff] %v564
                %v566 = vld [vmem:[%s206 + $0x1660] sm:$0xff]
                %567 = vst [vmem:[%s207 + $0xb30] sm:$0xff] %v566
                %v568 = vld [vmem:[%s206 + $0x1680] sm:$0xff]
                %569 = vst [vmem:[%s207 + $0xb40] sm:$0xff] %v568
                %v570 = vld [vmem:[%s206 + $0x16a0] sm:$0xff]
                %571 = vst [vmem:[%s207 + $0xb50] sm:$0xff] %v570
                %v572 = vld [vmem:[%s206 + $0x16c0] sm:$0xff]
                %573 = vst [vmem:[%s207 + $0xb60] sm:$0xff] %v572
                %v574 = vld [vmem:[%s206 + $0x16e0] sm:$0xff]
                %575 = vst [vmem:[%s207 + $0xb70] sm:$0xff] %v574
                %v576 = vld [vmem:[%s206 + $0x1700] sm:$0xff]
                %577 = vst [vmem:[%s207 + $0xb80] sm:$0xff] %v576
                %v578 = vld [vmem:[%s206 + $0x1720] sm:$0xff]
                %579 = vst [vmem:[%s207 + $0xb90] sm:$0xff] %v578
                %v580 = vld [vmem:[%s206 + $0x1740] sm:$0xff]
                %581 = vst [vmem:[%s207 + $0xba0] sm:$0xff] %v580
                %v582 = vld [vmem:[%s206 + $0x1760] sm:$0xff]
                %583 = vst [vmem:[%s207 + $0xbb0] sm:$0xff] %v582
                %v584 = vld [vmem:[%s206 + $0x1780] sm:$0xff]
                %585 = vst [vmem:[%s207 + $0xbc0] sm:$0xff] %v584
                %v586 = vld [vmem:[%s206 + $0x17a0] sm:$0xff]
                %587 = vst [vmem:[%s207 + $0xbd0] sm:$0xff] %v586
                %v588 = vld [vmem:[%s206 + $0x17c0] sm:$0xff]
                %589 = vst [vmem:[%s207 + $0xbe0] sm:$0xff] %v588
                %v590 = vld [vmem:[%s206 + $0x17e0] sm:$0xff]
                %591 = vst [vmem:[%s207 + $0xbf0] sm:$0xff] %v590
                %v592 = vld [vmem:[%s206 + $0x1800] sm:$0xff]
                %593 = vst [vmem:[%s207 + $0xc00] sm:$0xff] %v592
                %v594 = vld [vmem:[%s206 + $0x1820] sm:$0xff]
                %595 = vst [vmem:[%s207 + $0xc10] sm:$0xff] %v594
                %v596 = vld [vmem:[%s206 + $0x1840] sm:$0xff]
                %597 = vst [vmem:[%s207 + $0xc20] sm:$0xff] %v596
                %v598 = vld [vmem:[%s206 + $0x1860] sm:$0xff]
                %599 = vst [vmem:[%s207 + $0xc30] sm:$0xff] %v598
                %v600 = vld [vmem:[%s206 + $0x1880] sm:$0xff]
                %601 = vst [vmem:[%s207 + $0xc40] sm:$0xff] %v600
                %v602 = vld [vmem:[%s206 + $0x18a0] sm:$0xff]
                %603 = vst [vmem:[%s207 + $0xc50] sm:$0xff] %v602
                %v604 = vld [vmem:[%s206 + $0x18c0] sm:$0xff]
                %605 = vst [vmem:[%s207 + $0xc60] sm:$0xff] %v604
                %v606 = vld [vmem:[%s206 + $0x18e0] sm:$0xff]
                %607 = vst [vmem:[%s207 + $0xc70] sm:$0xff] %v606
                %v608 = vld [vmem:[%s206 + $0x1900] sm:$0xff]
                %609 = vst [vmem:[%s207 + $0xc80] sm:$0xff] %v608
                %v610 = vld [vmem:[%s206 + $0x1920] sm:$0xff]
                %611 = vst [vmem:[%s207 + $0xc90] sm:$0xff] %v610
                %v612 = vld [vmem:[%s206 + $0x1940] sm:$0xff]
                %613 = vst [vmem:[%s207 + $0xca0] sm:$0xff] %v612
                %v614 = vld [vmem:[%s206 + $0x1960] sm:$0xff]
                %615 = vst [vmem:[%s207 + $0xcb0] sm:$0xff] %v614
                %v616 = vld [vmem:[%s206 + $0x1980] sm:$0xff]
                %617 = vst [vmem:[%s207 + $0xcc0] sm:$0xff] %v616
                %v618 = vld [vmem:[%s206 + $0x19a0] sm:$0xff]
                %619 = vst [vmem:[%s207 + $0xcd0] sm:$0xff] %v618
                %v620 = vld [vmem:[%s206 + $0x19c0] sm:$0xff]
                %621 = vst [vmem:[%s207 + $0xce0] sm:$0xff] %v620
                %v622 = vld [vmem:[%s206 + $0x19e0] sm:$0xff]
                %623 = vst [vmem:[%s207 + $0xcf0] sm:$0xff] %v622
                %v624 = vld [vmem:[%s206 + $0x1a00] sm:$0xff]
                %625 = vst [vmem:[%s207 + $0xd00] sm:$0xff] %v624
                %v626 = vld [vmem:[%s206 + $0x1a20] sm:$0xff]
                %627 = vst [vmem:[%s207 + $0xd10] sm:$0xff] %v626
                %v628 = vld [vmem:[%s206 + $0x1a40] sm:$0xff]
                %629 = vst [vmem:[%s207 + $0xd20] sm:$0xff] %v628
                %v630 = vld [vmem:[%s206 + $0x1a60] sm:$0xff]
                %631 = vst [vmem:[%s207 + $0xd30] sm:$0xff] %v630
                %v632 = vld [vmem:[%s206 + $0x1a80] sm:$0xff]
                %633 = vst [vmem:[%s207 + $0xd40] sm:$0xff] %v632
                %v634 = vld [vmem:[%s206 + $0x1aa0] sm:$0xff]
                %635 = vst [vmem:[%s207 + $0xd50] sm:$0xff] %v634
                %v636 = vld [vmem:[%s206 + $0x1ac0] sm:$0xff]
                %637 = vst [vmem:[%s207 + $0xd60] sm:$0xff] %v636
                %v638 = vld [vmem:[%s206 + $0x1ae0] sm:$0xff]
                %639 = vst [vmem:[%s207 + $0xd70] sm:$0xff] %v638
                %v640 = vld [vmem:[%s206 + $0x1b00] sm:$0xff]
                %641 = vst [vmem:[%s207 + $0xd80] sm:$0xff] %v640
                %v642 = vld [vmem:[%s206 + $0x1b20] sm:$0xff]
                %643 = vst [vmem:[%s207 + $0xd90] sm:$0xff] %v642
                %v644 = vld [vmem:[%s206 + $0x1b40] sm:$0xff]
                %645 = vst [vmem:[%s207 + $0xda0] sm:$0xff] %v644
                %v646 = vld [vmem:[%s206 + $0x1b60] sm:$0xff]
                %647 = vst [vmem:[%s207 + $0xdb0] sm:$0xff] %v646
                %v648 = vld [vmem:[%s206 + $0x1b80] sm:$0xff]
                %649 = vst [vmem:[%s207 + $0xdc0] sm:$0xff] %v648
                %v650 = vld [vmem:[%s206 + $0x1ba0] sm:$0xff]
                %651 = vst [vmem:[%s207 + $0xdd0] sm:$0xff] %v650
                %v652 = vld [vmem:[%s206 + $0x1bc0] sm:$0xff]
                %653 = vst [vmem:[%s207 + $0xde0] sm:$0xff] %v652
                %v654 = vld [vmem:[%s206 + $0x1be0] sm:$0xff]
                %655 = vst [vmem:[%s207 + $0xdf0] sm:$0xff] %v654
                %v656 = vld [vmem:[%s206 + $0x1c00] sm:$0xff]
                %657 = vst [vmem:[%s207 + $0xe00] sm:$0xff] %v656
                %v658 = vld [vmem:[%s206 + $0x1c20] sm:$0xff]
                %659 = vst [vmem:[%s207 + $0xe10] sm:$0xff] %v658
                %v660 = vld [vmem:[%s206 + $0x1c40] sm:$0xff]
                %661 = vst [vmem:[%s207 + $0xe20] sm:$0xff] %v660
                %v662 = vld [vmem:[%s206 + $0x1c60] sm:$0xff]
                %663 = vst [vmem:[%s207 + $0xe30] sm:$0xff] %v662
                %v664 = vld [vmem:[%s206 + $0x1c80] sm:$0xff]
                %665 = vst [vmem:[%s207 + $0xe40] sm:$0xff] %v664
                %v666 = vld [vmem:[%s206 + $0x1ca0] sm:$0xff]
                %667 = vst [vmem:[%s207 + $0xe50] sm:$0xff] %v666
                %v668 = vld [vmem:[%s206 + $0x1cc0] sm:$0xff]
                %669 = vst [vmem:[%s207 + $0xe60] sm:$0xff] %v668
                %v670 = vld [vmem:[%s206 + $0x1ce0] sm:$0xff]
                %671 = vst [vmem:[%s207 + $0xe70] sm:$0xff] %v670
                %v672 = vld [vmem:[%s206 + $0x1d00] sm:$0xff]
                %673 = vst [vmem:[%s207 + $0xe80] sm:$0xff] %v672
                %v674 = vld [vmem:[%s206 + $0x1d20] sm:$0xff]
                %675 = vst [vmem:[%s207 + $0xe90] sm:$0xff] %v674
                %v676 = vld [vmem:[%s206 + $0x1d40] sm:$0xff]
                %677 = vst [vmem:[%s207 + $0xea0] sm:$0xff] %v676
                %v678 = vld [vmem:[%s206 + $0x1d60] sm:$0xff]
                %679 = vst [vmem:[%s207 + $0xeb0] sm:$0xff] %v678
                %v680 = vld [vmem:[%s206 + $0x1d80] sm:$0xff]
                %681 = vst [vmem:[%s207 + $0xec0] sm:$0xff] %v680
                %v682 = vld [vmem:[%s206 + $0x1da0] sm:$0xff]
                %683 = vst [vmem:[%s207 + $0xed0] sm:$0xff] %v682
                %v684 = vld [vmem:[%s206 + $0x1dc0] sm:$0xff]
                %685 = vst [vmem:[%s207 + $0xee0] sm:$0xff] %v684
                %v686 = vld [vmem:[%s206 + $0x1de0] sm:$0xff]
                %687 = vst [vmem:[%s207 + $0xef0] sm:$0xff] %v686
                %v688 = vld [vmem:[%s206 + $0x1e00] sm:$0xff]
                %689 = vst [vmem:[%s207 + $0xf00] sm:$0xff] %v688
                %v690 = vld [vmem:[%s206 + $0x1e20] sm:$0xff]
                %691 = vst [vmem:[%s207 + $0xf10] sm:$0xff] %v690
                %v692 = vld [vmem:[%s206 + $0x1e40] sm:$0xff]
                %693 = vst [vmem:[%s207 + $0xf20] sm:$0xff] %v692
                %v694 = vld [vmem:[%s206 + $0x1e60] sm:$0xff]
                %695 = vst [vmem:[%s207 + $0xf30] sm:$0xff] %v694
                %v696 = vld [vmem:[%s206 + $0x1e80] sm:$0xff]
                %697 = vst [vmem:[%s207 + $0xf40] sm:$0xff] %v696
                %v698 = vld [vmem:[%s206 + $0x1ea0] sm:$0xff]
                %699 = vst [vmem:[%s207 + $0xf50] sm:$0xff] %v698
                %v700 = vld [vmem:[%s206 + $0x1ec0] sm:$0xff]
                %701 = vst [vmem:[%s207 + $0xf60] sm:$0xff] %v700
                %v702 = vld [vmem:[%s206 + $0x1ee0] sm:$0xff]
                %703 = vst [vmem:[%s207 + $0xf70] sm:$0xff] %v702
                %v704 = vld [vmem:[%s206 + $0x1f00] sm:$0xff]
                %705 = vst [vmem:[%s207 + $0xf80] sm:$0xff] %v704
                %v706 = vld [vmem:[%s206 + $0x1f20] sm:$0xff]
                %707 = vst [vmem:[%s207 + $0xf90] sm:$0xff] %v706
                %v708 = vld [vmem:[%s206 + $0x1f40] sm:$0xff]
                %709 = vst [vmem:[%s207 + $0xfa0] sm:$0xff] %v708
                %v710 = vld [vmem:[%s206 + $0x1f60] sm:$0xff]
                %711 = vst [vmem:[%s207 + $0xfb0] sm:$0xff] %v710
                %v712 = vld [vmem:[%s206 + $0x1f80] sm:$0xff]
                %713 = vst [vmem:[%s207 + $0xfc0] sm:$0xff] %v712
                %v714 = vld [vmem:[%s206 + $0x1fa0] sm:$0xff]
                %715 = vst [vmem:[%s207 + $0xfd0] sm:$0xff] %v714
                %v716 = vld [vmem:[%s206 + $0x1fc0] sm:$0xff]
                %717 = vst [vmem:[%s207 + $0xfe0] sm:$0xff] %v716
                %v718 = vld [vmem:[%s206 + $0x1fe0] sm:$0xff]
                %719 = vst [vmem:[%s207 + $0xff0] sm:$0xff] %v718
                %s720 = sadd.s32 1, %s205
                %p721 = scmp.ge.s32.totalorder %s720, 2
                %s722 = scalar_select %p721, 0, %s720
                %s723 = smul.u32 %s722, 8
                %s724 = smul.u32 %s722, 8
                %s725 = scalar_lea.vmem %s194, %s723
                %s726 = scalar_lea.vmem %s188, %s724 [#allocation3]
              $region37: #{discriminator_forward.5} parent=31 // loop_footer
                %s204 = sadd.s32 1, %s200
              $region38: #{discriminator_forward.5} parent=31 // loop_footer_branch
                %199 = sbr.rel target = $region34
              $region39: #{discriminator_forward.5} parent=31 // loop_exit
                _
            $region32: #{discriminator_forward.5} parent=27 // pred_fallthru
              _
            // Predicated region
            $region40: #{discriminator_forward.5} parent=27 // pred_check
              _
            $region41: #{discriminator_forward.5} parent=27 // pred_check_branch
              %728 = sbr.rel target = $region43
            $region42: #{discriminator_forward.5} parent=27 // pred_region
              %s729 = scalar_lea.vmem %s194, 16
              %s730 = scalar_lea.vmem %s188, 16 [#allocation3]
              loop: start=0, step=1, limit=2
              $region44: #{discriminator_forward.5} parent=42 // loop_pre_header
                _
              $region45: #{discriminator_forward.5} parent=42 // loop_header
                %s732 = sphi 0, %s736
                %p733 = scmp.ge.s32.totalorder %s732, 2
                %s737 = sphi 0, %s1254
                %s738 = sphi %s194, %s1257
                %s739 = sphi %s188, %s1258
              $region46: #{discriminator_forward.5} parent=42 // loop_header_branch
                %735 = sbr.rel (%p733) target = $region50
              $region47: #{discriminator_forward.5} parent=42 // loop_body
                %v740 = vld [vmem:[%s738] sm:$0xff]
                %741 = vst [vmem:[%s739] sm:$0xff] %v740
                %v742 = vld [vmem:[%s738 + $0x20] sm:$0xff]
                %743 = vst [vmem:[%s739 + $0x10] sm:$0xff] %v742
                %v744 = vld [vmem:[%s738 + $0x40] sm:$0xff]
                %745 = vst [vmem:[%s739 + $0x20] sm:$0xff] %v744
                %v746 = vld [vmem:[%s738 + $0x60] sm:$0xff]
                %747 = vst [vmem:[%s739 + $0x30] sm:$0xff] %v746
                %v748 = vld [vmem:[%s738 + $0x80] sm:$0xff]
                %749 = vst [vmem:[%s739 + $0x40] sm:$0xff] %v748
                %v750 = vld [vmem:[%s738 + $0xa0] sm:$0xff]
                %751 = vst [vmem:[%s739 + $0x50] sm:$0xff] %v750
                %v752 = vld [vmem:[%s738 + $0xc0] sm:$0xff]
                %753 = vst [vmem:[%s739 + $0x60] sm:$0xff] %v752
                %v754 = vld [vmem:[%s738 + $0xe0] sm:$0xff]
                %755 = vst [vmem:[%s739 + $0x70] sm:$0xff] %v754
                %v756 = vld [vmem:[%s738 + $0x100] sm:$0xff]
                %757 = vst [vmem:[%s739 + $0x80] sm:$0xff] %v756
                %v758 = vld [vmem:[%s738 + $0x120] sm:$0xff]
                %759 = vst [vmem:[%s739 + $0x90] sm:$0xff] %v758
                %v760 = vld [vmem:[%s738 + $0x140] sm:$0xff]
                %761 = vst [vmem:[%s739 + $0xa0] sm:$0xff] %v760
                %v762 = vld [vmem:[%s738 + $0x160] sm:$0xff]
                %763 = vst [vmem:[%s739 + $0xb0] sm:$0xff] %v762
                %v764 = vld [vmem:[%s738 + $0x180] sm:$0xff]
                %765 = vst [vmem:[%s739 + $0xc0] sm:$0xff] %v764
                %v766 = vld [vmem:[%s738 + $0x1a0] sm:$0xff]
                %767 = vst [vmem:[%s739 + $0xd0] sm:$0xff] %v766
                %v768 = vld [vmem:[%s738 + $0x1c0] sm:$0xff]
                %769 = vst [vmem:[%s739 + $0xe0] sm:$0xff] %v768
                %v770 = vld [vmem:[%s738 + $0x1e0] sm:$0xff]
                %771 = vst [vmem:[%s739 + $0xf0] sm:$0xff] %v770
                %v772 = vld [vmem:[%s738 + $0x200] sm:$0xff]
                %773 = vst [vmem:[%s739 + $0x100] sm:$0xff] %v772
                %v774 = vld [vmem:[%s738 + $0x220] sm:$0xff]
                %775 = vst [vmem:[%s739 + $0x110] sm:$0xff] %v774
                %v776 = vld [vmem:[%s738 + $0x240] sm:$0xff]
                %777 = vst [vmem:[%s739 + $0x120] sm:$0xff] %v776
                %v778 = vld [vmem:[%s738 + $0x260] sm:$0xff]
                %779 = vst [vmem:[%s739 + $0x130] sm:$0xff] %v778
                %v780 = vld [vmem:[%s738 + $0x280] sm:$0xff]
                %781 = vst [vmem:[%s739 + $0x140] sm:$0xff] %v780
                %v782 = vld [vmem:[%s738 + $0x2a0] sm:$0xff]
                %783 = vst [vmem:[%s739 + $0x150] sm:$0xff] %v782
                %v784 = vld [vmem:[%s738 + $0x2c0] sm:$0xff]
                %785 = vst [vmem:[%s739 + $0x160] sm:$0xff] %v784
                %v786 = vld [vmem:[%s738 + $0x2e0] sm:$0xff]
                %787 = vst [vmem:[%s739 + $0x170] sm:$0xff] %v786
                %v788 = vld [vmem:[%s738 + $0x300] sm:$0xff]
                %789 = vst [vmem:[%s739 + $0x180] sm:$0xff] %v788
                %v790 = vld [vmem:[%s738 + $0x320] sm:$0xff]
                %791 = vst [vmem:[%s739 + $0x190] sm:$0xff] %v790
                %v792 = vld [vmem:[%s738 + $0x340] sm:$0xff]
                %793 = vst [vmem:[%s739 + $0x1a0] sm:$0xff] %v792
                %v794 = vld [vmem:[%s738 + $0x360] sm:$0xff]
                %795 = vst [vmem:[%s739 + $0x1b0] sm:$0xff] %v794
                %v796 = vld [vmem:[%s738 + $0x380] sm:$0xff]
                %797 = vst [vmem:[%s739 + $0x1c0] sm:$0xff] %v796
                %v798 = vld [vmem:[%s738 + $0x3a0] sm:$0xff]
                %799 = vst [vmem:[%s739 + $0x1d0] sm:$0xff] %v798
                %v800 = vld [vmem:[%s738 + $0x3c0] sm:$0xff]
                %801 = vst [vmem:[%s739 + $0x1e0] sm:$0xff] %v800
                %v802 = vld [vmem:[%s738 + $0x3e0] sm:$0xff]
                %803 = vst [vmem:[%s739 + $0x1f0] sm:$0xff] %v802
                %v804 = vld [vmem:[%s738 + $0x400] sm:$0xff]
                %805 = vst [vmem:[%s739 + $0x200] sm:$0xff] %v804
                %v806 = vld [vmem:[%s738 + $0x420] sm:$0xff]
                %807 = vst [vmem:[%s739 + $0x210] sm:$0xff] %v806
                %v808 = vld [vmem:[%s738 + $0x440] sm:$0xff]
                %809 = vst [vmem:[%s739 + $0x220] sm:$0xff] %v808
                %v810 = vld [vmem:[%s738 + $0x460] sm:$0xff]
                %811 = vst [vmem:[%s739 + $0x230] sm:$0xff] %v810
                %v812 = vld [vmem:[%s738 + $0x480] sm:$0xff]
                %813 = vst [vmem:[%s739 + $0x240] sm:$0xff] %v812
                %v814 = vld [vmem:[%s738 + $0x4a0] sm:$0xff]
                %815 = vst [vmem:[%s739 + $0x250] sm:$0xff] %v814
                %v816 = vld [vmem:[%s738 + $0x4c0] sm:$0xff]
                %817 = vst [vmem:[%s739 + $0x260] sm:$0xff] %v816
                %v818 = vld [vmem:[%s738 + $0x4e0] sm:$0xff]
                %819 = vst [vmem:[%s739 + $0x270] sm:$0xff] %v818
                %v820 = vld [vmem:[%s738 + $0x500] sm:$0xff]
                %821 = vst [vmem:[%s739 + $0x280] sm:$0xff] %v820
                %v822 = vld [vmem:[%s738 + $0x520] sm:$0xff]
                %823 = vst [vmem:[%s739 + $0x290] sm:$0xff] %v822
                %v824 = vld [vmem:[%s738 + $0x540] sm:$0xff]
                %825 = vst [vmem:[%s739 + $0x2a0] sm:$0xff] %v824
                %v826 = vld [vmem:[%s738 + $0x560] sm:$0xff]
                %827 = vst [vmem:[%s739 + $0x2b0] sm:$0xff] %v826
                %v828 = vld [vmem:[%s738 + $0x580] sm:$0xff]
                %829 = vst [vmem:[%s739 + $0x2c0] sm:$0xff] %v828
                %v830 = vld [vmem:[%s738 + $0x5a0] sm:$0xff]
                %831 = vst [vmem:[%s739 + $0x2d0] sm:$0xff] %v830
                %v832 = vld [vmem:[%s738 + $0x5c0] sm:$0xff]
                %833 = vst [vmem:[%s739 + $0x2e0] sm:$0xff] %v832
                %v834 = vld [vmem:[%s738 + $0x5e0] sm:$0xff]
                %835 = vst [vmem:[%s739 + $0x2f0] sm:$0xff] %v834
                %v836 = vld [vmem:[%s738 + $0x600] sm:$0xff]
                %837 = vst [vmem:[%s739 + $0x300] sm:$0xff] %v836
                %v838 = vld [vmem:[%s738 + $0x620] sm:$0xff]
                %839 = vst [vmem:[%s739 + $0x310] sm:$0xff] %v838
                %v840 = vld [vmem:[%s738 + $0x640] sm:$0xff]
                %841 = vst [vmem:[%s739 + $0x320] sm:$0xff] %v840
                %v842 = vld [vmem:[%s738 + $0x660] sm:$0xff]
                %843 = vst [vmem:[%s739 + $0x330] sm:$0xff] %v842
                %v844 = vld [vmem:[%s738 + $0x680] sm:$0xff]
                %845 = vst [vmem:[%s739 + $0x340] sm:$0xff] %v844
                %v846 = vld [vmem:[%s738 + $0x6a0] sm:$0xff]
                %847 = vst [vmem:[%s739 + $0x350] sm:$0xff] %v846
                %v848 = vld [vmem:[%s738 + $0x6c0] sm:$0xff]
                %849 = vst [vmem:[%s739 + $0x360] sm:$0xff] %v848
                %v850 = vld [vmem:[%s738 + $0x6e0] sm:$0xff]
                %851 = vst [vmem:[%s739 + $0x370] sm:$0xff] %v850
                %v852 = vld [vmem:[%s738 + $0x700] sm:$0xff]
                %853 = vst [vmem:[%s739 + $0x380] sm:$0xff] %v852
                %v854 = vld [vmem:[%s738 + $0x720] sm:$0xff]
                %855 = vst [vmem:[%s739 + $0x390] sm:$0xff] %v854
                %v856 = vld [vmem:[%s738 + $0x740] sm:$0xff]
                %857 = vst [vmem:[%s739 + $0x3a0] sm:$0xff] %v856
                %v858 = vld [vmem:[%s738 + $0x760] sm:$0xff]
                %859 = vst [vmem:[%s739 + $0x3b0] sm:$0xff] %v858
                %v860 = vld [vmem:[%s738 + $0x780] sm:$0xff]
                %861 = vst [vmem:[%s739 + $0x3c0] sm:$0xff] %v860
                %v862 = vld [vmem:[%s738 + $0x7a0] sm:$0xff]
                %863 = vst [vmem:[%s739 + $0x3d0] sm:$0xff] %v862
                %v864 = vld [vmem:[%s738 + $0x7c0] sm:$0xff]
                %865 = vst [vmem:[%s739 + $0x3e0] sm:$0xff] %v864
                %v866 = vld [vmem:[%s738 + $0x7e0] sm:$0xff]
                %867 = vst [vmem:[%s739 + $0x3f0] sm:$0xff] %v866
                %v868 = vld [vmem:[%s738 + $0x800] sm:$0xff]
                %869 = vst [vmem:[%s739 + $0x400] sm:$0xff] %v868
                %v870 = vld [vmem:[%s738 + $0x820] sm:$0xff]
                %871 = vst [vmem:[%s739 + $0x410] sm:$0xff] %v870
                %v872 = vld [vmem:[%s738 + $0x840] sm:$0xff]
                %873 = vst [vmem:[%s739 + $0x420] sm:$0xff] %v872
                %v874 = vld [vmem:[%s738 + $0x860] sm:$0xff]
                %875 = vst [vmem:[%s739 + $0x430] sm:$0xff] %v874
                %v876 = vld [vmem:[%s738 + $0x880] sm:$0xff]
                %877 = vst [vmem:[%s739 + $0x440] sm:$0xff] %v876
                %v878 = vld [vmem:[%s738 + $0x8a0] sm:$0xff]
                %879 = vst [vmem:[%s739 + $0x450] sm:$0xff] %v878
                %v880 = vld [vmem:[%s738 + $0x8c0] sm:$0xff]
                %881 = vst [vmem:[%s739 + $0x460] sm:$0xff] %v880
                %v882 = vld [vmem:[%s738 + $0x8e0] sm:$0xff]
                %883 = vst [vmem:[%s739 + $0x470] sm:$0xff] %v882
                %v884 = vld [vmem:[%s738 + $0x900] sm:$0xff]
                %885 = vst [vmem:[%s739 + $0x480] sm:$0xff] %v884
                %v886 = vld [vmem:[%s738 + $0x920] sm:$0xff]
                %887 = vst [vmem:[%s739 + $0x490] sm:$0xff] %v886
                %v888 = vld [vmem:[%s738 + $0x940] sm:$0xff]
                %889 = vst [vmem:[%s739 + $0x4a0] sm:$0xff] %v888
                %v890 = vld [vmem:[%s738 + $0x960] sm:$0xff]
                %891 = vst [vmem:[%s739 + $0x4b0] sm:$0xff] %v890
                %v892 = vld [vmem:[%s738 + $0x980] sm:$0xff]
                %893 = vst [vmem:[%s739 + $0x4c0] sm:$0xff] %v892
                %v894 = vld [vmem:[%s738 + $0x9a0] sm:$0xff]
                %895 = vst [vmem:[%s739 + $0x4d0] sm:$0xff] %v894
                %v896 = vld [vmem:[%s738 + $0x9c0] sm:$0xff]
                %897 = vst [vmem:[%s739 + $0x4e0] sm:$0xff] %v896
                %v898 = vld [vmem:[%s738 + $0x9e0] sm:$0xff]
                %899 = vst [vmem:[%s739 + $0x4f0] sm:$0xff] %v898
                %v900 = vld [vmem:[%s738 + $0xa00] sm:$0xff]
                %901 = vst [vmem:[%s739 + $0x500] sm:$0xff] %v900
                %v902 = vld [vmem:[%s738 + $0xa20] sm:$0xff]
                %903 = vst [vmem:[%s739 + $0x510] sm:$0xff] %v902
                %v904 = vld [vmem:[%s738 + $0xa40] sm:$0xff]
                %905 = vst [vmem:[%s739 + $0x520] sm:$0xff] %v904
                %v906 = vld [vmem:[%s738 + $0xa60] sm:$0xff]
                %907 = vst [vmem:[%s739 + $0x530] sm:$0xff] %v906
                %v908 = vld [vmem:[%s738 + $0xa80] sm:$0xff]
                %909 = vst [vmem:[%s739 + $0x540] sm:$0xff] %v908
                %v910 = vld [vmem:[%s738 + $0xaa0] sm:$0xff]
                %911 = vst [vmem:[%s739 + $0x550] sm:$0xff] %v910
                %v912 = vld [vmem:[%s738 + $0xac0] sm:$0xff]
                %913 = vst [vmem:[%s739 + $0x560] sm:$0xff] %v912
                %v914 = vld [vmem:[%s738 + $0xae0] sm:$0xff]
                %915 = vst [vmem:[%s739 + $0x570] sm:$0xff] %v914
                %v916 = vld [vmem:[%s738 + $0xb00] sm:$0xff]
                %917 = vst [vmem:[%s739 + $0x580] sm:$0xff] %v916
                %v918 = vld [vmem:[%s738 + $0xb20] sm:$0xff]
                %919 = vst [vmem:[%s739 + $0x590] sm:$0xff] %v918
                %v920 = vld [vmem:[%s738 + $0xb40] sm:$0xff]
                %921 = vst [vmem:[%s739 + $0x5a0] sm:$0xff] %v920
                %v922 = vld [vmem:[%s738 + $0xb60] sm:$0xff]
                %923 = vst [vmem:[%s739 + $0x5b0] sm:$0xff] %v922
                %v924 = vld [vmem:[%s738 + $0xb80] sm:$0xff]
                %925 = vst [vmem:[%s739 + $0x5c0] sm:$0xff] %v924
                %v926 = vld [vmem:[%s738 + $0xba0] sm:$0xff]
                %927 = vst [vmem:[%s739 + $0x5d0] sm:$0xff] %v926
                %v928 = vld [vmem:[%s738 + $0xbc0] sm:$0xff]
                %929 = vst [vmem:[%s739 + $0x5e0] sm:$0xff] %v928
                %v930 = vld [vmem:[%s738 + $0xbe0] sm:$0xff]
                %931 = vst [vmem:[%s739 + $0x5f0] sm:$0xff] %v930
                %v932 = vld [vmem:[%s738 + $0xc00] sm:$0xff]
                %933 = vst [vmem:[%s739 + $0x600] sm:$0xff] %v932
                %v934 = vld [vmem:[%s738 + $0xc20] sm:$0xff]
                %935 = vst [vmem:[%s739 + $0x610] sm:$0xff] %v934
                %v936 = vld [vmem:[%s738 + $0xc40] sm:$0xff]
                %937 = vst [vmem:[%s739 + $0x620] sm:$0xff] %v936
                %v938 = vld [vmem:[%s738 + $0xc60] sm:$0xff]
                %939 = vst [vmem:[%s739 + $0x630] sm:$0xff] %v938
                %v940 = vld [vmem:[%s738 + $0xc80] sm:$0xff]
                %941 = vst [vmem:[%s739 + $0x640] sm:$0xff] %v940
                %v942 = vld [vmem:[%s738 + $0xca0] sm:$0xff]
                %943 = vst [vmem:[%s739 + $0x650] sm:$0xff] %v942
                %v944 = vld [vmem:[%s738 + $0xcc0] sm:$0xff]
                %945 = vst [vmem:[%s739 + $0x660] sm:$0xff] %v944
                %v946 = vld [vmem:[%s738 + $0xce0] sm:$0xff]
                %947 = vst [vmem:[%s739 + $0x670] sm:$0xff] %v946
                %v948 = vld [vmem:[%s738 + $0xd00] sm:$0xff]
                %949 = vst [vmem:[%s739 + $0x680] sm:$0xff] %v948
                %v950 = vld [vmem:[%s738 + $0xd20] sm:$0xff]
                %951 = vst [vmem:[%s739 + $0x690] sm:$0xff] %v950
                %v952 = vld [vmem:[%s738 + $0xd40] sm:$0xff]
                %953 = vst [vmem:[%s739 + $0x6a0] sm:$0xff] %v952
                %v954 = vld [vmem:[%s738 + $0xd60] sm:$0xff]
                %955 = vst [vmem:[%s739 + $0x6b0] sm:$0xff] %v954
                %v956 = vld [vmem:[%s738 + $0xd80] sm:$0xff]
                %957 = vst [vmem:[%s739 + $0x6c0] sm:$0xff] %v956
                %v958 = vld [vmem:[%s738 + $0xda0] sm:$0xff]
                %959 = vst [vmem:[%s739 + $0x6d0] sm:$0xff] %v958
                %v960 = vld [vmem:[%s738 + $0xdc0] sm:$0xff]
                %961 = vst [vmem:[%s739 + $0x6e0] sm:$0xff] %v960
                %v962 = vld [vmem:[%s738 + $0xde0] sm:$0xff]
                %963 = vst [vmem:[%s739 + $0x6f0] sm:$0xff] %v962
                %v964 = vld [vmem:[%s738 + $0xe00] sm:$0xff]
                %965 = vst [vmem:[%s739 + $0x700] sm:$0xff] %v964
                %v966 = vld [vmem:[%s738 + $0xe20] sm:$0xff]
                %967 = vst [vmem:[%s739 + $0x710] sm:$0xff] %v966
                %v968 = vld [vmem:[%s738 + $0xe40] sm:$0xff]
                %969 = vst [vmem:[%s739 + $0x720] sm:$0xff] %v968
                %v970 = vld [vmem:[%s738 + $0xe60] sm:$0xff]
                %971 = vst [vmem:[%s739 + $0x730] sm:$0xff] %v970
                %v972 = vld [vmem:[%s738 + $0xe80] sm:$0xff]
                %973 = vst [vmem:[%s739 + $0x740] sm:$0xff] %v972
                %v974 = vld [vmem:[%s738 + $0xea0] sm:$0xff]
                %975 = vst [vmem:[%s739 + $0x750] sm:$0xff] %v974
                %v976 = vld [vmem:[%s738 + $0xec0] sm:$0xff]
                %977 = vst [vmem:[%s739 + $0x760] sm:$0xff] %v976
                %v978 = vld [vmem:[%s738 + $0xee0] sm:$0xff]
                %979 = vst [vmem:[%s739 + $0x770] sm:$0xff] %v978
                %v980 = vld [vmem:[%s738 + $0xf00] sm:$0xff]
                %981 = vst [vmem:[%s739 + $0x780] sm:$0xff] %v980
                %v982 = vld [vmem:[%s738 + $0xf20] sm:$0xff]
                %983 = vst [vmem:[%s739 + $0x790] sm:$0xff] %v982
                %v984 = vld [vmem:[%s738 + $0xf40] sm:$0xff]
                %985 = vst [vmem:[%s739 + $0x7a0] sm:$0xff] %v984
                %v986 = vld [vmem:[%s738 + $0xf60] sm:$0xff]
                %987 = vst [vmem:[%s739 + $0x7b0] sm:$0xff] %v986
                %v988 = vld [vmem:[%s738 + $0xf80] sm:$0xff]
                %989 = vst [vmem:[%s739 + $0x7c0] sm:$0xff] %v988
                %v990 = vld [vmem:[%s738 + $0xfa0] sm:$0xff]
                %991 = vst [vmem:[%s739 + $0x7d0] sm:$0xff] %v990
                %v992 = vld [vmem:[%s738 + $0xfc0] sm:$0xff]
                %993 = vst [vmem:[%s739 + $0x7e0] sm:$0xff] %v992
                %v994 = vld [vmem:[%s738 + $0xfe0] sm:$0xff]
                %995 = vst [vmem:[%s739 + $0x7f0] sm:$0xff] %v994
                %v996 = vld [vmem:[%s738 + $0x1000] sm:$0xff]
                %997 = vst [vmem:[%s739 + $0x800] sm:$0xff] %v996
                %v998 = vld [vmem:[%s738 + $0x1020] sm:$0xff]
                %999 = vst [vmem:[%s739 + $0x810] sm:$0xff] %v998
                %v1000 = vld [vmem:[%s738 + $0x1040] sm:$0xff]
                %1001 = vst [vmem:[%s739 + $0x820] sm:$0xff] %v1000
                %v1002 = vld [vmem:[%s738 + $0x1060] sm:$0xff]
                %1003 = vst [vmem:[%s739 + $0x830] sm:$0xff] %v1002
                %v1004 = vld [vmem:[%s738 + $0x1080] sm:$0xff]
                %1005 = vst [vmem:[%s739 + $0x840] sm:$0xff] %v1004
                %v1006 = vld [vmem:[%s738 + $0x10a0] sm:$0xff]
                %1007 = vst [vmem:[%s739 + $0x850] sm:$0xff] %v1006
                %v1008 = vld [vmem:[%s738 + $0x10c0] sm:$0xff]
                %1009 = vst [vmem:[%s739 + $0x860] sm:$0xff] %v1008
                %v1010 = vld [vmem:[%s738 + $0x10e0] sm:$0xff]
                %1011 = vst [vmem:[%s739 + $0x870] sm:$0xff] %v1010
                %v1012 = vld [vmem:[%s738 + $0x1100] sm:$0xff]
                %1013 = vst [vmem:[%s739 + $0x880] sm:$0xff] %v1012
                %v1014 = vld [vmem:[%s738 + $0x1120] sm:$0xff]
                %1015 = vst [vmem:[%s739 + $0x890] sm:$0xff] %v1014
                %v1016 = vld [vmem:[%s738 + $0x1140] sm:$0xff]
                %1017 = vst [vmem:[%s739 + $0x8a0] sm:$0xff] %v1016
                %v1018 = vld [vmem:[%s738 + $0x1160] sm:$0xff]
                %1019 = vst [vmem:[%s739 + $0x8b0] sm:$0xff] %v1018
                %v1020 = vld [vmem:[%s738 + $0x1180] sm:$0xff]
                %1021 = vst [vmem:[%s739 + $0x8c0] sm:$0xff] %v1020
                %v1022 = vld [vmem:[%s738 + $0x11a0] sm:$0xff]
                %1023 = vst [vmem:[%s739 + $0x8d0] sm:$0xff] %v1022
                %v1024 = vld [vmem:[%s738 + $0x11c0] sm:$0xff]
                %1025 = vst [vmem:[%s739 + $0x8e0] sm:$0xff] %v1024
                %v1026 = vld [vmem:[%s738 + $0x11e0] sm:$0xff]
                %1027 = vst [vmem:[%s739 + $0x8f0] sm:$0xff] %v1026
                %v1028 = vld [vmem:[%s738 + $0x1200] sm:$0xff]
                %1029 = vst [vmem:[%s739 + $0x900] sm:$0xff] %v1028
                %v1030 = vld [vmem:[%s738 + $0x1220] sm:$0xff]
                %1031 = vst [vmem:[%s739 + $0x910] sm:$0xff] %v1030
                %v1032 = vld [vmem:[%s738 + $0x1240] sm:$0xff]
                %1033 = vst [vmem:[%s739 + $0x920] sm:$0xff] %v1032
                %v1034 = vld [vmem:[%s738 + $0x1260] sm:$0xff]
                %1035 = vst [vmem:[%s739 + $0x930] sm:$0xff] %v1034
                %v1036 = vld [vmem:[%s738 + $0x1280] sm:$0xff]
                %1037 = vst [vmem:[%s739 + $0x940] sm:$0xff] %v1036
                %v1038 = vld [vmem:[%s738 + $0x12a0] sm:$0xff]
                %1039 = vst [vmem:[%s739 + $0x950] sm:$0xff] %v1038
                %v1040 = vld [vmem:[%s738 + $0x12c0] sm:$0xff]
                %1041 = vst [vmem:[%s739 + $0x960] sm:$0xff] %v1040
                %v1042 = vld [vmem:[%s738 + $0x12e0] sm:$0xff]
                %1043 = vst [vmem:[%s739 + $0x970] sm:$0xff] %v1042
                %v1044 = vld [vmem:[%s738 + $0x1300] sm:$0xff]
                %1045 = vst [vmem:[%s739 + $0x980] sm:$0xff] %v1044
                %v1046 = vld [vmem:[%s738 + $0x1320] sm:$0xff]
                %1047 = vst [vmem:[%s739 + $0x990] sm:$0xff] %v1046
                %v1048 = vld [vmem:[%s738 + $0x1340] sm:$0xff]
                %1049 = vst [vmem:[%s739 + $0x9a0] sm:$0xff] %v1048
                %v1050 = vld [vmem:[%s738 + $0x1360] sm:$0xff]
                %1051 = vst [vmem:[%s739 + $0x9b0] sm:$0xff] %v1050
                %v1052 = vld [vmem:[%s738 + $0x1380] sm:$0xff]
                %1053 = vst [vmem:[%s739 + $0x9c0] sm:$0xff] %v1052
                %v1054 = vld [vmem:[%s738 + $0x13a0] sm:$0xff]
                %1055 = vst [vmem:[%s739 + $0x9d0] sm:$0xff] %v1054
                %v1056 = vld [vmem:[%s738 + $0x13c0] sm:$0xff]
                %1057 = vst [vmem:[%s739 + $0x9e0] sm:$0xff] %v1056
                %v1058 = vld [vmem:[%s738 + $0x13e0] sm:$0xff]
                %1059 = vst [vmem:[%s739 + $0x9f0] sm:$0xff] %v1058
                %v1060 = vld [vmem:[%s738 + $0x1400] sm:$0xff]
                %1061 = vst [vmem:[%s739 + $0xa00] sm:$0xff] %v1060
                %v1062 = vld [vmem:[%s738 + $0x1420] sm:$0xff]
                %1063 = vst [vmem:[%s739 + $0xa10] sm:$0xff] %v1062
                %v1064 = vld [vmem:[%s738 + $0x1440] sm:$0xff]
                %1065 = vst [vmem:[%s739 + $0xa20] sm:$0xff] %v1064
                %v1066 = vld [vmem:[%s738 + $0x1460] sm:$0xff]
                %1067 = vst [vmem:[%s739 + $0xa30] sm:$0xff] %v1066
                %v1068 = vld [vmem:[%s738 + $0x1480] sm:$0xff]
                %1069 = vst [vmem:[%s739 + $0xa40] sm:$0xff] %v1068
                %v1070 = vld [vmem:[%s738 + $0x14a0] sm:$0xff]
                %1071 = vst [vmem:[%s739 + $0xa50] sm:$0xff] %v1070
                %v1072 = vld [vmem:[%s738 + $0x14c0] sm:$0xff]
                %1073 = vst [vmem:[%s739 + $0xa60] sm:$0xff] %v1072
                %v1074 = vld [vmem:[%s738 + $0x14e0] sm:$0xff]
                %1075 = vst [vmem:[%s739 + $0xa70] sm:$0xff] %v1074
                %v1076 = vld [vmem:[%s738 + $0x1500] sm:$0xff]
                %1077 = vst [vmem:[%s739 + $0xa80] sm:$0xff] %v1076
                %v1078 = vld [vmem:[%s738 + $0x1520] sm:$0xff]
                %1079 = vst [vmem:[%s739 + $0xa90] sm:$0xff] %v1078
                %v1080 = vld [vmem:[%s738 + $0x1540] sm:$0xff]
                %1081 = vst [vmem:[%s739 + $0xaa0] sm:$0xff] %v1080
                %v1082 = vld [vmem:[%s738 + $0x1560] sm:$0xff]
                %1083 = vst [vmem:[%s739 + $0xab0] sm:$0xff] %v1082
                %v1084 = vld [vmem:[%s738 + $0x1580] sm:$0xff]
                %1085 = vst [vmem:[%s739 + $0xac0] sm:$0xff] %v1084
                %v1086 = vld [vmem:[%s738 + $0x15a0] sm:$0xff]
                %1087 = vst [vmem:[%s739 + $0xad0] sm:$0xff] %v1086
                %v1088 = vld [vmem:[%s738 + $0x15c0] sm:$0xff]
                %1089 = vst [vmem:[%s739 + $0xae0] sm:$0xff] %v1088
                %v1090 = vld [vmem:[%s738 + $0x15e0] sm:$0xff]
                %1091 = vst [vmem:[%s739 + $0xaf0] sm:$0xff] %v1090
                %v1092 = vld [vmem:[%s738 + $0x1600] sm:$0xff]
                %1093 = vst [vmem:[%s739 + $0xb00] sm:$0xff] %v1092
                %v1094 = vld [vmem:[%s738 + $0x1620] sm:$0xff]
                %1095 = vst [vmem:[%s739 + $0xb10] sm:$0xff] %v1094
                %v1096 = vld [vmem:[%s738 + $0x1640] sm:$0xff]
                %1097 = vst [vmem:[%s739 + $0xb20] sm:$0xff] %v1096
                %v1098 = vld [vmem:[%s738 + $0x1660] sm:$0xff]
                %1099 = vst [vmem:[%s739 + $0xb30] sm:$0xff] %v1098
                %v1100 = vld [vmem:[%s738 + $0x1680] sm:$0xff]
                %1101 = vst [vmem:[%s739 + $0xb40] sm:$0xff] %v1100
                %v1102 = vld [vmem:[%s738 + $0x16a0] sm:$0xff]
                %1103 = vst [vmem:[%s739 + $0xb50] sm:$0xff] %v1102
                %v1104 = vld [vmem:[%s738 + $0x16c0] sm:$0xff]
                %1105 = vst [vmem:[%s739 + $0xb60] sm:$0xff] %v1104
                %v1106 = vld [vmem:[%s738 + $0x16e0] sm:$0xff]
                %1107 = vst [vmem:[%s739 + $0xb70] sm:$0xff] %v1106
                %v1108 = vld [vmem:[%s738 + $0x1700] sm:$0xff]
                %1109 = vst [vmem:[%s739 + $0xb80] sm:$0xff] %v1108
                %v1110 = vld [vmem:[%s738 + $0x1720] sm:$0xff]
                %1111 = vst [vmem:[%s739 + $0xb90] sm:$0xff] %v1110
                %v1112 = vld [vmem:[%s738 + $0x1740] sm:$0xff]
                %1113 = vst [vmem:[%s739 + $0xba0] sm:$0xff] %v1112
                %v1114 = vld [vmem:[%s738 + $0x1760] sm:$0xff]
                %1115 = vst [vmem:[%s739 + $0xbb0] sm:$0xff] %v1114
                %v1116 = vld [vmem:[%s738 + $0x1780] sm:$0xff]
                %1117 = vst [vmem:[%s739 + $0xbc0] sm:$0xff] %v1116
                %v1118 = vld [vmem:[%s738 + $0x17a0] sm:$0xff]
                %1119 = vst [vmem:[%s739 + $0xbd0] sm:$0xff] %v1118
                %v1120 = vld [vmem:[%s738 + $0x17c0] sm:$0xff]
                %1121 = vst [vmem:[%s739 + $0xbe0] sm:$0xff] %v1120
                %v1122 = vld [vmem:[%s738 + $0x17e0] sm:$0xff]
                %1123 = vst [vmem:[%s739 + $0xbf0] sm:$0xff] %v1122
                %v1124 = vld [vmem:[%s738 + $0x1800] sm:$0xff]
                %1125 = vst [vmem:[%s739 + $0xc00] sm:$0xff] %v1124
                %v1126 = vld [vmem:[%s738 + $0x1820] sm:$0xff]
                %1127 = vst [vmem:[%s739 + $0xc10] sm:$0xff] %v1126
                %v1128 = vld [vmem:[%s738 + $0x1840] sm:$0xff]
                %1129 = vst [vmem:[%s739 + $0xc20] sm:$0xff] %v1128
                %v1130 = vld [vmem:[%s738 + $0x1860] sm:$0xff]
                %1131 = vst [vmem:[%s739 + $0xc30] sm:$0xff] %v1130
                %v1132 = vld [vmem:[%s738 + $0x1880] sm:$0xff]
                %1133 = vst [vmem:[%s739 + $0xc40] sm:$0xff] %v1132
                %v1134 = vld [vmem:[%s738 + $0x18a0] sm:$0xff]
                %1135 = vst [vmem:[%s739 + $0xc50] sm:$0xff] %v1134
                %v1136 = vld [vmem:[%s738 + $0x18c0] sm:$0xff]
                %1137 = vst [vmem:[%s739 + $0xc60] sm:$0xff] %v1136
                %v1138 = vld [vmem:[%s738 + $0x18e0] sm:$0xff]
                %1139 = vst [vmem:[%s739 + $0xc70] sm:$0xff] %v1138
                %v1140 = vld [vmem:[%s738 + $0x1900] sm:$0xff]
                %1141 = vst [vmem:[%s739 + $0xc80] sm:$0xff] %v1140
                %v1142 = vld [vmem:[%s738 + $0x1920] sm:$0xff]
                %1143 = vst [vmem:[%s739 + $0xc90] sm:$0xff] %v1142
                %v1144 = vld [vmem:[%s738 + $0x1940] sm:$0xff]
                %1145 = vst [vmem:[%s739 + $0xca0] sm:$0xff] %v1144
                %v1146 = vld [vmem:[%s738 + $0x1960] sm:$0xff]
                %1147 = vst [vmem:[%s739 + $0xcb0] sm:$0xff] %v1146
                %v1148 = vld [vmem:[%s738 + $0x1980] sm:$0xff]
                %1149 = vst [vmem:[%s739 + $0xcc0] sm:$0xff] %v1148
                %v1150 = vld [vmem:[%s738 + $0x19a0] sm:$0xff]
                %1151 = vst [vmem:[%s739 + $0xcd0] sm:$0xff] %v1150
                %v1152 = vld [vmem:[%s738 + $0x19c0] sm:$0xff]
                %1153 = vst [vmem:[%s739 + $0xce0] sm:$0xff] %v1152
                %v1154 = vld [vmem:[%s738 + $0x19e0] sm:$0xff]
                %1155 = vst [vmem:[%s739 + $0xcf0] sm:$0xff] %v1154
                %v1156 = vld [vmem:[%s738 + $0x1a00] sm:$0xff]
                %1157 = vst [vmem:[%s739 + $0xd00] sm:$0xff] %v1156
                %v1158 = vld [vmem:[%s738 + $0x1a20] sm:$0xff]
                %1159 = vst [vmem:[%s739 + $0xd10] sm:$0xff] %v1158
                %v1160 = vld [vmem:[%s738 + $0x1a40] sm:$0xff]
                %1161 = vst [vmem:[%s739 + $0xd20] sm:$0xff] %v1160
                %v1162 = vld [vmem:[%s738 + $0x1a60] sm:$0xff]
                %1163 = vst [vmem:[%s739 + $0xd30] sm:$0xff] %v1162
                %v1164 = vld [vmem:[%s738 + $0x1a80] sm:$0xff]
                %1165 = vst [vmem:[%s739 + $0xd40] sm:$0xff] %v1164
                %v1166 = vld [vmem:[%s738 + $0x1aa0] sm:$0xff]
                %1167 = vst [vmem:[%s739 + $0xd50] sm:$0xff] %v1166
                %v1168 = vld [vmem:[%s738 + $0x1ac0] sm:$0xff]
                %1169 = vst [vmem:[%s739 + $0xd60] sm:$0xff] %v1168
                %v1170 = vld [vmem:[%s738 + $0x1ae0] sm:$0xff]
                %1171 = vst [vmem:[%s739 + $0xd70] sm:$0xff] %v1170
                %v1172 = vld [vmem:[%s738 + $0x1b00] sm:$0xff]
                %1173 = vst [vmem:[%s739 + $0xd80] sm:$0xff] %v1172
                %v1174 = vld [vmem:[%s738 + $0x1b20] sm:$0xff]
                %1175 = vst [vmem:[%s739 + $0xd90] sm:$0xff] %v1174
                %v1176 = vld [vmem:[%s738 + $0x1b40] sm:$0xff]
                %1177 = vst [vmem:[%s739 + $0xda0] sm:$0xff] %v1176
                %v1178 = vld [vmem:[%s738 + $0x1b60] sm:$0xff]
                %1179 = vst [vmem:[%s739 + $0xdb0] sm:$0xff] %v1178
                %v1180 = vld [vmem:[%s738 + $0x1b80] sm:$0xff]
                %1181 = vst [vmem:[%s739 + $0xdc0] sm:$0xff] %v1180
                %v1182 = vld [vmem:[%s738 + $0x1ba0] sm:$0xff]
                %1183 = vst [vmem:[%s739 + $0xdd0] sm:$0xff] %v1182
                %v1184 = vld [vmem:[%s738 + $0x1bc0] sm:$0xff]
                %1185 = vst [vmem:[%s739 + $0xde0] sm:$0xff] %v1184
                %v1186 = vld [vmem:[%s738 + $0x1be0] sm:$0xff]
                %1187 = vst [vmem:[%s739 + $0xdf0] sm:$0xff] %v1186
                %v1188 = vld [vmem:[%s738 + $0x1c00] sm:$0xff]
                %1189 = vst [vmem:[%s739 + $0xe00] sm:$0xff] %v1188
                %v1190 = vld [vmem:[%s738 + $0x1c20] sm:$0xff]
                %1191 = vst [vmem:[%s739 + $0xe10] sm:$0xff] %v1190
                %v1192 = vld [vmem:[%s738 + $0x1c40] sm:$0xff]
                %1193 = vst [vmem:[%s739 + $0xe20] sm:$0xff] %v1192
                %v1194 = vld [vmem:[%s738 + $0x1c60] sm:$0xff]
                %1195 = vst [vmem:[%s739 + $0xe30] sm:$0xff] %v1194
                %v1196 = vld [vmem:[%s738 + $0x1c80] sm:$0xff]
                %1197 = vst [vmem:[%s739 + $0xe40] sm:$0xff] %v1196
                %v1198 = vld [vmem:[%s738 + $0x1ca0] sm:$0xff]
                %1199 = vst [vmem:[%s739 + $0xe50] sm:$0xff] %v1198
                %v1200 = vld [vmem:[%s738 + $0x1cc0] sm:$0xff]
                %1201 = vst [vmem:[%s739 + $0xe60] sm:$0xff] %v1200
                %v1202 = vld [vmem:[%s738 + $0x1ce0] sm:$0xff]
                %1203 = vst [vmem:[%s739 + $0xe70] sm:$0xff] %v1202
                %v1204 = vld [vmem:[%s738 + $0x1d00] sm:$0xff]
                %1205 = vst [vmem:[%s739 + $0xe80] sm:$0xff] %v1204
                %v1206 = vld [vmem:[%s738 + $0x1d20] sm:$0xff]
                %1207 = vst [vmem:[%s739 + $0xe90] sm:$0xff] %v1206
                %v1208 = vld [vmem:[%s738 + $0x1d40] sm:$0xff]
                %1209 = vst [vmem:[%s739 + $0xea0] sm:$0xff] %v1208
                %v1210 = vld [vmem:[%s738 + $0x1d60] sm:$0xff]
                %1211 = vst [vmem:[%s739 + $0xeb0] sm:$0xff] %v1210
                %v1212 = vld [vmem:[%s738 + $0x1d80] sm:$0xff]
                %1213 = vst [vmem:[%s739 + $0xec0] sm:$0xff] %v1212
                %v1214 = vld [vmem:[%s738 + $0x1da0] sm:$0xff]
                %1215 = vst [vmem:[%s739 + $0xed0] sm:$0xff] %v1214
                %v1216 = vld [vmem:[%s738 + $0x1dc0] sm:$0xff]
                %1217 = vst [vmem:[%s739 + $0xee0] sm:$0xff] %v1216
                %v1218 = vld [vmem:[%s738 + $0x1de0] sm:$0xff]
                %1219 = vst [vmem:[%s739 + $0xef0] sm:$0xff] %v1218
                %v1220 = vld [vmem:[%s738 + $0x1e00] sm:$0xff]
                %1221 = vst [vmem:[%s739 + $0xf00] sm:$0xff] %v1220
                %v1222 = vld [vmem:[%s738 + $0x1e20] sm:$0xff]
                %1223 = vst [vmem:[%s739 + $0xf10] sm:$0xff] %v1222
                %v1224 = vld [vmem:[%s738 + $0x1e40] sm:$0xff]
                %1225 = vst [vmem:[%s739 + $0xf20] sm:$0xff] %v1224
                %v1226 = vld [vmem:[%s738 + $0x1e60] sm:$0xff]
                %1227 = vst [vmem:[%s739 + $0xf30] sm:$0xff] %v1226
                %v1228 = vld [vmem:[%s738 + $0x1e80] sm:$0xff]
                %1229 = vst [vmem:[%s739 + $0xf40] sm:$0xff] %v1228
                %v1230 = vld [vmem:[%s738 + $0x1ea0] sm:$0xff]
                %1231 = vst [vmem:[%s739 + $0xf50] sm:$0xff] %v1230
                %v1232 = vld [vmem:[%s738 + $0x1ec0] sm:$0xff]
                %1233 = vst [vmem:[%s739 + $0xf60] sm:$0xff] %v1232
                %v1234 = vld [vmem:[%s738 + $0x1ee0] sm:$0xff]
                %1235 = vst [vmem:[%s739 + $0xf70] sm:$0xff] %v1234
                %v1236 = vld [vmem:[%s738 + $0x1f00] sm:$0xff]
                %1237 = vst [vmem:[%s739 + $0xf80] sm:$0xff] %v1236
                %v1238 = vld [vmem:[%s738 + $0x1f20] sm:$0xff]
                %1239 = vst [vmem:[%s739 + $0xf90] sm:$0xff] %v1238
                %v1240 = vld [vmem:[%s738 + $0x1f40] sm:$0xff]
                %1241 = vst [vmem:[%s739 + $0xfa0] sm:$0xff] %v1240
                %v1242 = vld [vmem:[%s738 + $0x1f60] sm:$0xff]
                %1243 = vst [vmem:[%s739 + $0xfb0] sm:$0xff] %v1242
                %v1244 = vld [vmem:[%s738 + $0x1f80] sm:$0xff]
                %1245 = vst [vmem:[%s739 + $0xfc0] sm:$0xff] %v1244
                %v1246 = vld [vmem:[%s738 + $0x1fa0] sm:$0xff]
                %1247 = vst [vmem:[%s739 + $0xfd0] sm:$0xff] %v1246
                %v1248 = vld [vmem:[%s738 + $0x1fc0] sm:$0xff]
                %1249 = vst [vmem:[%s739 + $0xfe0] sm:$0xff] %v1248
                %v1250 = vld [vmem:[%s738 + $0x1fe0] sm:$0xff]
                %1251 = vst [vmem:[%s739 + $0xff0] sm:$0xff] %v1250
                %s1252 = sadd.s32 1, %s737
                %p1253 = scmp.ge.s32.totalorder %s1252, 2
                %s1254 = scalar_select %p1253, 0, %s1252
                %s1255 = smul.u32 %s1254, 8
                %s1256 = smul.u32 %s1254, 8
                %s1257 = scalar_lea.vmem %s194, %s1255
                %s1258 = scalar_lea.vmem %s188, %s1256 [#allocation3]
              $region48: #{discriminator_forward.5} parent=42 // loop_footer
                %s736 = sadd.s32 1, %s732
              $region49: #{discriminator_forward.5} parent=42 // loop_footer_branch
                %731 = sbr.rel target = $region45
              $region50: #{discriminator_forward.5} parent=42 // loop_exit
                _
              %s1260 = ssub.s32 1, 1
              loop: start=0, step=1, limit=1
              $region51: #{discriminator_forward.5} parent=42 // loop_pre_header
                _
              $region52: #{discriminator_forward.5} parent=42 // loop_header
                %s1262 = sphi 0, %s1266
                %p1263 = scmp.ge.s32.totalorder %s1262, 1
                %s1267 = sphi %s729, %s729
                %s1268 = sphi %s730, %s730
              $region53: #{discriminator_forward.5} parent=42 // loop_header_branch
                %1265 = sbr.rel (%p1263) target = $region57
              $region54: #{discriminator_forward.5} parent=42 // loop_body
                %v1269 = vld [vmem:[%s1267] sm:%s1260]
                %1270 = vst [vmem:[%s1268] sm:%s1260] %v1269
                %v1271 = vld [vmem:[%s1267 + $0x20] sm:%s1260]
                %1272 = vst [vmem:[%s1268 + $0x10] sm:%s1260] %v1271
                %v1273 = vld [vmem:[%s1267 + $0x40] sm:%s1260]
                %1274 = vst [vmem:[%s1268 + $0x20] sm:%s1260] %v1273
                %v1275 = vld [vmem:[%s1267 + $0x60] sm:%s1260]
                %1276 = vst [vmem:[%s1268 + $0x30] sm:%s1260] %v1275
                %v1277 = vld [vmem:[%s1267 + $0x80] sm:%s1260]
                %1278 = vst [vmem:[%s1268 + $0x40] sm:%s1260] %v1277
                %v1279 = vld [vmem:[%s1267 + $0xa0] sm:%s1260]
                %1280 = vst [vmem:[%s1268 + $0x50] sm:%s1260] %v1279
                %v1281 = vld [vmem:[%s1267 + $0xc0] sm:%s1260]
                %1282 = vst [vmem:[%s1268 + $0x60] sm:%s1260] %v1281
                %v1283 = vld [vmem:[%s1267 + $0xe0] sm:%s1260]
                %1284 = vst [vmem:[%s1268 + $0x70] sm:%s1260] %v1283
                %v1285 = vld [vmem:[%s1267 + $0x100] sm:%s1260]
                %1286 = vst [vmem:[%s1268 + $0x80] sm:%s1260] %v1285
                %v1287 = vld [vmem:[%s1267 + $0x120] sm:%s1260]
                %1288 = vst [vmem:[%s1268 + $0x90] sm:%s1260] %v1287
                %v1289 = vld [vmem:[%s1267 + $0x140] sm:%s1260]
                %1290 = vst [vmem:[%s1268 + $0xa0] sm:%s1260] %v1289
                %v1291 = vld [vmem:[%s1267 + $0x160] sm:%s1260]
                %1292 = vst [vmem:[%s1268 + $0xb0] sm:%s1260] %v1291
                %v1293 = vld [vmem:[%s1267 + $0x180] sm:%s1260]
                %1294 = vst [vmem:[%s1268 + $0xc0] sm:%s1260] %v1293
                %v1295 = vld [vmem:[%s1267 + $0x1a0] sm:%s1260]
                %1296 = vst [vmem:[%s1268 + $0xd0] sm:%s1260] %v1295
                %v1297 = vld [vmem:[%s1267 + $0x1c0] sm:%s1260]
                %1298 = vst [vmem:[%s1268 + $0xe0] sm:%s1260] %v1297
                %v1299 = vld [vmem:[%s1267 + $0x1e0] sm:%s1260]
                %1300 = vst [vmem:[%s1268 + $0xf0] sm:%s1260] %v1299
                %v1301 = vld [vmem:[%s1267 + $0x200] sm:%s1260]
                %1302 = vst [vmem:[%s1268 + $0x100] sm:%s1260] %v1301
                %v1303 = vld [vmem:[%s1267 + $0x220] sm:%s1260]
                %1304 = vst [vmem:[%s1268 + $0x110] sm:%s1260] %v1303
                %v1305 = vld [vmem:[%s1267 + $0x240] sm:%s1260]
                %1306 = vst [vmem:[%s1268 + $0x120] sm:%s1260] %v1305
                %v1307 = vld [vmem:[%s1267 + $0x260] sm:%s1260]
                %1308 = vst [vmem:[%s1268 + $0x130] sm:%s1260] %v1307
                %v1309 = vld [vmem:[%s1267 + $0x280] sm:%s1260]
                %1310 = vst [vmem:[%s1268 + $0x140] sm:%s1260] %v1309
                %v1311 = vld [vmem:[%s1267 + $0x2a0] sm:%s1260]
                %1312 = vst [vmem:[%s1268 + $0x150] sm:%s1260] %v1311
                %v1313 = vld [vmem:[%s1267 + $0x2c0] sm:%s1260]
                %1314 = vst [vmem:[%s1268 + $0x160] sm:%s1260] %v1313
                %v1315 = vld [vmem:[%s1267 + $0x2e0] sm:%s1260]
                %1316 = vst [vmem:[%s1268 + $0x170] sm:%s1260] %v1315
                %v1317 = vld [vmem:[%s1267 + $0x300] sm:%s1260]
                %1318 = vst [vmem:[%s1268 + $0x180] sm:%s1260] %v1317
                %v1319 = vld [vmem:[%s1267 + $0x320] sm:%s1260]
                %1320 = vst [vmem:[%s1268 + $0x190] sm:%s1260] %v1319
                %v1321 = vld [vmem:[%s1267 + $0x340] sm:%s1260]
                %1322 = vst [vmem:[%s1268 + $0x1a0] sm:%s1260] %v1321
                %v1323 = vld [vmem:[%s1267 + $0x360] sm:%s1260]
                %1324 = vst [vmem:[%s1268 + $0x1b0] sm:%s1260] %v1323
                %v1325 = vld [vmem:[%s1267 + $0x380] sm:%s1260]
                %1326 = vst [vmem:[%s1268 + $0x1c0] sm:%s1260] %v1325
                %v1327 = vld [vmem:[%s1267 + $0x3a0] sm:%s1260]
                %1328 = vst [vmem:[%s1268 + $0x1d0] sm:%s1260] %v1327
                %v1329 = vld [vmem:[%s1267 + $0x3c0] sm:%s1260]
                %1330 = vst [vmem:[%s1268 + $0x1e0] sm:%s1260] %v1329
                %v1331 = vld [vmem:[%s1267 + $0x3e0] sm:%s1260]
                %1332 = vst [vmem:[%s1268 + $0x1f0] sm:%s1260] %v1331
                %v1333 = vld [vmem:[%s1267 + $0x400] sm:%s1260]
                %1334 = vst [vmem:[%s1268 + $0x200] sm:%s1260] %v1333
                %v1335 = vld [vmem:[%s1267 + $0x420] sm:%s1260]
                %1336 = vst [vmem:[%s1268 + $0x210] sm:%s1260] %v1335
                %v1337 = vld [vmem:[%s1267 + $0x440] sm:%s1260]
                %1338 = vst [vmem:[%s1268 + $0x220] sm:%s1260] %v1337
                %v1339 = vld [vmem:[%s1267 + $0x460] sm:%s1260]
                %1340 = vst [vmem:[%s1268 + $0x230] sm:%s1260] %v1339
                %v1341 = vld [vmem:[%s1267 + $0x480] sm:%s1260]
                %1342 = vst [vmem:[%s1268 + $0x240] sm:%s1260] %v1341
                %v1343 = vld [vmem:[%s1267 + $0x4a0] sm:%s1260]
                %1344 = vst [vmem:[%s1268 + $0x250] sm:%s1260] %v1343
                %v1345 = vld [vmem:[%s1267 + $0x4c0] sm:%s1260]
                %1346 = vst [vmem:[%s1268 + $0x260] sm:%s1260] %v1345
                %v1347 = vld [vmem:[%s1267 + $0x4e0] sm:%s1260]
                %1348 = vst [vmem:[%s1268 + $0x270] sm:%s1260] %v1347
                %v1349 = vld [vmem:[%s1267 + $0x500] sm:%s1260]
                %1350 = vst [vmem:[%s1268 + $0x280] sm:%s1260] %v1349
                %v1351 = vld [vmem:[%s1267 + $0x520] sm:%s1260]
                %1352 = vst [vmem:[%s1268 + $0x290] sm:%s1260] %v1351
                %v1353 = vld [vmem:[%s1267 + $0x540] sm:%s1260]
                %1354 = vst [vmem:[%s1268 + $0x2a0] sm:%s1260] %v1353
                %v1355 = vld [vmem:[%s1267 + $0x560] sm:%s1260]
                %1356 = vst [vmem:[%s1268 + $0x2b0] sm:%s1260] %v1355
                %v1357 = vld [vmem:[%s1267 + $0x580] sm:%s1260]
                %1358 = vst [vmem:[%s1268 + $0x2c0] sm:%s1260] %v1357
                %v1359 = vld [vmem:[%s1267 + $0x5a0] sm:%s1260]
                %1360 = vst [vmem:[%s1268 + $0x2d0] sm:%s1260] %v1359
                %v1361 = vld [vmem:[%s1267 + $0x5c0] sm:%s1260]
                %1362 = vst [vmem:[%s1268 + $0x2e0] sm:%s1260] %v1361
                %v1363 = vld [vmem:[%s1267 + $0x5e0] sm:%s1260]
                %1364 = vst [vmem:[%s1268 + $0x2f0] sm:%s1260] %v1363
                %v1365 = vld [vmem:[%s1267 + $0x600] sm:%s1260]
                %1366 = vst [vmem:[%s1268 + $0x300] sm:%s1260] %v1365
                %v1367 = vld [vmem:[%s1267 + $0x620] sm:%s1260]
                %1368 = vst [vmem:[%s1268 + $0x310] sm:%s1260] %v1367
                %v1369 = vld [vmem:[%s1267 + $0x640] sm:%s1260]
                %1370 = vst [vmem:[%s1268 + $0x320] sm:%s1260] %v1369
                %v1371 = vld [vmem:[%s1267 + $0x660] sm:%s1260]
                %1372 = vst [vmem:[%s1268 + $0x330] sm:%s1260] %v1371
                %v1373 = vld [vmem:[%s1267 + $0x680] sm:%s1260]
                %1374 = vst [vmem:[%s1268 + $0x340] sm:%s1260] %v1373
                %v1375 = vld [vmem:[%s1267 + $0x6a0] sm:%s1260]
                %1376 = vst [vmem:[%s1268 + $0x350] sm:%s1260] %v1375
                %v1377 = vld [vmem:[%s1267 + $0x6c0] sm:%s1260]
                %1378 = vst [vmem:[%s1268 + $0x360] sm:%s1260] %v1377
                %v1379 = vld [vmem:[%s1267 + $0x6e0] sm:%s1260]
                %1380 = vst [vmem:[%s1268 + $0x370] sm:%s1260] %v1379
                %v1381 = vld [vmem:[%s1267 + $0x700] sm:%s1260]
                %1382 = vst [vmem:[%s1268 + $0x380] sm:%s1260] %v1381
                %v1383 = vld [vmem:[%s1267 + $0x720] sm:%s1260]
                %1384 = vst [vmem:[%s1268 + $0x390] sm:%s1260] %v1383
                %v1385 = vld [vmem:[%s1267 + $0x740] sm:%s1260]
                %1386 = vst [vmem:[%s1268 + $0x3a0] sm:%s1260] %v1385
                %v1387 = vld [vmem:[%s1267 + $0x760] sm:%s1260]
                %1388 = vst [vmem:[%s1268 + $0x3b0] sm:%s1260] %v1387
                %v1389 = vld [vmem:[%s1267 + $0x780] sm:%s1260]
                %1390 = vst [vmem:[%s1268 + $0x3c0] sm:%s1260] %v1389
                %v1391 = vld [vmem:[%s1267 + $0x7a0] sm:%s1260]
                %1392 = vst [vmem:[%s1268 + $0x3d0] sm:%s1260] %v1391
                %v1393 = vld [vmem:[%s1267 + $0x7c0] sm:%s1260]
                %1394 = vst [vmem:[%s1268 + $0x3e0] sm:%s1260] %v1393
                %v1395 = vld [vmem:[%s1267 + $0x7e0] sm:%s1260]
                %1396 = vst [vmem:[%s1268 + $0x3f0] sm:%s1260] %v1395
                %v1397 = vld [vmem:[%s1267 + $0x800] sm:%s1260]
                %1398 = vst [vmem:[%s1268 + $0x400] sm:%s1260] %v1397
                %v1399 = vld [vmem:[%s1267 + $0x820] sm:%s1260]
                %1400 = vst [vmem:[%s1268 + $0x410] sm:%s1260] %v1399
                %v1401 = vld [vmem:[%s1267 + $0x840] sm:%s1260]
                %1402 = vst [vmem:[%s1268 + $0x420] sm:%s1260] %v1401
                %v1403 = vld [vmem:[%s1267 + $0x860] sm:%s1260]
                %1404 = vst [vmem:[%s1268 + $0x430] sm:%s1260] %v1403
                %v1405 = vld [vmem:[%s1267 + $0x880] sm:%s1260]
                %1406 = vst [vmem:[%s1268 + $0x440] sm:%s1260] %v1405
                %v1407 = vld [vmem:[%s1267 + $0x8a0] sm:%s1260]
                %1408 = vst [vmem:[%s1268 + $0x450] sm:%s1260] %v1407
                %v1409 = vld [vmem:[%s1267 + $0x8c0] sm:%s1260]
                %1410 = vst [vmem:[%s1268 + $0x460] sm:%s1260] %v1409
                %v1411 = vld [vmem:[%s1267 + $0x8e0] sm:%s1260]
                %1412 = vst [vmem:[%s1268 + $0x470] sm:%s1260] %v1411
                %v1413 = vld [vmem:[%s1267 + $0x900] sm:%s1260]
                %1414 = vst [vmem:[%s1268 + $0x480] sm:%s1260] %v1413
                %v1415 = vld [vmem:[%s1267 + $0x920] sm:%s1260]
                %1416 = vst [vmem:[%s1268 + $0x490] sm:%s1260] %v1415
                %v1417 = vld [vmem:[%s1267 + $0x940] sm:%s1260]
                %1418 = vst [vmem:[%s1268 + $0x4a0] sm:%s1260] %v1417
                %v1419 = vld [vmem:[%s1267 + $0x960] sm:%s1260]
                %1420 = vst [vmem:[%s1268 + $0x4b0] sm:%s1260] %v1419
                %v1421 = vld [vmem:[%s1267 + $0x980] sm:%s1260]
                %1422 = vst [vmem:[%s1268 + $0x4c0] sm:%s1260] %v1421
                %v1423 = vld [vmem:[%s1267 + $0x9a0] sm:%s1260]
                %1424 = vst [vmem:[%s1268 + $0x4d0] sm:%s1260] %v1423
                %v1425 = vld [vmem:[%s1267 + $0x9c0] sm:%s1260]
                %1426 = vst [vmem:[%s1268 + $0x4e0] sm:%s1260] %v1425
                %v1427 = vld [vmem:[%s1267 + $0x9e0] sm:%s1260]
                %1428 = vst [vmem:[%s1268 + $0x4f0] sm:%s1260] %v1427
                %v1429 = vld [vmem:[%s1267 + $0xa00] sm:%s1260]
                %1430 = vst [vmem:[%s1268 + $0x500] sm:%s1260] %v1429
                %v1431 = vld [vmem:[%s1267 + $0xa20] sm:%s1260]
                %1432 = vst [vmem:[%s1268 + $0x510] sm:%s1260] %v1431
                %v1433 = vld [vmem:[%s1267 + $0xa40] sm:%s1260]
                %1434 = vst [vmem:[%s1268 + $0x520] sm:%s1260] %v1433
                %v1435 = vld [vmem:[%s1267 + $0xa60] sm:%s1260]
                %1436 = vst [vmem:[%s1268 + $0x530] sm:%s1260] %v1435
                %v1437 = vld [vmem:[%s1267 + $0xa80] sm:%s1260]
                %1438 = vst [vmem:[%s1268 + $0x540] sm:%s1260] %v1437
                %v1439 = vld [vmem:[%s1267 + $0xaa0] sm:%s1260]
                %1440 = vst [vmem:[%s1268 + $0x550] sm:%s1260] %v1439
                %v1441 = vld [vmem:[%s1267 + $0xac0] sm:%s1260]
                %1442 = vst [vmem:[%s1268 + $0x560] sm:%s1260] %v1441
                %v1443 = vld [vmem:[%s1267 + $0xae0] sm:%s1260]
                %1444 = vst [vmem:[%s1268 + $0x570] sm:%s1260] %v1443
                %v1445 = vld [vmem:[%s1267 + $0xb00] sm:%s1260]
                %1446 = vst [vmem:[%s1268 + $0x580] sm:%s1260] %v1445
                %v1447 = vld [vmem:[%s1267 + $0xb20] sm:%s1260]
                %1448 = vst [vmem:[%s1268 + $0x590] sm:%s1260] %v1447
                %v1449 = vld [vmem:[%s1267 + $0xb40] sm:%s1260]
                %1450 = vst [vmem:[%s1268 + $0x5a0] sm:%s1260] %v1449
                %v1451 = vld [vmem:[%s1267 + $0xb60] sm:%s1260]
                %1452 = vst [vmem:[%s1268 + $0x5b0] sm:%s1260] %v1451
                %v1453 = vld [vmem:[%s1267 + $0xb80] sm:%s1260]
                %1454 = vst [vmem:[%s1268 + $0x5c0] sm:%s1260] %v1453
                %v1455 = vld [vmem:[%s1267 + $0xba0] sm:%s1260]
                %1456 = vst [vmem:[%s1268 + $0x5d0] sm:%s1260] %v1455
                %v1457 = vld [vmem:[%s1267 + $0xbc0] sm:%s1260]
                %1458 = vst [vmem:[%s1268 + $0x5e0] sm:%s1260] %v1457
                %v1459 = vld [vmem:[%s1267 + $0xbe0] sm:%s1260]
                %1460 = vst [vmem:[%s1268 + $0x5f0] sm:%s1260] %v1459
                %v1461 = vld [vmem:[%s1267 + $0xc00] sm:%s1260]
                %1462 = vst [vmem:[%s1268 + $0x600] sm:%s1260] %v1461
                %v1463 = vld [vmem:[%s1267 + $0xc20] sm:%s1260]
                %1464 = vst [vmem:[%s1268 + $0x610] sm:%s1260] %v1463
                %v1465 = vld [vmem:[%s1267 + $0xc40] sm:%s1260]
                %1466 = vst [vmem:[%s1268 + $0x620] sm:%s1260] %v1465
                %v1467 = vld [vmem:[%s1267 + $0xc60] sm:%s1260]
                %1468 = vst [vmem:[%s1268 + $0x630] sm:%s1260] %v1467
                %v1469 = vld [vmem:[%s1267 + $0xc80] sm:%s1260]
                %1470 = vst [vmem:[%s1268 + $0x640] sm:%s1260] %v1469
                %v1471 = vld [vmem:[%s1267 + $0xca0] sm:%s1260]
                %1472 = vst [vmem:[%s1268 + $0x650] sm:%s1260] %v1471
                %v1473 = vld [vmem:[%s1267 + $0xcc0] sm:%s1260]
                %1474 = vst [vmem:[%s1268 + $0x660] sm:%s1260] %v1473
                %v1475 = vld [vmem:[%s1267 + $0xce0] sm:%s1260]
                %1476 = vst [vmem:[%s1268 + $0x670] sm:%s1260] %v1475
                %v1477 = vld [vmem:[%s1267 + $0xd00] sm:%s1260]
                %1478 = vst [vmem:[%s1268 + $0x680] sm:%s1260] %v1477
                %v1479 = vld [vmem:[%s1267 + $0xd20] sm:%s1260]
                %1480 = vst [vmem:[%s1268 + $0x690] sm:%s1260] %v1479
                %v1481 = vld [vmem:[%s1267 + $0xd40] sm:%s1260]
                %1482 = vst [vmem:[%s1268 + $0x6a0] sm:%s1260] %v1481
                %v1483 = vld [vmem:[%s1267 + $0xd60] sm:%s1260]
                %1484 = vst [vmem:[%s1268 + $0x6b0] sm:%s1260] %v1483
                %v1485 = vld [vmem:[%s1267 + $0xd80] sm:%s1260]
                %1486 = vst [vmem:[%s1268 + $0x6c0] sm:%s1260] %v1485
                %v1487 = vld [vmem:[%s1267 + $0xda0] sm:%s1260]
                %1488 = vst [vmem:[%s1268 + $0x6d0] sm:%s1260] %v1487
                %v1489 = vld [vmem:[%s1267 + $0xdc0] sm:%s1260]
                %1490 = vst [vmem:[%s1268 + $0x6e0] sm:%s1260] %v1489
                %v1491 = vld [vmem:[%s1267 + $0xde0] sm:%s1260]
                %1492 = vst [vmem:[%s1268 + $0x6f0] sm:%s1260] %v1491
                %v1493 = vld [vmem:[%s1267 + $0xe00] sm:%s1260]
                %1494 = vst [vmem:[%s1268 + $0x700] sm:%s1260] %v1493
                %v1495 = vld [vmem:[%s1267 + $0xe20] sm:%s1260]
                %1496 = vst [vmem:[%s1268 + $0x710] sm:%s1260] %v1495
                %v1497 = vld [vmem:[%s1267 + $0xe40] sm:%s1260]
                %1498 = vst [vmem:[%s1268 + $0x720] sm:%s1260] %v1497
                %v1499 = vld [vmem:[%s1267 + $0xe60] sm:%s1260]
                %1500 = vst [vmem:[%s1268 + $0x730] sm:%s1260] %v1499
                %v1501 = vld [vmem:[%s1267 + $0xe80] sm:%s1260]
                %1502 = vst [vmem:[%s1268 + $0x740] sm:%s1260] %v1501
                %v1503 = vld [vmem:[%s1267 + $0xea0] sm:%s1260]
                %1504 = vst [vmem:[%s1268 + $0x750] sm:%s1260] %v1503
                %v1505 = vld [vmem:[%s1267 + $0xec0] sm:%s1260]
                %1506 = vst [vmem:[%s1268 + $0x760] sm:%s1260] %v1505
                %v1507 = vld [vmem:[%s1267 + $0xee0] sm:%s1260]
                %1508 = vst [vmem:[%s1268 + $0x770] sm:%s1260] %v1507
                %v1509 = vld [vmem:[%s1267 + $0xf00] sm:%s1260]
                %1510 = vst [vmem:[%s1268 + $0x780] sm:%s1260] %v1509
                %v1511 = vld [vmem:[%s1267 + $0xf20] sm:%s1260]
                %1512 = vst [vmem:[%s1268 + $0x790] sm:%s1260] %v1511
                %v1513 = vld [vmem:[%s1267 + $0xf40] sm:%s1260]
                %1514 = vst [vmem:[%s1268 + $0x7a0] sm:%s1260] %v1513
                %v1515 = vld [vmem:[%s1267 + $0xf60] sm:%s1260]
                %1516 = vst [vmem:[%s1268 + $0x7b0] sm:%s1260] %v1515
                %v1517 = vld [vmem:[%s1267 + $0xf80] sm:%s1260]
                %1518 = vst [vmem:[%s1268 + $0x7c0] sm:%s1260] %v1517
                %v1519 = vld [vmem:[%s1267 + $0xfa0] sm:%s1260]
                %1520 = vst [vmem:[%s1268 + $0x7d0] sm:%s1260] %v1519
                %v1521 = vld [vmem:[%s1267 + $0xfc0] sm:%s1260]
                %1522 = vst [vmem:[%s1268 + $0x7e0] sm:%s1260] %v1521
                %v1523 = vld [vmem:[%s1267 + $0xfe0] sm:%s1260]
                %1524 = vst [vmem:[%s1268 + $0x7f0] sm:%s1260] %v1523
                %v1525 = vld [vmem:[%s1267 + $0x1000] sm:%s1260]
                %1526 = vst [vmem:[%s1268 + $0x800] sm:%s1260] %v1525
                %v1527 = vld [vmem:[%s1267 + $0x1020] sm:%s1260]
                %1528 = vst [vmem:[%s1268 + $0x810] sm:%s1260] %v1527
                %v1529 = vld [vmem:[%s1267 + $0x1040] sm:%s1260]
                %1530 = vst [vmem:[%s1268 + $0x820] sm:%s1260] %v1529
                %v1531 = vld [vmem:[%s1267 + $0x1060] sm:%s1260]
                %1532 = vst [vmem:[%s1268 + $0x830] sm:%s1260] %v1531
                %v1533 = vld [vmem:[%s1267 + $0x1080] sm:%s1260]
                %1534 = vst [vmem:[%s1268 + $0x840] sm:%s1260] %v1533
                %v1535 = vld [vmem:[%s1267 + $0x10a0] sm:%s1260]
                %1536 = vst [vmem:[%s1268 + $0x850] sm:%s1260] %v1535
                %v1537 = vld [vmem:[%s1267 + $0x10c0] sm:%s1260]
                %1538 = vst [vmem:[%s1268 + $0x860] sm:%s1260] %v1537
                %v1539 = vld [vmem:[%s1267 + $0x10e0] sm:%s1260]
                %1540 = vst [vmem:[%s1268 + $0x870] sm:%s1260] %v1539
                %v1541 = vld [vmem:[%s1267 + $0x1100] sm:%s1260]
                %1542 = vst [vmem:[%s1268 + $0x880] sm:%s1260] %v1541
                %v1543 = vld [vmem:[%s1267 + $0x1120] sm:%s1260]
                %1544 = vst [vmem:[%s1268 + $0x890] sm:%s1260] %v1543
                %v1545 = vld [vmem:[%s1267 + $0x1140] sm:%s1260]
                %1546 = vst [vmem:[%s1268 + $0x8a0] sm:%s1260] %v1545
                %v1547 = vld [vmem:[%s1267 + $0x1160] sm:%s1260]
                %1548 = vst [vmem:[%s1268 + $0x8b0] sm:%s1260] %v1547
                %v1549 = vld [vmem:[%s1267 + $0x1180] sm:%s1260]
                %1550 = vst [vmem:[%s1268 + $0x8c0] sm:%s1260] %v1549
                %v1551 = vld [vmem:[%s1267 + $0x11a0] sm:%s1260]
                %1552 = vst [vmem:[%s1268 + $0x8d0] sm:%s1260] %v1551
                %v1553 = vld [vmem:[%s1267 + $0x11c0] sm:%s1260]
                %1554 = vst [vmem:[%s1268 + $0x8e0] sm:%s1260] %v1553
                %v1555 = vld [vmem:[%s1267 + $0x11e0] sm:%s1260]
                %1556 = vst [vmem:[%s1268 + $0x8f0] sm:%s1260] %v1555
                %v1557 = vld [vmem:[%s1267 + $0x1200] sm:%s1260]
                %1558 = vst [vmem:[%s1268 + $0x900] sm:%s1260] %v1557
                %v1559 = vld [vmem:[%s1267 + $0x1220] sm:%s1260]
                %1560 = vst [vmem:[%s1268 + $0x910] sm:%s1260] %v1559
                %v1561 = vld [vmem:[%s1267 + $0x1240] sm:%s1260]
                %1562 = vst [vmem:[%s1268 + $0x920] sm:%s1260] %v1561
                %v1563 = vld [vmem:[%s1267 + $0x1260] sm:%s1260]
                %1564 = vst [vmem:[%s1268 + $0x930] sm:%s1260] %v1563
                %v1565 = vld [vmem:[%s1267 + $0x1280] sm:%s1260]
                %1566 = vst [vmem:[%s1268 + $0x940] sm:%s1260] %v1565
                %v1567 = vld [vmem:[%s1267 + $0x12a0] sm:%s1260]
                %1568 = vst [vmem:[%s1268 + $0x950] sm:%s1260] %v1567
                %v1569 = vld [vmem:[%s1267 + $0x12c0] sm:%s1260]
                %1570 = vst [vmem:[%s1268 + $0x960] sm:%s1260] %v1569
                %v1571 = vld [vmem:[%s1267 + $0x12e0] sm:%s1260]
                %1572 = vst [vmem:[%s1268 + $0x970] sm:%s1260] %v1571
                %v1573 = vld [vmem:[%s1267 + $0x1300] sm:%s1260]
                %1574 = vst [vmem:[%s1268 + $0x980] sm:%s1260] %v1573
                %v1575 = vld [vmem:[%s1267 + $0x1320] sm:%s1260]
                %1576 = vst [vmem:[%s1268 + $0x990] sm:%s1260] %v1575
                %v1577 = vld [vmem:[%s1267 + $0x1340] sm:%s1260]
                %1578 = vst [vmem:[%s1268 + $0x9a0] sm:%s1260] %v1577
                %v1579 = vld [vmem:[%s1267 + $0x1360] sm:%s1260]
                %1580 = vst [vmem:[%s1268 + $0x9b0] sm:%s1260] %v1579
                %v1581 = vld [vmem:[%s1267 + $0x1380] sm:%s1260]
                %1582 = vst [vmem:[%s1268 + $0x9c0] sm:%s1260] %v1581
                %v1583 = vld [vmem:[%s1267 + $0x13a0] sm:%s1260]
                %1584 = vst [vmem:[%s1268 + $0x9d0] sm:%s1260] %v1583
                %v1585 = vld [vmem:[%s1267 + $0x13c0] sm:%s1260]
                %1586 = vst [vmem:[%s1268 + $0x9e0] sm:%s1260] %v1585
                %v1587 = vld [vmem:[%s1267 + $0x13e0] sm:%s1260]
                %1588 = vst [vmem:[%s1268 + $0x9f0] sm:%s1260] %v1587
                %v1589 = vld [vmem:[%s1267 + $0x1400] sm:%s1260]
                %1590 = vst [vmem:[%s1268 + $0xa00] sm:%s1260] %v1589
                %v1591 = vld [vmem:[%s1267 + $0x1420] sm:%s1260]
                %1592 = vst [vmem:[%s1268 + $0xa10] sm:%s1260] %v1591
                %v1593 = vld [vmem:[%s1267 + $0x1440] sm:%s1260]
                %1594 = vst [vmem:[%s1268 + $0xa20] sm:%s1260] %v1593
                %v1595 = vld [vmem:[%s1267 + $0x1460] sm:%s1260]
                %1596 = vst [vmem:[%s1268 + $0xa30] sm:%s1260] %v1595
                %v1597 = vld [vmem:[%s1267 + $0x1480] sm:%s1260]
                %1598 = vst [vmem:[%s1268 + $0xa40] sm:%s1260] %v1597
                %v1599 = vld [vmem:[%s1267 + $0x14a0] sm:%s1260]
                %1600 = vst [vmem:[%s1268 + $0xa50] sm:%s1260] %v1599
                %v1601 = vld [vmem:[%s1267 + $0x14c0] sm:%s1260]
                %1602 = vst [vmem:[%s1268 + $0xa60] sm:%s1260] %v1601
                %v1603 = vld [vmem:[%s1267 + $0x14e0] sm:%s1260]
                %1604 = vst [vmem:[%s1268 + $0xa70] sm:%s1260] %v1603
                %v1605 = vld [vmem:[%s1267 + $0x1500] sm:%s1260]
                %1606 = vst [vmem:[%s1268 + $0xa80] sm:%s1260] %v1605
                %v1607 = vld [vmem:[%s1267 + $0x1520] sm:%s1260]
                %1608 = vst [vmem:[%s1268 + $0xa90] sm:%s1260] %v1607
                %v1609 = vld [vmem:[%s1267 + $0x1540] sm:%s1260]
                %1610 = vst [vmem:[%s1268 + $0xaa0] sm:%s1260] %v1609
                %v1611 = vld [vmem:[%s1267 + $0x1560] sm:%s1260]
                %1612 = vst [vmem:[%s1268 + $0xab0] sm:%s1260] %v1611
                %v1613 = vld [vmem:[%s1267 + $0x1580] sm:%s1260]
                %1614 = vst [vmem:[%s1268 + $0xac0] sm:%s1260] %v1613
                %v1615 = vld [vmem:[%s1267 + $0x15a0] sm:%s1260]
                %1616 = vst [vmem:[%s1268 + $0xad0] sm:%s1260] %v1615
                %v1617 = vld [vmem:[%s1267 + $0x15c0] sm:%s1260]
                %1618 = vst [vmem:[%s1268 + $0xae0] sm:%s1260] %v1617
                %v1619 = vld [vmem:[%s1267 + $0x15e0] sm:%s1260]
                %1620 = vst [vmem:[%s1268 + $0xaf0] sm:%s1260] %v1619
                %v1621 = vld [vmem:[%s1267 + $0x1600] sm:%s1260]
                %1622 = vst [vmem:[%s1268 + $0xb00] sm:%s1260] %v1621
                %v1623 = vld [vmem:[%s1267 + $0x1620] sm:%s1260]
                %1624 = vst [vmem:[%s1268 + $0xb10] sm:%s1260] %v1623
                %v1625 = vld [vmem:[%s1267 + $0x1640] sm:%s1260]
                %1626 = vst [vmem:[%s1268 + $0xb20] sm:%s1260] %v1625
                %v1627 = vld [vmem:[%s1267 + $0x1660] sm:%s1260]
                %1628 = vst [vmem:[%s1268 + $0xb30] sm:%s1260] %v1627
                %v1629 = vld [vmem:[%s1267 + $0x1680] sm:%s1260]
                %1630 = vst [vmem:[%s1268 + $0xb40] sm:%s1260] %v1629
                %v1631 = vld [vmem:[%s1267 + $0x16a0] sm:%s1260]
                %1632 = vst [vmem:[%s1268 + $0xb50] sm:%s1260] %v1631
                %v1633 = vld [vmem:[%s1267 + $0x16c0] sm:%s1260]
                %1634 = vst [vmem:[%s1268 + $0xb60] sm:%s1260] %v1633
                %v1635 = vld [vmem:[%s1267 + $0x16e0] sm:%s1260]
                %1636 = vst [vmem:[%s1268 + $0xb70] sm:%s1260] %v1635
                %v1637 = vld [vmem:[%s1267 + $0x1700] sm:%s1260]
                %1638 = vst [vmem:[%s1268 + $0xb80] sm:%s1260] %v1637
                %v1639 = vld [vmem:[%s1267 + $0x1720] sm:%s1260]
                %1640 = vst [vmem:[%s1268 + $0xb90] sm:%s1260] %v1639
                %v1641 = vld [vmem:[%s1267 + $0x1740] sm:%s1260]
                %1642 = vst [vmem:[%s1268 + $0xba0] sm:%s1260] %v1641
                %v1643 = vld [vmem:[%s1267 + $0x1760] sm:%s1260]
                %1644 = vst [vmem:[%s1268 + $0xbb0] sm:%s1260] %v1643
                %v1645 = vld [vmem:[%s1267 + $0x1780] sm:%s1260]
                %1646 = vst [vmem:[%s1268 + $0xbc0] sm:%s1260] %v1645
                %v1647 = vld [vmem:[%s1267 + $0x17a0] sm:%s1260]
                %1648 = vst [vmem:[%s1268 + $0xbd0] sm:%s1260] %v1647
                %v1649 = vld [vmem:[%s1267 + $0x17c0] sm:%s1260]
                %1650 = vst [vmem:[%s1268 + $0xbe0] sm:%s1260] %v1649
                %v1651 = vld [vmem:[%s1267 + $0x17e0] sm:%s1260]
                %1652 = vst [vmem:[%s1268 + $0xbf0] sm:%s1260] %v1651
                %v1653 = vld [vmem:[%s1267 + $0x1800] sm:%s1260]
                %1654 = vst [vmem:[%s1268 + $0xc00] sm:%s1260] %v1653
                %v1655 = vld [vmem:[%s1267 + $0x1820] sm:%s1260]
                %1656 = vst [vmem:[%s1268 + $0xc10] sm:%s1260] %v1655
                %v1657 = vld [vmem:[%s1267 + $0x1840] sm:%s1260]
                %1658 = vst [vmem:[%s1268 + $0xc20] sm:%s1260] %v1657
                %v1659 = vld [vmem:[%s1267 + $0x1860] sm:%s1260]
                %1660 = vst [vmem:[%s1268 + $0xc30] sm:%s1260] %v1659
                %v1661 = vld [vmem:[%s1267 + $0x1880] sm:%s1260]
                %1662 = vst [vmem:[%s1268 + $0xc40] sm:%s1260] %v1661
                %v1663 = vld [vmem:[%s1267 + $0x18a0] sm:%s1260]
                %1664 = vst [vmem:[%s1268 + $0xc50] sm:%s1260] %v1663
                %v1665 = vld [vmem:[%s1267 + $0x18c0] sm:%s1260]
                %1666 = vst [vmem:[%s1268 + $0xc60] sm:%s1260] %v1665
                %v1667 = vld [vmem:[%s1267 + $0x18e0] sm:%s1260]
                %1668 = vst [vmem:[%s1268 + $0xc70] sm:%s1260] %v1667
                %v1669 = vld [vmem:[%s1267 + $0x1900] sm:%s1260]
                %1670 = vst [vmem:[%s1268 + $0xc80] sm:%s1260] %v1669
                %v1671 = vld [vmem:[%s1267 + $0x1920] sm:%s1260]
                %1672 = vst [vmem:[%s1268 + $0xc90] sm:%s1260] %v1671
                %v1673 = vld [vmem:[%s1267 + $0x1940] sm:%s1260]
                %1674 = vst [vmem:[%s1268 + $0xca0] sm:%s1260] %v1673
                %v1675 = vld [vmem:[%s1267 + $0x1960] sm:%s1260]
                %1676 = vst [vmem:[%s1268 + $0xcb0] sm:%s1260] %v1675
                %v1677 = vld [vmem:[%s1267 + $0x1980] sm:%s1260]
                %1678 = vst [vmem:[%s1268 + $0xcc0] sm:%s1260] %v1677
                %v1679 = vld [vmem:[%s1267 + $0x19a0] sm:%s1260]
                %1680 = vst [vmem:[%s1268 + $0xcd0] sm:%s1260] %v1679
                %v1681 = vld [vmem:[%s1267 + $0x19c0] sm:%s1260]
                %1682 = vst [vmem:[%s1268 + $0xce0] sm:%s1260] %v1681
                %v1683 = vld [vmem:[%s1267 + $0x19e0] sm:%s1260]
                %1684 = vst [vmem:[%s1268 + $0xcf0] sm:%s1260] %v1683
                %v1685 = vld [vmem:[%s1267 + $0x1a00] sm:%s1260]
                %1686 = vst [vmem:[%s1268 + $0xd00] sm:%s1260] %v1685
                %v1687 = vld [vmem:[%s1267 + $0x1a20] sm:%s1260]
                %1688 = vst [vmem:[%s1268 + $0xd10] sm:%s1260] %v1687
                %v1689 = vld [vmem:[%s1267 + $0x1a40] sm:%s1260]
                %1690 = vst [vmem:[%s1268 + $0xd20] sm:%s1260] %v1689
                %v1691 = vld [vmem:[%s1267 + $0x1a60] sm:%s1260]
                %1692 = vst [vmem:[%s1268 + $0xd30] sm:%s1260] %v1691
                %v1693 = vld [vmem:[%s1267 + $0x1a80] sm:%s1260]
                %1694 = vst [vmem:[%s1268 + $0xd40] sm:%s1260] %v1693
                %v1695 = vld [vmem:[%s1267 + $0x1aa0] sm:%s1260]
                %1696 = vst [vmem:[%s1268 + $0xd50] sm:%s1260] %v1695
                %v1697 = vld [vmem:[%s1267 + $0x1ac0] sm:%s1260]
                %1698 = vst [vmem:[%s1268 + $0xd60] sm:%s1260] %v1697
                %v1699 = vld [vmem:[%s1267 + $0x1ae0] sm:%s1260]
                %1700 = vst [vmem:[%s1268 + $0xd70] sm:%s1260] %v1699
                %v1701 = vld [vmem:[%s1267 + $0x1b00] sm:%s1260]
                %1702 = vst [vmem:[%s1268 + $0xd80] sm:%s1260] %v1701
                %v1703 = vld [vmem:[%s1267 + $0x1b20] sm:%s1260]
                %1704 = vst [vmem:[%s1268 + $0xd90] sm:%s1260] %v1703
                %v1705 = vld [vmem:[%s1267 + $0x1b40] sm:%s1260]
                %1706 = vst [vmem:[%s1268 + $0xda0] sm:%s1260] %v1705
                %v1707 = vld [vmem:[%s1267 + $0x1b60] sm:%s1260]
                %1708 = vst [vmem:[%s1268 + $0xdb0] sm:%s1260] %v1707
                %v1709 = vld [vmem:[%s1267 + $0x1b80] sm:%s1260]
                %1710 = vst [vmem:[%s1268 + $0xdc0] sm:%s1260] %v1709
                %v1711 = vld [vmem:[%s1267 + $0x1ba0] sm:%s1260]
                %1712 = vst [vmem:[%s1268 + $0xdd0] sm:%s1260] %v1711
                %v1713 = vld [vmem:[%s1267 + $0x1bc0] sm:%s1260]
                %1714 = vst [vmem:[%s1268 + $0xde0] sm:%s1260] %v1713
                %v1715 = vld [vmem:[%s1267 + $0x1be0] sm:%s1260]
                %1716 = vst [vmem:[%s1268 + $0xdf0] sm:%s1260] %v1715
                %v1717 = vld [vmem:[%s1267 + $0x1c00] sm:%s1260]
                %1718 = vst [vmem:[%s1268 + $0xe00] sm:%s1260] %v1717
                %v1719 = vld [vmem:[%s1267 + $0x1c20] sm:%s1260]
                %1720 = vst [vmem:[%s1268 + $0xe10] sm:%s1260] %v1719
                %v1721 = vld [vmem:[%s1267 + $0x1c40] sm:%s1260]
                %1722 = vst [vmem:[%s1268 + $0xe20] sm:%s1260] %v1721
                %v1723 = vld [vmem:[%s1267 + $0x1c60] sm:%s1260]
                %1724 = vst [vmem:[%s1268 + $0xe30] sm:%s1260] %v1723
                %v1725 = vld [vmem:[%s1267 + $0x1c80] sm:%s1260]
                %1726 = vst [vmem:[%s1268 + $0xe40] sm:%s1260] %v1725
                %v1727 = vld [vmem:[%s1267 + $0x1ca0] sm:%s1260]
                %1728 = vst [vmem:[%s1268 + $0xe50] sm:%s1260] %v1727
                %v1729 = vld [vmem:[%s1267 + $0x1cc0] sm:%s1260]
                %1730 = vst [vmem:[%s1268 + $0xe60] sm:%s1260] %v1729
                %v1731 = vld [vmem:[%s1267 + $0x1ce0] sm:%s1260]
                %1732 = vst [vmem:[%s1268 + $0xe70] sm:%s1260] %v1731
                %v1733 = vld [vmem:[%s1267 + $0x1d00] sm:%s1260]
                %1734 = vst [vmem:[%s1268 + $0xe80] sm:%s1260] %v1733
                %v1735 = vld [vmem:[%s1267 + $0x1d20] sm:%s1260]
                %1736 = vst [vmem:[%s1268 + $0xe90] sm:%s1260] %v1735
                %v1737 = vld [vmem:[%s1267 + $0x1d40] sm:%s1260]
                %1738 = vst [vmem:[%s1268 + $0xea0] sm:%s1260] %v1737
                %v1739 = vld [vmem:[%s1267 + $0x1d60] sm:%s1260]
                %1740 = vst [vmem:[%s1268 + $0xeb0] sm:%s1260] %v1739
                %v1741 = vld [vmem:[%s1267 + $0x1d80] sm:%s1260]
                %1742 = vst [vmem:[%s1268 + $0xec0] sm:%s1260] %v1741
                %v1743 = vld [vmem:[%s1267 + $0x1da0] sm:%s1260]
                %1744 = vst [vmem:[%s1268 + $0xed0] sm:%s1260] %v1743
                %v1745 = vld [vmem:[%s1267 + $0x1dc0] sm:%s1260]
                %1746 = vst [vmem:[%s1268 + $0xee0] sm:%s1260] %v1745
                %v1747 = vld [vmem:[%s1267 + $0x1de0] sm:%s1260]
                %1748 = vst [vmem:[%s1268 + $0xef0] sm:%s1260] %v1747
                %v1749 = vld [vmem:[%s1267 + $0x1e00] sm:%s1260]
                %1750 = vst [vmem:[%s1268 + $0xf00] sm:%s1260] %v1749
                %v1751 = vld [vmem:[%s1267 + $0x1e20] sm:%s1260]
                %1752 = vst [vmem:[%s1268 + $0xf10] sm:%s1260] %v1751
                %v1753 = vld [vmem:[%s1267 + $0x1e40] sm:%s1260]
                %1754 = vst [vmem:[%s1268 + $0xf20] sm:%s1260] %v1753
                %v1755 = vld [vmem:[%s1267 + $0x1e60] sm:%s1260]
                %1756 = vst [vmem:[%s1268 + $0xf30] sm:%s1260] %v1755
                %v1757 = vld [vmem:[%s1267 + $0x1e80] sm:%s1260]
                %1758 = vst [vmem:[%s1268 + $0xf40] sm:%s1260] %v1757
                %v1759 = vld [vmem:[%s1267 + $0x1ea0] sm:%s1260]
                %1760 = vst [vmem:[%s1268 + $0xf50] sm:%s1260] %v1759
                %v1761 = vld [vmem:[%s1267 + $0x1ec0] sm:%s1260]
                %1762 = vst [vmem:[%s1268 + $0xf60] sm:%s1260] %v1761
                %v1763 = vld [vmem:[%s1267 + $0x1ee0] sm:%s1260]
                %1764 = vst [vmem:[%s1268 + $0xf70] sm:%s1260] %v1763
                %v1765 = vld [vmem:[%s1267 + $0x1f00] sm:%s1260]
                %1766 = vst [vmem:[%s1268 + $0xf80] sm:%s1260] %v1765
                %v1767 = vld [vmem:[%s1267 + $0x1f20] sm:%s1260]
                %1768 = vst [vmem:[%s1268 + $0xf90] sm:%s1260] %v1767
                %v1769 = vld [vmem:[%s1267 + $0x1f40] sm:%s1260]
                %1770 = vst [vmem:[%s1268 + $0xfa0] sm:%s1260] %v1769
                %v1771 = vld [vmem:[%s1267 + $0x1f60] sm:%s1260]
                %1772 = vst [vmem:[%s1268 + $0xfb0] sm:%s1260] %v1771
                %v1773 = vld [vmem:[%s1267 + $0x1f80] sm:%s1260]
                %1774 = vst [vmem:[%s1268 + $0xfc0] sm:%s1260] %v1773
                %v1775 = vld [vmem:[%s1267 + $0x1fa0] sm:%s1260]
                %1776 = vst [vmem:[%s1268 + $0xfd0] sm:%s1260] %v1775
                %v1777 = vld [vmem:[%s1267 + $0x1fc0] sm:%s1260]
                %1778 = vst [vmem:[%s1268 + $0xfe0] sm:%s1260] %v1777
                %v1779 = vld [vmem:[%s1267 + $0x1fe0] sm:%s1260]
                %1780 = vst [vmem:[%s1268 + $0xff0] sm:%s1260] %v1779
              $region55: #{discriminator_forward.5} parent=42 // loop_footer
                %s1266 = sadd.s32 1, %s1262
              $region56: #{discriminator_forward.5} parent=42 // loop_footer_branch
                %1261 = sbr.rel target = $region52
              $region57: #{discriminator_forward.5} parent=42 // loop_exit
                _
            $region43: #{discriminator_forward.5} parent=27 // pred_fallthru
              _
          $region28: #{discriminator_forward.5} parent=23 // pred_fallthru
            _
          %1781 = vnop
        $region24: #{discriminator_forward.5} parent=19 // pred_fallthru
          _
        // Predicated region
        $region58: #{discriminator_forward.5} parent=19 // pred_check
          %p1782 = pneg %p96
        $region59: #{discriminator_forward.5} parent=19 // pred_check_branch
          %1784 = sbr.rel (%p1782) target = $region61
        $region60: #{discriminator_forward.5} parent=19 // pred_region
          %s1785 = smul.u32 4, %s17
          %p1786 = scmp.lt.s32.totalorder %s1785, 7
          %s1787 = scalar_select %p1786, %s1785, 7
          %s1788 = scalar_lea.vmem %s2, %s1787
          %s1789 = smul.u32 4, %s17
        $region61: #{discriminator_forward.5} parent=19 // pred_fallthru
          _
        // Predicated region
        $region62: #{discriminator_forward.5} parent=19 // pred_check
          %p1790 = pneg %p122
        $region63: #{discriminator_forward.5} parent=19 // pred_check_branch
          %1792 = sbr.rel (%p1790) target = $region65
        $region64: #{discriminator_forward.5} parent=19 // pred_region
          %s1793 = smul.u32 64, %s17
          %p1794 = scmp.lt.s32.totalorder %s1793, 127
          %s1795 = scalar_select %p1794, %s1793, 127
          %s1796 = smul.addr %s1795, 4
          %s1797 = scalar_lea.vmem %s3, %s1796
          %s1798 = smul.u32 64, %s17
        $region65: #{discriminator_forward.5} parent=19 // pred_fallthru
          _
      $region20: #{discriminator_forward.5} parent=5 // pred_fallthru
        _
      %p1799 = scmp.le.s32.totalorder 1, %s10
      %p1800 = scmp.lt.s32.totalorder %s10, 3
      %p1801 = pnand %p1799, %p1800
      %p1802 = pneg %p1801
      // Predicated region
      $region66: #{discriminator_forward.5} parent=5 // pred_check
        _
      $region67: #{discriminator_forward.5} parent=5 // pred_check_branch
        %1804 = sbr.rel (%p1801) target = $region69
      $region68: #{discriminator_forward.5} parent=5 // pred_region
        %s1805 = ssub.s32 %s10, 1
        %s1806 = sand.u32 %s63, 1
        %s1807 = sand.u32 %s63, 1
        %s1808 = smul.addr %s1807, 4096
        %s1809 = scalar_lea.vmem [#allocation3], %s1808
        // Predicated region
        $region70: #{discriminator_forward.5} parent=68 // pred_check
          %p1810 = pneg %p76
        $region71: #{discriminator_forward.5} parent=68 // pred_check_branch
          %1812 = sbr.rel (%p1810) target = $region73
        $region72: #{discriminator_forward.5} parent=68 // pred_region
          _
        $region73: #{discriminator_forward.5} parent=68 // pred_fallthru
          _
        %s1813 = smul.u32 16, %s20
        %p1814 = scmp.lt.s32.totalorder %s1813, 15
        %s1815 = scalar_select %p1814, %s1813, 15
        %s1816 = smul.addr %s1815, 4
        %s1817 = scalar_lea.vmem %s0, %s1816
        %p1818 = pneg %p48
        %p1819 = pneg %p45
        %s1820 = sand.u32 %s63, 1
        %s1821 = sand.u32 %s63, 1
        %s1822 = smul.addr %s1821, 4096
        %s1823 = scalar_lea.vmem [#allocation3], %s1822
        %p1824 = pneg %p76
        %p1825 = pneg %p73
        %s1826 = smul.u32 4, %s19
        %p1827 = scmp.lt.s32.totalorder %s1826, 7
        %s1828 = scalar_select %p1827, %s1826, 7
        %s1829 = scalar_lea.vmem %s2, %s1828
        %p1830 = pneg %p102
        %p1831 = pneg %p99
        %s1832 = smul.u32 64, %s19
        %p1833 = scmp.lt.s32.totalorder %s1832, 127
        %s1834 = scalar_select %p1833, %s1832, 127
        %s1835 = smul.addr %s1834, 4
        %s1836 = scalar_lea.vmem %s3, %s1835
        %p1837 = pneg %p128
        %p1838 = pneg %p125
        %p1839 = pneg %p154
        %p1840 = pneg %p151
        %p1841 = scmp.lt.s32.totalorder %s19, 1
        %s1842 = scalar_select %p1841, %s19, 1
        %s1843 = smul.addr %s1842, 8
        %s1844 = scalar_lea.vmem %s4, %s1843
        %s1845 = smul.u32 16, %s20
        %p1846 = scmp.lt.s32.totalorder %s1845, 15
        %s1847 = scalar_select %p1846, %s1845, 15
        %s1848 = smul.addr %s1847, 4
        %s1849 = scalar_lea.vmem %s0, %s1848
        %s1850 = smul.u32 16, %s20
        %s1851 = smul.u32 256, %s20
        %s1852 = smul.u32 4, %s19
        %s1853 = smul.u32 4, %s19
        %p1854 = scmp.lt.s32.totalorder %s1853, 7
        %s1855 = scalar_select %p1854, %s1853, 7
        %s1856 = scalar_lea.vmem %s2, %s1855
        %s1857 = smul.u32 4, %s19
        %s1858 = smul.u32 64, %s19
        %p1859 = scmp.lt.s32.totalorder %s1858, 127
        %s1860 = scalar_select %p1859, %s1858, 127
        %s1861 = smul.addr %s1860, 4
        %s1862 = scalar_lea.vmem %s3, %s1861
        %s1863 = smul.u32 64, %s19
        %p1864 = scmp.lt.s32.totalorder %s19, 1
        %s1865 = scalar_select %p1864, %s19, 1
        %s1866 = smul.addr %s1865, 8
        %s1867 = scalar_lea.vmem %s4, %s1866
        %p1868 = scmp.eq.s32.totalorder %s20, 0
        // Predicated region
        $region74: #{discriminator_forward.5} parent=68 // pred_check
          %p1869 = pneg %p1868
        $region75: #{discriminator_forward.5} parent=68 // pred_check_branch
          %1871 = sbr.rel (%p1869) target = $region77
        $region76: #{discriminator_forward.5} parent=68 // pred_region
          %1872 = vst [vmem:[#allocation2] sm:$0xff] 0.0
          %1873 = vst [vmem:[#allocation2 + $0x8] sm:$0xff] 0.0
          %1874 = vst [vmem:[#allocation2 + $0x10] sm:$0xff] 0.0
          %1875 = vst [vmem:[#allocation2 + $0x18] sm:$0xff] 0.0
        $region77: #{discriminator_forward.5} parent=68 // pred_fallthru
          _
        %v1876 = vld [vmem:[#allocation2] sm:$0xff]
        %v1877 = vld [vmem:[#allocation2 + $0x8] sm:$0xff]
        %v1878 = vld [vmem:[#allocation2 + $0x10] sm:$0xff]
        %v1879 = vld [vmem:[#allocation2 + $0x18] sm:$0xff]
        %v1880 = vld [vmem:[%s1849] sm:$0xff]
        %v1881 = vld [vmem:[%s1849 + $0x8] sm:$0xff]
        %v1882 = vld [vmem:[%s1849 + $0x10] sm:$0xff]
        %v1883 = vld [vmem:[%s1849 + $0x18] sm:$0xff]
        %v1884 = vld [vmem:[%s1849 + $0x20] sm:$0xff]
        %v1885 = vld [vmem:[%s1849 + $0x28] sm:$0xff]
        %v1886 = vld [vmem:[%s1849 + $0x30] sm:$0xff]
        %v1887 = vld [vmem:[%s1849 + $0x38] sm:$0xff]
        %v1888 = vld [vmem:[%s1809] sm:$0xff]
        %v1889 = vld [vmem:[%s1809 + $0x8] sm:$0xff]
        %v1890 = vld [vmem:[%s1809 + $0x10] sm:$0xff]
        %v1891 = vld [vmem:[%s1809 + $0x18] sm:$0xff]
        %v1892 = vld [vmem:[%s1809 + $0x20] sm:$0xff]
        %v1893 = vld [vmem:[%s1809 + $0x28] sm:$0xff]
        %v1894 = vld [vmem:[%s1809 + $0x30] sm:$0xff]
        %v1895 = vld [vmem:[%s1809 + $0x38] sm:$0xff]
        %v1896 = vld [vmem:[%s1809 + $0x40] sm:$0xff]
        %v1897 = vld [vmem:[%s1809 + $0x48] sm:$0xff]
        %v1898 = vld [vmem:[%s1809 + $0x50] sm:$0xff]
        %v1899 = vld [vmem:[%s1809 + $0x58] sm:$0xff]
        %v1900 = vld [vmem:[%s1809 + $0x60] sm:$0xff]
        %v1901 = vld [vmem:[%s1809 + $0x68] sm:$0xff]
        %v1902 = vld [vmem:[%s1809 + $0x70] sm:$0xff]
        %v1903 = vld [vmem:[%s1809 + $0x78] sm:$0xff]
        %v1904 = vld [vmem:[%s1809 + $0x80] sm:$0xff]
        %v1905 = vld [vmem:[%s1809 + $0x88] sm:$0xff]
        %v1906 = vld [vmem:[%s1809 + $0x90] sm:$0xff]
        %v1907 = vld [vmem:[%s1809 + $0x98] sm:$0xff]
        %v1908 = vld [vmem:[%s1809 + $0xa0] sm:$0xff]
        %v1909 = vld [vmem:[%s1809 + $0xa8] sm:$0xff]
        %v1910 = vld [vmem:[%s1809 + $0xb0] sm:$0xff]
        %v1911 = vld [vmem:[%s1809 + $0xb8] sm:$0xff]
        %v1912 = vld [vmem:[%s1809 + $0xc0] sm:$0xff]
        %v1913 = vld [vmem:[%s1809 + $0xc8] sm:$0xff]
        %v1914 = vld [vmem:[%s1809 + $0xd0] sm:$0xff]
        %v1915 = vld [vmem:[%s1809 + $0xd8] sm:$0xff]
        %v1916 = vld [vmem:[%s1809 + $0xe0] sm:$0xff]
        %v1917 = vld [vmem:[%s1809 + $0xe8] sm:$0xff]
        %v1918 = vld [vmem:[%s1809 + $0xf0] sm:$0xff]
        %v1919 = vld [vmem:[%s1809 + $0xf8] sm:$0xff]
        %v1920 = vld [vmem:[%s1809 + $0x100] sm:$0xff]
        %v1921 = vld [vmem:[%s1809 + $0x108] sm:$0xff]
        %v1922 = vld [vmem:[%s1809 + $0x110] sm:$0xff]
        %v1923 = vld [vmem:[%s1809 + $0x118] sm:$0xff]
        %v1924 = vld [vmem:[%s1809 + $0x120] sm:$0xff]
        %v1925 = vld [vmem:[%s1809 + $0x128] sm:$0xff]
        %v1926 = vld [vmem:[%s1809 + $0x130] sm:$0xff]
        %v1927 = vld [vmem:[%s1809 + $0x138] sm:$0xff]
        %v1928 = vld [vmem:[%s1809 + $0x140] sm:$0xff]
        %v1929 = vld [vmem:[%s1809 + $0x148] sm:$0xff]
        %v1930 = vld [vmem:[%s1809 + $0x150] sm:$0xff]
        %v1931 = vld [vmem:[%s1809 + $0x158] sm:$0xff]
        %v1932 = vld [vmem:[%s1809 + $0x160] sm:$0xff]
        %v1933 = vld [vmem:[%s1809 + $0x168] sm:$0xff]
        %v1934 = vld [vmem:[%s1809 + $0x170] sm:$0xff]
        %v1935 = vld [vmem:[%s1809 + $0x178] sm:$0xff]
        %v1936 = vld [vmem:[%s1809 + $0x180] sm:$0xff]
        %v1937 = vld [vmem:[%s1809 + $0x188] sm:$0xff]
        %v1938 = vld [vmem:[%s1809 + $0x190] sm:$0xff]
        %v1939 = vld [vmem:[%s1809 + $0x198] sm:$0xff]
        %v1940 = vld [vmem:[%s1809 + $0x1a0] sm:$0xff]
        %v1941 = vld [vmem:[%s1809 + $0x1a8] sm:$0xff]
        %v1942 = vld [vmem:[%s1809 + $0x1b0] sm:$0xff]
        %v1943 = vld [vmem:[%s1809 + $0x1b8] sm:$0xff]
        %v1944 = vld [vmem:[%s1809 + $0x1c0] sm:$0xff]
        %v1945 = vld [vmem:[%s1809 + $0x1c8] sm:$0xff]
        %v1946 = vld [vmem:[%s1809 + $0x1d0] sm:$0xff]
        %v1947 = vld [vmem:[%s1809 + $0x1d8] sm:$0xff]
        %v1948 = vld [vmem:[%s1809 + $0x1e0] sm:$0xff]
        %v1949 = vld [vmem:[%s1809 + $0x1e8] sm:$0xff]
        %v1950 = vld [vmem:[%s1809 + $0x1f0] sm:$0xff]
        %v1951 = vld [vmem:[%s1809 + $0x1f8] sm:$0xff]
        %v1952 = vld [vmem:[%s1809 + $0x200] sm:$0xff]
        %v1953 = vld [vmem:[%s1809 + $0x208] sm:$0xff]
        %v1954 = vld [vmem:[%s1809 + $0x210] sm:$0xff]
        %v1955 = vld [vmem:[%s1809 + $0x218] sm:$0xff]
        %v1956 = vld [vmem:[%s1809 + $0x220] sm:$0xff]
        %v1957 = vld [vmem:[%s1809 + $0x228] sm:$0xff]
        %v1958 = vld [vmem:[%s1809 + $0x230] sm:$0xff]
        %v1959 = vld [vmem:[%s1809 + $0x238] sm:$0xff]
        %v1960 = vld [vmem:[%s1809 + $0x240] sm:$0xff]
        %v1961 = vld [vmem:[%s1809 + $0x248] sm:$0xff]
        %v1962 = vld [vmem:[%s1809 + $0x250] sm:$0xff]
        %v1963 = vld [vmem:[%s1809 + $0x258] sm:$0xff]
        %v1964 = vld [vmem:[%s1809 + $0x260] sm:$0xff]
        %v1965 = vld [vmem:[%s1809 + $0x268] sm:$0xff]
        %v1966 = vld [vmem:[%s1809 + $0x270] sm:$0xff]
        %v1967 = vld [vmem:[%s1809 + $0x278] sm:$0xff]
        %v1968 = vld [vmem:[%s1809 + $0x280] sm:$0xff]
        %v1969 = vld [vmem:[%s1809 + $0x288] sm:$0xff]
        %v1970 = vld [vmem:[%s1809 + $0x290] sm:$0xff]
        %v1971 = vld [vmem:[%s1809 + $0x298] sm:$0xff]
        %v1972 = vld [vmem:[%s1809 + $0x2a0] sm:$0xff]
        %v1973 = vld [vmem:[%s1809 + $0x2a8] sm:$0xff]
        %v1974 = vld [vmem:[%s1809 + $0x2b0] sm:$0xff]
        %v1975 = vld [vmem:[%s1809 + $0x2b8] sm:$0xff]
        %v1976 = vld [vmem:[%s1809 + $0x2c0] sm:$0xff]
        %v1977 = vld [vmem:[%s1809 + $0x2c8] sm:$0xff]
        %v1978 = vld [vmem:[%s1809 + $0x2d0] sm:$0xff]
        %v1979 = vld [vmem:[%s1809 + $0x2d8] sm:$0xff]
        %v1980 = vld [vmem:[%s1809 + $0x2e0] sm:$0xff]
        %v1981 = vld [vmem:[%s1809 + $0x2e8] sm:$0xff]
        %v1982 = vld [vmem:[%s1809 + $0x2f0] sm:$0xff]
        %v1983 = vld [vmem:[%s1809 + $0x2f8] sm:$0xff]
        %v1984 = vld [vmem:[%s1809 + $0x300] sm:$0xff]
        %v1985 = vld [vmem:[%s1809 + $0x308] sm:$0xff]
        %v1986 = vld [vmem:[%s1809 + $0x310] sm:$0xff]
        %v1987 = vld [vmem:[%s1809 + $0x318] sm:$0xff]
        %v1988 = vld [vmem:[%s1809 + $0x320] sm:$0xff]
        %v1989 = vld [vmem:[%s1809 + $0x328] sm:$0xff]
        %v1990 = vld [vmem:[%s1809 + $0x330] sm:$0xff]
        %v1991 = vld [vmem:[%s1809 + $0x338] sm:$0xff]
        %v1992 = vld [vmem:[%s1809 + $0x340] sm:$0xff]
        %v1993 = vld [vmem:[%s1809 + $0x348] sm:$0xff]
        %v1994 = vld [vmem:[%s1809 + $0x350] sm:$0xff]
        %v1995 = vld [vmem:[%s1809 + $0x358] sm:$0xff]
        %v1996 = vld [vmem:[%s1809 + $0x360] sm:$0xff]
        %v1997 = vld [vmem:[%s1809 + $0x368] sm:$0xff]
        %v1998 = vld [vmem:[%s1809 + $0x370] sm:$0xff]
        %v1999 = vld [vmem:[%s1809 + $0x378] sm:$0xff]
        %v2000 = vld [vmem:[%s1809 + $0x380] sm:$0xff]
        %v2001 = vld [vmem:[%s1809 + $0x388] sm:$0xff]
        %v2002 = vld [vmem:[%s1809 + $0x390] sm:$0xff]
        %v2003 = vld [vmem:[%s1809 + $0x398] sm:$0xff]
        %v2004 = vld [vmem:[%s1809 + $0x3a0] sm:$0xff]
        %v2005 = vld [vmem:[%s1809 + $0x3a8] sm:$0xff]
        %v2006 = vld [vmem:[%s1809 + $0x3b0] sm:$0xff]
        %v2007 = vld [vmem:[%s1809 + $0x3b8] sm:$0xff]
        %v2008 = vld [vmem:[%s1809 + $0x3c0] sm:$0xff]
        %v2009 = vld [vmem:[%s1809 + $0x3c8] sm:$0xff]
        %v2010 = vld [vmem:[%s1809 + $0x3d0] sm:$0xff]
        %v2011 = vld [vmem:[%s1809 + $0x3d8] sm:$0xff]
        %v2012 = vld [vmem:[%s1809 + $0x3e0] sm:$0xff]
        %v2013 = vld [vmem:[%s1809 + $0x3e8] sm:$0xff]
        %v2014 = vld [vmem:[%s1809 + $0x3f0] sm:$0xff]
        %v2015 = vld [vmem:[%s1809 + $0x3f8] sm:$0xff]
        %v2016 = vld [vmem:[%s1809 + $0x400] sm:$0xff]
        %v2017 = vld [vmem:[%s1809 + $0x408] sm:$0xff]
        %v2018 = vld [vmem:[%s1809 + $0x410] sm:$0xff]
        %v2019 = vld [vmem:[%s1809 + $0x418] sm:$0xff]
        %v2020 = vld [vmem:[%s1809 + $0x420] sm:$0xff]
        %v2021 = vld [vmem:[%s1809 + $0x428] sm:$0xff]
        %v2022 = vld [vmem:[%s1809 + $0x430] sm:$0xff]
        %v2023 = vld [vmem:[%s1809 + $0x438] sm:$0xff]
        %v2024 = vld [vmem:[%s1809 + $0x440] sm:$0xff]
        %v2025 = vld [vmem:[%s1809 + $0x448] sm:$0xff]
        %v2026 = vld [vmem:[%s1809 + $0x450] sm:$0xff]
        %v2027 = vld [vmem:[%s1809 + $0x458] sm:$0xff]
        %v2028 = vld [vmem:[%s1809 + $0x460] sm:$0xff]
        %v2029 = vld [vmem:[%s1809 + $0x468] sm:$0xff]
        %v2030 = vld [vmem:[%s1809 + $0x470] sm:$0xff]
        %v2031 = vld [vmem:[%s1809 + $0x478] sm:$0xff]
        %v2032 = vld [vmem:[%s1809 + $0x480] sm:$0xff]
        %v2033 = vld [vmem:[%s1809 + $0x488] sm:$0xff]
        %v2034 = vld [vmem:[%s1809 + $0x490] sm:$0xff]
        %v2035 = vld [vmem:[%s1809 + $0x498] sm:$0xff]
        %v2036 = vld [vmem:[%s1809 + $0x4a0] sm:$0xff]
        %v2037 = vld [vmem:[%s1809 + $0x4a8] sm:$0xff]
        %v2038 = vld [vmem:[%s1809 + $0x4b0] sm:$0xff]
        %v2039 = vld [vmem:[%s1809 + $0x4b8] sm:$0xff]
        %v2040 = vld [vmem:[%s1809 + $0x4c0] sm:$0xff]
        %v2041 = vld [vmem:[%s1809 + $0x4c8] sm:$0xff]
        %v2042 = vld [vmem:[%s1809 + $0x4d0] sm:$0xff]
        %v2043 = vld [vmem:[%s1809 + $0x4d8] sm:$0xff]
        %v2044 = vld [vmem:[%s1809 + $0x4e0] sm:$0xff]
        %v2045 = vld [vmem:[%s1809 + $0x4e8] sm:$0xff]
        %v2046 = vld [vmem:[%s1809 + $0x4f0] sm:$0xff]
        %v2047 = vld [vmem:[%s1809 + $0x4f8] sm:$0xff]
        %v2048 = vld [vmem:[%s1809 + $0x500] sm:$0xff]
        %v2049 = vld [vmem:[%s1809 + $0x508] sm:$0xff]
        %v2050 = vld [vmem:[%s1809 + $0x510] sm:$0xff]
        %v2051 = vld [vmem:[%s1809 + $0x518] sm:$0xff]
        %v2052 = vld [vmem:[%s1809 + $0x520] sm:$0xff]
        %v2053 = vld [vmem:[%s1809 + $0x528] sm:$0xff]
        %v2054 = vld [vmem:[%s1809 + $0x530] sm:$0xff]
        %v2055 = vld [vmem:[%s1809 + $0x538] sm:$0xff]
        %v2056 = vld [vmem:[%s1809 + $0x540] sm:$0xff]
        %v2057 = vld [vmem:[%s1809 + $0x548] sm:$0xff]
        %v2058 = vld [vmem:[%s1809 + $0x550] sm:$0xff]
        %v2059 = vld [vmem:[%s1809 + $0x558] sm:$0xff]
        %v2060 = vld [vmem:[%s1809 + $0x560] sm:$0xff]
        %v2061 = vld [vmem:[%s1809 + $0x568] sm:$0xff]
        %v2062 = vld [vmem:[%s1809 + $0x570] sm:$0xff]
        %v2063 = vld [vmem:[%s1809 + $0x578] sm:$0xff]
        %v2064 = vld [vmem:[%s1809 + $0x580] sm:$0xff]
        %v2065 = vld [vmem:[%s1809 + $0x588] sm:$0xff]
        %v2066 = vld [vmem:[%s1809 + $0x590] sm:$0xff]
        %v2067 = vld [vmem:[%s1809 + $0x598] sm:$0xff]
        %v2068 = vld [vmem:[%s1809 + $0x5a0] sm:$0xff]
        %v2069 = vld [vmem:[%s1809 + $0x5a8] sm:$0xff]
        %v2070 = vld [vmem:[%s1809 + $0x5b0] sm:$0xff]
        %v2071 = vld [vmem:[%s1809 + $0x5b8] sm:$0xff]
        %v2072 = vld [vmem:[%s1809 + $0x5c0] sm:$0xff]
        %v2073 = vld [vmem:[%s1809 + $0x5c8] sm:$0xff]
        %v2074 = vld [vmem:[%s1809 + $0x5d0] sm:$0xff]
        %v2075 = vld [vmem:[%s1809 + $0x5d8] sm:$0xff]
        %v2076 = vld [vmem:[%s1809 + $0x5e0] sm:$0xff]
        %v2077 = vld [vmem:[%s1809 + $0x5e8] sm:$0xff]
        %v2078 = vld [vmem:[%s1809 + $0x5f0] sm:$0xff]
        %v2079 = vld [vmem:[%s1809 + $0x5f8] sm:$0xff]
        %v2080 = vld [vmem:[%s1809 + $0x600] sm:$0xff]
        %v2081 = vld [vmem:[%s1809 + $0x608] sm:$0xff]
        %v2082 = vld [vmem:[%s1809 + $0x610] sm:$0xff]
        %v2083 = vld [vmem:[%s1809 + $0x618] sm:$0xff]
        %v2084 = vld [vmem:[%s1809 + $0x620] sm:$0xff]
        %v2085 = vld [vmem:[%s1809 + $0x628] sm:$0xff]
        %v2086 = vld [vmem:[%s1809 + $0x630] sm:$0xff]
        %v2087 = vld [vmem:[%s1809 + $0x638] sm:$0xff]
        %v2088 = vld [vmem:[%s1809 + $0x640] sm:$0xff]
        %v2089 = vld [vmem:[%s1809 + $0x648] sm:$0xff]
        %v2090 = vld [vmem:[%s1809 + $0x650] sm:$0xff]
        %v2091 = vld [vmem:[%s1809 + $0x658] sm:$0xff]
        %v2092 = vld [vmem:[%s1809 + $0x660] sm:$0xff]
        %v2093 = vld [vmem:[%s1809 + $0x668] sm:$0xff]
        %v2094 = vld [vmem:[%s1809 + $0x670] sm:$0xff]
        %v2095 = vld [vmem:[%s1809 + $0x678] sm:$0xff]
        %v2096 = vld [vmem:[%s1809 + $0x680] sm:$0xff]
        %v2097 = vld [vmem:[%s1809 + $0x688] sm:$0xff]
        %v2098 = vld [vmem:[%s1809 + $0x690] sm:$0xff]
        %v2099 = vld [vmem:[%s1809 + $0x698] sm:$0xff]
        %v2100 = vld [vmem:[%s1809 + $0x6a0] sm:$0xff]
        %v2101 = vld [vmem:[%s1809 + $0x6a8] sm:$0xff]
        %v2102 = vld [vmem:[%s1809 + $0x6b0] sm:$0xff]
        %v2103 = vld [vmem:[%s1809 + $0x6b8] sm:$0xff]
        %v2104 = vld [vmem:[%s1809 + $0x6c0] sm:$0xff]
        %v2105 = vld [vmem:[%s1809 + $0x6c8] sm:$0xff]
        %v2106 = vld [vmem:[%s1809 + $0x6d0] sm:$0xff]
        %v2107 = vld [vmem:[%s1809 + $0x6d8] sm:$0xff]
        %v2108 = vld [vmem:[%s1809 + $0x6e0] sm:$0xff]
        %v2109 = vld [vmem:[%s1809 + $0x6e8] sm:$0xff]
        %v2110 = vld [vmem:[%s1809 + $0x6f0] sm:$0xff]
        %v2111 = vld [vmem:[%s1809 + $0x6f8] sm:$0xff]
        %v2112 = vld [vmem:[%s1809 + $0x700] sm:$0xff]
        %v2113 = vld [vmem:[%s1809 + $0x708] sm:$0xff]
        %v2114 = vld [vmem:[%s1809 + $0x710] sm:$0xff]
        %v2115 = vld [vmem:[%s1809 + $0x718] sm:$0xff]
        %v2116 = vld [vmem:[%s1809 + $0x720] sm:$0xff]
        %v2117 = vld [vmem:[%s1809 + $0x728] sm:$0xff]
        %v2118 = vld [vmem:[%s1809 + $0x730] sm:$0xff]
        %v2119 = vld [vmem:[%s1809 + $0x738] sm:$0xff]
        %v2120 = vld [vmem:[%s1809 + $0x740] sm:$0xff]
        %v2121 = vld [vmem:[%s1809 + $0x748] sm:$0xff]
        %v2122 = vld [vmem:[%s1809 + $0x750] sm:$0xff]
        %v2123 = vld [vmem:[%s1809 + $0x758] sm:$0xff]
        %v2124 = vld [vmem:[%s1809 + $0x760] sm:$0xff]
        %v2125 = vld [vmem:[%s1809 + $0x768] sm:$0xff]
        %v2126 = vld [vmem:[%s1809 + $0x770] sm:$0xff]
        %v2127 = vld [vmem:[%s1809 + $0x778] sm:$0xff]
        %v2128 = vld [vmem:[%s1809 + $0x780] sm:$0xff]
        %v2129 = vld [vmem:[%s1809 + $0x788] sm:$0xff]
        %v2130 = vld [vmem:[%s1809 + $0x790] sm:$0xff]
        %v2131 = vld [vmem:[%s1809 + $0x798] sm:$0xff]
        %v2132 = vld [vmem:[%s1809 + $0x7a0] sm:$0xff]
        %v2133 = vld [vmem:[%s1809 + $0x7a8] sm:$0xff]
        %v2134 = vld [vmem:[%s1809 + $0x7b0] sm:$0xff]
        %v2135 = vld [vmem:[%s1809 + $0x7b8] sm:$0xff]
        %v2136 = vld [vmem:[%s1809 + $0x7c0] sm:$0xff]
        %v2137 = vld [vmem:[%s1809 + $0x7c8] sm:$0xff]
        %v2138 = vld [vmem:[%s1809 + $0x7d0] sm:$0xff]
        %v2139 = vld [vmem:[%s1809 + $0x7d8] sm:$0xff]
        %v2140 = vld [vmem:[%s1809 + $0x7e0] sm:$0xff]
        %v2141 = vld [vmem:[%s1809 + $0x7e8] sm:$0xff]
        %v2142 = vld [vmem:[%s1809 + $0x7f0] sm:$0xff]
        %v2143 = vld [vmem:[%s1809 + $0x7f8] sm:$0xff]
        %v2144 = vld [vmem:[%s1809 + $0x800] sm:$0xff]
        %v2145 = vld [vmem:[%s1809 + $0x808] sm:$0xff]
        %v2146 = vld [vmem:[%s1809 + $0x810] sm:$0xff]
        %v2147 = vld [vmem:[%s1809 + $0x818] sm:$0xff]
        %v2148 = vld [vmem:[%s1809 + $0x820] sm:$0xff]
        %v2149 = vld [vmem:[%s1809 + $0x828] sm:$0xff]
        %v2150 = vld [vmem:[%s1809 + $0x830] sm:$0xff]
        %v2151 = vld [vmem:[%s1809 + $0x838] sm:$0xff]
        %v2152 = vld [vmem:[%s1809 + $0x840] sm:$0xff]
        %v2153 = vld [vmem:[%s1809 + $0x848] sm:$0xff]
        %v2154 = vld [vmem:[%s1809 + $0x850] sm:$0xff]
        %v2155 = vld [vmem:[%s1809 + $0x858] sm:$0xff]
        %v2156 = vld [vmem:[%s1809 + $0x860] sm:$0xff]
        %v2157 = vld [vmem:[%s1809 + $0x868] sm:$0xff]
        %v2158 = vld [vmem:[%s1809 + $0x870] sm:$0xff]
        %v2159 = vld [vmem:[%s1809 + $0x878] sm:$0xff]
        %v2160 = vld [vmem:[%s1809 + $0x880] sm:$0xff]
        %v2161 = vld [vmem:[%s1809 + $0x888] sm:$0xff]
        %v2162 = vld [vmem:[%s1809 + $0x890] sm:$0xff]
        %v2163 = vld [vmem:[%s1809 + $0x898] sm:$0xff]
        %v2164 = vld [vmem:[%s1809 + $0x8a0] sm:$0xff]
        %v2165 = vld [vmem:[%s1809 + $0x8a8] sm:$0xff]
        %v2166 = vld [vmem:[%s1809 + $0x8b0] sm:$0xff]
        %v2167 = vld [vmem:[%s1809 + $0x8b8] sm:$0xff]
        %v2168 = vld [vmem:[%s1809 + $0x8c0] sm:$0xff]
        %v2169 = vld [vmem:[%s1809 + $0x8c8] sm:$0xff]
        %v2170 = vld [vmem:[%s1809 + $0x8d0] sm:$0xff]
        %v2171 = vld [vmem:[%s1809 + $0x8d8] sm:$0xff]
        %v2172 = vld [vmem:[%s1809 + $0x8e0] sm:$0xff]
        %v2173 = vld [vmem:[%s1809 + $0x8e8] sm:$0xff]
        %v2174 = vld [vmem:[%s1809 + $0x8f0] sm:$0xff]
        %v2175 = vld [vmem:[%s1809 + $0x8f8] sm:$0xff]
        %v2176 = vld [vmem:[%s1809 + $0x900] sm:$0xff]
        %v2177 = vld [vmem:[%s1809 + $0x908] sm:$0xff]
        %v2178 = vld [vmem:[%s1809 + $0x910] sm:$0xff]
        %v2179 = vld [vmem:[%s1809 + $0x918] sm:$0xff]
        %v2180 = vld [vmem:[%s1809 + $0x920] sm:$0xff]
        %v2181 = vld [vmem:[%s1809 + $0x928] sm:$0xff]
        %v2182 = vld [vmem:[%s1809 + $0x930] sm:$0xff]
        %v2183 = vld [vmem:[%s1809 + $0x938] sm:$0xff]
        %v2184 = vld [vmem:[%s1809 + $0x940] sm:$0xff]
        %v2185 = vld [vmem:[%s1809 + $0x948] sm:$0xff]
        %v2186 = vld [vmem:[%s1809 + $0x950] sm:$0xff]
        %v2187 = vld [vmem:[%s1809 + $0x958] sm:$0xff]
        %v2188 = vld [vmem:[%s1809 + $0x960] sm:$0xff]
        %v2189 = vld [vmem:[%s1809 + $0x968] sm:$0xff]
        %v2190 = vld [vmem:[%s1809 + $0x970] sm:$0xff]
        %v2191 = vld [vmem:[%s1809 + $0x978] sm:$0xff]
        %v2192 = vld [vmem:[%s1809 + $0x980] sm:$0xff]
        %v2193 = vld [vmem:[%s1809 + $0x988] sm:$0xff]
        %v2194 = vld [vmem:[%s1809 + $0x990] sm:$0xff]
        %v2195 = vld [vmem:[%s1809 + $0x998] sm:$0xff]
        %v2196 = vld [vmem:[%s1809 + $0x9a0] sm:$0xff]
        %v2197 = vld [vmem:[%s1809 + $0x9a8] sm:$0xff]
        %v2198 = vld [vmem:[%s1809 + $0x9b0] sm:$0xff]
        %v2199 = vld [vmem:[%s1809 + $0x9b8] sm:$0xff]
        %v2200 = vld [vmem:[%s1809 + $0x9c0] sm:$0xff]
        %v2201 = vld [vmem:[%s1809 + $0x9c8] sm:$0xff]
        %v2202 = vld [vmem:[%s1809 + $0x9d0] sm:$0xff]
        %v2203 = vld [vmem:[%s1809 + $0x9d8] sm:$0xff]
        %v2204 = vld [vmem:[%s1809 + $0x9e0] sm:$0xff]
        %v2205 = vld [vmem:[%s1809 + $0x9e8] sm:$0xff]
        %v2206 = vld [vmem:[%s1809 + $0x9f0] sm:$0xff]
        %v2207 = vld [vmem:[%s1809 + $0x9f8] sm:$0xff]
        %v2208 = vld [vmem:[%s1809 + $0xa00] sm:$0xff]
        %v2209 = vld [vmem:[%s1809 + $0xa08] sm:$0xff]
        %v2210 = vld [vmem:[%s1809 + $0xa10] sm:$0xff]
        %v2211 = vld [vmem:[%s1809 + $0xa18] sm:$0xff]
        %v2212 = vld [vmem:[%s1809 + $0xa20] sm:$0xff]
        %v2213 = vld [vmem:[%s1809 + $0xa28] sm:$0xff]
        %v2214 = vld [vmem:[%s1809 + $0xa30] sm:$0xff]
        %v2215 = vld [vmem:[%s1809 + $0xa38] sm:$0xff]
        %v2216 = vld [vmem:[%s1809 + $0xa40] sm:$0xff]
        %v2217 = vld [vmem:[%s1809 + $0xa48] sm:$0xff]
        %v2218 = vld [vmem:[%s1809 + $0xa50] sm:$0xff]
        %v2219 = vld [vmem:[%s1809 + $0xa58] sm:$0xff]
        %v2220 = vld [vmem:[%s1809 + $0xa60] sm:$0xff]
        %v2221 = vld [vmem:[%s1809 + $0xa68] sm:$0xff]
        %v2222 = vld [vmem:[%s1809 + $0xa70] sm:$0xff]
        %v2223 = vld [vmem:[%s1809 + $0xa78] sm:$0xff]
        %v2224 = vld [vmem:[%s1809 + $0xa80] sm:$0xff]
        %v2225 = vld [vmem:[%s1809 + $0xa88] sm:$0xff]
        %v2226 = vld [vmem:[%s1809 + $0xa90] sm:$0xff]
        %v2227 = vld [vmem:[%s1809 + $0xa98] sm:$0xff]
        %v2228 = vld [vmem:[%s1809 + $0xaa0] sm:$0xff]
        %v2229 = vld [vmem:[%s1809 + $0xaa8] sm:$0xff]
        %v2230 = vld [vmem:[%s1809 + $0xab0] sm:$0xff]
        %v2231 = vld [vmem:[%s1809 + $0xab8] sm:$0xff]
        %v2232 = vld [vmem:[%s1809 + $0xac0] sm:$0xff]
        %v2233 = vld [vmem:[%s1809 + $0xac8] sm:$0xff]
        %v2234 = vld [vmem:[%s1809 + $0xad0] sm:$0xff]
        %v2235 = vld [vmem:[%s1809 + $0xad8] sm:$0xff]
        %v2236 = vld [vmem:[%s1809 + $0xae0] sm:$0xff]
        %v2237 = vld [vmem:[%s1809 + $0xae8] sm:$0xff]
        %v2238 = vld [vmem:[%s1809 + $0xaf0] sm:$0xff]
        %v2239 = vld [vmem:[%s1809 + $0xaf8] sm:$0xff]
        %v2240 = vld [vmem:[%s1809 + $0xb00] sm:$0xff]
        %v2241 = vld [vmem:[%s1809 + $0xb08] sm:$0xff]
        %v2242 = vld [vmem:[%s1809 + $0xb10] sm:$0xff]
        %v2243 = vld [vmem:[%s1809 + $0xb18] sm:$0xff]
        %v2244 = vld [vmem:[%s1809 + $0xb20] sm:$0xff]
        %v2245 = vld [vmem:[%s1809 + $0xb28] sm:$0xff]
        %v2246 = vld [vmem:[%s1809 + $0xb30] sm:$0xff]
        %v2247 = vld [vmem:[%s1809 + $0xb38] sm:$0xff]
        %v2248 = vld [vmem:[%s1809 + $0xb40] sm:$0xff]
        %v2249 = vld [vmem:[%s1809 + $0xb48] sm:$0xff]
        %v2250 = vld [vmem:[%s1809 + $0xb50] sm:$0xff]
        %v2251 = vld [vmem:[%s1809 + $0xb58] sm:$0xff]
        %v2252 = vld [vmem:[%s1809 + $0xb60] sm:$0xff]
        %v2253 = vld [vmem:[%s1809 + $0xb68] sm:$0xff]
        %v2254 = vld [vmem:[%s1809 + $0xb70] sm:$0xff]
        %v2255 = vld [vmem:[%s1809 + $0xb78] sm:$0xff]
        %v2256 = vld [vmem:[%s1809 + $0xb80] sm:$0xff]
        %v2257 = vld [vmem:[%s1809 + $0xb88] sm:$0xff]
        %v2258 = vld [vmem:[%s1809 + $0xb90] sm:$0xff]
        %v2259 = vld [vmem:[%s1809 + $0xb98] sm:$0xff]
        %v2260 = vld [vmem:[%s1809 + $0xba0] sm:$0xff]
        %v2261 = vld [vmem:[%s1809 + $0xba8] sm:$0xff]
        %v2262 = vld [vmem:[%s1809 + $0xbb0] sm:$0xff]
        %v2263 = vld [vmem:[%s1809 + $0xbb8] sm:$0xff]
        %v2264 = vld [vmem:[%s1809 + $0xbc0] sm:$0xff]
        %v2265 = vld [vmem:[%s1809 + $0xbc8] sm:$0xff]
        %v2266 = vld [vmem:[%s1809 + $0xbd0] sm:$0xff]
        %v2267 = vld [vmem:[%s1809 + $0xbd8] sm:$0xff]
        %v2268 = vld [vmem:[%s1809 + $0xbe0] sm:$0xff]
        %v2269 = vld [vmem:[%s1809 + $0xbe8] sm:$0xff]
        %v2270 = vld [vmem:[%s1809 + $0xbf0] sm:$0xff]
        %v2271 = vld [vmem:[%s1809 + $0xbf8] sm:$0xff]
        %v2272 = vld [vmem:[%s1809 + $0xc00] sm:$0xff]
        %v2273 = vld [vmem:[%s1809 + $0xc08] sm:$0xff]
        %v2274 = vld [vmem:[%s1809 + $0xc10] sm:$0xff]
        %v2275 = vld [vmem:[%s1809 + $0xc18] sm:$0xff]
        %v2276 = vld [vmem:[%s1809 + $0xc20] sm:$0xff]
        %v2277 = vld [vmem:[%s1809 + $0xc28] sm:$0xff]
        %v2278 = vld [vmem:[%s1809 + $0xc30] sm:$0xff]
        %v2279 = vld [vmem:[%s1809 + $0xc38] sm:$0xff]
        %v2280 = vld [vmem:[%s1809 + $0xc40] sm:$0xff]
        %v2281 = vld [vmem:[%s1809 + $0xc48] sm:$0xff]
        %v2282 = vld [vmem:[%s1809 + $0xc50] sm:$0xff]
        %v2283 = vld [vmem:[%s1809 + $0xc58] sm:$0xff]
        %v2284 = vld [vmem:[%s1809 + $0xc60] sm:$0xff]
        %v2285 = vld [vmem:[%s1809 + $0xc68] sm:$0xff]
        %v2286 = vld [vmem:[%s1809 + $0xc70] sm:$0xff]
        %v2287 = vld [vmem:[%s1809 + $0xc78] sm:$0xff]
        %v2288 = vld [vmem:[%s1809 + $0xc80] sm:$0xff]
        %v2289 = vld [vmem:[%s1809 + $0xc88] sm:$0xff]
        %v2290 = vld [vmem:[%s1809 + $0xc90] sm:$0xff]
        %v2291 = vld [vmem:[%s1809 + $0xc98] sm:$0xff]
        %v2292 = vld [vmem:[%s1809 + $0xca0] sm:$0xff]
        %v2293 = vld [vmem:[%s1809 + $0xca8] sm:$0xff]
        %v2294 = vld [vmem:[%s1809 + $0xcb0] sm:$0xff]
        %v2295 = vld [vmem:[%s1809 + $0xcb8] sm:$0xff]
        %v2296 = vld [vmem:[%s1809 + $0xcc0] sm:$0xff]
        %v2297 = vld [vmem:[%s1809 + $0xcc8] sm:$0xff]
        %v2298 = vld [vmem:[%s1809 + $0xcd0] sm:$0xff]
        %v2299 = vld [vmem:[%s1809 + $0xcd8] sm:$0xff]
        %v2300 = vld [vmem:[%s1809 + $0xce0] sm:$0xff]
        %v2301 = vld [vmem:[%s1809 + $0xce8] sm:$0xff]
        %v2302 = vld [vmem:[%s1809 + $0xcf0] sm:$0xff]
        %v2303 = vld [vmem:[%s1809 + $0xcf8] sm:$0xff]
        %v2304 = vld [vmem:[%s1809 + $0xd00] sm:$0xff]
        %v2305 = vld [vmem:[%s1809 + $0xd08] sm:$0xff]
        %v2306 = vld [vmem:[%s1809 + $0xd10] sm:$0xff]
        %v2307 = vld [vmem:[%s1809 + $0xd18] sm:$0xff]
        %v2308 = vld [vmem:[%s1809 + $0xd20] sm:$0xff]
        %v2309 = vld [vmem:[%s1809 + $0xd28] sm:$0xff]
        %v2310 = vld [vmem:[%s1809 + $0xd30] sm:$0xff]
        %v2311 = vld [vmem:[%s1809 + $0xd38] sm:$0xff]
        %v2312 = vld [vmem:[%s1809 + $0xd40] sm:$0xff]
        %v2313 = vld [vmem:[%s1809 + $0xd48] sm:$0xff]
        %v2314 = vld [vmem:[%s1809 + $0xd50] sm:$0xff]
        %v2315 = vld [vmem:[%s1809 + $0xd58] sm:$0xff]
        %v2316 = vld [vmem:[%s1809 + $0xd60] sm:$0xff]
        %v2317 = vld [vmem:[%s1809 + $0xd68] sm:$0xff]
        %v2318 = vld [vmem:[%s1809 + $0xd70] sm:$0xff]
        %v2319 = vld [vmem:[%s1809 + $0xd78] sm:$0xff]
        %v2320 = vld [vmem:[%s1809 + $0xd80] sm:$0xff]
        %v2321 = vld [vmem:[%s1809 + $0xd88] sm:$0xff]
        %v2322 = vld [vmem:[%s1809 + $0xd90] sm:$0xff]
        %v2323 = vld [vmem:[%s1809 + $0xd98] sm:$0xff]
        %v2324 = vld [vmem:[%s1809 + $0xda0] sm:$0xff]
        %v2325 = vld [vmem:[%s1809 + $0xda8] sm:$0xff]
        %v2326 = vld [vmem:[%s1809 + $0xdb0] sm:$0xff]
        %v2327 = vld [vmem:[%s1809 + $0xdb8] sm:$0xff]
        %v2328 = vld [vmem:[%s1809 + $0xdc0] sm:$0xff]
        %v2329 = vld [vmem:[%s1809 + $0xdc8] sm:$0xff]
        %v2330 = vld [vmem:[%s1809 + $0xdd0] sm:$0xff]
        %v2331 = vld [vmem:[%s1809 + $0xdd8] sm:$0xff]
        %v2332 = vld [vmem:[%s1809 + $0xde0] sm:$0xff]
        %v2333 = vld [vmem:[%s1809 + $0xde8] sm:$0xff]
        %v2334 = vld [vmem:[%s1809 + $0xdf0] sm:$0xff]
        %v2335 = vld [vmem:[%s1809 + $0xdf8] sm:$0xff]
        %v2336 = vld [vmem:[%s1809 + $0xe00] sm:$0xff]
        %v2337 = vld [vmem:[%s1809 + $0xe08] sm:$0xff]
        %v2338 = vld [vmem:[%s1809 + $0xe10] sm:$0xff]
        %v2339 = vld [vmem:[%s1809 + $0xe18] sm:$0xff]
        %v2340 = vld [vmem:[%s1809 + $0xe20] sm:$0xff]
        %v2341 = vld [vmem:[%s1809 + $0xe28] sm:$0xff]
        %v2342 = vld [vmem:[%s1809 + $0xe30] sm:$0xff]
        %v2343 = vld [vmem:[%s1809 + $0xe38] sm:$0xff]
        %v2344 = vld [vmem:[%s1809 + $0xe40] sm:$0xff]
        %v2345 = vld [vmem:[%s1809 + $0xe48] sm:$0xff]
        %v2346 = vld [vmem:[%s1809 + $0xe50] sm:$0xff]
        %v2347 = vld [vmem:[%s1809 + $0xe58] sm:$0xff]
        %v2348 = vld [vmem:[%s1809 + $0xe60] sm:$0xff]
        %v2349 = vld [vmem:[%s1809 + $0xe68] sm:$0xff]
        %v2350 = vld [vmem:[%s1809 + $0xe70] sm:$0xff]
        %v2351 = vld [vmem:[%s1809 + $0xe78] sm:$0xff]
        %v2352 = vld [vmem:[%s1809 + $0xe80] sm:$0xff]
        %v2353 = vld [vmem:[%s1809 + $0xe88] sm:$0xff]
        %v2354 = vld [vmem:[%s1809 + $0xe90] sm:$0xff]
        %v2355 = vld [vmem:[%s1809 + $0xe98] sm:$0xff]
        %v2356 = vld [vmem:[%s1809 + $0xea0] sm:$0xff]
        %v2357 = vld [vmem:[%s1809 + $0xea8] sm:$0xff]
        %v2358 = vld [vmem:[%s1809 + $0xeb0] sm:$0xff]
        %v2359 = vld [vmem:[%s1809 + $0xeb8] sm:$0xff]
        %v2360 = vld [vmem:[%s1809 + $0xec0] sm:$0xff]
        %v2361 = vld [vmem:[%s1809 + $0xec8] sm:$0xff]
        %v2362 = vld [vmem:[%s1809 + $0xed0] sm:$0xff]
        %v2363 = vld [vmem:[%s1809 + $0xed8] sm:$0xff]
        %v2364 = vld [vmem:[%s1809 + $0xee0] sm:$0xff]
        %v2365 = vld [vmem:[%s1809 + $0xee8] sm:$0xff]
        %v2366 = vld [vmem:[%s1809 + $0xef0] sm:$0xff]
        %v2367 = vld [vmem:[%s1809 + $0xef8] sm:$0xff]
        %v2368 = vld [vmem:[%s1809 + $0xf00] sm:$0xff]
        %v2369 = vld [vmem:[%s1809 + $0xf08] sm:$0xff]
        %v2370 = vld [vmem:[%s1809 + $0xf10] sm:$0xff]
        %v2371 = vld [vmem:[%s1809 + $0xf18] sm:$0xff]
        %v2372 = vld [vmem:[%s1809 + $0xf20] sm:$0xff]
        %v2373 = vld [vmem:[%s1809 + $0xf28] sm:$0xff]
        %v2374 = vld [vmem:[%s1809 + $0xf30] sm:$0xff]
        %v2375 = vld [vmem:[%s1809 + $0xf38] sm:$0xff]
        %v2376 = vld [vmem:[%s1809 + $0xf40] sm:$0xff]
        %v2377 = vld [vmem:[%s1809 + $0xf48] sm:$0xff]
        %v2378 = vld [vmem:[%s1809 + $0xf50] sm:$0xff]
        %v2379 = vld [vmem:[%s1809 + $0xf58] sm:$0xff]
        %v2380 = vld [vmem:[%s1809 + $0xf60] sm:$0xff]
        %v2381 = vld [vmem:[%s1809 + $0xf68] sm:$0xff]
        %v2382 = vld [vmem:[%s1809 + $0xf70] sm:$0xff]
        %v2383 = vld [vmem:[%s1809 + $0xf78] sm:$0xff]
        %v2384 = vld [vmem:[%s1809 + $0xf80] sm:$0xff]
        %v2385 = vld [vmem:[%s1809 + $0xf88] sm:$0xff]
        %v2386 = vld [vmem:[%s1809 + $0xf90] sm:$0xff]
        %v2387 = vld [vmem:[%s1809 + $0xf98] sm:$0xff]
        %v2388 = vld [vmem:[%s1809 + $0xfa0] sm:$0xff]
        %v2389 = vld [vmem:[%s1809 + $0xfa8] sm:$0xff]
        %v2390 = vld [vmem:[%s1809 + $0xfb0] sm:$0xff]
        %v2391 = vld [vmem:[%s1809 + $0xfb8] sm:$0xff]
        %v2392 = vld [vmem:[%s1809 + $0xfc0] sm:$0xff]
        %v2393 = vld [vmem:[%s1809 + $0xfc8] sm:$0xff]
        %v2394 = vld [vmem:[%s1809 + $0xfd0] sm:$0xff]
        %v2395 = vld [vmem:[%s1809 + $0xfd8] sm:$0xff]
        %v2396 = vld [vmem:[%s1809 + $0xfe0] sm:$0xff]
        %v2397 = vld [vmem:[%s1809 + $0xfe8] sm:$0xff]
        %v2398 = vld [vmem:[%s1809 + $0xff0] sm:$0xff]
        %v2399 = vld [vmem:[%s1809 + $0xff8] sm:$0xff]
        %v2408 = vunpack.c.l.b16 %v1880
        %v2409 = vunpack.c.h.b16 %v1880
        %v2410 = vunpack.c.l.b16 %v1881
        %v2411 = vunpack.c.h.b16 %v1881
        %v2412 = vunpack.c.l.b16 %v1882
        %v2413 = vunpack.c.h.b16 %v1882
        %v2414 = vunpack.c.l.b16 %v1883
        %v2415 = vunpack.c.h.b16 %v1883
        %v2416 = vunpack.c.l.b16 %v1884
        %v2417 = vunpack.c.h.b16 %v1884
        %v2418 = vunpack.c.l.b16 %v1885
        %v2419 = vunpack.c.h.b16 %v1885
        %v2420 = vunpack.c.l.b16 %v1886
        %v2421 = vunpack.c.h.b16 %v1886
        %v2422 = vunpack.c.l.b16 %v1887
        %v2423 = vunpack.c.h.b16 %v1887
        %v2424 = vpack.c.b16 %v2408, %v2408
        %v2425 = vpack.c.b16 %v2409, %v2409
        %v2426 = vpack.c.b16 %v2410, %v2410
        %v2427 = vpack.c.b16 %v2411, %v2411
        %v2428 = vpack.c.b16 %v2412, %v2412
        %v2429 = vpack.c.b16 %v2413, %v2413
        %v2430 = vpack.c.b16 %v2414, %v2414
        %v2431 = vpack.c.b16 %v2415, %v2415
        %v2432 = vpack.c.b16 %v2416, %v2416
        %v2433 = vpack.c.b16 %v2417, %v2417
        %v2434 = vpack.c.b16 %v2418, %v2418
        %v2435 = vpack.c.b16 %v2419, %v2419
        %v2436 = vpack.c.b16 %v2420, %v2420
        %v2437 = vpack.c.b16 %v2421, %v2421
        %v2438 = vpack.c.b16 %v2422, %v2422
        %v2439 = vpack.c.b16 %v2423, %v2423
        %v2968 = vunpack.c.l.b16 %v1888
        %v2969 = vunpack.c.h.b16 %v1888
        %v2970 = vunpack.c.l.b16 %v1889
        %v2971 = vunpack.c.h.b16 %v1889
        %v2972 = vunpack.c.l.b16 %v1890
        %v2973 = vunpack.c.h.b16 %v1890
        %v2974 = vunpack.c.l.b16 %v1891
        %v2975 = vunpack.c.h.b16 %v1891
        %v2976 = vunpack.c.l.b16 %v1892
        %v2977 = vunpack.c.h.b16 %v1892
        %v2978 = vunpack.c.l.b16 %v1893
        %v2979 = vunpack.c.h.b16 %v1893
        %v2980 = vunpack.c.l.b16 %v1894
        %v2981 = vunpack.c.h.b16 %v1894
        %v2982 = vunpack.c.l.b16 %v1895
        %v2983 = vunpack.c.h.b16 %v1895
        %v2984 = vunpack.c.l.b16 %v1896
        %v2985 = vunpack.c.h.b16 %v1896
        %v2986 = vunpack.c.l.b16 %v1897
        %v2987 = vunpack.c.h.b16 %v1897
        %v2988 = vunpack.c.l.b16 %v1898
        %v2989 = vunpack.c.h.b16 %v1898
        %v2990 = vunpack.c.l.b16 %v1899
        %v2991 = vunpack.c.h.b16 %v1899
        %v2992 = vunpack.c.l.b16 %v1900
        %v2993 = vunpack.c.h.b16 %v1900
        %v2994 = vunpack.c.l.b16 %v1901
        %v2995 = vunpack.c.h.b16 %v1901
        %v2996 = vunpack.c.l.b16 %v1902
        %v2997 = vunpack.c.h.b16 %v1902
        %v2998 = vunpack.c.l.b16 %v1903
        %v2999 = vunpack.c.h.b16 %v1903
        %v3000 = vunpack.c.l.b16 %v1904
        %v3001 = vunpack.c.h.b16 %v1904
        %v3002 = vunpack.c.l.b16 %v1905
        %v3003 = vunpack.c.h.b16 %v1905
        %v3004 = vunpack.c.l.b16 %v1906
        %v3005 = vunpack.c.h.b16 %v1906
        %v3006 = vunpack.c.l.b16 %v1907
        %v3007 = vunpack.c.h.b16 %v1907
        %v3008 = vunpack.c.l.b16 %v1908
        %v3009 = vunpack.c.h.b16 %v1908
        %v3010 = vunpack.c.l.b16 %v1909
        %v3011 = vunpack.c.h.b16 %v1909
        %v3012 = vunpack.c.l.b16 %v1910
        %v3013 = vunpack.c.h.b16 %v1910
        %v3014 = vunpack.c.l.b16 %v1911
        %v3015 = vunpack.c.h.b16 %v1911
        %v3016 = vunpack.c.l.b16 %v1912
        %v3017 = vunpack.c.h.b16 %v1912
        %v3018 = vunpack.c.l.b16 %v1913
        %v3019 = vunpack.c.h.b16 %v1913
        %v3020 = vunpack.c.l.b16 %v1914
        %v3021 = vunpack.c.h.b16 %v1914
        %v3022 = vunpack.c.l.b16 %v1915
        %v3023 = vunpack.c.h.b16 %v1915
        %v3024 = vunpack.c.l.b16 %v1916
        %v3025 = vunpack.c.h.b16 %v1916
        %v3026 = vunpack.c.l.b16 %v1917
        %v3027 = vunpack.c.h.b16 %v1917
        %v3028 = vunpack.c.l.b16 %v1918
        %v3029 = vunpack.c.h.b16 %v1918
        %v3030 = vunpack.c.l.b16 %v1919
        %v3031 = vunpack.c.h.b16 %v1919
        %v3032 = vunpack.c.l.b16 %v1920
        %v3033 = vunpack.c.h.b16 %v1920
        %v3034 = vunpack.c.l.b16 %v1921
        %v3035 = vunpack.c.h.b16 %v1921
        %v3036 = vunpack.c.l.b16 %v1922
        %v3037 = vunpack.c.h.b16 %v1922
        %v3038 = vunpack.c.l.b16 %v1923
        %v3039 = vunpack.c.h.b16 %v1923
        %v3040 = vunpack.c.l.b16 %v1924
        %v3041 = vunpack.c.h.b16 %v1924
        %v3042 = vunpack.c.l.b16 %v1925
        %v3043 = vunpack.c.h.b16 %v1925
        %v3044 = vunpack.c.l.b16 %v1926
        %v3045 = vunpack.c.h.b16 %v1926
        %v3046 = vunpack.c.l.b16 %v1927
        %v3047 = vunpack.c.h.b16 %v1927
        %v3048 = vunpack.c.l.b16 %v1928
        %v3049 = vunpack.c.h.b16 %v1928
        %v3050 = vunpack.c.l.b16 %v1929
        %v3051 = vunpack.c.h.b16 %v1929
        %v3052 = vunpack.c.l.b16 %v1930
        %v3053 = vunpack.c.h.b16 %v1930
        %v3054 = vunpack.c.l.b16 %v1931
        %v3055 = vunpack.c.h.b16 %v1931
        %v3056 = vunpack.c.l.b16 %v1932
        %v3057 = vunpack.c.h.b16 %v1932
        %v3058 = vunpack.c.l.b16 %v1933
        %v3059 = vunpack.c.h.b16 %v1933
        %v3060 = vunpack.c.l.b16 %v1934
        %v3061 = vunpack.c.h.b16 %v1934
        %v3062 = vunpack.c.l.b16 %v1935
        %v3063 = vunpack.c.h.b16 %v1935
        %v3064 = vunpack.c.l.b16 %v1936
        %v3065 = vunpack.c.h.b16 %v1936
        %v3066 = vunpack.c.l.b16 %v1937
        %v3067 = vunpack.c.h.b16 %v1937
        %v3068 = vunpack.c.l.b16 %v1938
        %v3069 = vunpack.c.h.b16 %v1938
        %v3070 = vunpack.c.l.b16 %v1939
        %v3071 = vunpack.c.h.b16 %v1939
        %v3072 = vunpack.c.l.b16 %v1940
        %v3073 = vunpack.c.h.b16 %v1940
        %v3074 = vunpack.c.l.b16 %v1941
        %v3075 = vunpack.c.h.b16 %v1941
        %v3076 = vunpack.c.l.b16 %v1942
        %v3077 = vunpack.c.h.b16 %v1942
        %v3078 = vunpack.c.l.b16 %v1943
        %v3079 = vunpack.c.h.b16 %v1943
        %v3080 = vunpack.c.l.b16 %v1944
        %v3081 = vunpack.c.h.b16 %v1944
        %v3082 = vunpack.c.l.b16 %v1945
        %v3083 = vunpack.c.h.b16 %v1945
        %v3084 = vunpack.c.l.b16 %v1946
        %v3085 = vunpack.c.h.b16 %v1946
        %v3086 = vunpack.c.l.b16 %v1947
        %v3087 = vunpack.c.h.b16 %v1947
        %v3088 = vunpack.c.l.b16 %v1948
        %v3089 = vunpack.c.h.b16 %v1948
        %v3090 = vunpack.c.l.b16 %v1949
        %v3091 = vunpack.c.h.b16 %v1949
        %v3092 = vunpack.c.l.b16 %v1950
        %v3093 = vunpack.c.h.b16 %v1950
        %v3094 = vunpack.c.l.b16 %v1951
        %v3095 = vunpack.c.h.b16 %v1951
        %v3096 = vunpack.c.l.b16 %v1952
        %v3097 = vunpack.c.h.b16 %v1952
        %v3098 = vunpack.c.l.b16 %v1953
        %v3099 = vunpack.c.h.b16 %v1953
        %v3100 = vunpack.c.l.b16 %v1954
        %v3101 = vunpack.c.h.b16 %v1954
        %v3102 = vunpack.c.l.b16 %v1955
        %v3103 = vunpack.c.h.b16 %v1955
        %v3104 = vunpack.c.l.b16 %v1956
        %v3105 = vunpack.c.h.b16 %v1956
        %v3106 = vunpack.c.l.b16 %v1957
        %v3107 = vunpack.c.h.b16 %v1957
        %v3108 = vunpack.c.l.b16 %v1958
        %v3109 = vunpack.c.h.b16 %v1958
        %v3110 = vunpack.c.l.b16 %v1959
        %v3111 = vunpack.c.h.b16 %v1959
        %v3112 = vunpack.c.l.b16 %v1960
        %v3113 = vunpack.c.h.b16 %v1960
        %v3114 = vunpack.c.l.b16 %v1961
        %v3115 = vunpack.c.h.b16 %v1961
        %v3116 = vunpack.c.l.b16 %v1962
        %v3117 = vunpack.c.h.b16 %v1962
        %v3118 = vunpack.c.l.b16 %v1963
        %v3119 = vunpack.c.h.b16 %v1963
        %v3120 = vunpack.c.l.b16 %v1964
        %v3121 = vunpack.c.h.b16 %v1964
        %v3122 = vunpack.c.l.b16 %v1965
        %v3123 = vunpack.c.h.b16 %v1965
        %v3124 = vunpack.c.l.b16 %v1966
        %v3125 = vunpack.c.h.b16 %v1966
        %v3126 = vunpack.c.l.b16 %v1967
        %v3127 = vunpack.c.h.b16 %v1967
        %v3128 = vunpack.c.l.b16 %v1968
        %v3129 = vunpack.c.h.b16 %v1968
        %v3130 = vunpack.c.l.b16 %v1969
        %v3131 = vunpack.c.h.b16 %v1969
        %v3132 = vunpack.c.l.b16 %v1970
        %v3133 = vunpack.c.h.b16 %v1970
        %v3134 = vunpack.c.l.b16 %v1971
        %v3135 = vunpack.c.h.b16 %v1971
        %v3136 = vunpack.c.l.b16 %v1972
        %v3137 = vunpack.c.h.b16 %v1972
        %v3138 = vunpack.c.l.b16 %v1973
        %v3139 = vunpack.c.h.b16 %v1973
        %v3140 = vunpack.c.l.b16 %v1974
        %v3141 = vunpack.c.h.b16 %v1974
        %v3142 = vunpack.c.l.b16 %v1975
        %v3143 = vunpack.c.h.b16 %v1975
        %v3144 = vunpack.c.l.b16 %v1976
        %v3145 = vunpack.c.h.b16 %v1976
        %v3146 = vunpack.c.l.b16 %v1977
        %v3147 = vunpack.c.h.b16 %v1977
        %v3148 = vunpack.c.l.b16 %v1978
        %v3149 = vunpack.c.h.b16 %v1978
        %v3150 = vunpack.c.l.b16 %v1979
        %v3151 = vunpack.c.h.b16 %v1979
        %v3152 = vunpack.c.l.b16 %v1980
        %v3153 = vunpack.c.h.b16 %v1980
        %v3154 = vunpack.c.l.b16 %v1981
        %v3155 = vunpack.c.h.b16 %v1981
        %v3156 = vunpack.c.l.b16 %v1982
        %v3157 = vunpack.c.h.b16 %v1982
        %v3158 = vunpack.c.l.b16 %v1983
        %v3159 = vunpack.c.h.b16 %v1983
        %v3160 = vunpack.c.l.b16 %v1984
        %v3161 = vunpack.c.h.b16 %v1984
        %v3162 = vunpack.c.l.b16 %v1985
        %v3163 = vunpack.c.h.b16 %v1985
        %v3164 = vunpack.c.l.b16 %v1986
        %v3165 = vunpack.c.h.b16 %v1986
        %v3166 = vunpack.c.l.b16 %v1987
        %v3167 = vunpack.c.h.b16 %v1987
        %v3168 = vunpack.c.l.b16 %v1988
        %v3169 = vunpack.c.h.b16 %v1988
        %v3170 = vunpack.c.l.b16 %v1989
        %v3171 = vunpack.c.h.b16 %v1989
        %v3172 = vunpack.c.l.b16 %v1990
        %v3173 = vunpack.c.h.b16 %v1990
        %v3174 = vunpack.c.l.b16 %v1991
        %v3175 = vunpack.c.h.b16 %v1991
        %v3176 = vunpack.c.l.b16 %v1992
        %v3177 = vunpack.c.h.b16 %v1992
        %v3178 = vunpack.c.l.b16 %v1993
        %v3179 = vunpack.c.h.b16 %v1993
        %v3180 = vunpack.c.l.b16 %v1994
        %v3181 = vunpack.c.h.b16 %v1994
        %v3182 = vunpack.c.l.b16 %v1995
        %v3183 = vunpack.c.h.b16 %v1995
        %v3184 = vunpack.c.l.b16 %v1996
        %v3185 = vunpack.c.h.b16 %v1996
        %v3186 = vunpack.c.l.b16 %v1997
        %v3187 = vunpack.c.h.b16 %v1997
        %v3188 = vunpack.c.l.b16 %v1998
        %v3189 = vunpack.c.h.b16 %v1998
        %v3190 = vunpack.c.l.b16 %v1999
        %v3191 = vunpack.c.h.b16 %v1999
        %v3192 = vunpack.c.l.b16 %v2000
        %v3193 = vunpack.c.h.b16 %v2000
        %v3194 = vunpack.c.l.b16 %v2001
        %v3195 = vunpack.c.h.b16 %v2001
        %v3196 = vunpack.c.l.b16 %v2002
        %v3197 = vunpack.c.h.b16 %v2002
        %v3198 = vunpack.c.l.b16 %v2003
        %v3199 = vunpack.c.h.b16 %v2003
        %v3200 = vunpack.c.l.b16 %v2004
        %v3201 = vunpack.c.h.b16 %v2004
        %v3202 = vunpack.c.l.b16 %v2005
        %v3203 = vunpack.c.h.b16 %v2005
        %v3204 = vunpack.c.l.b16 %v2006
        %v3205 = vunpack.c.h.b16 %v2006
        %v3206 = vunpack.c.l.b16 %v2007
        %v3207 = vunpack.c.h.b16 %v2007
        %v3208 = vunpack.c.l.b16 %v2008
        %v3209 = vunpack.c.h.b16 %v2008
        %v3210 = vunpack.c.l.b16 %v2009
        %v3211 = vunpack.c.h.b16 %v2009
        %v3212 = vunpack.c.l.b16 %v2010
        %v3213 = vunpack.c.h.b16 %v2010
        %v3214 = vunpack.c.l.b16 %v2011
        %v3215 = vunpack.c.h.b16 %v2011
        %v3216 = vunpack.c.l.b16 %v2012
        %v3217 = vunpack.c.h.b16 %v2012
        %v3218 = vunpack.c.l.b16 %v2013
        %v3219 = vunpack.c.h.b16 %v2013
        %v3220 = vunpack.c.l.b16 %v2014
        %v3221 = vunpack.c.h.b16 %v2014
        %v3222 = vunpack.c.l.b16 %v2015
        %v3223 = vunpack.c.h.b16 %v2015
        %v3224 = vunpack.c.l.b16 %v2016
        %v3225 = vunpack.c.h.b16 %v2016
        %v3226 = vunpack.c.l.b16 %v2017
        %v3227 = vunpack.c.h.b16 %v2017
        %v3228 = vunpack.c.l.b16 %v2018
        %v3229 = vunpack.c.h.b16 %v2018
        %v3230 = vunpack.c.l.b16 %v2019
        %v3231 = vunpack.c.h.b16 %v2019
        %v3232 = vunpack.c.l.b16 %v2020
        %v3233 = vunpack.c.h.b16 %v2020
        %v3234 = vunpack.c.l.b16 %v2021
        %v3235 = vunpack.c.h.b16 %v2021
        %v3236 = vunpack.c.l.b16 %v2022
        %v3237 = vunpack.c.h.b16 %v2022
        %v3238 = vunpack.c.l.b16 %v2023
        %v3239 = vunpack.c.h.b16 %v2023
        %v3240 = vunpack.c.l.b16 %v2024
        %v3241 = vunpack.c.h.b16 %v2024
        %v3242 = vunpack.c.l.b16 %v2025
        %v3243 = vunpack.c.h.b16 %v2025
        %v3244 = vunpack.c.l.b16 %v2026
        %v3245 = vunpack.c.h.b16 %v2026
        %v3246 = vunpack.c.l.b16 %v2027
        %v3247 = vunpack.c.h.b16 %v2027
        %v3248 = vunpack.c.l.b16 %v2028
        %v3249 = vunpack.c.h.b16 %v2028
        %v3250 = vunpack.c.l.b16 %v2029
        %v3251 = vunpack.c.h.b16 %v2029
        %v3252 = vunpack.c.l.b16 %v2030
        %v3253 = vunpack.c.h.b16 %v2030
        %v3254 = vunpack.c.l.b16 %v2031
        %v3255 = vunpack.c.h.b16 %v2031
        %v3256 = vunpack.c.l.b16 %v2032
        %v3257 = vunpack.c.h.b16 %v2032
        %v3258 = vunpack.c.l.b16 %v2033
        %v3259 = vunpack.c.h.b16 %v2033
        %v3260 = vunpack.c.l.b16 %v2034
        %v3261 = vunpack.c.h.b16 %v2034
        %v3262 = vunpack.c.l.b16 %v2035
        %v3263 = vunpack.c.h.b16 %v2035
        %v3264 = vunpack.c.l.b16 %v2036
        %v3265 = vunpack.c.h.b16 %v2036
        %v3266 = vunpack.c.l.b16 %v2037
        %v3267 = vunpack.c.h.b16 %v2037
        %v3268 = vunpack.c.l.b16 %v2038
        %v3269 = vunpack.c.h.b16 %v2038
        %v3270 = vunpack.c.l.b16 %v2039
        %v3271 = vunpack.c.h.b16 %v2039
        %v3272 = vunpack.c.l.b16 %v2040
        %v3273 = vunpack.c.h.b16 %v2040
        %v3274 = vunpack.c.l.b16 %v2041
        %v3275 = vunpack.c.h.b16 %v2041
        %v3276 = vunpack.c.l.b16 %v2042
        %v3277 = vunpack.c.h.b16 %v2042
        %v3278 = vunpack.c.l.b16 %v2043
        %v3279 = vunpack.c.h.b16 %v2043
        %v3280 = vunpack.c.l.b16 %v2044
        %v3281 = vunpack.c.h.b16 %v2044
        %v3282 = vunpack.c.l.b16 %v2045
        %v3283 = vunpack.c.h.b16 %v2045
        %v3284 = vunpack.c.l.b16 %v2046
        %v3285 = vunpack.c.h.b16 %v2046
        %v3286 = vunpack.c.l.b16 %v2047
        %v3287 = vunpack.c.h.b16 %v2047
        %v3288 = vunpack.c.l.b16 %v2048
        %v3289 = vunpack.c.h.b16 %v2048
        %v3290 = vunpack.c.l.b16 %v2049
        %v3291 = vunpack.c.h.b16 %v2049
        %v3292 = vunpack.c.l.b16 %v2050
        %v3293 = vunpack.c.h.b16 %v2050
        %v3294 = vunpack.c.l.b16 %v2051
        %v3295 = vunpack.c.h.b16 %v2051
        %v3296 = vunpack.c.l.b16 %v2052
        %v3297 = vunpack.c.h.b16 %v2052
        %v3298 = vunpack.c.l.b16 %v2053
        %v3299 = vunpack.c.h.b16 %v2053
        %v3300 = vunpack.c.l.b16 %v2054
        %v3301 = vunpack.c.h.b16 %v2054
        %v3302 = vunpack.c.l.b16 %v2055
        %v3303 = vunpack.c.h.b16 %v2055
        %v3304 = vunpack.c.l.b16 %v2056
        %v3305 = vunpack.c.h.b16 %v2056
        %v3306 = vunpack.c.l.b16 %v2057
        %v3307 = vunpack.c.h.b16 %v2057
        %v3308 = vunpack.c.l.b16 %v2058
        %v3309 = vunpack.c.h.b16 %v2058
        %v3310 = vunpack.c.l.b16 %v2059
        %v3311 = vunpack.c.h.b16 %v2059
        %v3312 = vunpack.c.l.b16 %v2060
        %v3313 = vunpack.c.h.b16 %v2060
        %v3314 = vunpack.c.l.b16 %v2061
        %v3315 = vunpack.c.h.b16 %v2061
        %v3316 = vunpack.c.l.b16 %v2062
        %v3317 = vunpack.c.h.b16 %v2062
        %v3318 = vunpack.c.l.b16 %v2063
        %v3319 = vunpack.c.h.b16 %v2063
        %v3320 = vunpack.c.l.b16 %v2064
        %v3321 = vunpack.c.h.b16 %v2064
        %v3322 = vunpack.c.l.b16 %v2065
        %v3323 = vunpack.c.h.b16 %v2065
        %v3324 = vunpack.c.l.b16 %v2066
        %v3325 = vunpack.c.h.b16 %v2066
        %v3326 = vunpack.c.l.b16 %v2067
        %v3327 = vunpack.c.h.b16 %v2067
        %v3328 = vunpack.c.l.b16 %v2068
        %v3329 = vunpack.c.h.b16 %v2068
        %v3330 = vunpack.c.l.b16 %v2069
        %v3331 = vunpack.c.h.b16 %v2069
        %v3332 = vunpack.c.l.b16 %v2070
        %v3333 = vunpack.c.h.b16 %v2070
        %v3334 = vunpack.c.l.b16 %v2071
        %v3335 = vunpack.c.h.b16 %v2071
        %v3336 = vunpack.c.l.b16 %v2072
        %v3337 = vunpack.c.h.b16 %v2072
        %v3338 = vunpack.c.l.b16 %v2073
        %v3339 = vunpack.c.h.b16 %v2073
        %v3340 = vunpack.c.l.b16 %v2074
        %v3341 = vunpack.c.h.b16 %v2074
        %v3342 = vunpack.c.l.b16 %v2075
        %v3343 = vunpack.c.h.b16 %v2075
        %v3344 = vunpack.c.l.b16 %v2076
        %v3345 = vunpack.c.h.b16 %v2076
        %v3346 = vunpack.c.l.b16 %v2077
        %v3347 = vunpack.c.h.b16 %v2077
        %v3348 = vunpack.c.l.b16 %v2078
        %v3349 = vunpack.c.h.b16 %v2078
        %v3350 = vunpack.c.l.b16 %v2079
        %v3351 = vunpack.c.h.b16 %v2079
        %v3352 = vunpack.c.l.b16 %v2080
        %v3353 = vunpack.c.h.b16 %v2080
        %v3354 = vunpack.c.l.b16 %v2081
        %v3355 = vunpack.c.h.b16 %v2081
        %v3356 = vunpack.c.l.b16 %v2082
        %v3357 = vunpack.c.h.b16 %v2082
        %v3358 = vunpack.c.l.b16 %v2083
        %v3359 = vunpack.c.h.b16 %v2083
        %v3360 = vunpack.c.l.b16 %v2084
        %v3361 = vunpack.c.h.b16 %v2084
        %v3362 = vunpack.c.l.b16 %v2085
        %v3363 = vunpack.c.h.b16 %v2085
        %v3364 = vunpack.c.l.b16 %v2086
        %v3365 = vunpack.c.h.b16 %v2086
        %v3366 = vunpack.c.l.b16 %v2087
        %v3367 = vunpack.c.h.b16 %v2087
        %v3368 = vunpack.c.l.b16 %v2088
        %v3369 = vunpack.c.h.b16 %v2088
        %v3370 = vunpack.c.l.b16 %v2089
        %v3371 = vunpack.c.h.b16 %v2089
        %v3372 = vunpack.c.l.b16 %v2090
        %v3373 = vunpack.c.h.b16 %v2090
        %v3374 = vunpack.c.l.b16 %v2091
        %v3375 = vunpack.c.h.b16 %v2091
        %v3376 = vunpack.c.l.b16 %v2092
        %v3377 = vunpack.c.h.b16 %v2092
        %v3378 = vunpack.c.l.b16 %v2093
        %v3379 = vunpack.c.h.b16 %v2093
        %v3380 = vunpack.c.l.b16 %v2094
        %v3381 = vunpack.c.h.b16 %v2094
        %v3382 = vunpack.c.l.b16 %v2095
        %v3383 = vunpack.c.h.b16 %v2095
        %v3384 = vunpack.c.l.b16 %v2096
        %v3385 = vunpack.c.h.b16 %v2096
        %v3386 = vunpack.c.l.b16 %v2097
        %v3387 = vunpack.c.h.b16 %v2097
        %v3388 = vunpack.c.l.b16 %v2098
        %v3389 = vunpack.c.h.b16 %v2098
        %v3390 = vunpack.c.l.b16 %v2099
        %v3391 = vunpack.c.h.b16 %v2099
        %v3392 = vunpack.c.l.b16 %v2100
        %v3393 = vunpack.c.h.b16 %v2100
        %v3394 = vunpack.c.l.b16 %v2101
        %v3395 = vunpack.c.h.b16 %v2101
        %v3396 = vunpack.c.l.b16 %v2102
        %v3397 = vunpack.c.h.b16 %v2102
        %v3398 = vunpack.c.l.b16 %v2103
        %v3399 = vunpack.c.h.b16 %v2103
        %v3400 = vunpack.c.l.b16 %v2104
        %v3401 = vunpack.c.h.b16 %v2104
        %v3402 = vunpack.c.l.b16 %v2105
        %v3403 = vunpack.c.h.b16 %v2105
        %v3404 = vunpack.c.l.b16 %v2106
        %v3405 = vunpack.c.h.b16 %v2106
        %v3406 = vunpack.c.l.b16 %v2107
        %v3407 = vunpack.c.h.b16 %v2107
        %v3408 = vunpack.c.l.b16 %v2108
        %v3409 = vunpack.c.h.b16 %v2108
        %v3410 = vunpack.c.l.b16 %v2109
        %v3411 = vunpack.c.h.b16 %v2109
        %v3412 = vunpack.c.l.b16 %v2110
        %v3413 = vunpack.c.h.b16 %v2110
        %v3414 = vunpack.c.l.b16 %v2111
        %v3415 = vunpack.c.h.b16 %v2111
        %v3416 = vunpack.c.l.b16 %v2112
        %v3417 = vunpack.c.h.b16 %v2112
        %v3418 = vunpack.c.l.b16 %v2113
        %v3419 = vunpack.c.h.b16 %v2113
        %v3420 = vunpack.c.l.b16 %v2114
        %v3421 = vunpack.c.h.b16 %v2114
        %v3422 = vunpack.c.l.b16 %v2115
        %v3423 = vunpack.c.h.b16 %v2115
        %v3424 = vunpack.c.l.b16 %v2116
        %v3425 = vunpack.c.h.b16 %v2116
        %v3426 = vunpack.c.l.b16 %v2117
        %v3427 = vunpack.c.h.b16 %v2117
        %v3428 = vunpack.c.l.b16 %v2118
        %v3429 = vunpack.c.h.b16 %v2118
        %v3430 = vunpack.c.l.b16 %v2119
        %v3431 = vunpack.c.h.b16 %v2119
        %v3432 = vunpack.c.l.b16 %v2120
        %v3433 = vunpack.c.h.b16 %v2120
        %v3434 = vunpack.c.l.b16 %v2121
        %v3435 = vunpack.c.h.b16 %v2121
        %v3436 = vunpack.c.l.b16 %v2122
        %v3437 = vunpack.c.h.b16 %v2122
        %v3438 = vunpack.c.l.b16 %v2123
        %v3439 = vunpack.c.h.b16 %v2123
        %v3440 = vunpack.c.l.b16 %v2124
        %v3441 = vunpack.c.h.b16 %v2124
        %v3442 = vunpack.c.l.b16 %v2125
        %v3443 = vunpack.c.h.b16 %v2125
        %v3444 = vunpack.c.l.b16 %v2126
        %v3445 = vunpack.c.h.b16 %v2126
        %v3446 = vunpack.c.l.b16 %v2127
        %v3447 = vunpack.c.h.b16 %v2127
        %v3448 = vunpack.c.l.b16 %v2128
        %v3449 = vunpack.c.h.b16 %v2128
        %v3450 = vunpack.c.l.b16 %v2129
        %v3451 = vunpack.c.h.b16 %v2129
        %v3452 = vunpack.c.l.b16 %v2130
        %v3453 = vunpack.c.h.b16 %v2130
        %v3454 = vunpack.c.l.b16 %v2131
        %v3455 = vunpack.c.h.b16 %v2131
        %v3456 = vunpack.c.l.b16 %v2132
        %v3457 = vunpack.c.h.b16 %v2132
        %v3458 = vunpack.c.l.b16 %v2133
        %v3459 = vunpack.c.h.b16 %v2133
        %v3460 = vunpack.c.l.b16 %v2134
        %v3461 = vunpack.c.h.b16 %v2134
        %v3462 = vunpack.c.l.b16 %v2135
        %v3463 = vunpack.c.h.b16 %v2135
        %v3464 = vunpack.c.l.b16 %v2136
        %v3465 = vunpack.c.h.b16 %v2136
        %v3466 = vunpack.c.l.b16 %v2137
        %v3467 = vunpack.c.h.b16 %v2137
        %v3468 = vunpack.c.l.b16 %v2138
        %v3469 = vunpack.c.h.b16 %v2138
        %v3470 = vunpack.c.l.b16 %v2139
        %v3471 = vunpack.c.h.b16 %v2139
        %v3472 = vunpack.c.l.b16 %v2140
        %v3473 = vunpack.c.h.b16 %v2140
        %v3474 = vunpack.c.l.b16 %v2141
        %v3475 = vunpack.c.h.b16 %v2141
        %v3476 = vunpack.c.l.b16 %v2142
        %v3477 = vunpack.c.h.b16 %v2142
        %v3478 = vunpack.c.l.b16 %v2143
        %v3479 = vunpack.c.h.b16 %v2143
        %v3480 = vunpack.c.l.b16 %v2144
        %v3481 = vunpack.c.h.b16 %v2144
        %v3482 = vunpack.c.l.b16 %v2145
        %v3483 = vunpack.c.h.b16 %v2145
        %v3484 = vunpack.c.l.b16 %v2146
        %v3485 = vunpack.c.h.b16 %v2146
        %v3486 = vunpack.c.l.b16 %v2147
        %v3487 = vunpack.c.h.b16 %v2147
        %v3488 = vunpack.c.l.b16 %v2148
        %v3489 = vunpack.c.h.b16 %v2148
        %v3490 = vunpack.c.l.b16 %v2149
        %v3491 = vunpack.c.h.b16 %v2149
        %v3492 = vunpack.c.l.b16 %v2150
        %v3493 = vunpack.c.h.b16 %v2150
        %v3494 = vunpack.c.l.b16 %v2151
        %v3495 = vunpack.c.h.b16 %v2151
        %v3496 = vunpack.c.l.b16 %v2152
        %v3497 = vunpack.c.h.b16 %v2152
        %v3498 = vunpack.c.l.b16 %v2153
        %v3499 = vunpack.c.h.b16 %v2153
        %v3500 = vunpack.c.l.b16 %v2154
        %v3501 = vunpack.c.h.b16 %v2154
        %v3502 = vunpack.c.l.b16 %v2155
        %v3503 = vunpack.c.h.b16 %v2155
        %v3504 = vunpack.c.l.b16 %v2156
        %v3505 = vunpack.c.h.b16 %v2156
        %v3506 = vunpack.c.l.b16 %v2157
        %v3507 = vunpack.c.h.b16 %v2157
        %v3508 = vunpack.c.l.b16 %v2158
        %v3509 = vunpack.c.h.b16 %v2158
        %v3510 = vunpack.c.l.b16 %v2159
        %v3511 = vunpack.c.h.b16 %v2159
        %v3512 = vunpack.c.l.b16 %v2160
        %v3513 = vunpack.c.h.b16 %v2160
        %v3514 = vunpack.c.l.b16 %v2161
        %v3515 = vunpack.c.h.b16 %v2161
        %v3516 = vunpack.c.l.b16 %v2162
        %v3517 = vunpack.c.h.b16 %v2162
        %v3518 = vunpack.c.l.b16 %v2163
        %v3519 = vunpack.c.h.b16 %v2163
        %v3520 = vunpack.c.l.b16 %v2164
        %v3521 = vunpack.c.h.b16 %v2164
        %v3522 = vunpack.c.l.b16 %v2165
        %v3523 = vunpack.c.h.b16 %v2165
        %v3524 = vunpack.c.l.b16 %v2166
        %v3525 = vunpack.c.h.b16 %v2166
        %v3526 = vunpack.c.l.b16 %v2167
        %v3527 = vunpack.c.h.b16 %v2167
        %v3528 = vunpack.c.l.b16 %v2168
        %v3529 = vunpack.c.h.b16 %v2168
        %v3530 = vunpack.c.l.b16 %v2169
        %v3531 = vunpack.c.h.b16 %v2169
        %v3532 = vunpack.c.l.b16 %v2170
        %v3533 = vunpack.c.h.b16 %v2170
        %v3534 = vunpack.c.l.b16 %v2171
        %v3535 = vunpack.c.h.b16 %v2171
        %v3536 = vunpack.c.l.b16 %v2172
        %v3537 = vunpack.c.h.b16 %v2172
        %v3538 = vunpack.c.l.b16 %v2173
        %v3539 = vunpack.c.h.b16 %v2173
        %v3540 = vunpack.c.l.b16 %v2174
        %v3541 = vunpack.c.h.b16 %v2174
        %v3542 = vunpack.c.l.b16 %v2175
        %v3543 = vunpack.c.h.b16 %v2175
        %v3544 = vunpack.c.l.b16 %v2176
        %v3545 = vunpack.c.h.b16 %v2176
        %v3546 = vunpack.c.l.b16 %v2177
        %v3547 = vunpack.c.h.b16 %v2177
        %v3548 = vunpack.c.l.b16 %v2178
        %v3549 = vunpack.c.h.b16 %v2178
        %v3550 = vunpack.c.l.b16 %v2179
        %v3551 = vunpack.c.h.b16 %v2179
        %v3552 = vunpack.c.l.b16 %v2180
        %v3553 = vunpack.c.h.b16 %v2180
        %v3554 = vunpack.c.l.b16 %v2181
        %v3555 = vunpack.c.h.b16 %v2181
        %v3556 = vunpack.c.l.b16 %v2182
        %v3557 = vunpack.c.h.b16 %v2182
        %v3558 = vunpack.c.l.b16 %v2183
        %v3559 = vunpack.c.h.b16 %v2183
        %v3560 = vunpack.c.l.b16 %v2184
        %v3561 = vunpack.c.h.b16 %v2184
        %v3562 = vunpack.c.l.b16 %v2185
        %v3563 = vunpack.c.h.b16 %v2185
        %v3564 = vunpack.c.l.b16 %v2186
        %v3565 = vunpack.c.h.b16 %v2186
        %v3566 = vunpack.c.l.b16 %v2187
        %v3567 = vunpack.c.h.b16 %v2187
        %v3568 = vunpack.c.l.b16 %v2188
        %v3569 = vunpack.c.h.b16 %v2188
        %v3570 = vunpack.c.l.b16 %v2189
        %v3571 = vunpack.c.h.b16 %v2189
        %v3572 = vunpack.c.l.b16 %v2190
        %v3573 = vunpack.c.h.b16 %v2190
        %v3574 = vunpack.c.l.b16 %v2191
        %v3575 = vunpack.c.h.b16 %v2191
        %v3576 = vunpack.c.l.b16 %v2192
        %v3577 = vunpack.c.h.b16 %v2192
        %v3578 = vunpack.c.l.b16 %v2193
        %v3579 = vunpack.c.h.b16 %v2193
        %v3580 = vunpack.c.l.b16 %v2194
        %v3581 = vunpack.c.h.b16 %v2194
        %v3582 = vunpack.c.l.b16 %v2195
        %v3583 = vunpack.c.h.b16 %v2195
        %v3584 = vunpack.c.l.b16 %v2196
        %v3585 = vunpack.c.h.b16 %v2196
        %v3586 = vunpack.c.l.b16 %v2197
        %v3587 = vunpack.c.h.b16 %v2197
        %v3588 = vunpack.c.l.b16 %v2198
        %v3589 = vunpack.c.h.b16 %v2198
        %v3590 = vunpack.c.l.b16 %v2199
        %v3591 = vunpack.c.h.b16 %v2199
        %v3592 = vunpack.c.l.b16 %v2200
        %v3593 = vunpack.c.h.b16 %v2200
        %v3594 = vunpack.c.l.b16 %v2201
        %v3595 = vunpack.c.h.b16 %v2201
        %v3596 = vunpack.c.l.b16 %v2202
        %v3597 = vunpack.c.h.b16 %v2202
        %v3598 = vunpack.c.l.b16 %v2203
        %v3599 = vunpack.c.h.b16 %v2203
        %v3600 = vunpack.c.l.b16 %v2204
        %v3601 = vunpack.c.h.b16 %v2204
        %v3602 = vunpack.c.l.b16 %v2205
        %v3603 = vunpack.c.h.b16 %v2205
        %v3604 = vunpack.c.l.b16 %v2206
        %v3605 = vunpack.c.h.b16 %v2206
        %v3606 = vunpack.c.l.b16 %v2207
        %v3607 = vunpack.c.h.b16 %v2207
        %v3608 = vunpack.c.l.b16 %v2208
        %v3609 = vunpack.c.h.b16 %v2208
        %v3610 = vunpack.c.l.b16 %v2209
        %v3611 = vunpack.c.h.b16 %v2209
        %v3612 = vunpack.c.l.b16 %v2210
        %v3613 = vunpack.c.h.b16 %v2210
        %v3614 = vunpack.c.l.b16 %v2211
        %v3615 = vunpack.c.h.b16 %v2211
        %v3616 = vunpack.c.l.b16 %v2212
        %v3617 = vunpack.c.h.b16 %v2212
        %v3618 = vunpack.c.l.b16 %v2213
        %v3619 = vunpack.c.h.b16 %v2213
        %v3620 = vunpack.c.l.b16 %v2214
        %v3621 = vunpack.c.h.b16 %v2214
        %v3622 = vunpack.c.l.b16 %v2215
        %v3623 = vunpack.c.h.b16 %v2215
        %v3624 = vunpack.c.l.b16 %v2216
        %v3625 = vunpack.c.h.b16 %v2216
        %v3626 = vunpack.c.l.b16 %v2217
        %v3627 = vunpack.c.h.b16 %v2217
        %v3628 = vunpack.c.l.b16 %v2218
        %v3629 = vunpack.c.h.b16 %v2218
        %v3630 = vunpack.c.l.b16 %v2219
        %v3631 = vunpack.c.h.b16 %v2219
        %v3632 = vunpack.c.l.b16 %v2220
        %v3633 = vunpack.c.h.b16 %v2220
        %v3634 = vunpack.c.l.b16 %v2221
        %v3635 = vunpack.c.h.b16 %v2221
        %v3636 = vunpack.c.l.b16 %v2222
        %v3637 = vunpack.c.h.b16 %v2222
        %v3638 = vunpack.c.l.b16 %v2223
        %v3639 = vunpack.c.h.b16 %v2223
        %v3640 = vunpack.c.l.b16 %v2224
        %v3641 = vunpack.c.h.b16 %v2224
        %v3642 = vunpack.c.l.b16 %v2225
        %v3643 = vunpack.c.h.b16 %v2225
        %v3644 = vunpack.c.l.b16 %v2226
        %v3645 = vunpack.c.h.b16 %v2226
        %v3646 = vunpack.c.l.b16 %v2227
        %v3647 = vunpack.c.h.b16 %v2227
        %v3648 = vunpack.c.l.b16 %v2228
        %v3649 = vunpack.c.h.b16 %v2228
        %v3650 = vunpack.c.l.b16 %v2229
        %v3651 = vunpack.c.h.b16 %v2229
        %v3652 = vunpack.c.l.b16 %v2230
        %v3653 = vunpack.c.h.b16 %v2230
        %v3654 = vunpack.c.l.b16 %v2231
        %v3655 = vunpack.c.h.b16 %v2231
        %v3656 = vunpack.c.l.b16 %v2232
        %v3657 = vunpack.c.h.b16 %v2232
        %v3658 = vunpack.c.l.b16 %v2233
        %v3659 = vunpack.c.h.b16 %v2233
        %v3660 = vunpack.c.l.b16 %v2234
        %v3661 = vunpack.c.h.b16 %v2234
        %v3662 = vunpack.c.l.b16 %v2235
        %v3663 = vunpack.c.h.b16 %v2235
        %v3664 = vunpack.c.l.b16 %v2236
        %v3665 = vunpack.c.h.b16 %v2236
        %v3666 = vunpack.c.l.b16 %v2237
        %v3667 = vunpack.c.h.b16 %v2237
        %v3668 = vunpack.c.l.b16 %v2238
        %v3669 = vunpack.c.h.b16 %v2238
        %v3670 = vunpack.c.l.b16 %v2239
        %v3671 = vunpack.c.h.b16 %v2239
        %v3672 = vunpack.c.l.b16 %v2240
        %v3673 = vunpack.c.h.b16 %v2240
        %v3674 = vunpack.c.l.b16 %v2241
        %v3675 = vunpack.c.h.b16 %v2241
        %v3676 = vunpack.c.l.b16 %v2242
        %v3677 = vunpack.c.h.b16 %v2242
        %v3678 = vunpack.c.l.b16 %v2243
        %v3679 = vunpack.c.h.b16 %v2243
        %v3680 = vunpack.c.l.b16 %v2244
        %v3681 = vunpack.c.h.b16 %v2244
        %v3682 = vunpack.c.l.b16 %v2245
        %v3683 = vunpack.c.h.b16 %v2245
        %v3684 = vunpack.c.l.b16 %v2246
        %v3685 = vunpack.c.h.b16 %v2246
        %v3686 = vunpack.c.l.b16 %v2247
        %v3687 = vunpack.c.h.b16 %v2247
        %v3688 = vunpack.c.l.b16 %v2248
        %v3689 = vunpack.c.h.b16 %v2248
        %v3690 = vunpack.c.l.b16 %v2249
        %v3691 = vunpack.c.h.b16 %v2249
        %v3692 = vunpack.c.l.b16 %v2250
        %v3693 = vunpack.c.h.b16 %v2250
        %v3694 = vunpack.c.l.b16 %v2251
        %v3695 = vunpack.c.h.b16 %v2251
        %v3696 = vunpack.c.l.b16 %v2252
        %v3697 = vunpack.c.h.b16 %v2252
        %v3698 = vunpack.c.l.b16 %v2253
        %v3699 = vunpack.c.h.b16 %v2253
        %v3700 = vunpack.c.l.b16 %v2254
        %v3701 = vunpack.c.h.b16 %v2254
        %v3702 = vunpack.c.l.b16 %v2255
        %v3703 = vunpack.c.h.b16 %v2255
        %v3704 = vunpack.c.l.b16 %v2256
        %v3705 = vunpack.c.h.b16 %v2256
        %v3706 = vunpack.c.l.b16 %v2257
        %v3707 = vunpack.c.h.b16 %v2257
        %v3708 = vunpack.c.l.b16 %v2258
        %v3709 = vunpack.c.h.b16 %v2258
        %v3710 = vunpack.c.l.b16 %v2259
        %v3711 = vunpack.c.h.b16 %v2259
        %v3712 = vunpack.c.l.b16 %v2260
        %v3713 = vunpack.c.h.b16 %v2260
        %v3714 = vunpack.c.l.b16 %v2261
        %v3715 = vunpack.c.h.b16 %v2261
        %v3716 = vunpack.c.l.b16 %v2262
        %v3717 = vunpack.c.h.b16 %v2262
        %v3718 = vunpack.c.l.b16 %v2263
        %v3719 = vunpack.c.h.b16 %v2263
        %v3720 = vunpack.c.l.b16 %v2264
        %v3721 = vunpack.c.h.b16 %v2264
        %v3722 = vunpack.c.l.b16 %v2265
        %v3723 = vunpack.c.h.b16 %v2265
        %v3724 = vunpack.c.l.b16 %v2266
        %v3725 = vunpack.c.h.b16 %v2266
        %v3726 = vunpack.c.l.b16 %v2267
        %v3727 = vunpack.c.h.b16 %v2267
        %v3728 = vunpack.c.l.b16 %v2268
        %v3729 = vunpack.c.h.b16 %v2268
        %v3730 = vunpack.c.l.b16 %v2269
        %v3731 = vunpack.c.h.b16 %v2269
        %v3732 = vunpack.c.l.b16 %v2270
        %v3733 = vunpack.c.h.b16 %v2270
        %v3734 = vunpack.c.l.b16 %v2271
        %v3735 = vunpack.c.h.b16 %v2271
        %v3736 = vunpack.c.l.b16 %v2272
        %v3737 = vunpack.c.h.b16 %v2272
        %v3738 = vunpack.c.l.b16 %v2273
        %v3739 = vunpack.c.h.b16 %v2273
        %v3740 = vunpack.c.l.b16 %v2274
        %v3741 = vunpack.c.h.b16 %v2274
        %v3742 = vunpack.c.l.b16 %v2275
        %v3743 = vunpack.c.h.b16 %v2275
        %v3744 = vunpack.c.l.b16 %v2276
        %v3745 = vunpack.c.h.b16 %v2276
        %v3746 = vunpack.c.l.b16 %v2277
        %v3747 = vunpack.c.h.b16 %v2277
        %v3748 = vunpack.c.l.b16 %v2278
        %v3749 = vunpack.c.h.b16 %v2278
        %v3750 = vunpack.c.l.b16 %v2279
        %v3751 = vunpack.c.h.b16 %v2279
        %v3752 = vunpack.c.l.b16 %v2280
        %v3753 = vunpack.c.h.b16 %v2280
        %v3754 = vunpack.c.l.b16 %v2281
        %v3755 = vunpack.c.h.b16 %v2281
        %v3756 = vunpack.c.l.b16 %v2282
        %v3757 = vunpack.c.h.b16 %v2282
        %v3758 = vunpack.c.l.b16 %v2283
        %v3759 = vunpack.c.h.b16 %v2283
        %v3760 = vunpack.c.l.b16 %v2284
        %v3761 = vunpack.c.h.b16 %v2284
        %v3762 = vunpack.c.l.b16 %v2285
        %v3763 = vunpack.c.h.b16 %v2285
        %v3764 = vunpack.c.l.b16 %v2286
        %v3765 = vunpack.c.h.b16 %v2286
        %v3766 = vunpack.c.l.b16 %v2287
        %v3767 = vunpack.c.h.b16 %v2287
        %v3768 = vunpack.c.l.b16 %v2288
        %v3769 = vunpack.c.h.b16 %v2288
        %v3770 = vunpack.c.l.b16 %v2289
        %v3771 = vunpack.c.h.b16 %v2289
        %v3772 = vunpack.c.l.b16 %v2290
        %v3773 = vunpack.c.h.b16 %v2290
        %v3774 = vunpack.c.l.b16 %v2291
        %v3775 = vunpack.c.h.b16 %v2291
        %v3776 = vunpack.c.l.b16 %v2292
        %v3777 = vunpack.c.h.b16 %v2292
        %v3778 = vunpack.c.l.b16 %v2293
        %v3779 = vunpack.c.h.b16 %v2293
        %v3780 = vunpack.c.l.b16 %v2294
        %v3781 = vunpack.c.h.b16 %v2294
        %v3782 = vunpack.c.l.b16 %v2295
        %v3783 = vunpack.c.h.b16 %v2295
        %v3784 = vunpack.c.l.b16 %v2296
        %v3785 = vunpack.c.h.b16 %v2296
        %v3786 = vunpack.c.l.b16 %v2297
        %v3787 = vunpack.c.h.b16 %v2297
        %v3788 = vunpack.c.l.b16 %v2298
        %v3789 = vunpack.c.h.b16 %v2298
        %v3790 = vunpack.c.l.b16 %v2299
        %v3791 = vunpack.c.h.b16 %v2299
        %v3792 = vunpack.c.l.b16 %v2300
        %v3793 = vunpack.c.h.b16 %v2300
        %v3794 = vunpack.c.l.b16 %v2301
        %v3795 = vunpack.c.h.b16 %v2301
        %v3796 = vunpack.c.l.b16 %v2302
        %v3797 = vunpack.c.h.b16 %v2302
        %v3798 = vunpack.c.l.b16 %v2303
        %v3799 = vunpack.c.h.b16 %v2303
        %v3800 = vunpack.c.l.b16 %v2304
        %v3801 = vunpack.c.h.b16 %v2304
        %v3802 = vunpack.c.l.b16 %v2305
        %v3803 = vunpack.c.h.b16 %v2305
        %v3804 = vunpack.c.l.b16 %v2306
        %v3805 = vunpack.c.h.b16 %v2306
        %v3806 = vunpack.c.l.b16 %v2307
        %v3807 = vunpack.c.h.b16 %v2307
        %v3808 = vunpack.c.l.b16 %v2308
        %v3809 = vunpack.c.h.b16 %v2308
        %v3810 = vunpack.c.l.b16 %v2309
        %v3811 = vunpack.c.h.b16 %v2309
        %v3812 = vunpack.c.l.b16 %v2310
        %v3813 = vunpack.c.h.b16 %v2310
        %v3814 = vunpack.c.l.b16 %v2311
        %v3815 = vunpack.c.h.b16 %v2311
        %v3816 = vunpack.c.l.b16 %v2312
        %v3817 = vunpack.c.h.b16 %v2312
        %v3818 = vunpack.c.l.b16 %v2313
        %v3819 = vunpack.c.h.b16 %v2313
        %v3820 = vunpack.c.l.b16 %v2314
        %v3821 = vunpack.c.h.b16 %v2314
        %v3822 = vunpack.c.l.b16 %v2315
        %v3823 = vunpack.c.h.b16 %v2315
        %v3824 = vunpack.c.l.b16 %v2316
        %v3825 = vunpack.c.h.b16 %v2316
        %v3826 = vunpack.c.l.b16 %v2317
        %v3827 = vunpack.c.h.b16 %v2317
        %v3828 = vunpack.c.l.b16 %v2318
        %v3829 = vunpack.c.h.b16 %v2318
        %v3830 = vunpack.c.l.b16 %v2319
        %v3831 = vunpack.c.h.b16 %v2319
        %v3832 = vunpack.c.l.b16 %v2320
        %v3833 = vunpack.c.h.b16 %v2320
        %v3834 = vunpack.c.l.b16 %v2321
        %v3835 = vunpack.c.h.b16 %v2321
        %v3836 = vunpack.c.l.b16 %v2322
        %v3837 = vunpack.c.h.b16 %v2322
        %v3838 = vunpack.c.l.b16 %v2323
        %v3839 = vunpack.c.h.b16 %v2323
        %v3840 = vunpack.c.l.b16 %v2324
        %v3841 = vunpack.c.h.b16 %v2324
        %v3842 = vunpack.c.l.b16 %v2325
        %v3843 = vunpack.c.h.b16 %v2325
        %v3844 = vunpack.c.l.b16 %v2326
        %v3845 = vunpack.c.h.b16 %v2326
        %v3846 = vunpack.c.l.b16 %v2327
        %v3847 = vunpack.c.h.b16 %v2327
        %v3848 = vunpack.c.l.b16 %v2328
        %v3849 = vunpack.c.h.b16 %v2328
        %v3850 = vunpack.c.l.b16 %v2329
        %v3851 = vunpack.c.h.b16 %v2329
        %v3852 = vunpack.c.l.b16 %v2330
        %v3853 = vunpack.c.h.b16 %v2330
        %v3854 = vunpack.c.l.b16 %v2331
        %v3855 = vunpack.c.h.b16 %v2331
        %v3856 = vunpack.c.l.b16 %v2332
        %v3857 = vunpack.c.h.b16 %v2332
        %v3858 = vunpack.c.l.b16 %v2333
        %v3859 = vunpack.c.h.b16 %v2333
        %v3860 = vunpack.c.l.b16 %v2334
        %v3861 = vunpack.c.h.b16 %v2334
        %v3862 = vunpack.c.l.b16 %v2335
        %v3863 = vunpack.c.h.b16 %v2335
        %v3864 = vunpack.c.l.b16 %v2336
        %v3865 = vunpack.c.h.b16 %v2336
        %v3866 = vunpack.c.l.b16 %v2337
        %v3867 = vunpack.c.h.b16 %v2337
        %v3868 = vunpack.c.l.b16 %v2338
        %v3869 = vunpack.c.h.b16 %v2338
        %v3870 = vunpack.c.l.b16 %v2339
        %v3871 = vunpack.c.h.b16 %v2339
        %v3872 = vunpack.c.l.b16 %v2340
        %v3873 = vunpack.c.h.b16 %v2340
        %v3874 = vunpack.c.l.b16 %v2341
        %v3875 = vunpack.c.h.b16 %v2341
        %v3876 = vunpack.c.l.b16 %v2342
        %v3877 = vunpack.c.h.b16 %v2342
        %v3878 = vunpack.c.l.b16 %v2343
        %v3879 = vunpack.c.h.b16 %v2343
        %v3880 = vunpack.c.l.b16 %v2344
        %v3881 = vunpack.c.h.b16 %v2344
        %v3882 = vunpack.c.l.b16 %v2345
        %v3883 = vunpack.c.h.b16 %v2345
        %v3884 = vunpack.c.l.b16 %v2346
        %v3885 = vunpack.c.h.b16 %v2346
        %v3886 = vunpack.c.l.b16 %v2347
        %v3887 = vunpack.c.h.b16 %v2347
        %v3888 = vunpack.c.l.b16 %v2348
        %v3889 = vunpack.c.h.b16 %v2348
        %v3890 = vunpack.c.l.b16 %v2349
        %v3891 = vunpack.c.h.b16 %v2349
        %v3892 = vunpack.c.l.b16 %v2350
        %v3893 = vunpack.c.h.b16 %v2350
        %v3894 = vunpack.c.l.b16 %v2351
        %v3895 = vunpack.c.h.b16 %v2351
        %v3896 = vunpack.c.l.b16 %v2352
        %v3897 = vunpack.c.h.b16 %v2352
        %v3898 = vunpack.c.l.b16 %v2353
        %v3899 = vunpack.c.h.b16 %v2353
        %v3900 = vunpack.c.l.b16 %v2354
        %v3901 = vunpack.c.h.b16 %v2354
        %v3902 = vunpack.c.l.b16 %v2355
        %v3903 = vunpack.c.h.b16 %v2355
        %v3904 = vunpack.c.l.b16 %v2356
        %v3905 = vunpack.c.h.b16 %v2356
        %v3906 = vunpack.c.l.b16 %v2357
        %v3907 = vunpack.c.h.b16 %v2357
        %v3908 = vunpack.c.l.b16 %v2358
        %v3909 = vunpack.c.h.b16 %v2358
        %v3910 = vunpack.c.l.b16 %v2359
        %v3911 = vunpack.c.h.b16 %v2359
        %v3912 = vunpack.c.l.b16 %v2360
        %v3913 = vunpack.c.h.b16 %v2360
        %v3914 = vunpack.c.l.b16 %v2361
        %v3915 = vunpack.c.h.b16 %v2361
        %v3916 = vunpack.c.l.b16 %v2362
        %v3917 = vunpack.c.h.b16 %v2362
        %v3918 = vunpack.c.l.b16 %v2363
        %v3919 = vunpack.c.h.b16 %v2363
        %v3920 = vunpack.c.l.b16 %v2364
        %v3921 = vunpack.c.h.b16 %v2364
        %v3922 = vunpack.c.l.b16 %v2365
        %v3923 = vunpack.c.h.b16 %v2365
        %v3924 = vunpack.c.l.b16 %v2366
        %v3925 = vunpack.c.h.b16 %v2366
        %v3926 = vunpack.c.l.b16 %v2367
        %v3927 = vunpack.c.h.b16 %v2367
        %v3928 = vunpack.c.l.b16 %v2368
        %v3929 = vunpack.c.h.b16 %v2368
        %v3930 = vunpack.c.l.b16 %v2369
        %v3931 = vunpack.c.h.b16 %v2369
        %v3932 = vunpack.c.l.b16 %v2370
        %v3933 = vunpack.c.h.b16 %v2370
        %v3934 = vunpack.c.l.b16 %v2371
        %v3935 = vunpack.c.h.b16 %v2371
        %v3936 = vunpack.c.l.b16 %v2372
        %v3937 = vunpack.c.h.b16 %v2372
        %v3938 = vunpack.c.l.b16 %v2373
        %v3939 = vunpack.c.h.b16 %v2373
        %v3940 = vunpack.c.l.b16 %v2374
        %v3941 = vunpack.c.h.b16 %v2374
        %v3942 = vunpack.c.l.b16 %v2375
        %v3943 = vunpack.c.h.b16 %v2375
        %v3944 = vunpack.c.l.b16 %v2376
        %v3945 = vunpack.c.h.b16 %v2376
        %v3946 = vunpack.c.l.b16 %v2377
        %v3947 = vunpack.c.h.b16 %v2377
        %v3948 = vunpack.c.l.b16 %v2378
        %v3949 = vunpack.c.h.b16 %v2378
        %v3950 = vunpack.c.l.b16 %v2379
        %v3951 = vunpack.c.h.b16 %v2379
        %v3952 = vunpack.c.l.b16 %v2380
        %v3953 = vunpack.c.h.b16 %v2380
        %v3954 = vunpack.c.l.b16 %v2381
        %v3955 = vunpack.c.h.b16 %v2381
        %v3956 = vunpack.c.l.b16 %v2382
        %v3957 = vunpack.c.h.b16 %v2382
        %v3958 = vunpack.c.l.b16 %v2383
        %v3959 = vunpack.c.h.b16 %v2383
        %v3960 = vunpack.c.l.b16 %v2384
        %v3961 = vunpack.c.h.b16 %v2384
        %v3962 = vunpack.c.l.b16 %v2385
        %v3963 = vunpack.c.h.b16 %v2385
        %v3964 = vunpack.c.l.b16 %v2386
        %v3965 = vunpack.c.h.b16 %v2386
        %v3966 = vunpack.c.l.b16 %v2387
        %v3967 = vunpack.c.h.b16 %v2387
        %v3968 = vunpack.c.l.b16 %v2388
        %v3969 = vunpack.c.h.b16 %v2388
        %v3970 = vunpack.c.l.b16 %v2389
        %v3971 = vunpack.c.h.b16 %v2389
        %v3972 = vunpack.c.l.b16 %v2390
        %v3973 = vunpack.c.h.b16 %v2390
        %v3974 = vunpack.c.l.b16 %v2391
        %v3975 = vunpack.c.h.b16 %v2391
        %v3976 = vunpack.c.l.b16 %v2392
        %v3977 = vunpack.c.h.b16 %v2392
        %v3978 = vunpack.c.l.b16 %v2393
        %v3979 = vunpack.c.h.b16 %v2393
        %v3980 = vunpack.c.l.b16 %v2394
        %v3981 = vunpack.c.h.b16 %v2394
        %v3982 = vunpack.c.l.b16 %v2395
        %v3983 = vunpack.c.h.b16 %v2395
        %v3984 = vunpack.c.l.b16 %v2396
        %v3985 = vunpack.c.h.b16 %v2396
        %v3986 = vunpack.c.l.b16 %v2397
        %v3987 = vunpack.c.h.b16 %v2397
        %v3988 = vunpack.c.l.b16 %v2398
        %v3989 = vunpack.c.h.b16 %v2398
        %v3990 = vunpack.c.l.b16 %v2399
        %v3991 = vunpack.c.h.b16 %v2399
        %v3992 = vpack.c.b16 %v2972, %v2968
        %v3993 = vpack.c.b16 %v2973, %v2969
        %v3994 = vpack.c.b16 %v2974, %v2970
        %v3995 = vpack.c.b16 %v2975, %v2971
        %v3996 = vpack.c.b16 %v2980, %v2976
        %v3997 = vpack.c.b16 %v2981, %v2977
        %v3998 = vpack.c.b16 %v2982, %v2978
        %v3999 = vpack.c.b16 %v2983, %v2979
        %v4000 = vpack.c.b16 %v2988, %v2984
        %v4001 = vpack.c.b16 %v2989, %v2985
        %v4002 = vpack.c.b16 %v2990, %v2986
        %v4003 = vpack.c.b16 %v2991, %v2987
        %v4004 = vpack.c.b16 %v2996, %v2992
        %v4005 = vpack.c.b16 %v2997, %v2993
        %v4006 = vpack.c.b16 %v2998, %v2994
        %v4007 = vpack.c.b16 %v2999, %v2995
        %v4008 = vpack.c.b16 %v3004, %v3000
        %v4009 = vpack.c.b16 %v3005, %v3001
        %v4010 = vpack.c.b16 %v3006, %v3002
        %v4011 = vpack.c.b16 %v3007, %v3003
        %v4012 = vpack.c.b16 %v3012, %v3008
        %v4013 = vpack.c.b16 %v3013, %v3009
        %v4014 = vpack.c.b16 %v3014, %v3010
        %v4015 = vpack.c.b16 %v3015, %v3011
        %v4016 = vpack.c.b16 %v3020, %v3016
        %v4017 = vpack.c.b16 %v3021, %v3017
        %v4018 = vpack.c.b16 %v3022, %v3018
        %v4019 = vpack.c.b16 %v3023, %v3019
        %v4020 = vpack.c.b16 %v3028, %v3024
        %v4021 = vpack.c.b16 %v3029, %v3025
        %v4022 = vpack.c.b16 %v3030, %v3026
        %v4023 = vpack.c.b16 %v3031, %v3027
        %v4024 = vpack.c.b16 %v3036, %v3032
        %v4025 = vpack.c.b16 %v3037, %v3033
        %v4026 = vpack.c.b16 %v3038, %v3034
        %v4027 = vpack.c.b16 %v3039, %v3035
        %v4028 = vpack.c.b16 %v3044, %v3040
        %v4029 = vpack.c.b16 %v3045, %v3041
        %v4030 = vpack.c.b16 %v3046, %v3042
        %v4031 = vpack.c.b16 %v3047, %v3043
        %v4032 = vpack.c.b16 %v3052, %v3048
        %v4033 = vpack.c.b16 %v3053, %v3049
        %v4034 = vpack.c.b16 %v3054, %v3050
        %v4035 = vpack.c.b16 %v3055, %v3051
        %v4036 = vpack.c.b16 %v3060, %v3056
        %v4037 = vpack.c.b16 %v3061, %v3057
        %v4038 = vpack.c.b16 %v3062, %v3058
        %v4039 = vpack.c.b16 %v3063, %v3059
        %v4040 = vpack.c.b16 %v3068, %v3064
        %v4041 = vpack.c.b16 %v3069, %v3065
        %v4042 = vpack.c.b16 %v3070, %v3066
        %v4043 = vpack.c.b16 %v3071, %v3067
        %v4044 = vpack.c.b16 %v3076, %v3072
        %v4045 = vpack.c.b16 %v3077, %v3073
        %v4046 = vpack.c.b16 %v3078, %v3074
        %v4047 = vpack.c.b16 %v3079, %v3075
        %v4048 = vpack.c.b16 %v3084, %v3080
        %v4049 = vpack.c.b16 %v3085, %v3081
        %v4050 = vpack.c.b16 %v3086, %v3082
        %v4051 = vpack.c.b16 %v3087, %v3083
        %v4052 = vpack.c.b16 %v3092, %v3088
        %v4053 = vpack.c.b16 %v3093, %v3089
        %v4054 = vpack.c.b16 %v3094, %v3090
        %v4055 = vpack.c.b16 %v3095, %v3091
        %v4056 = vpack.c.b16 %v3100, %v3096
        %v4057 = vpack.c.b16 %v3101, %v3097
        %v4058 = vpack.c.b16 %v3102, %v3098
        %v4059 = vpack.c.b16 %v3103, %v3099
        %v4060 = vpack.c.b16 %v3108, %v3104
        %v4061 = vpack.c.b16 %v3109, %v3105
        %v4062 = vpack.c.b16 %v3110, %v3106
        %v4063 = vpack.c.b16 %v3111, %v3107
        %v4064 = vpack.c.b16 %v3116, %v3112
        %v4065 = vpack.c.b16 %v3117, %v3113
        %v4066 = vpack.c.b16 %v3118, %v3114
        %v4067 = vpack.c.b16 %v3119, %v3115
        %v4068 = vpack.c.b16 %v3124, %v3120
        %v4069 = vpack.c.b16 %v3125, %v3121
        %v4070 = vpack.c.b16 %v3126, %v3122
        %v4071 = vpack.c.b16 %v3127, %v3123
        %v4072 = vpack.c.b16 %v3132, %v3128
        %v4073 = vpack.c.b16 %v3133, %v3129
        %v4074 = vpack.c.b16 %v3134, %v3130
        %v4075 = vpack.c.b16 %v3135, %v3131
        %v4076 = vpack.c.b16 %v3140, %v3136
        %v4077 = vpack.c.b16 %v3141, %v3137
        %v4078 = vpack.c.b16 %v3142, %v3138
        %v4079 = vpack.c.b16 %v3143, %v3139
        %v4080 = vpack.c.b16 %v3148, %v3144
        %v4081 = vpack.c.b16 %v3149, %v3145
        %v4082 = vpack.c.b16 %v3150, %v3146
        %v4083 = vpack.c.b16 %v3151, %v3147
        %v4084 = vpack.c.b16 %v3156, %v3152
        %v4085 = vpack.c.b16 %v3157, %v3153
        %v4086 = vpack.c.b16 %v3158, %v3154
        %v4087 = vpack.c.b16 %v3159, %v3155
        %v4088 = vpack.c.b16 %v3164, %v3160
        %v4089 = vpack.c.b16 %v3165, %v3161
        %v4090 = vpack.c.b16 %v3166, %v3162
        %v4091 = vpack.c.b16 %v3167, %v3163
        %v4092 = vpack.c.b16 %v3172, %v3168
        %v4093 = vpack.c.b16 %v3173, %v3169
        %v4094 = vpack.c.b16 %v3174, %v3170
        %v4095 = vpack.c.b16 %v3175, %v3171
        %v4096 = vpack.c.b16 %v3180, %v3176
        %v4097 = vpack.c.b16 %v3181, %v3177
        %v4098 = vpack.c.b16 %v3182, %v3178
        %v4099 = vpack.c.b16 %v3183, %v3179
        %v4100 = vpack.c.b16 %v3188, %v3184
        %v4101 = vpack.c.b16 %v3189, %v3185
        %v4102 = vpack.c.b16 %v3190, %v3186
        %v4103 = vpack.c.b16 %v3191, %v3187
        %v4104 = vpack.c.b16 %v3196, %v3192
        %v4105 = vpack.c.b16 %v3197, %v3193
        %v4106 = vpack.c.b16 %v3198, %v3194
        %v4107 = vpack.c.b16 %v3199, %v3195
        %v4108 = vpack.c.b16 %v3204, %v3200
        %v4109 = vpack.c.b16 %v3205, %v3201
        %v4110 = vpack.c.b16 %v3206, %v3202
        %v4111 = vpack.c.b16 %v3207, %v3203
        %v4112 = vpack.c.b16 %v3212, %v3208
        %v4113 = vpack.c.b16 %v3213, %v3209
        %v4114 = vpack.c.b16 %v3214, %v3210
        %v4115 = vpack.c.b16 %v3215, %v3211
        %v4116 = vpack.c.b16 %v3220, %v3216
        %v4117 = vpack.c.b16 %v3221, %v3217
        %v4118 = vpack.c.b16 %v3222, %v3218
        %v4119 = vpack.c.b16 %v3223, %v3219
        %v4120 = vpack.c.b16 %v3228, %v3224
        %v4121 = vpack.c.b16 %v3229, %v3225
        %v4122 = vpack.c.b16 %v3230, %v3226
        %v4123 = vpack.c.b16 %v3231, %v3227
        %v4124 = vpack.c.b16 %v3236, %v3232
        %v4125 = vpack.c.b16 %v3237, %v3233
        %v4126 = vpack.c.b16 %v3238, %v3234
        %v4127 = vpack.c.b16 %v3239, %v3235
        %v4128 = vpack.c.b16 %v3244, %v3240
        %v4129 = vpack.c.b16 %v3245, %v3241
        %v4130 = vpack.c.b16 %v3246, %v3242
        %v4131 = vpack.c.b16 %v3247, %v3243
        %v4132 = vpack.c.b16 %v3252, %v3248
        %v4133 = vpack.c.b16 %v3253, %v3249
        %v4134 = vpack.c.b16 %v3254, %v3250
        %v4135 = vpack.c.b16 %v3255, %v3251
        %v4136 = vpack.c.b16 %v3260, %v3256
        %v4137 = vpack.c.b16 %v3261, %v3257
        %v4138 = vpack.c.b16 %v3262, %v3258
        %v4139 = vpack.c.b16 %v3263, %v3259
        %v4140 = vpack.c.b16 %v3268, %v3264
        %v4141 = vpack.c.b16 %v3269, %v3265
        %v4142 = vpack.c.b16 %v3270, %v3266
        %v4143 = vpack.c.b16 %v3271, %v3267
        %v4144 = vpack.c.b16 %v3276, %v3272
        %v4145 = vpack.c.b16 %v3277, %v3273
        %v4146 = vpack.c.b16 %v3278, %v3274
        %v4147 = vpack.c.b16 %v3279, %v3275
        %v4148 = vpack.c.b16 %v3284, %v3280
        %v4149 = vpack.c.b16 %v3285, %v3281
        %v4150 = vpack.c.b16 %v3286, %v3282
        %v4151 = vpack.c.b16 %v3287, %v3283
        %v4152 = vpack.c.b16 %v3292, %v3288
        %v4153 = vpack.c.b16 %v3293, %v3289
        %v4154 = vpack.c.b16 %v3294, %v3290
        %v4155 = vpack.c.b16 %v3295, %v3291
        %v4156 = vpack.c.b16 %v3300, %v3296
        %v4157 = vpack.c.b16 %v3301, %v3297
        %v4158 = vpack.c.b16 %v3302, %v3298
        %v4159 = vpack.c.b16 %v3303, %v3299
        %v4160 = vpack.c.b16 %v3308, %v3304
        %v4161 = vpack.c.b16 %v3309, %v3305
        %v4162 = vpack.c.b16 %v3310, %v3306
        %v4163 = vpack.c.b16 %v3311, %v3307
        %v4164 = vpack.c.b16 %v3316, %v3312
        %v4165 = vpack.c.b16 %v3317, %v3313
        %v4166 = vpack.c.b16 %v3318, %v3314
        %v4167 = vpack.c.b16 %v3319, %v3315
        %v4168 = vpack.c.b16 %v3324, %v3320
        %v4169 = vpack.c.b16 %v3325, %v3321
        %v4170 = vpack.c.b16 %v3326, %v3322
        %v4171 = vpack.c.b16 %v3327, %v3323
        %v4172 = vpack.c.b16 %v3332, %v3328
        %v4173 = vpack.c.b16 %v3333, %v3329
        %v4174 = vpack.c.b16 %v3334, %v3330
        %v4175 = vpack.c.b16 %v3335, %v3331
        %v4176 = vpack.c.b16 %v3340, %v3336
        %v4177 = vpack.c.b16 %v3341, %v3337
        %v4178 = vpack.c.b16 %v3342, %v3338
        %v4179 = vpack.c.b16 %v3343, %v3339
        %v4180 = vpack.c.b16 %v3348, %v3344
        %v4181 = vpack.c.b16 %v3349, %v3345
        %v4182 = vpack.c.b16 %v3350, %v3346
        %v4183 = vpack.c.b16 %v3351, %v3347
        %v4184 = vpack.c.b16 %v3356, %v3352
        %v4185 = vpack.c.b16 %v3357, %v3353
        %v4186 = vpack.c.b16 %v3358, %v3354
        %v4187 = vpack.c.b16 %v3359, %v3355
        %v4188 = vpack.c.b16 %v3364, %v3360
        %v4189 = vpack.c.b16 %v3365, %v3361
        %v4190 = vpack.c.b16 %v3366, %v3362
        %v4191 = vpack.c.b16 %v3367, %v3363
        %v4192 = vpack.c.b16 %v3372, %v3368
        %v4193 = vpack.c.b16 %v3373, %v3369
        %v4194 = vpack.c.b16 %v3374, %v3370
        %v4195 = vpack.c.b16 %v3375, %v3371
        %v4196 = vpack.c.b16 %v3380, %v3376
        %v4197 = vpack.c.b16 %v3381, %v3377
        %v4198 = vpack.c.b16 %v3382, %v3378
        %v4199 = vpack.c.b16 %v3383, %v3379
        %v4200 = vpack.c.b16 %v3388, %v3384
        %v4201 = vpack.c.b16 %v3389, %v3385
        %v4202 = vpack.c.b16 %v3390, %v3386
        %v4203 = vpack.c.b16 %v3391, %v3387
        %v4204 = vpack.c.b16 %v3396, %v3392
        %v4205 = vpack.c.b16 %v3397, %v3393
        %v4206 = vpack.c.b16 %v3398, %v3394
        %v4207 = vpack.c.b16 %v3399, %v3395
        %v4208 = vpack.c.b16 %v3404, %v3400
        %v4209 = vpack.c.b16 %v3405, %v3401
        %v4210 = vpack.c.b16 %v3406, %v3402
        %v4211 = vpack.c.b16 %v3407, %v3403
        %v4212 = vpack.c.b16 %v3412, %v3408
        %v4213 = vpack.c.b16 %v3413, %v3409
        %v4214 = vpack.c.b16 %v3414, %v3410
        %v4215 = vpack.c.b16 %v3415, %v3411
        %v4216 = vpack.c.b16 %v3420, %v3416
        %v4217 = vpack.c.b16 %v3421, %v3417
        %v4218 = vpack.c.b16 %v3422, %v3418
        %v4219 = vpack.c.b16 %v3423, %v3419
        %v4220 = vpack.c.b16 %v3428, %v3424
        %v4221 = vpack.c.b16 %v3429, %v3425
        %v4222 = vpack.c.b16 %v3430, %v3426
        %v4223 = vpack.c.b16 %v3431, %v3427
        %v4224 = vpack.c.b16 %v3436, %v3432
        %v4225 = vpack.c.b16 %v3437, %v3433
        %v4226 = vpack.c.b16 %v3438, %v3434
        %v4227 = vpack.c.b16 %v3439, %v3435
        %v4228 = vpack.c.b16 %v3444, %v3440
        %v4229 = vpack.c.b16 %v3445, %v3441
        %v4230 = vpack.c.b16 %v3446, %v3442
        %v4231 = vpack.c.b16 %v3447, %v3443
        %v4232 = vpack.c.b16 %v3452, %v3448
        %v4233 = vpack.c.b16 %v3453, %v3449
        %v4234 = vpack.c.b16 %v3454, %v3450
        %v4235 = vpack.c.b16 %v3455, %v3451
        %v4236 = vpack.c.b16 %v3460, %v3456
        %v4237 = vpack.c.b16 %v3461, %v3457
        %v4238 = vpack.c.b16 %v3462, %v3458
        %v4239 = vpack.c.b16 %v3463, %v3459
        %v4240 = vpack.c.b16 %v3468, %v3464
        %v4241 = vpack.c.b16 %v3469, %v3465
        %v4242 = vpack.c.b16 %v3470, %v3466
        %v4243 = vpack.c.b16 %v3471, %v3467
        %v4244 = vpack.c.b16 %v3476, %v3472
        %v4245 = vpack.c.b16 %v3477, %v3473
        %v4246 = vpack.c.b16 %v3478, %v3474
        %v4247 = vpack.c.b16 %v3479, %v3475
        %v4248 = vpack.c.b16 %v3484, %v3480
        %v4249 = vpack.c.b16 %v3485, %v3481
        %v4250 = vpack.c.b16 %v3486, %v3482
        %v4251 = vpack.c.b16 %v3487, %v3483
        %v4252 = vpack.c.b16 %v3492, %v3488
        %v4253 = vpack.c.b16 %v3493, %v3489
        %v4254 = vpack.c.b16 %v3494, %v3490
        %v4255 = vpack.c.b16 %v3495, %v3491
        %v4256 = vpack.c.b16 %v3500, %v3496
        %v4257 = vpack.c.b16 %v3501, %v3497
        %v4258 = vpack.c.b16 %v3502, %v3498
        %v4259 = vpack.c.b16 %v3503, %v3499
        %v4260 = vpack.c.b16 %v3508, %v3504
        %v4261 = vpack.c.b16 %v3509, %v3505
        %v4262 = vpack.c.b16 %v3510, %v3506
        %v4263 = vpack.c.b16 %v3511, %v3507
        %v4264 = vpack.c.b16 %v3516, %v3512
        %v4265 = vpack.c.b16 %v3517, %v3513
        %v4266 = vpack.c.b16 %v3518, %v3514
        %v4267 = vpack.c.b16 %v3519, %v3515
        %v4268 = vpack.c.b16 %v3524, %v3520
        %v4269 = vpack.c.b16 %v3525, %v3521
        %v4270 = vpack.c.b16 %v3526, %v3522
        %v4271 = vpack.c.b16 %v3527, %v3523
        %v4272 = vpack.c.b16 %v3532, %v3528
        %v4273 = vpack.c.b16 %v3533, %v3529
        %v4274 = vpack.c.b16 %v3534, %v3530
        %v4275 = vpack.c.b16 %v3535, %v3531
        %v4276 = vpack.c.b16 %v3540, %v3536
        %v4277 = vpack.c.b16 %v3541, %v3537
        %v4278 = vpack.c.b16 %v3542, %v3538
        %v4279 = vpack.c.b16 %v3543, %v3539
        %v4280 = vpack.c.b16 %v3548, %v3544
        %v4281 = vpack.c.b16 %v3549, %v3545
        %v4282 = vpack.c.b16 %v3550, %v3546
        %v4283 = vpack.c.b16 %v3551, %v3547
        %v4284 = vpack.c.b16 %v3556, %v3552
        %v4285 = vpack.c.b16 %v3557, %v3553
        %v4286 = vpack.c.b16 %v3558, %v3554
        %v4287 = vpack.c.b16 %v3559, %v3555
        %v4288 = vpack.c.b16 %v3564, %v3560
        %v4289 = vpack.c.b16 %v3565, %v3561
        %v4290 = vpack.c.b16 %v3566, %v3562
        %v4291 = vpack.c.b16 %v3567, %v3563
        %v4292 = vpack.c.b16 %v3572, %v3568
        %v4293 = vpack.c.b16 %v3573, %v3569
        %v4294 = vpack.c.b16 %v3574, %v3570
        %v4295 = vpack.c.b16 %v3575, %v3571
        %v4296 = vpack.c.b16 %v3580, %v3576
        %v4297 = vpack.c.b16 %v3581, %v3577
        %v4298 = vpack.c.b16 %v3582, %v3578
        %v4299 = vpack.c.b16 %v3583, %v3579
        %v4300 = vpack.c.b16 %v3588, %v3584
        %v4301 = vpack.c.b16 %v3589, %v3585
        %v4302 = vpack.c.b16 %v3590, %v3586
        %v4303 = vpack.c.b16 %v3591, %v3587
        %v4304 = vpack.c.b16 %v3596, %v3592
        %v4305 = vpack.c.b16 %v3597, %v3593
        %v4306 = vpack.c.b16 %v3598, %v3594
        %v4307 = vpack.c.b16 %v3599, %v3595
        %v4308 = vpack.c.b16 %v3604, %v3600
        %v4309 = vpack.c.b16 %v3605, %v3601
        %v4310 = vpack.c.b16 %v3606, %v3602
        %v4311 = vpack.c.b16 %v3607, %v3603
        %v4312 = vpack.c.b16 %v3612, %v3608
        %v4313 = vpack.c.b16 %v3613, %v3609
        %v4314 = vpack.c.b16 %v3614, %v3610
        %v4315 = vpack.c.b16 %v3615, %v3611
        %v4316 = vpack.c.b16 %v3620, %v3616
        %v4317 = vpack.c.b16 %v3621, %v3617
        %v4318 = vpack.c.b16 %v3622, %v3618
        %v4319 = vpack.c.b16 %v3623, %v3619
        %v4320 = vpack.c.b16 %v3628, %v3624
        %v4321 = vpack.c.b16 %v3629, %v3625
        %v4322 = vpack.c.b16 %v3630, %v3626
        %v4323 = vpack.c.b16 %v3631, %v3627
        %v4324 = vpack.c.b16 %v3636, %v3632
        %v4325 = vpack.c.b16 %v3637, %v3633
        %v4326 = vpack.c.b16 %v3638, %v3634
        %v4327 = vpack.c.b16 %v3639, %v3635
        %v4328 = vpack.c.b16 %v3644, %v3640
        %v4329 = vpack.c.b16 %v3645, %v3641
        %v4330 = vpack.c.b16 %v3646, %v3642
        %v4331 = vpack.c.b16 %v3647, %v3643
        %v4332 = vpack.c.b16 %v3652, %v3648
        %v4333 = vpack.c.b16 %v3653, %v3649
        %v4334 = vpack.c.b16 %v3654, %v3650
        %v4335 = vpack.c.b16 %v3655, %v3651
        %v4336 = vpack.c.b16 %v3660, %v3656
        %v4337 = vpack.c.b16 %v3661, %v3657
        %v4338 = vpack.c.b16 %v3662, %v3658
        %v4339 = vpack.c.b16 %v3663, %v3659
        %v4340 = vpack.c.b16 %v3668, %v3664
        %v4341 = vpack.c.b16 %v3669, %v3665
        %v4342 = vpack.c.b16 %v3670, %v3666
        %v4343 = vpack.c.b16 %v3671, %v3667
        %v4344 = vpack.c.b16 %v3676, %v3672
        %v4345 = vpack.c.b16 %v3677, %v3673
        %v4346 = vpack.c.b16 %v3678, %v3674
        %v4347 = vpack.c.b16 %v3679, %v3675
        %v4348 = vpack.c.b16 %v3684, %v3680
        %v4349 = vpack.c.b16 %v3685, %v3681
        %v4350 = vpack.c.b16 %v3686, %v3682
        %v4351 = vpack.c.b16 %v3687, %v3683
        %v4352 = vpack.c.b16 %v3692, %v3688
        %v4353 = vpack.c.b16 %v3693, %v3689
        %v4354 = vpack.c.b16 %v3694, %v3690
        %v4355 = vpack.c.b16 %v3695, %v3691
        %v4356 = vpack.c.b16 %v3700, %v3696
        %v4357 = vpack.c.b16 %v3701, %v3697
        %v4358 = vpack.c.b16 %v3702, %v3698
        %v4359 = vpack.c.b16 %v3703, %v3699
        %v4360 = vpack.c.b16 %v3708, %v3704
        %v4361 = vpack.c.b16 %v3709, %v3705
        %v4362 = vpack.c.b16 %v3710, %v3706
        %v4363 = vpack.c.b16 %v3711, %v3707
        %v4364 = vpack.c.b16 %v3716, %v3712
        %v4365 = vpack.c.b16 %v3717, %v3713
        %v4366 = vpack.c.b16 %v3718, %v3714
        %v4367 = vpack.c.b16 %v3719, %v3715
        %v4368 = vpack.c.b16 %v3724, %v3720
        %v4369 = vpack.c.b16 %v3725, %v3721
        %v4370 = vpack.c.b16 %v3726, %v3722
        %v4371 = vpack.c.b16 %v3727, %v3723
        %v4372 = vpack.c.b16 %v3732, %v3728
        %v4373 = vpack.c.b16 %v3733, %v3729
        %v4374 = vpack.c.b16 %v3734, %v3730
        %v4375 = vpack.c.b16 %v3735, %v3731
        %v4376 = vpack.c.b16 %v3740, %v3736
        %v4377 = vpack.c.b16 %v3741, %v3737
        %v4378 = vpack.c.b16 %v3742, %v3738
        %v4379 = vpack.c.b16 %v3743, %v3739
        %v4380 = vpack.c.b16 %v3748, %v3744
        %v4381 = vpack.c.b16 %v3749, %v3745
        %v4382 = vpack.c.b16 %v3750, %v3746
        %v4383 = vpack.c.b16 %v3751, %v3747
        %v4384 = vpack.c.b16 %v3756, %v3752
        %v4385 = vpack.c.b16 %v3757, %v3753
        %v4386 = vpack.c.b16 %v3758, %v3754
        %v4387 = vpack.c.b16 %v3759, %v3755
        %v4388 = vpack.c.b16 %v3764, %v3760
        %v4389 = vpack.c.b16 %v3765, %v3761
        %v4390 = vpack.c.b16 %v3766, %v3762
        %v4391 = vpack.c.b16 %v3767, %v3763
        %v4392 = vpack.c.b16 %v3772, %v3768
        %v4393 = vpack.c.b16 %v3773, %v3769
        %v4394 = vpack.c.b16 %v3774, %v3770
        %v4395 = vpack.c.b16 %v3775, %v3771
        %v4396 = vpack.c.b16 %v3780, %v3776
        %v4397 = vpack.c.b16 %v3781, %v3777
        %v4398 = vpack.c.b16 %v3782, %v3778
        %v4399 = vpack.c.b16 %v3783, %v3779
        %v4400 = vpack.c.b16 %v3788, %v3784
        %v4401 = vpack.c.b16 %v3789, %v3785
        %v4402 = vpack.c.b16 %v3790, %v3786
        %v4403 = vpack.c.b16 %v3791, %v3787
        %v4404 = vpack.c.b16 %v3796, %v3792
        %v4405 = vpack.c.b16 %v3797, %v3793
        %v4406 = vpack.c.b16 %v3798, %v3794
        %v4407 = vpack.c.b16 %v3799, %v3795
        %v4408 = vpack.c.b16 %v3804, %v3800
        %v4409 = vpack.c.b16 %v3805, %v3801
        %v4410 = vpack.c.b16 %v3806, %v3802
        %v4411 = vpack.c.b16 %v3807, %v3803
        %v4412 = vpack.c.b16 %v3812, %v3808
        %v4413 = vpack.c.b16 %v3813, %v3809
        %v4414 = vpack.c.b16 %v3814, %v3810
        %v4415 = vpack.c.b16 %v3815, %v3811
        %v4416 = vpack.c.b16 %v3820, %v3816
        %v4417 = vpack.c.b16 %v3821, %v3817
        %v4418 = vpack.c.b16 %v3822, %v3818
        %v4419 = vpack.c.b16 %v3823, %v3819
        %v4420 = vpack.c.b16 %v3828, %v3824
        %v4421 = vpack.c.b16 %v3829, %v3825
        %v4422 = vpack.c.b16 %v3830, %v3826
        %v4423 = vpack.c.b16 %v3831, %v3827
        %v4424 = vpack.c.b16 %v3836, %v3832
        %v4425 = vpack.c.b16 %v3837, %v3833
        %v4426 = vpack.c.b16 %v3838, %v3834
        %v4427 = vpack.c.b16 %v3839, %v3835
        %v4428 = vpack.c.b16 %v3844, %v3840
        %v4429 = vpack.c.b16 %v3845, %v3841
        %v4430 = vpack.c.b16 %v3846, %v3842
        %v4431 = vpack.c.b16 %v3847, %v3843
        %v4432 = vpack.c.b16 %v3852, %v3848
        %v4433 = vpack.c.b16 %v3853, %v3849
        %v4434 = vpack.c.b16 %v3854, %v3850
        %v4435 = vpack.c.b16 %v3855, %v3851
        %v4436 = vpack.c.b16 %v3860, %v3856
        %v4437 = vpack.c.b16 %v3861, %v3857
        %v4438 = vpack.c.b16 %v3862, %v3858
        %v4439 = vpack.c.b16 %v3863, %v3859
        %v4440 = vpack.c.b16 %v3868, %v3864
        %v4441 = vpack.c.b16 %v3869, %v3865
        %v4442 = vpack.c.b16 %v3870, %v3866
        %v4443 = vpack.c.b16 %v3871, %v3867
        %v4444 = vpack.c.b16 %v3876, %v3872
        %v4445 = vpack.c.b16 %v3877, %v3873
        %v4446 = vpack.c.b16 %v3878, %v3874
        %v4447 = vpack.c.b16 %v3879, %v3875
        %v4448 = vpack.c.b16 %v3884, %v3880
        %v4449 = vpack.c.b16 %v3885, %v3881
        %v4450 = vpack.c.b16 %v3886, %v3882
        %v4451 = vpack.c.b16 %v3887, %v3883
        %v4452 = vpack.c.b16 %v3892, %v3888
        %v4453 = vpack.c.b16 %v3893, %v3889
        %v4454 = vpack.c.b16 %v3894, %v3890
        %v4455 = vpack.c.b16 %v3895, %v3891
        %v4456 = vpack.c.b16 %v3900, %v3896
        %v4457 = vpack.c.b16 %v3901, %v3897
        %v4458 = vpack.c.b16 %v3902, %v3898
        %v4459 = vpack.c.b16 %v3903, %v3899
        %v4460 = vpack.c.b16 %v3908, %v3904
        %v4461 = vpack.c.b16 %v3909, %v3905
        %v4462 = vpack.c.b16 %v3910, %v3906
        %v4463 = vpack.c.b16 %v3911, %v3907
        %v4464 = vpack.c.b16 %v3916, %v3912
        %v4465 = vpack.c.b16 %v3917, %v3913
        %v4466 = vpack.c.b16 %v3918, %v3914
        %v4467 = vpack.c.b16 %v3919, %v3915
        %v4468 = vpack.c.b16 %v3924, %v3920
        %v4469 = vpack.c.b16 %v3925, %v3921
        %v4470 = vpack.c.b16 %v3926, %v3922
        %v4471 = vpack.c.b16 %v3927, %v3923
        %v4472 = vpack.c.b16 %v3932, %v3928
        %v4473 = vpack.c.b16 %v3933, %v3929
        %v4474 = vpack.c.b16 %v3934, %v3930
        %v4475 = vpack.c.b16 %v3935, %v3931
        %v4476 = vpack.c.b16 %v3940, %v3936
        %v4477 = vpack.c.b16 %v3941, %v3937
        %v4478 = vpack.c.b16 %v3942, %v3938
        %v4479 = vpack.c.b16 %v3943, %v3939
        %v4480 = vpack.c.b16 %v3948, %v3944
        %v4481 = vpack.c.b16 %v3949, %v3945
        %v4482 = vpack.c.b16 %v3950, %v3946
        %v4483 = vpack.c.b16 %v3951, %v3947
        %v4484 = vpack.c.b16 %v3956, %v3952
        %v4485 = vpack.c.b16 %v3957, %v3953
        %v4486 = vpack.c.b16 %v3958, %v3954
        %v4487 = vpack.c.b16 %v3959, %v3955
        %v4488 = vpack.c.b16 %v3964, %v3960
        %v4489 = vpack.c.b16 %v3965, %v3961
        %v4490 = vpack.c.b16 %v3966, %v3962
        %v4491 = vpack.c.b16 %v3967, %v3963
        %v4492 = vpack.c.b16 %v3972, %v3968
        %v4493 = vpack.c.b16 %v3973, %v3969
        %v4494 = vpack.c.b16 %v3974, %v3970
        %v4495 = vpack.c.b16 %v3975, %v3971
        %v4496 = vpack.c.b16 %v3980, %v3976
        %v4497 = vpack.c.b16 %v3981, %v3977
        %v4498 = vpack.c.b16 %v3982, %v3978
        %v4499 = vpack.c.b16 %v3983, %v3979
        %v4500 = vpack.c.b16 %v3988, %v3984
        %v4501 = vpack.c.b16 %v3989, %v3985
        %v4502 = vpack.c.b16 %v3990, %v3986
        %v4503 = vpack.c.b16 %v3991, %v3987
        %5016 = vmatpush.bf16.msra.mxu0 %v4020
        %5017 = vmatpush.bf16.msra.mxu0 %v4016
        %5018 = vmatpush.bf16.msra.mxu0 %v4012
        %5019 = vmatpush.bf16.msra.mxu0 %v4008
        %5020 = vmatpush.bf16.msra.mxu0 %v4004
        %5021 = vmatpush.bf16.msra.mxu0 %v4000
        %5022 = vmatpush.bf16.msra.mxu0 %v3996
        %5023 = vmatpush.bf16.msra.mxu0 %v3992
        %5024 = vmatmul.bf16.gmra.mxu0 %v2424
        %v5025 = vpop.f32.mrf.mxu0
        %v5026 = vadd.f32 0.0, %v5025
        %v5027 = vpop.f32.mrf.mxu0
        %5028 = vdwg.mxu0
        %5029 = vmatpush.bf16.msra.mxu0 %v4052
        %5030 = vmatpush.bf16.msra.mxu0 %v4048
        %5031 = vmatpush.bf16.msra.mxu0 %v4044
        %5032 = vmatpush.bf16.msra.mxu0 %v4040
        %5033 = vmatpush.bf16.msra.mxu0 %v4036
        %5034 = vmatpush.bf16.msra.mxu0 %v4032
        %5035 = vmatpush.bf16.msra.mxu0 %v4028
        %5036 = vmatpush.bf16.msra.mxu0 %v4024
        %5037 = vmatmul.bf16.gmra.mxu0 %v2425
        %v5038 = vpop.f32.mrf.mxu0
        %v5039 = vadd.f32 %v5026, %v5038
        %v5040 = vpop.f32.mrf.mxu0
        %5041 = vdwg.mxu0
        %5042 = vmatpush.bf16.msra.mxu0 %v4084
        %5043 = vmatpush.bf16.msra.mxu0 %v4080
        %5044 = vmatpush.bf16.msra.mxu0 %v4076
        %5045 = vmatpush.bf16.msra.mxu0 %v4072
        %5046 = vmatpush.bf16.msra.mxu0 %v4068
        %5047 = vmatpush.bf16.msra.mxu0 %v4064
        %5048 = vmatpush.bf16.msra.mxu0 %v4060
        %5049 = vmatpush.bf16.msra.mxu0 %v4056
        %5050 = vmatmul.bf16.gmra.mxu0 %v2426
        %v5051 = vpop.f32.mrf.mxu0
        %v5052 = vadd.f32 %v5039, %v5051
        %v5053 = vpop.f32.mrf.mxu0
        %5054 = vdwg.mxu0
        %5055 = vmatpush.bf16.msra.mxu0 %v4116
        %5056 = vmatpush.bf16.msra.mxu0 %v4112
        %5057 = vmatpush.bf16.msra.mxu0 %v4108
        %5058 = vmatpush.bf16.msra.mxu0 %v4104
        %5059 = vmatpush.bf16.msra.mxu0 %v4100
        %5060 = vmatpush.bf16.msra.mxu0 %v4096
        %5061 = vmatpush.bf16.msra.mxu0 %v4092
        %5062 = vmatpush.bf16.msra.mxu0 %v4088
        %5063 = vmatmul.bf16.gmra.mxu0 %v2427
        %v5064 = vpop.f32.mrf.mxu0
        %v5065 = vadd.f32 %v5052, %v5064
        %v5066 = vpop.f32.mrf.mxu0
        %5067 = vdwg.mxu0
        %5068 = vmatpush.bf16.msra.mxu0 %v4148
        %5069 = vmatpush.bf16.msra.mxu0 %v4144
        %5070 = vmatpush.bf16.msra.mxu0 %v4140
        %5071 = vmatpush.bf16.msra.mxu0 %v4136
        %5072 = vmatpush.bf16.msra.mxu0 %v4132
        %5073 = vmatpush.bf16.msra.mxu0 %v4128
        %5074 = vmatpush.bf16.msra.mxu0 %v4124
        %5075 = vmatpush.bf16.msra.mxu0 %v4120
        %5076 = vmatmul.bf16.gmra.mxu0 %v2428
        %v5077 = vpop.f32.mrf.mxu0
        %v5078 = vadd.f32 %v5065, %v5077
        %v5079 = vpop.f32.mrf.mxu0
        %5080 = vdwg.mxu0
        %5081 = vmatpush.bf16.msra.mxu0 %v4180
        %5082 = vmatpush.bf16.msra.mxu0 %v4176
        %5083 = vmatpush.bf16.msra.mxu0 %v4172
        %5084 = vmatpush.bf16.msra.mxu0 %v4168
        %5085 = vmatpush.bf16.msra.mxu0 %v4164
        %5086 = vmatpush.bf16.msra.mxu0 %v4160
        %5087 = vmatpush.bf16.msra.mxu0 %v4156
        %5088 = vmatpush.bf16.msra.mxu0 %v4152
        %5089 = vmatmul.bf16.gmra.mxu0 %v2429
        %v5090 = vpop.f32.mrf.mxu0
        %v5091 = vadd.f32 %v5078, %v5090
        %v5092 = vpop.f32.mrf.mxu0
        %5093 = vdwg.mxu0
        %5094 = vmatpush.bf16.msra.mxu0 %v4212
        %5095 = vmatpush.bf16.msra.mxu0 %v4208
        %5096 = vmatpush.bf16.msra.mxu0 %v4204
        %5097 = vmatpush.bf16.msra.mxu0 %v4200
        %5098 = vmatpush.bf16.msra.mxu0 %v4196
        %5099 = vmatpush.bf16.msra.mxu0 %v4192
        %5100 = vmatpush.bf16.msra.mxu0 %v4188
        %5101 = vmatpush.bf16.msra.mxu0 %v4184
        %5102 = vmatmul.bf16.gmra.mxu0 %v2430
        %v5103 = vpop.f32.mrf.mxu0
        %v5104 = vadd.f32 %v5091, %v5103
        %v5105 = vpop.f32.mrf.mxu0
        %5106 = vdwg.mxu0
        %5107 = vmatpush.bf16.msra.mxu0 %v4244
        %5108 = vmatpush.bf16.msra.mxu0 %v4240
        %5109 = vmatpush.bf16.msra.mxu0 %v4236
        %5110 = vmatpush.bf16.msra.mxu0 %v4232
        %5111 = vmatpush.bf16.msra.mxu0 %v4228
        %5112 = vmatpush.bf16.msra.mxu0 %v4224
        %5113 = vmatpush.bf16.msra.mxu0 %v4220
        %5114 = vmatpush.bf16.msra.mxu0 %v4216
        %5115 = vmatmul.bf16.gmra.mxu0 %v2431
        %v5116 = vpop.f32.mrf.mxu0
        %v5117 = vadd.f32 %v5104, %v5116
        %v5118 = vpop.f32.mrf.mxu0
        %5119 = vdwg.mxu0
        %5120 = vmatpush.bf16.msra.mxu0 %v4276
        %5121 = vmatpush.bf16.msra.mxu0 %v4272
        %5122 = vmatpush.bf16.msra.mxu0 %v4268
        %5123 = vmatpush.bf16.msra.mxu0 %v4264
        %5124 = vmatpush.bf16.msra.mxu0 %v4260
        %5125 = vmatpush.bf16.msra.mxu0 %v4256
        %5126 = vmatpush.bf16.msra.mxu0 %v4252
        %5127 = vmatpush.bf16.msra.mxu0 %v4248
        %5128 = vmatmul.bf16.gmra.mxu0 %v2432
        %v5129 = vpop.f32.mrf.mxu0
        %v5130 = vadd.f32 %v5117, %v5129
        %v5131 = vpop.f32.mrf.mxu0
        %5132 = vdwg.mxu0
        %5133 = vmatpush.bf16.msra.mxu0 %v4308
        %5134 = vmatpush.bf16.msra.mxu0 %v4304
        %5135 = vmatpush.bf16.msra.mxu0 %v4300
        %5136 = vmatpush.bf16.msra.mxu0 %v4296
        %5137 = vmatpush.bf16.msra.mxu0 %v4292
        %5138 = vmatpush.bf16.msra.mxu0 %v4288
        %5139 = vmatpush.bf16.msra.mxu0 %v4284
        %5140 = vmatpush.bf16.msra.mxu0 %v4280
        %5141 = vmatmul.bf16.gmra.mxu0 %v2433
        %v5142 = vpop.f32.mrf.mxu0
        %v5143 = vadd.f32 %v5130, %v5142
        %v5144 = vpop.f32.mrf.mxu0
        %5145 = vdwg.mxu0
        %5146 = vmatpush.bf16.msra.mxu0 %v4340
        %5147 = vmatpush.bf16.msra.mxu0 %v4336
        %5148 = vmatpush.bf16.msra.mxu0 %v4332
        %5149 = vmatpush.bf16.msra.mxu0 %v4328
        %5150 = vmatpush.bf16.msra.mxu0 %v4324
        %5151 = vmatpush.bf16.msra.mxu0 %v4320
        %5152 = vmatpush.bf16.msra.mxu0 %v4316
        %5153 = vmatpush.bf16.msra.mxu0 %v4312
        %5154 = vmatmul.bf16.gmra.mxu0 %v2434
        %v5155 = vpop.f32.mrf.mxu0
        %v5156 = vadd.f32 %v5143, %v5155
        %v5157 = vpop.f32.mrf.mxu0
        %5158 = vdwg.mxu0
        %5159 = vmatpush.bf16.msra.mxu0 %v4372
        %5160 = vmatpush.bf16.msra.mxu0 %v4368
        %5161 = vmatpush.bf16.msra.mxu0 %v4364
        %5162 = vmatpush.bf16.msra.mxu0 %v4360
        %5163 = vmatpush.bf16.msra.mxu0 %v4356
        %5164 = vmatpush.bf16.msra.mxu0 %v4352
        %5165 = vmatpush.bf16.msra.mxu0 %v4348
        %5166 = vmatpush.bf16.msra.mxu0 %v4344
        %5167 = vmatmul.bf16.gmra.mxu0 %v2435
        %v5168 = vpop.f32.mrf.mxu0
        %v5169 = vadd.f32 %v5156, %v5168
        %v5170 = vpop.f32.mrf.mxu0
        %5171 = vdwg.mxu0
        %5172 = vmatpush.bf16.msra.mxu0 %v4404
        %5173 = vmatpush.bf16.msra.mxu0 %v4400
        %5174 = vmatpush.bf16.msra.mxu0 %v4396
        %5175 = vmatpush.bf16.msra.mxu0 %v4392
        %5176 = vmatpush.bf16.msra.mxu0 %v4388
        %5177 = vmatpush.bf16.msra.mxu0 %v4384
        %5178 = vmatpush.bf16.msra.mxu0 %v4380
        %5179 = vmatpush.bf16.msra.mxu0 %v4376
        %5180 = vmatmul.bf16.gmra.mxu0 %v2436
        %v5181 = vpop.f32.mrf.mxu0
        %v5182 = vadd.f32 %v5169, %v5181
        %v5183 = vpop.f32.mrf.mxu0
        %5184 = vdwg.mxu0
        %5185 = vmatpush.bf16.msra.mxu0 %v4436
        %5186 = vmatpush.bf16.msra.mxu0 %v4432
        %5187 = vmatpush.bf16.msra.mxu0 %v4428
        %5188 = vmatpush.bf16.msra.mxu0 %v4424
        %5189 = vmatpush.bf16.msra.mxu0 %v4420
        %5190 = vmatpush.bf16.msra.mxu0 %v4416
        %5191 = vmatpush.bf16.msra.mxu0 %v4412
        %5192 = vmatpush.bf16.msra.mxu0 %v4408
        %5193 = vmatmul.bf16.gmra.mxu0 %v2437
        %v5194 = vpop.f32.mrf.mxu0
        %v5195 = vadd.f32 %v5182, %v5194
        %v5196 = vpop.f32.mrf.mxu0
        %5197 = vdwg.mxu0
        %5198 = vmatpush.bf16.msra.mxu0 %v4468
        %5199 = vmatpush.bf16.msra.mxu0 %v4464
        %5200 = vmatpush.bf16.msra.mxu0 %v4460
        %5201 = vmatpush.bf16.msra.mxu0 %v4456
        %5202 = vmatpush.bf16.msra.mxu0 %v4452
        %5203 = vmatpush.bf16.msra.mxu0 %v4448
        %5204 = vmatpush.bf16.msra.mxu0 %v4444
        %5205 = vmatpush.bf16.msra.mxu0 %v4440
        %5206 = vmatmul.bf16.gmra.mxu0 %v2438
        %v5207 = vpop.f32.mrf.mxu0
        %v5208 = vadd.f32 %v5195, %v5207
        %v5209 = vpop.f32.mrf.mxu0
        %5210 = vdwg.mxu0
        %5211 = vmatpush.bf16.msra.mxu0 %v4500
        %5212 = vmatpush.bf16.msra.mxu0 %v4496
        %5213 = vmatpush.bf16.msra.mxu0 %v4492
        %5214 = vmatpush.bf16.msra.mxu0 %v4488
        %5215 = vmatpush.bf16.msra.mxu0 %v4484
        %5216 = vmatpush.bf16.msra.mxu0 %v4480
        %5217 = vmatpush.bf16.msra.mxu0 %v4476
        %5218 = vmatpush.bf16.msra.mxu0 %v4472
        %5219 = vmatmul.bf16.gmra.mxu0 %v2439
        %v5220 = vpop.f32.mrf.mxu0
        %v5221 = vadd.f32 %v5208, %v5220
        %v5222 = vpop.f32.mrf.mxu0
        %5223 = vdwg.mxu0
        %5224 = vmatpush.bf16.msra.mxu0 %v4021
        %5225 = vmatpush.bf16.msra.mxu0 %v4017
        %5226 = vmatpush.bf16.msra.mxu0 %v4013
        %5227 = vmatpush.bf16.msra.mxu0 %v4009
        %5228 = vmatpush.bf16.msra.mxu0 %v4005
        %5229 = vmatpush.bf16.msra.mxu0 %v4001
        %5230 = vmatpush.bf16.msra.mxu0 %v3997
        %5231 = vmatpush.bf16.msra.mxu0 %v3993
        %5232 = vmatmul.bf16.gmra.mxu0 %v2424
        %v5233 = vpop.f32.mrf.mxu0
        %v5234 = vadd.f32 0.0, %v5233
        %v5235 = vpop.f32.mrf.mxu0
        %5236 = vdwg.mxu0
        %5237 = vmatpush.bf16.msra.mxu0 %v4053
        %5238 = vmatpush.bf16.msra.mxu0 %v4049
        %5239 = vmatpush.bf16.msra.mxu0 %v4045
        %5240 = vmatpush.bf16.msra.mxu0 %v4041
        %5241 = vmatpush.bf16.msra.mxu0 %v4037
        %5242 = vmatpush.bf16.msra.mxu0 %v4033
        %5243 = vmatpush.bf16.msra.mxu0 %v4029
        %5244 = vmatpush.bf16.msra.mxu0 %v4025
        %5245 = vmatmul.bf16.gmra.mxu0 %v2425
        %v5246 = vpop.f32.mrf.mxu0
        %v5247 = vadd.f32 %v5234, %v5246
        %v5248 = vpop.f32.mrf.mxu0
        %5249 = vdwg.mxu0
        %5250 = vmatpush.bf16.msra.mxu0 %v4085
        %5251 = vmatpush.bf16.msra.mxu0 %v4081
        %5252 = vmatpush.bf16.msra.mxu0 %v4077
        %5253 = vmatpush.bf16.msra.mxu0 %v4073
        %5254 = vmatpush.bf16.msra.mxu0 %v4069
        %5255 = vmatpush.bf16.msra.mxu0 %v4065
        %5256 = vmatpush.bf16.msra.mxu0 %v4061
        %5257 = vmatpush.bf16.msra.mxu0 %v4057
        %5258 = vmatmul.bf16.gmra.mxu0 %v2426
        %v5259 = vpop.f32.mrf.mxu0
        %v5260 = vadd.f32 %v5247, %v5259
        %v5261 = vpop.f32.mrf.mxu0
        %5262 = vdwg.mxu0
        %5263 = vmatpush.bf16.msra.mxu0 %v4117
        %5264 = vmatpush.bf16.msra.mxu0 %v4113
        %5265 = vmatpush.bf16.msra.mxu0 %v4109
        %5266 = vmatpush.bf16.msra.mxu0 %v4105
        %5267 = vmatpush.bf16.msra.mxu0 %v4101
        %5268 = vmatpush.bf16.msra.mxu0 %v4097
        %5269 = vmatpush.bf16.msra.mxu0 %v4093
        %5270 = vmatpush.bf16.msra.mxu0 %v4089
        %5271 = vmatmul.bf16.gmra.mxu0 %v2427
        %v5272 = vpop.f32.mrf.mxu0
        %v5273 = vadd.f32 %v5260, %v5272
        %v5274 = vpop.f32.mrf.mxu0
        %5275 = vdwg.mxu0
        %5276 = vmatpush.bf16.msra.mxu0 %v4149
        %5277 = vmatpush.bf16.msra.mxu0 %v4145
        %5278 = vmatpush.bf16.msra.mxu0 %v4141
        %5279 = vmatpush.bf16.msra.mxu0 %v4137
        %5280 = vmatpush.bf16.msra.mxu0 %v4133
        %5281 = vmatpush.bf16.msra.mxu0 %v4129
        %5282 = vmatpush.bf16.msra.mxu0 %v4125
        %5283 = vmatpush.bf16.msra.mxu0 %v4121
        %5284 = vmatmul.bf16.gmra.mxu0 %v2428
        %v5285 = vpop.f32.mrf.mxu0
        %v5286 = vadd.f32 %v5273, %v5285
        %v5287 = vpop.f32.mrf.mxu0
        %5288 = vdwg.mxu0
        %5289 = vmatpush.bf16.msra.mxu0 %v4181
        %5290 = vmatpush.bf16.msra.mxu0 %v4177
        %5291 = vmatpush.bf16.msra.mxu0 %v4173
        %5292 = vmatpush.bf16.msra.mxu0 %v4169
        %5293 = vmatpush.bf16.msra.mxu0 %v4165
        %5294 = vmatpush.bf16.msra.mxu0 %v4161
        %5295 = vmatpush.bf16.msra.mxu0 %v4157
        %5296 = vmatpush.bf16.msra.mxu0 %v4153
        %5297 = vmatmul.bf16.gmra.mxu0 %v2429
        %v5298 = vpop.f32.mrf.mxu0
        %v5299 = vadd.f32 %v5286, %v5298
        %v5300 = vpop.f32.mrf.mxu0
        %5301 = vdwg.mxu0
        %5302 = vmatpush.bf16.msra.mxu0 %v4213
        %5303 = vmatpush.bf16.msra.mxu0 %v4209
        %5304 = vmatpush.bf16.msra.mxu0 %v4205
        %5305 = vmatpush.bf16.msra.mxu0 %v4201
        %5306 = vmatpush.bf16.msra.mxu0 %v4197
        %5307 = vmatpush.bf16.msra.mxu0 %v4193
        %5308 = vmatpush.bf16.msra.mxu0 %v4189
        %5309 = vmatpush.bf16.msra.mxu0 %v4185
        %5310 = vmatmul.bf16.gmra.mxu0 %v2430
        %v5311 = vpop.f32.mrf.mxu0
        %v5312 = vadd.f32 %v5299, %v5311
        %v5313 = vpop.f32.mrf.mxu0
        %5314 = vdwg.mxu0
        %5315 = vmatpush.bf16.msra.mxu0 %v4245
        %5316 = vmatpush.bf16.msra.mxu0 %v4241
        %5317 = vmatpush.bf16.msra.mxu0 %v4237
        %5318 = vmatpush.bf16.msra.mxu0 %v4233
        %5319 = vmatpush.bf16.msra.mxu0 %v4229
        %5320 = vmatpush.bf16.msra.mxu0 %v4225
        %5321 = vmatpush.bf16.msra.mxu0 %v4221
        %5322 = vmatpush.bf16.msra.mxu0 %v4217
        %5323 = vmatmul.bf16.gmra.mxu0 %v2431
        %v5324 = vpop.f32.mrf.mxu0
        %v5325 = vadd.f32 %v5312, %v5324
        %v5326 = vpop.f32.mrf.mxu0
        %5327 = vdwg.mxu0
        %5328 = vmatpush.bf16.msra.mxu0 %v4277
        %5329 = vmatpush.bf16.msra.mxu0 %v4273
        %5330 = vmatpush.bf16.msra.mxu0 %v4269
        %5331 = vmatpush.bf16.msra.mxu0 %v4265
        %5332 = vmatpush.bf16.msra.mxu0 %v4261
        %5333 = vmatpush.bf16.msra.mxu0 %v4257
        %5334 = vmatpush.bf16.msra.mxu0 %v4253
        %5335 = vmatpush.bf16.msra.mxu0 %v4249
        %5336 = vmatmul.bf16.gmra.mxu0 %v2432
        %v5337 = vpop.f32.mrf.mxu0
        %v5338 = vadd.f32 %v5325, %v5337
        %v5339 = vpop.f32.mrf.mxu0
        %5340 = vdwg.mxu0
        %5341 = vmatpush.bf16.msra.mxu0 %v4309
        %5342 = vmatpush.bf16.msra.mxu0 %v4305
        %5343 = vmatpush.bf16.msra.mxu0 %v4301
        %5344 = vmatpush.bf16.msra.mxu0 %v4297
        %5345 = vmatpush.bf16.msra.mxu0 %v4293
        %5346 = vmatpush.bf16.msra.mxu0 %v4289
        %5347 = vmatpush.bf16.msra.mxu0 %v4285
        %5348 = vmatpush.bf16.msra.mxu0 %v4281
        %5349 = vmatmul.bf16.gmra.mxu0 %v2433
        %v5350 = vpop.f32.mrf.mxu0
        %v5351 = vadd.f32 %v5338, %v5350
        %v5352 = vpop.f32.mrf.mxu0
        %5353 = vdwg.mxu0
        %5354 = vmatpush.bf16.msra.mxu0 %v4341
        %5355 = vmatpush.bf16.msra.mxu0 %v4337
        %5356 = vmatpush.bf16.msra.mxu0 %v4333
        %5357 = vmatpush.bf16.msra.mxu0 %v4329
        %5358 = vmatpush.bf16.msra.mxu0 %v4325
        %5359 = vmatpush.bf16.msra.mxu0 %v4321
        %5360 = vmatpush.bf16.msra.mxu0 %v4317
        %5361 = vmatpush.bf16.msra.mxu0 %v4313
        %5362 = vmatmul.bf16.gmra.mxu0 %v2434
        %v5363 = vpop.f32.mrf.mxu0
        %v5364 = vadd.f32 %v5351, %v5363
        %v5365 = vpop.f32.mrf.mxu0
        %5366 = vdwg.mxu0
        %5367 = vmatpush.bf16.msra.mxu0 %v4373
        %5368 = vmatpush.bf16.msra.mxu0 %v4369
        %5369 = vmatpush.bf16.msra.mxu0 %v4365
        %5370 = vmatpush.bf16.msra.mxu0 %v4361
        %5371 = vmatpush.bf16.msra.mxu0 %v4357
        %5372 = vmatpush.bf16.msra.mxu0 %v4353
        %5373 = vmatpush.bf16.msra.mxu0 %v4349
        %5374 = vmatpush.bf16.msra.mxu0 %v4345
        %5375 = vmatmul.bf16.gmra.mxu0 %v2435
        %v5376 = vpop.f32.mrf.mxu0
        %v5377 = vadd.f32 %v5364, %v5376
        %v5378 = vpop.f32.mrf.mxu0
        %5379 = vdwg.mxu0
        %5380 = vmatpush.bf16.msra.mxu0 %v4405
        %5381 = vmatpush.bf16.msra.mxu0 %v4401
        %5382 = vmatpush.bf16.msra.mxu0 %v4397
        %5383 = vmatpush.bf16.msra.mxu0 %v4393
        %5384 = vmatpush.bf16.msra.mxu0 %v4389
        %5385 = vmatpush.bf16.msra.mxu0 %v4385
        %5386 = vmatpush.bf16.msra.mxu0 %v4381
        %5387 = vmatpush.bf16.msra.mxu0 %v4377
        %5388 = vmatmul.bf16.gmra.mxu0 %v2436
        %v5389 = vpop.f32.mrf.mxu0
        %v5390 = vadd.f32 %v5377, %v5389
        %v5391 = vpop.f32.mrf.mxu0
        %5392 = vdwg.mxu0
        %5393 = vmatpush.bf16.msra.mxu0 %v4437
        %5394 = vmatpush.bf16.msra.mxu0 %v4433
        %5395 = vmatpush.bf16.msra.mxu0 %v4429
        %5396 = vmatpush.bf16.msra.mxu0 %v4425
        %5397 = vmatpush.bf16.msra.mxu0 %v4421
        %5398 = vmatpush.bf16.msra.mxu0 %v4417
        %5399 = vmatpush.bf16.msra.mxu0 %v4413
        %5400 = vmatpush.bf16.msra.mxu0 %v4409
        %5401 = vmatmul.bf16.gmra.mxu0 %v2437
        %v5402 = vpop.f32.mrf.mxu0
        %v5403 = vadd.f32 %v5390, %v5402
        %v5404 = vpop.f32.mrf.mxu0
        %5405 = vdwg.mxu0
        %5406 = vmatpush.bf16.msra.mxu0 %v4469
        %5407 = vmatpush.bf16.msra.mxu0 %v4465
        %5408 = vmatpush.bf16.msra.mxu0 %v4461
        %5409 = vmatpush.bf16.msra.mxu0 %v4457
        %5410 = vmatpush.bf16.msra.mxu0 %v4453
        %5411 = vmatpush.bf16.msra.mxu0 %v4449
        %5412 = vmatpush.bf16.msra.mxu0 %v4445
        %5413 = vmatpush.bf16.msra.mxu0 %v4441
        %5414 = vmatmul.bf16.gmra.mxu0 %v2438
        %v5415 = vpop.f32.mrf.mxu0
        %v5416 = vadd.f32 %v5403, %v5415
        %v5417 = vpop.f32.mrf.mxu0
        %5418 = vdwg.mxu0
        %5419 = vmatpush.bf16.msra.mxu0 %v4501
        %5420 = vmatpush.bf16.msra.mxu0 %v4497
        %5421 = vmatpush.bf16.msra.mxu0 %v4493
        %5422 = vmatpush.bf16.msra.mxu0 %v4489
        %5423 = vmatpush.bf16.msra.mxu0 %v4485
        %5424 = vmatpush.bf16.msra.mxu0 %v4481
        %5425 = vmatpush.bf16.msra.mxu0 %v4477
        %5426 = vmatpush.bf16.msra.mxu0 %v4473
        %5427 = vmatmul.bf16.gmra.mxu0 %v2439
        %v5428 = vpop.f32.mrf.mxu0
        %v5429 = vadd.f32 %v5416, %v5428
        %v5430 = vpop.f32.mrf.mxu0
        %5431 = vdwg.mxu0
        %5432 = vmatpush.bf16.msra.mxu0 %v4022
        %5433 = vmatpush.bf16.msra.mxu0 %v4018
        %5434 = vmatpush.bf16.msra.mxu0 %v4014
        %5435 = vmatpush.bf16.msra.mxu0 %v4010
        %5436 = vmatpush.bf16.msra.mxu0 %v4006
        %5437 = vmatpush.bf16.msra.mxu0 %v4002
        %5438 = vmatpush.bf16.msra.mxu0 %v3998
        %5439 = vmatpush.bf16.msra.mxu0 %v3994
        %5440 = vmatmul.bf16.gmra.mxu0 %v2424
        %v5441 = vpop.f32.mrf.mxu0
        %v5442 = vadd.f32 0.0, %v5441
        %v5443 = vpop.f32.mrf.mxu0
        %5444 = vdwg.mxu0
        %5445 = vmatpush.bf16.msra.mxu0 %v4054
        %5446 = vmatpush.bf16.msra.mxu0 %v4050
        %5447 = vmatpush.bf16.msra.mxu0 %v4046
        %5448 = vmatpush.bf16.msra.mxu0 %v4042
        %5449 = vmatpush.bf16.msra.mxu0 %v4038
        %5450 = vmatpush.bf16.msra.mxu0 %v4034
        %5451 = vmatpush.bf16.msra.mxu0 %v4030
        %5452 = vmatpush.bf16.msra.mxu0 %v4026
        %5453 = vmatmul.bf16.gmra.mxu0 %v2425
        %v5454 = vpop.f32.mrf.mxu0
        %v5455 = vadd.f32 %v5442, %v5454
        %v5456 = vpop.f32.mrf.mxu0
        %5457 = vdwg.mxu0
        %5458 = vmatpush.bf16.msra.mxu0 %v4086
        %5459 = vmatpush.bf16.msra.mxu0 %v4082
        %5460 = vmatpush.bf16.msra.mxu0 %v4078
        %5461 = vmatpush.bf16.msra.mxu0 %v4074
        %5462 = vmatpush.bf16.msra.mxu0 %v4070
        %5463 = vmatpush.bf16.msra.mxu0 %v4066
        %5464 = vmatpush.bf16.msra.mxu0 %v4062
        %5465 = vmatpush.bf16.msra.mxu0 %v4058
        %5466 = vmatmul.bf16.gmra.mxu0 %v2426
        %v5467 = vpop.f32.mrf.mxu0
        %v5468 = vadd.f32 %v5455, %v5467
        %v5469 = vpop.f32.mrf.mxu0
        %5470 = vdwg.mxu0
        %5471 = vmatpush.bf16.msra.mxu0 %v4118
        %5472 = vmatpush.bf16.msra.mxu0 %v4114
        %5473 = vmatpush.bf16.msra.mxu0 %v4110
        %5474 = vmatpush.bf16.msra.mxu0 %v4106
        %5475 = vmatpush.bf16.msra.mxu0 %v4102
        %5476 = vmatpush.bf16.msra.mxu0 %v4098
        %5477 = vmatpush.bf16.msra.mxu0 %v4094
        %5478 = vmatpush.bf16.msra.mxu0 %v4090
        %5479 = vmatmul.bf16.gmra.mxu0 %v2427
        %v5480 = vpop.f32.mrf.mxu0
        %v5481 = vadd.f32 %v5468, %v5480
        %v5482 = vpop.f32.mrf.mxu0
        %5483 = vdwg.mxu0
        %5484 = vmatpush.bf16.msra.mxu0 %v4150
        %5485 = vmatpush.bf16.msra.mxu0 %v4146
        %5486 = vmatpush.bf16.msra.mxu0 %v4142
        %5487 = vmatpush.bf16.msra.mxu0 %v4138
        %5488 = vmatpush.bf16.msra.mxu0 %v4134
        %5489 = vmatpush.bf16.msra.mxu0 %v4130
        %5490 = vmatpush.bf16.msra.mxu0 %v4126
        %5491 = vmatpush.bf16.msra.mxu0 %v4122
        %5492 = vmatmul.bf16.gmra.mxu0 %v2428
        %v5493 = vpop.f32.mrf.mxu0
        %v5494 = vadd.f32 %v5481, %v5493
        %v5495 = vpop.f32.mrf.mxu0
        %5496 = vdwg.mxu0
        %5497 = vmatpush.bf16.msra.mxu0 %v4182
        %5498 = vmatpush.bf16.msra.mxu0 %v4178
        %5499 = vmatpush.bf16.msra.mxu0 %v4174
        %5500 = vmatpush.bf16.msra.mxu0 %v4170
        %5501 = vmatpush.bf16.msra.mxu0 %v4166
        %5502 = vmatpush.bf16.msra.mxu0 %v4162
        %5503 = vmatpush.bf16.msra.mxu0 %v4158
        %5504 = vmatpush.bf16.msra.mxu0 %v4154
        %5505 = vmatmul.bf16.gmra.mxu0 %v2429
        %v5506 = vpop.f32.mrf.mxu0
        %v5507 = vadd.f32 %v5494, %v5506
        %v5508 = vpop.f32.mrf.mxu0
        %5509 = vdwg.mxu0
        %5510 = vmatpush.bf16.msra.mxu0 %v4214
        %5511 = vmatpush.bf16.msra.mxu0 %v4210
        %5512 = vmatpush.bf16.msra.mxu0 %v4206
        %5513 = vmatpush.bf16.msra.mxu0 %v4202
        %5514 = vmatpush.bf16.msra.mxu0 %v4198
        %5515 = vmatpush.bf16.msra.mxu0 %v4194
        %5516 = vmatpush.bf16.msra.mxu0 %v4190
        %5517 = vmatpush.bf16.msra.mxu0 %v4186
        %5518 = vmatmul.bf16.gmra.mxu0 %v2430
        %v5519 = vpop.f32.mrf.mxu0
        %v5520 = vadd.f32 %v5507, %v5519
        %v5521 = vpop.f32.mrf.mxu0
        %5522 = vdwg.mxu0
        %5523 = vmatpush.bf16.msra.mxu0 %v4246
        %5524 = vmatpush.bf16.msra.mxu0 %v4242
        %5525 = vmatpush.bf16.msra.mxu0 %v4238
        %5526 = vmatpush.bf16.msra.mxu0 %v4234
        %5527 = vmatpush.bf16.msra.mxu0 %v4230
        %5528 = vmatpush.bf16.msra.mxu0 %v4226
        %5529 = vmatpush.bf16.msra.mxu0 %v4222
        %5530 = vmatpush.bf16.msra.mxu0 %v4218
        %5531 = vmatmul.bf16.gmra.mxu0 %v2431
        %v5532 = vpop.f32.mrf.mxu0
        %v5533 = vadd.f32 %v5520, %v5532
        %v5534 = vpop.f32.mrf.mxu0
        %5535 = vdwg.mxu0
        %5536 = vmatpush.bf16.msra.mxu0 %v4278
        %5537 = vmatpush.bf16.msra.mxu0 %v4274
        %5538 = vmatpush.bf16.msra.mxu0 %v4270
        %5539 = vmatpush.bf16.msra.mxu0 %v4266
        %5540 = vmatpush.bf16.msra.mxu0 %v4262
        %5541 = vmatpush.bf16.msra.mxu0 %v4258
        %5542 = vmatpush.bf16.msra.mxu0 %v4254
        %5543 = vmatpush.bf16.msra.mxu0 %v4250
        %5544 = vmatmul.bf16.gmra.mxu0 %v2432
        %v5545 = vpop.f32.mrf.mxu0
        %v5546 = vadd.f32 %v5533, %v5545
        %v5547 = vpop.f32.mrf.mxu0
        %5548 = vdwg.mxu0
        %5549 = vmatpush.bf16.msra.mxu0 %v4310
        %5550 = vmatpush.bf16.msra.mxu0 %v4306
        %5551 = vmatpush.bf16.msra.mxu0 %v4302
        %5552 = vmatpush.bf16.msra.mxu0 %v4298
        %5553 = vmatpush.bf16.msra.mxu0 %v4294
        %5554 = vmatpush.bf16.msra.mxu0 %v4290
        %5555 = vmatpush.bf16.msra.mxu0 %v4286
        %5556 = vmatpush.bf16.msra.mxu0 %v4282
        %5557 = vmatmul.bf16.gmra.mxu0 %v2433
        %v5558 = vpop.f32.mrf.mxu0
        %v5559 = vadd.f32 %v5546, %v5558
        %v5560 = vpop.f32.mrf.mxu0
        %5561 = vdwg.mxu0
        %5562 = vmatpush.bf16.msra.mxu0 %v4342
        %5563 = vmatpush.bf16.msra.mxu0 %v4338
        %5564 = vmatpush.bf16.msra.mxu0 %v4334
        %5565 = vmatpush.bf16.msra.mxu0 %v4330
        %5566 = vmatpush.bf16.msra.mxu0 %v4326
        %5567 = vmatpush.bf16.msra.mxu0 %v4322
        %5568 = vmatpush.bf16.msra.mxu0 %v4318
        %5569 = vmatpush.bf16.msra.mxu0 %v4314
        %5570 = vmatmul.bf16.gmra.mxu0 %v2434
        %v5571 = vpop.f32.mrf.mxu0
        %v5572 = vadd.f32 %v5559, %v5571
        %v5573 = vpop.f32.mrf.mxu0
        %5574 = vdwg.mxu0
        %5575 = vmatpush.bf16.msra.mxu0 %v4374
        %5576 = vmatpush.bf16.msra.mxu0 %v4370
        %5577 = vmatpush.bf16.msra.mxu0 %v4366
        %5578 = vmatpush.bf16.msra.mxu0 %v4362
        %5579 = vmatpush.bf16.msra.mxu0 %v4358
        %5580 = vmatpush.bf16.msra.mxu0 %v4354
        %5581 = vmatpush.bf16.msra.mxu0 %v4350
        %5582 = vmatpush.bf16.msra.mxu0 %v4346
        %5583 = vmatmul.bf16.gmra.mxu0 %v2435
        %v5584 = vpop.f32.mrf.mxu0
        %v5585 = vadd.f32 %v5572, %v5584
        %v5586 = vpop.f32.mrf.mxu0
        %5587 = vdwg.mxu0
        %5588 = vmatpush.bf16.msra.mxu0 %v4406
        %5589 = vmatpush.bf16.msra.mxu0 %v4402
        %5590 = vmatpush.bf16.msra.mxu0 %v4398
        %5591 = vmatpush.bf16.msra.mxu0 %v4394
        %5592 = vmatpush.bf16.msra.mxu0 %v4390
        %5593 = vmatpush.bf16.msra.mxu0 %v4386
        %5594 = vmatpush.bf16.msra.mxu0 %v4382
        %5595 = vmatpush.bf16.msra.mxu0 %v4378
        %5596 = vmatmul.bf16.gmra.mxu0 %v2436
        %v5597 = vpop.f32.mrf.mxu0
        %v5598 = vadd.f32 %v5585, %v5597
        %v5599 = vpop.f32.mrf.mxu0
        %5600 = vdwg.mxu0
        %5601 = vmatpush.bf16.msra.mxu0 %v4438
        %5602 = vmatpush.bf16.msra.mxu0 %v4434
        %5603 = vmatpush.bf16.msra.mxu0 %v4430
        %5604 = vmatpush.bf16.msra.mxu0 %v4426
        %5605 = vmatpush.bf16.msra.mxu0 %v4422
        %5606 = vmatpush.bf16.msra.mxu0 %v4418
        %5607 = vmatpush.bf16.msra.mxu0 %v4414
        %5608 = vmatpush.bf16.msra.mxu0 %v4410
        %5609 = vmatmul.bf16.gmra.mxu0 %v2437
        %v5610 = vpop.f32.mrf.mxu0
        %v5611 = vadd.f32 %v5598, %v5610
        %v5612 = vpop.f32.mrf.mxu0
        %5613 = vdwg.mxu0
        %5614 = vmatpush.bf16.msra.mxu0 %v4470
        %5615 = vmatpush.bf16.msra.mxu0 %v4466
        %5616 = vmatpush.bf16.msra.mxu0 %v4462
        %5617 = vmatpush.bf16.msra.mxu0 %v4458
        %5618 = vmatpush.bf16.msra.mxu0 %v4454
        %5619 = vmatpush.bf16.msra.mxu0 %v4450
        %5620 = vmatpush.bf16.msra.mxu0 %v4446
        %5621 = vmatpush.bf16.msra.mxu0 %v4442
        %5622 = vmatmul.bf16.gmra.mxu0 %v2438
        %v5623 = vpop.f32.mrf.mxu0
        %v5624 = vadd.f32 %v5611, %v5623
        %v5625 = vpop.f32.mrf.mxu0
        %5626 = vdwg.mxu0
        %5627 = vmatpush.bf16.msra.mxu0 %v4502
        %5628 = vmatpush.bf16.msra.mxu0 %v4498
        %5629 = vmatpush.bf16.msra.mxu0 %v4494
        %5630 = vmatpush.bf16.msra.mxu0 %v4490
        %5631 = vmatpush.bf16.msra.mxu0 %v4486
        %5632 = vmatpush.bf16.msra.mxu0 %v4482
        %5633 = vmatpush.bf16.msra.mxu0 %v4478
        %5634 = vmatpush.bf16.msra.mxu0 %v4474
        %5635 = vmatmul.bf16.gmra.mxu0 %v2439
        %v5636 = vpop.f32.mrf.mxu0
        %v5637 = vadd.f32 %v5624, %v5636
        %v5638 = vpop.f32.mrf.mxu0
        %5639 = vdwg.mxu0
        %5640 = vmatpush.bf16.msra.mxu0 %v4023
        %5641 = vmatpush.bf16.msra.mxu0 %v4019
        %5642 = vmatpush.bf16.msra.mxu0 %v4015
        %5643 = vmatpush.bf16.msra.mxu0 %v4011
        %5644 = vmatpush.bf16.msra.mxu0 %v4007
        %5645 = vmatpush.bf16.msra.mxu0 %v4003
        %5646 = vmatpush.bf16.msra.mxu0 %v3999
        %5647 = vmatpush.bf16.msra.mxu0 %v3995
        %5648 = vmatmul.bf16.gmra.mxu0 %v2424
        %v5649 = vpop.f32.mrf.mxu0
        %v5650 = vadd.f32 0.0, %v5649
        %v5651 = vpop.f32.mrf.mxu0
        %5652 = vdwg.mxu0
        %5653 = vmatpush.bf16.msra.mxu0 %v4055
        %5654 = vmatpush.bf16.msra.mxu0 %v4051
        %5655 = vmatpush.bf16.msra.mxu0 %v4047
        %5656 = vmatpush.bf16.msra.mxu0 %v4043
        %5657 = vmatpush.bf16.msra.mxu0 %v4039
        %5658 = vmatpush.bf16.msra.mxu0 %v4035
        %5659 = vmatpush.bf16.msra.mxu0 %v4031
        %5660 = vmatpush.bf16.msra.mxu0 %v4027
        %5661 = vmatmul.bf16.gmra.mxu0 %v2425
        %v5662 = vpop.f32.mrf.mxu0
        %v5663 = vadd.f32 %v5650, %v5662
        %v5664 = vpop.f32.mrf.mxu0
        %5665 = vdwg.mxu0
        %5666 = vmatpush.bf16.msra.mxu0 %v4087
        %5667 = vmatpush.bf16.msra.mxu0 %v4083
        %5668 = vmatpush.bf16.msra.mxu0 %v4079
        %5669 = vmatpush.bf16.msra.mxu0 %v4075
        %5670 = vmatpush.bf16.msra.mxu0 %v4071
        %5671 = vmatpush.bf16.msra.mxu0 %v4067
        %5672 = vmatpush.bf16.msra.mxu0 %v4063
        %5673 = vmatpush.bf16.msra.mxu0 %v4059
        %5674 = vmatmul.bf16.gmra.mxu0 %v2426
        %v5675 = vpop.f32.mrf.mxu0
        %v5676 = vadd.f32 %v5663, %v5675
        %v5677 = vpop.f32.mrf.mxu0
        %5678 = vdwg.mxu0
        %5679 = vmatpush.bf16.msra.mxu0 %v4119
        %5680 = vmatpush.bf16.msra.mxu0 %v4115
        %5681 = vmatpush.bf16.msra.mxu0 %v4111
        %5682 = vmatpush.bf16.msra.mxu0 %v4107
        %5683 = vmatpush.bf16.msra.mxu0 %v4103
        %5684 = vmatpush.bf16.msra.mxu0 %v4099
        %5685 = vmatpush.bf16.msra.mxu0 %v4095
        %5686 = vmatpush.bf16.msra.mxu0 %v4091
        %5687 = vmatmul.bf16.gmra.mxu0 %v2427
        %v5688 = vpop.f32.mrf.mxu0
        %v5689 = vadd.f32 %v5676, %v5688
        %v5690 = vpop.f32.mrf.mxu0
        %5691 = vdwg.mxu0
        %5692 = vmatpush.bf16.msra.mxu0 %v4151
        %5693 = vmatpush.bf16.msra.mxu0 %v4147
        %5694 = vmatpush.bf16.msra.mxu0 %v4143
        %5695 = vmatpush.bf16.msra.mxu0 %v4139
        %5696 = vmatpush.bf16.msra.mxu0 %v4135
        %5697 = vmatpush.bf16.msra.mxu0 %v4131
        %5698 = vmatpush.bf16.msra.mxu0 %v4127
        %5699 = vmatpush.bf16.msra.mxu0 %v4123
        %5700 = vmatmul.bf16.gmra.mxu0 %v2428
        %v5701 = vpop.f32.mrf.mxu0
        %v5702 = vadd.f32 %v5689, %v5701
        %v5703 = vpop.f32.mrf.mxu0
        %5704 = vdwg.mxu0
        %5705 = vmatpush.bf16.msra.mxu0 %v4183
        %5706 = vmatpush.bf16.msra.mxu0 %v4179
        %5707 = vmatpush.bf16.msra.mxu0 %v4175
        %5708 = vmatpush.bf16.msra.mxu0 %v4171
        %5709 = vmatpush.bf16.msra.mxu0 %v4167
        %5710 = vmatpush.bf16.msra.mxu0 %v4163
        %5711 = vmatpush.bf16.msra.mxu0 %v4159
        %5712 = vmatpush.bf16.msra.mxu0 %v4155
        %5713 = vmatmul.bf16.gmra.mxu0 %v2429
        %v5714 = vpop.f32.mrf.mxu0
        %v5715 = vadd.f32 %v5702, %v5714
        %v5716 = vpop.f32.mrf.mxu0
        %5717 = vdwg.mxu0
        %5718 = vmatpush.bf16.msra.mxu0 %v4215
        %5719 = vmatpush.bf16.msra.mxu0 %v4211
        %5720 = vmatpush.bf16.msra.mxu0 %v4207
        %5721 = vmatpush.bf16.msra.mxu0 %v4203
        %5722 = vmatpush.bf16.msra.mxu0 %v4199
        %5723 = vmatpush.bf16.msra.mxu0 %v4195
        %5724 = vmatpush.bf16.msra.mxu0 %v4191
        %5725 = vmatpush.bf16.msra.mxu0 %v4187
        %5726 = vmatmul.bf16.gmra.mxu0 %v2430
        %v5727 = vpop.f32.mrf.mxu0
        %v5728 = vadd.f32 %v5715, %v5727
        %v5729 = vpop.f32.mrf.mxu0
        %5730 = vdwg.mxu0
        %5731 = vmatpush.bf16.msra.mxu0 %v4247
        %5732 = vmatpush.bf16.msra.mxu0 %v4243
        %5733 = vmatpush.bf16.msra.mxu0 %v4239
        %5734 = vmatpush.bf16.msra.mxu0 %v4235
        %5735 = vmatpush.bf16.msra.mxu0 %v4231
        %5736 = vmatpush.bf16.msra.mxu0 %v4227
        %5737 = vmatpush.bf16.msra.mxu0 %v4223
        %5738 = vmatpush.bf16.msra.mxu0 %v4219
        %5739 = vmatmul.bf16.gmra.mxu0 %v2431
        %v5740 = vpop.f32.mrf.mxu0
        %v5741 = vadd.f32 %v5728, %v5740
        %v5742 = vpop.f32.mrf.mxu0
        %5743 = vdwg.mxu0
        %5744 = vmatpush.bf16.msra.mxu0 %v4279
        %5745 = vmatpush.bf16.msra.mxu0 %v4275
        %5746 = vmatpush.bf16.msra.mxu0 %v4271
        %5747 = vmatpush.bf16.msra.mxu0 %v4267
        %5748 = vmatpush.bf16.msra.mxu0 %v4263
        %5749 = vmatpush.bf16.msra.mxu0 %v4259
        %5750 = vmatpush.bf16.msra.mxu0 %v4255
        %5751 = vmatpush.bf16.msra.mxu0 %v4251
        %5752 = vmatmul.bf16.gmra.mxu0 %v2432
        %v5753 = vpop.f32.mrf.mxu0
        %v5754 = vadd.f32 %v5741, %v5753
        %v5755 = vpop.f32.mrf.mxu0
        %5756 = vdwg.mxu0
        %5757 = vmatpush.bf16.msra.mxu0 %v4311
        %5758 = vmatpush.bf16.msra.mxu0 %v4307
        %5759 = vmatpush.bf16.msra.mxu0 %v4303
        %5760 = vmatpush.bf16.msra.mxu0 %v4299
        %5761 = vmatpush.bf16.msra.mxu0 %v4295
        %5762 = vmatpush.bf16.msra.mxu0 %v4291
        %5763 = vmatpush.bf16.msra.mxu0 %v4287
        %5764 = vmatpush.bf16.msra.mxu0 %v4283
        %5765 = vmatmul.bf16.gmra.mxu0 %v2433
        %v5766 = vpop.f32.mrf.mxu0
        %v5767 = vadd.f32 %v5754, %v5766
        %v5768 = vpop.f32.mrf.mxu0
        %5769 = vdwg.mxu0
        %5770 = vmatpush.bf16.msra.mxu0 %v4343
        %5771 = vmatpush.bf16.msra.mxu0 %v4339
        %5772 = vmatpush.bf16.msra.mxu0 %v4335
        %5773 = vmatpush.bf16.msra.mxu0 %v4331
        %5774 = vmatpush.bf16.msra.mxu0 %v4327
        %5775 = vmatpush.bf16.msra.mxu0 %v4323
        %5776 = vmatpush.bf16.msra.mxu0 %v4319
        %5777 = vmatpush.bf16.msra.mxu0 %v4315
        %5778 = vmatmul.bf16.gmra.mxu0 %v2434
        %v5779 = vpop.f32.mrf.mxu0
        %v5780 = vadd.f32 %v5767, %v5779
        %v5781 = vpop.f32.mrf.mxu0
        %5782 = vdwg.mxu0
        %5783 = vmatpush.bf16.msra.mxu0 %v4375
        %5784 = vmatpush.bf16.msra.mxu0 %v4371
        %5785 = vmatpush.bf16.msra.mxu0 %v4367
        %5786 = vmatpush.bf16.msra.mxu0 %v4363
        %5787 = vmatpush.bf16.msra.mxu0 %v4359
        %5788 = vmatpush.bf16.msra.mxu0 %v4355
        %5789 = vmatpush.bf16.msra.mxu0 %v4351
        %5790 = vmatpush.bf16.msra.mxu0 %v4347
        %5791 = vmatmul.bf16.gmra.mxu0 %v2435
        %v5792 = vpop.f32.mrf.mxu0
        %v5793 = vadd.f32 %v5780, %v5792
        %v5794 = vpop.f32.mrf.mxu0
        %5795 = vdwg.mxu0
        %5796 = vmatpush.bf16.msra.mxu0 %v4407
        %5797 = vmatpush.bf16.msra.mxu0 %v4403
        %5798 = vmatpush.bf16.msra.mxu0 %v4399
        %5799 = vmatpush.bf16.msra.mxu0 %v4395
        %5800 = vmatpush.bf16.msra.mxu0 %v4391
        %5801 = vmatpush.bf16.msra.mxu0 %v4387
        %5802 = vmatpush.bf16.msra.mxu0 %v4383
        %5803 = vmatpush.bf16.msra.mxu0 %v4379
        %5804 = vmatmul.bf16.gmra.mxu0 %v2436
        %v5805 = vpop.f32.mrf.mxu0
        %v5806 = vadd.f32 %v5793, %v5805
        %v5807 = vpop.f32.mrf.mxu0
        %5808 = vdwg.mxu0
        %5809 = vmatpush.bf16.msra.mxu0 %v4439
        %5810 = vmatpush.bf16.msra.mxu0 %v4435
        %5811 = vmatpush.bf16.msra.mxu0 %v4431
        %5812 = vmatpush.bf16.msra.mxu0 %v4427
        %5813 = vmatpush.bf16.msra.mxu0 %v4423
        %5814 = vmatpush.bf16.msra.mxu0 %v4419
        %5815 = vmatpush.bf16.msra.mxu0 %v4415
        %5816 = vmatpush.bf16.msra.mxu0 %v4411
        %5817 = vmatmul.bf16.gmra.mxu0 %v2437
        %v5818 = vpop.f32.mrf.mxu0
        %v5819 = vadd.f32 %v5806, %v5818
        %v5820 = vpop.f32.mrf.mxu0
        %5821 = vdwg.mxu0
        %5822 = vmatpush.bf16.msra.mxu0 %v4471
        %5823 = vmatpush.bf16.msra.mxu0 %v4467
        %5824 = vmatpush.bf16.msra.mxu0 %v4463
        %5825 = vmatpush.bf16.msra.mxu0 %v4459
        %5826 = vmatpush.bf16.msra.mxu0 %v4455
        %5827 = vmatpush.bf16.msra.mxu0 %v4451
        %5828 = vmatpush.bf16.msra.mxu0 %v4447
        %5829 = vmatpush.bf16.msra.mxu0 %v4443
        %5830 = vmatmul.bf16.gmra.mxu0 %v2438
        %v5831 = vpop.f32.mrf.mxu0
        %v5832 = vadd.f32 %v5819, %v5831
        %v5833 = vpop.f32.mrf.mxu0
        %5834 = vdwg.mxu0
        %5835 = vmatpush.bf16.msra.mxu0 %v4503
        %5836 = vmatpush.bf16.msra.mxu0 %v4499
        %5837 = vmatpush.bf16.msra.mxu0 %v4495
        %5838 = vmatpush.bf16.msra.mxu0 %v4491
        %5839 = vmatpush.bf16.msra.mxu0 %v4487
        %5840 = vmatpush.bf16.msra.mxu0 %v4483
        %5841 = vmatpush.bf16.msra.mxu0 %v4479
        %5842 = vmatpush.bf16.msra.mxu0 %v4475
        %5843 = vmatmul.bf16.gmra.mxu0 %v2439
        %v5844 = vpop.f32.mrf.mxu0
        %v5845 = vadd.f32 %v5832, %v5844
        %v5846 = vpop.f32.mrf.mxu0
        %5847 = vdwg.mxu0
        %v5848 = vadd.f32 %v1876, %v5221
        %v5849 = vadd.f32 %v1877, %v5429
        %v5850 = vadd.f32 %v1878, %v5637
        %v5851 = vadd.f32 %v1879, %v5845
        %5852 = vst [vmem:[#allocation2] sm:$0xff] %v5848
        %5853 = vst [vmem:[#allocation2 + $0x8] sm:$0xff] %v5849
        %5854 = vst [vmem:[#allocation2 + $0x10] sm:$0xff] %v5850
        %5855 = vst [vmem:[#allocation2 + $0x18] sm:$0xff] %v5851
        // Predicated region
        $region78: #{discriminator_forward.5} parent=68 // pred_check
          %p5856 = pneg %p1868
        $region79: #{discriminator_forward.5} parent=68 // pred_check_branch
          %5858 = sbr.rel (%p5856) target = $region81
        $region80: #{discriminator_forward.5} parent=68 // pred_region
          %v5859 = vld [vmem:[#allocation2] sm:$0xff]
          %v5860 = vld [vmem:[#allocation2 + $0x8] sm:$0xff]
          %v5861 = vld [vmem:[#allocation2 + $0x10] sm:$0xff]
          %v5862 = vld [vmem:[#allocation2 + $0x18] sm:$0xff]
          %v5863 = vld [vmem:[%s1856] sm:$0xf]
          %v5865 = vperm.slane %v5863, 0
          %v5866 = vperm.slane %v5863, 1
          %v5867 = vperm.slane %v5863, 2
          %v5868 = vperm.slane %v5863, 3
          %v5873 = vadd.f32 %v5859, %v5865
          %v5874 = vadd.f32 %v5860, %v5866
          %v5875 = vadd.f32 %v5861, %v5867
          %v5876 = vadd.f32 %v5862, %v5868
          %v5877 = vrot.slane %v5873, 4
          %v5878 = vadd.f32 %v5873, %v5877
          %v5879 = vrot.slane %v5878, 2
          %v5880 = vadd.f32 %v5878, %v5879
          %v5881 = vrot.slane %v5880, 1
          %v5882 = vadd.f32 %v5880, %v5881
          %v5883 = vrot.slane %v5874, 4
          %v5884 = vadd.f32 %v5874, %v5883
          %v5885 = vrot.slane %v5884, 2
          %v5886 = vadd.f32 %v5884, %v5885
          %v5887 = vrot.slane %v5886, 1
          %v5888 = vadd.f32 %v5886, %v5887
          %v5889 = vrot.slane %v5875, 4
          %v5890 = vadd.f32 %v5875, %v5889
          %v5891 = vrot.slane %v5890, 2
          %v5892 = vadd.f32 %v5890, %v5891
          %v5893 = vrot.slane %v5892, 1
          %v5894 = vadd.f32 %v5892, %v5893
          %v5895 = vrot.slane %v5876, 4
          %v5896 = vadd.f32 %v5876, %v5895
          %v5897 = vrot.slane %v5896, 2
          %v5898 = vadd.f32 %v5896, %v5897
          %v5899 = vrot.slane %v5898, 1
          %v5900 = vadd.f32 %v5898, %v5899
          %v5901 = vrcp.pop 8.0
          %v5902 = vmul.f32 8.0, %v5901
          %v5903 = vsub.f32 1.0, %v5902
          %v5904 = vmul.f32 %v5901, %v5903
          %v5905 = vadd.f32 %v5901, %v5904
          %vm5906 = vweird.f32 %v5901
          %v5907 = vsel %vm5906, %v5901, %v5905
          %v5908 = vmul.f32 %v5882, %v5907
          %v5909 = vmul.f32 %v5888, %v5907
          %v5910 = vmul.f32 %v5894, %v5907
          %v5911 = vmul.f32 %v5900, %v5907
          %v5912 = vsub.f32 %v5873, %v5908
          %v5913 = vsub.f32 %v5874, %v5909
          %v5914 = vsub.f32 %v5875, %v5910
          %v5915 = vsub.f32 %v5876, %v5911
          %v5916 = vmul.f32 %v5912, %v5912
          %v5917 = vmul.f32 %v5913, %v5913
          %v5918 = vmul.f32 %v5914, %v5914
          %v5919 = vmul.f32 %v5915, %v5915
          %v5920 = vrot.slane %v5916, 4
          %v5921 = vadd.f32 %v5916, %v5920
          %v5922 = vrot.slane %v5921, 2
          %v5923 = vadd.f32 %v5921, %v5922
          %v5924 = vrot.slane %v5923, 1
          %v5925 = vadd.f32 %v5923, %v5924
          %v5926 = vrot.slane %v5917, 4
          %v5927 = vadd.f32 %v5917, %v5926
          %v5928 = vrot.slane %v5927, 2
          %v5929 = vadd.f32 %v5927, %v5928
          %v5930 = vrot.slane %v5929, 1
          %v5931 = vadd.f32 %v5929, %v5930
          %v5932 = vrot.slane %v5918, 4
          %v5933 = vadd.f32 %v5918, %v5932
          %v5934 = vrot.slane %v5933, 2
          %v5935 = vadd.f32 %v5933, %v5934
          %v5936 = vrot.slane %v5935, 1
          %v5937 = vadd.f32 %v5935, %v5936
          %v5938 = vrot.slane %v5919, 4
          %v5939 = vadd.f32 %v5919, %v5938
          %v5940 = vrot.slane %v5939, 2
          %v5941 = vadd.f32 %v5939, %v5940
          %v5942 = vrot.slane %v5941, 1
          %v5943 = vadd.f32 %v5941, %v5942
          %v5944 = vmul.f32 %v5925, %v5907
          %v5945 = vmul.f32 %v5931, %v5907
          %v5946 = vmul.f32 %v5937, %v5907
          %v5947 = vmul.f32 %v5943, %v5907
          %v5948 = vadd.f32 %v5944, 1e-05
          %v5949 = vadd.f32 %v5945, 1e-05
          %v5950 = vadd.f32 %v5946, 1e-05
          %v5951 = vadd.f32 %v5947, 1e-05
          %v5952 = vrsqrt.pop %v5948
          %v5953 = vmul.f32 %v5952, %v5948
          %v5954 = vmul.f32 %v5953, %v5952
          %v5955 = vmul.f32 0.5, %v5954
          %v5956 = vsub.f32 1.5, %v5955
          %v5957 = vmul.f32 %v5952, %v5956
          %vm5958 = vweird.f32 %v5948
          %vm5959 = vweird.f32 %v5952
          %vm5960 = vmor %vm5958, %vm5959
          %v5961 = vsel %vm5960, %v5952, %v5957
          %v5962 = vrsqrt.pop %v5949
          %v5963 = vmul.f32 %v5962, %v5949
          %v5964 = vmul.f32 %v5963, %v5962
          %v5965 = vmul.f32 0.5, %v5964
          %v5966 = vsub.f32 1.5, %v5965
          %v5967 = vmul.f32 %v5962, %v5966
          %vm5968 = vweird.f32 %v5949
          %vm5969 = vweird.f32 %v5962
          %vm5970 = vmor %vm5968, %vm5969
          %v5971 = vsel %vm5970, %v5962, %v5967
          %v5972 = vrsqrt.pop %v5950
          %v5973 = vmul.f32 %v5972, %v5950
          %v5974 = vmul.f32 %v5973, %v5972
          %v5975 = vmul.f32 0.5, %v5974
          %v5976 = vsub.f32 1.5, %v5975
          %v5977 = vmul.f32 %v5972, %v5976
          %vm5978 = vweird.f32 %v5950
          %vm5979 = vweird.f32 %v5972
          %vm5980 = vmor %vm5978, %vm5979
          %v5981 = vsel %vm5980, %v5972, %v5977
          %v5982 = vrsqrt.pop %v5951
          %v5983 = vmul.f32 %v5982, %v5951
          %v5984 = vmul.f32 %v5983, %v5982
          %v5985 = vmul.f32 0.5, %v5984
          %v5986 = vsub.f32 1.5, %v5985
          %v5987 = vmul.f32 %v5982, %v5986
          %vm5988 = vweird.f32 %v5951
          %vm5989 = vweird.f32 %v5982
          %vm5990 = vmor %vm5988, %vm5989
          %v5991 = vsel %vm5990, %v5982, %v5987
          %v5992 = vmul.f32 %v5912, %v5961
          %v5993 = vmul.f32 %v5913, %v5971
          %v5994 = vmul.f32 %v5914, %v5981
          %v5995 = vmul.f32 %v5915, %v5991
          %vm5996 = vcmp.ge.f32.partialorder %v5992, 0.0
          %vm5997 = vcmp.ge.f32.partialorder %v5993, 0.0
          %vm5998 = vcmp.ge.f32.partialorder %v5994, 0.0
          %vm5999 = vcmp.ge.f32.partialorder %v5995, 0.0
          %v6000 = vmul.f32 %v5992, 0.2
          %v6001 = vmul.f32 %v5993, 0.2
          %v6002 = vmul.f32 %v5994, 0.2
          %v6003 = vmul.f32 %v5995, 0.2
          %v6004 = vsel %vm5996, %v5992, %v6000
          %v6005 = vsel %vm5997, %v5993, %v6001
          %v6006 = vsel %vm5998, %v5994, %v6002
          %v6007 = vsel %vm5999, %v5995, %v6003
          %v6008 = vpack.c.bf16 %v6004, %v6004
          %v6009 = vpack.c.bf16 %v6005, %v6005
          %v6010 = vpack.c.bf16 %v6006, %v6006
          %v6011 = vpack.c.bf16 %v6007, %v6007
          %v6012 = vld [vmem:[%s1862] sm:$0xf]
          %v6013 = vld [vmem:[%s1862 + $0x4] sm:$0xf]
          %v6014 = vld [vmem:[%s1862 + $0x8] sm:$0xf]
          %v6015 = vld [vmem:[%s1862 + $0xc] sm:$0xf]
          %v6016 = vld [vmem:[%s1862 + $0x10] sm:$0xf]
          %v6017 = vld [vmem:[%s1862 + $0x14] sm:$0xf]
          %v6018 = vld [vmem:[%s1862 + $0x18] sm:$0xf]
          %v6019 = vld [vmem:[%s1862 + $0x1c] sm:$0xf]
          %v6020 = vld [vmem:[%s1862 + $0x20] sm:$0xf]
          %v6021 = vld [vmem:[%s1862 + $0x24] sm:$0xf]
          %v6022 = vld [vmem:[%s1862 + $0x28] sm:$0xf]
          %v6023 = vld [vmem:[%s1862 + $0x2c] sm:$0xf]
          %v6024 = vld [vmem:[%s1862 + $0x30] sm:$0xf]
          %v6025 = vld [vmem:[%s1862 + $0x34] sm:$0xf]
          %v6026 = vld [vmem:[%s1862 + $0x38] sm:$0xf]
          %v6027 = vld [vmem:[%s1862 + $0x3c] sm:$0xf]
          %v6028 = vld [vmem:[%s1862 + $0x40] sm:$0xf]
          %v6029 = vld [vmem:[%s1862 + $0x44] sm:$0xf]
          %v6030 = vld [vmem:[%s1862 + $0x48] sm:$0xf]
          %v6031 = vld [vmem:[%s1862 + $0x4c] sm:$0xf]
          %v6032 = vld [vmem:[%s1862 + $0x50] sm:$0xf]
          %v6033 = vld [vmem:[%s1862 + $0x54] sm:$0xf]
          %v6034 = vld [vmem:[%s1862 + $0x58] sm:$0xf]
          %v6035 = vld [vmem:[%s1862 + $0x5c] sm:$0xf]
          %v6036 = vld [vmem:[%s1862 + $0x60] sm:$0xf]
          %v6037 = vld [vmem:[%s1862 + $0x64] sm:$0xf]
          %v6038 = vld [vmem:[%s1862 + $0x68] sm:$0xf]
          %v6039 = vld [vmem:[%s1862 + $0x6c] sm:$0xf]
          %v6040 = vld [vmem:[%s1862 + $0x70] sm:$0xf]
          %v6041 = vld [vmem:[%s1862 + $0x74] sm:$0xf]
          %v6042 = vld [vmem:[%s1862 + $0x78] sm:$0xf]
          %v6043 = vld [vmem:[%s1862 + $0x7c] sm:$0xf]
          %v6044 = vld [vmem:[%s1862 + $0x80] sm:$0xf]
          %v6045 = vld [vmem:[%s1862 + $0x84] sm:$0xf]
          %v6046 = vld [vmem:[%s1862 + $0x88] sm:$0xf]
          %v6047 = vld [vmem:[%s1862 + $0x8c] sm:$0xf]
          %v6048 = vld [vmem:[%s1862 + $0x90] sm:$0xf]
          %v6049 = vld [vmem:[%s1862 + $0x94] sm:$0xf]
          %v6050 = vld [vmem:[%s1862 + $0x98] sm:$0xf]
          %v6051 = vld [vmem:[%s1862 + $0x9c] sm:$0xf]
          %v6052 = vld [vmem:[%s1862 + $0xa0] sm:$0xf]
          %v6053 = vld [vmem:[%s1862 + $0xa4] sm:$0xf]
          %v6054 = vld [vmem:[%s1862 + $0xa8] sm:$0xf]
          %v6055 = vld [vmem:[%s1862 + $0xac] sm:$0xf]
          %v6056 = vld [vmem:[%s1862 + $0xb0] sm:$0xf]
          %v6057 = vld [vmem:[%s1862 + $0xb4] sm:$0xf]
          %v6058 = vld [vmem:[%s1862 + $0xb8] sm:$0xf]
          %v6059 = vld [vmem:[%s1862 + $0xbc] sm:$0xf]
          %v6060 = vld [vmem:[%s1862 + $0xc0] sm:$0xf]
          %v6061 = vld [vmem:[%s1862 + $0xc4] sm:$0xf]
          %v6062 = vld [vmem:[%s1862 + $0xc8] sm:$0xf]
          %v6063 = vld [vmem:[%s1862 + $0xcc] sm:$0xf]
          %v6064 = vld [vmem:[%s1862 + $0xd0] sm:$0xf]
          %v6065 = vld [vmem:[%s1862 + $0xd4] sm:$0xf]
          %v6066 = vld [vmem:[%s1862 + $0xd8] sm:$0xf]
          %v6067 = vld [vmem:[%s1862 + $0xdc] sm:$0xf]
          %v6068 = vld [vmem:[%s1862 + $0xe0] sm:$0xf]
          %v6069 = vld [vmem:[%s1862 + $0xe4] sm:$0xf]
          %v6070 = vld [vmem:[%s1862 + $0xe8] sm:$0xf]
          %v6071 = vld [vmem:[%s1862 + $0xec] sm:$0xf]
          %v6072 = vld [vmem:[%s1862 + $0xf0] sm:$0xf]
          %v6073 = vld [vmem:[%s1862 + $0xf4] sm:$0xf]
          %v6074 = vld [vmem:[%s1862 + $0xf8] sm:$0xf]
          %v6075 = vld [vmem:[%s1862 + $0xfc] sm:$0xf]
          %v6140 = vunpack.c.l.b16 %v6012
          %v6141 = vunpack.c.l.b16 %v6013
          %v6142 = vunpack.c.l.b16 %v6014
          %v6143 = vunpack.c.l.b16 %v6015
          %v6144 = vunpack.c.l.b16 %v6016
          %v6145 = vunpack.c.l.b16 %v6017
          %v6146 = vunpack.c.l.b16 %v6018
          %v6147 = vunpack.c.l.b16 %v6019
          %v6148 = vunpack.c.l.b16 %v6020
          %v6149 = vunpack.c.l.b16 %v6021
          %v6150 = vunpack.c.l.b16 %v6022
          %v6151 = vunpack.c.l.b16 %v6023
          %v6152 = vunpack.c.l.b16 %v6024
          %v6153 = vunpack.c.l.b16 %v6025
          %v6154 = vunpack.c.l.b16 %v6026
          %v6155 = vunpack.c.l.b16 %v6027
          %v6156 = vunpack.c.l.b16 %v6028
          %v6157 = vunpack.c.l.b16 %v6029
          %v6158 = vunpack.c.l.b16 %v6030
          %v6159 = vunpack.c.l.b16 %v6031
          %v6160 = vunpack.c.l.b16 %v6032
          %v6161 = vunpack.c.l.b16 %v6033
          %v6162 = vunpack.c.l.b16 %v6034
          %v6163 = vunpack.c.l.b16 %v6035
          %v6164 = vunpack.c.l.b16 %v6036
          %v6165 = vunpack.c.l.b16 %v6037
          %v6166 = vunpack.c.l.b16 %v6038
          %v6167 = vunpack.c.l.b16 %v6039
          %v6168 = vunpack.c.l.b16 %v6040
          %v6169 = vunpack.c.l.b16 %v6041
          %v6170 = vunpack.c.l.b16 %v6042
          %v6171 = vunpack.c.l.b16 %v6043
          %v6172 = vunpack.c.l.b16 %v6044
          %v6173 = vunpack.c.l.b16 %v6045
          %v6174 = vunpack.c.l.b16 %v6046
          %v6175 = vunpack.c.l.b16 %v6047
          %v6176 = vunpack.c.l.b16 %v6048
          %v6177 = vunpack.c.l.b16 %v6049
          %v6178 = vunpack.c.l.b16 %v6050
          %v6179 = vunpack.c.l.b16 %v6051
          %v6180 = vunpack.c.l.b16 %v6052
          %v6181 = vunpack.c.l.b16 %v6053
          %v6182 = vunpack.c.l.b16 %v6054
          %v6183 = vunpack.c.l.b16 %v6055
          %v6184 = vunpack.c.l.b16 %v6056
          %v6185 = vunpack.c.l.b16 %v6057
          %v6186 = vunpack.c.l.b16 %v6058
          %v6187 = vunpack.c.l.b16 %v6059
          %v6188 = vunpack.c.l.b16 %v6060
          %v6189 = vunpack.c.l.b16 %v6061
          %v6190 = vunpack.c.l.b16 %v6062
          %v6191 = vunpack.c.l.b16 %v6063
          %v6192 = vunpack.c.l.b16 %v6064
          %v6193 = vunpack.c.l.b16 %v6065
          %v6194 = vunpack.c.l.b16 %v6066
          %v6195 = vunpack.c.l.b16 %v6067
          %v6196 = vunpack.c.l.b16 %v6068
          %v6197 = vunpack.c.l.b16 %v6069
          %v6198 = vunpack.c.l.b16 %v6070
          %v6199 = vunpack.c.l.b16 %v6071
          %v6200 = vunpack.c.l.b16 %v6072
          %v6201 = vunpack.c.l.b16 %v6073
          %v6202 = vunpack.c.l.b16 %v6074
          %v6203 = vunpack.c.l.b16 %v6075
          %v6204 = vpack.c.b16 %v6141, %v6140
          %v6205 = vpack.c.b16 %v6143, %v6142
          %v6206 = vpack.c.b16 %v6145, %v6144
          %v6207 = vpack.c.b16 %v6147, %v6146
          %v6208 = vpack.c.b16 %v6149, %v6148
          %v6209 = vpack.c.b16 %v6151, %v6150
          %v6210 = vpack.c.b16 %v6153, %v6152
          %v6211 = vpack.c.b16 %v6155, %v6154
          %v6212 = vpack.c.b16 %v6157, %v6156
          %v6213 = vpack.c.b16 %v6159, %v6158
          %v6214 = vpack.c.b16 %v6161, %v6160
          %v6215 = vpack.c.b16 %v6163, %v6162
          %v6216 = vpack.c.b16 %v6165, %v6164
          %v6217 = vpack.c.b16 %v6167, %v6166
          %v6218 = vpack.c.b16 %v6169, %v6168
          %v6219 = vpack.c.b16 %v6171, %v6170
          %v6220 = vpack.c.b16 %v6173, %v6172
          %v6221 = vpack.c.b16 %v6175, %v6174
          %v6222 = vpack.c.b16 %v6177, %v6176
          %v6223 = vpack.c.b16 %v6179, %v6178
          %v6224 = vpack.c.b16 %v6181, %v6180
          %v6225 = vpack.c.b16 %v6183, %v6182
          %v6226 = vpack.c.b16 %v6185, %v6184
          %v6227 = vpack.c.b16 %v6187, %v6186
          %v6228 = vpack.c.b16 %v6189, %v6188
          %v6229 = vpack.c.b16 %v6191, %v6190
          %v6230 = vpack.c.b16 %v6193, %v6192
          %v6231 = vpack.c.b16 %v6195, %v6194
          %v6232 = vpack.c.b16 %v6197, %v6196
          %v6233 = vpack.c.b16 %v6199, %v6198
          %v6234 = vpack.c.b16 %v6201, %v6200
          %v6235 = vpack.c.b16 %v6203, %v6202
          %6268 = vmatpush.bf16.msra.mxu0 %v6211
          %6269 = vmatpush.bf16.msra.mxu0 %v6210
          %6270 = vmatpush.bf16.msra.mxu0 %v6209
          %6271 = vmatpush.bf16.msra.mxu0 %v6208
          %6272 = vmatpush.bf16.msra.mxu0 %v6207
          %6273 = vmatpush.bf16.msra.mxu0 %v6206
          %6274 = vmatpush.bf16.msra.mxu0 %v6205
          %6275 = vmatpush.bf16.msra.mxu0 %v6204
          %6276 = vmatmul.bf16.gmra.mxu0 %v6008
          %v6277 = vpop.f32.mrf.mxu0
          %v6278 = vadd.f32 0.0, %v6277
          %v6279 = vpop.f32.mrf.mxu0
          %6280 = vdwg.mxu0
          %6281 = vmatpush.bf16.msra.mxu0 %v6219
          %6282 = vmatpush.bf16.msra.mxu0 %v6218
          %6283 = vmatpush.bf16.msra.mxu0 %v6217
          %6284 = vmatpush.bf16.msra.mxu0 %v6216
          %6285 = vmatpush.bf16.msra.mxu0 %v6215
          %6286 = vmatpush.bf16.msra.mxu0 %v6214
          %6287 = vmatpush.bf16.msra.mxu0 %v6213
          %6288 = vmatpush.bf16.msra.mxu0 %v6212
          %6289 = vmatmul.bf16.gmra.mxu0 %v6009
          %v6290 = vpop.f32.mrf.mxu0
          %v6291 = vadd.f32 %v6278, %v6290
          %v6292 = vpop.f32.mrf.mxu0
          %6293 = vdwg.mxu0
          %6294 = vmatpush.bf16.msra.mxu0 %v6227
          %6295 = vmatpush.bf16.msra.mxu0 %v6226
          %6296 = vmatpush.bf16.msra.mxu0 %v6225
          %6297 = vmatpush.bf16.msra.mxu0 %v6224
          %6298 = vmatpush.bf16.msra.mxu0 %v6223
          %6299 = vmatpush.bf16.msra.mxu0 %v6222
          %6300 = vmatpush.bf16.msra.mxu0 %v6221
          %6301 = vmatpush.bf16.msra.mxu0 %v6220
          %6302 = vmatmul.bf16.gmra.mxu0 %v6010
          %v6303 = vpop.f32.mrf.mxu0
          %v6304 = vadd.f32 %v6291, %v6303
          %v6305 = vpop.f32.mrf.mxu0
          %6306 = vdwg.mxu0
          %6307 = vmatpush.bf16.msra.mxu0 %v6235
          %6308 = vmatpush.bf16.msra.mxu0 %v6234
          %6309 = vmatpush.bf16.msra.mxu0 %v6233
          %6310 = vmatpush.bf16.msra.mxu0 %v6232
          %6311 = vmatpush.bf16.msra.mxu0 %v6231
          %6312 = vmatpush.bf16.msra.mxu0 %v6230
          %6313 = vmatpush.bf16.msra.mxu0 %v6229
          %6314 = vmatpush.bf16.msra.mxu0 %v6228
          %6315 = vmatmul.bf16.gmra.mxu0 %v6011
          %v6316 = vpop.f32.mrf.mxu0
          %v6317 = vadd.f32 %v6304, %v6316
          %v6318 = vpop.f32.mrf.mxu0
          %6319 = vdwg.mxu0
          %vm6320 = vcmask 7168
          %6321 = vst.msk [vmem:[%s1867] sm:$0xff] %vm6320, %v6317
        $region81: #{discriminator_forward.5} parent=68 // pred_fallthru
          _
        %p6322 = scmp.lt.s32.totalorder %s19, 1
        %s6323 = scalar_select %p6322, %s19, 1
        %s6324 = smul.addr %s6323, 8
        %s6325 = scalar_lea.vmem %s4, %s6324
        // Predicated region
        $region82: #{discriminator_forward.5} parent=68 // pred_check
          %p6326 = pneg %p151
        $region83: #{discriminator_forward.5} parent=68 // pred_check_branch
          %6328 = sbr.rel (%p6326) target = $region85
        $region84: #{discriminator_forward.5} parent=68 // pred_region
          _
        $region85: #{discriminator_forward.5} parent=68 // pred_fallthru
          _
      $region69: #{discriminator_forward.5} parent=5 // pred_fallthru
        _
      %p6329 = scmp.le.s32.totalorder 2, %s10
      // Predicated region
      $region86: #{discriminator_forward.5} parent=5 // pred_check
        %p6330 = pneg %p6329
      $region87: #{discriminator_forward.5} parent=5 // pred_check_branch
        %6332 = sbr.rel (%p6330) target = $region89
      $region88: #{discriminator_forward.5} parent=5 // pred_region
        %s6333 = ssub.s32 %s10, 2
        // Predicated region
        $region90: #{discriminator_forward.5} parent=88 // pred_check
          %p6334 = pneg %p157
        $region91: #{discriminator_forward.5} parent=88 // pred_check_branch
          %6336 = sbr.rel (%p6334) target = $region93
        $region92: #{discriminator_forward.5} parent=88 // pred_region
          %p6337 = scmp.lt.s32.totalorder %s21, 1
          %s6338 = scalar_select %p6337, %s21, 1
          %s6339 = smul.addr %s6338, 8
          %s6340 = scalar_lea.vmem %s4, %s6339
        $region93: #{discriminator_forward.5} parent=88 // pred_fallthru
          _
      $region89: #{discriminator_forward.5} parent=5 // pred_fallthru
        _
    $region6: #{discriminator_forward.5} parent=1 // loop_footer
      %s14 = sadd.s32 1, %s10
    $region7: #{discriminator_forward.5} parent=1 // loop_footer_branch
      %9 = sbr.rel target = $region3
    $region8: #{discriminator_forward.5} parent=1 // loop_exit
      _

</llo_original>
